<compile_context>
chip_gen: v5e
topology: v5e:2x2
jax: 0.10.0
libtpu: 0.0.40
codegen_flags: <defaults>
</compile_context>

<pallas_src>
import functools
import math

import jax
import jax.numpy as jnp
from jax.experimental import pallas as pl
from jax.experimental.pallas import tpu as pltpu


CFG = dict(vocab=1000, hidden=32, n_heads=4, num_layers=2, intermediate=64,
           max_pos=16, num_labels=3, max_length=8)   # max_length == seq_len

_MXU_DTYPE = jnp.bfloat16   # MXU inputs; accumulation stays f32


# --------------------------- fused BERT-pass kernel ---------------------------

def _mm(a, b):
    """bf16 MXU matmul with f32 accumulation."""
    return jnp.dot(a.astype(_MXU_DTYPE), b.astype(_MXU_DTYPE),
                   preferred_element_type=jnp.float32)


def _bert_pass_kernel(x_ref, mask_ref,
                      emb_g_ref, emb_b_ref,
                      qkv_w_ref, qkv_b_ref,
                      ao_w_ref, ao_b_ref,
                      ln1_g_ref, ln1_b_ref,
                      wi_ref, bi_ref,
                      wo_ref, bo_ref,
                      ln2_g_ref, ln2_b_ref,
                      pool_w_ref, pool_b_ref,
                      cls_w_ref, cls_b_ref,
                      fc_w_ref, fc_b_ref,
                      hidden_ref, logits_ref, fc_ref,
                      *, B, S, H, n_heads, n_layers, eps):
    D = H // n_heads
    scale = 1.0 / math.sqrt(D)

    def layer_norm(x, g, b):                     # f32 epilogue (v5e-safe)
        mu = jnp.mean(x, axis=-1, keepdims=True)
        var = jnp.mean(jnp.square(x - mu), axis=-1, keepdims=True)
        return (x - mu) * jax.lax.rsqrt(var + eps) * g + b

    def gelu(y):
        # TODO(synk): HF bert-base uses exact erf GELU; tanh approximation used here
        # (erf has no guaranteed Mosaic lowering) -> tiny numeric divergence.
        c = math.sqrt(2.0 / math.pi)
        return 0.5 * y * (1.0 + jnp.tanh(c * (y + 0.044715 * y * y * y)))

    x = layer_norm(x_ref[...], emb_g_ref[...], emb_b_ref[...])      # (B*S, H) f32
    bias = (1.0 - mask_ref[...]) * -10000.0                          # (B, S) additive mask

    for l in range(n_layers):
        # ----- self-attention: fused QKV matmul, in-kernel per-(batch, head) attention
        qkv = _mm(x, qkv_w_ref[l]) + qkv_b_ref[l]                    # (B*S, 3H)
        w_o = ao_w_ref[l]                                            # (H, H)

        attn_rows = []
        for b in range(B):
            r0, r1 = b * S, (b + 1) * S
            row_bias = bias[b:b + 1, :]                              # (1, S) -> bcast over rows
            acc = None
            for h in range(n_heads):
                cq, ck, cv = h * D, H + h * D, 2 * H + h * D
                qs = qkv[r0:r1, cq:cq + D]                           # (S, D)
                ks = qkv[r0:r1, ck:ck + D]
                vs = qkv[r0:r1, cv:cv + D]
                s = _mm(qs, ks.T) * scale + row_bias                 # (S, S)
                s = s - jnp.max(s, axis=-1, keepdims=True)
                p = jnp.exp(s)
                p = p * pl.reciprocal(jnp.sum(p, axis=-1, keepdims=True), approx=True)
                ctx_h = _mm(p, vs)                                   # (S, D)
                # fold head merge into the output projection: sum_h ctx_h @ Wo[hD:(h+1)D]
                part = _mm(ctx_h, w_o[cq:cq + D, :])                 # (S, H)
                acc = part if acc is None else acc + part
            attn_rows.append(acc)
        attn_out = jnp.concatenate(attn_rows, axis=0) + ao_b_ref[l]  # (B*S, H)

        x = layer_norm(x + attn_out, ln1_g_ref[l], ln1_b_ref[l])

        # ----- feed-forward
        hmid = gelu(_mm(x, wi_ref[l]) + bi_ref[l])                   # (B*S, I)
        ffn = _mm(hmid, wo_ref[l]) + bo_ref[l]                       # (B*S, H)
        x = layer_norm(x + ffn, ln2_g_ref[l], ln2_b_ref[l])

    hidden_ref[...] = x                                              # last_hidden_state (flattened)

    # [CLS] rows (token 0 of every batch element)
    cls = jnp.concatenate([x[b * S:b * S + 1, :] for b in range(B)], axis=0)   # (B, H)

    pooled = jnp.tanh(_mm(cls, pool_w_ref[...]) + pool_b_ref[...])
    logits_ref[...] = _mm(pooled, cls_w_ref[...]) + cls_b_ref[...]
    fc_ref[...] = jax.nn.sigmoid(_mm(cls, fc_w_ref[...]) + fc_b_ref[...])


def _full_spec(shape):
    nd = len(shape)
    return pl.BlockSpec(tuple(shape), lambda i, _nd=nd: (0,) * _nd)


def bert_pass(x_flat, mask_f, params, cfg):
    """One full BERTWithFC forward (post-embedding) in a single pallas_call."""
    B, S = mask_f.shape
    H = cfg["hidden"]
    NL, ML = cfg["num_labels"], cfg["max_length"]

    inputs = (
        x_flat, mask_f,
        params["emb_ln_g"], params["emb_ln_b"],
        params["qkv_w"], params["qkv_b"],
        params["attn_ow"], params["attn_ob"],
        params["ln1_g"], params["ln1_b"],
        params["wi"], params["bi"],
        params["wo2"], params["bo2"],
        params["ln2_g"], params["ln2_b"],
        params["pool_w"], params["pool_b"],
        params["cls_w"], params["cls_b"],
        params["fc_w"], params["fc_b"],
    )

    kernel = functools.partial(
        _bert_pass_kernel, B=B, S=S, H=H, n_heads=cfg["n_heads"],
        n_layers=cfg["num_layers"], eps=1e-12)

    hidden, logits, fc_out = pl.pallas_call(
        kernel,
        grid=(1,),
        in_specs=[_full_spec(a.shape) for a in inputs],
        out_specs=(
            _full_spec((B * S, H)),
            _full_spec((B, NL)),
            _full_spec((B, ML)),
        ),
        out_shape=(
            jax.ShapeDtypeStruct((B * S, H), jnp.float32),
            jax.ShapeDtypeStruct((B, NL), jnp.float32),
            jax.ShapeDtypeStruct((B, ML), jnp.float32),
        ),
        compiler_params=pltpu.CompilerParams(dimension_semantics=("arbitrary",)),
    )(*inputs)
    return hidden, logits, fc_out


# --------------------------- synthetic BERT parameters ------------------------

def init_params(key, cfg):
    H, I, L = cfg["hidden"], cfg["intermediate"], cfg["num_layers"]

    def dense(k, shape, std=0.02):
        return std * jax.random.normal(k, shape, dtype=jnp.float32)

    keys = iter(jax.random.split(key, 64))
    return {
        "word_emb": dense(next(keys), (cfg["vocab"], H)),
        "pos_emb": dense(next(keys), (cfg["max_pos"], H)),
        "type_emb": dense(next(keys), (2, H)),
        "emb_ln_g": jnp.ones((1, H), jnp.float32),
        "emb_ln_b": jnp.zeros((1, H), jnp.float32),
        # per-layer weights stacked along a leading layer axis; q|k|v concatenated
        "qkv_w": dense(next(keys), (L, H, 3 * H)),
        "qkv_b": jnp.zeros((L, 1, 3 * H), jnp.float32),
        "attn_ow": dense(next(keys), (L, H, H)),
        "attn_ob": jnp.zeros((L, 1, H), jnp.float32),
        "ln1_g": jnp.ones((L, 1, H), jnp.float32),
        "ln1_b": jnp.zeros((L, 1, H), jnp.float32),
        "wi": dense(next(keys), (L, H, I)),
        "bi": jnp.zeros((L, 1, I), jnp.float32),
        "wo2": dense(next(keys), (L, I, H)),
        "bo2": jnp.zeros((L, 1, H), jnp.float32),
        "ln2_g": jnp.ones((L, 1, H), jnp.float32),
        "ln2_b": jnp.zeros((L, 1, H), jnp.float32),
        "pool_w": dense(next(keys), (H, H)),
        "pool_b": jnp.zeros((1, H), jnp.float32),
        "cls_w": dense(next(keys), (H, cfg["num_labels"])),
        "cls_b": jnp.zeros((1, cfg["num_labels"]), jnp.float32),
        "fc_w": dense(next(keys), (H, cfg["max_length"])),   # nn.Linear(hidden, max_length)
        "fc_b": jnp.zeros((1, cfg["max_length"]), jnp.float32),
    }


# ------------------------------ model forward ---------------------------------

def bert_with_fc_forward(params, input_ids, attention_mask, labels=None, cfg=CFG):
    B, S = input_ids.shape
    H = cfg["hidden"]

    # Embedding gather is glue; everything downstream runs in the fused Pallas kernel.
    x = (jnp.take(params["word_emb"], input_ids, axis=0)
         + params["pos_emb"][:S][None, :, :]
         + params["type_emb"][0][None, None, :])
    x_flat = x.reshape(B * S, H).astype(jnp.float32)
    mask_f = attention_mask.astype(jnp.float32)

    hidden, logits, fc_output = bert_pass(x_flat, mask_f, params, cfg)
    last_hidden_state = hidden.reshape(B, S, H)

    loss = None
    if labels is not None:
        logp = jax.nn.log_softmax(logits, axis=-1)
        loss = -jnp.mean(jnp.take_along_axis(logp, labels[:, None], axis=1))

    outputs = {"loss": loss, "logits": logits, "last_hidden_state": last_hidden_state}
    return outputs, fc_output


def double_bert_forward(params, input_ids, attention_mask, labels=None,
                        complementry="fixed", threshold=0.0, cfg=CFG):
    outputs, sufficient = bert_with_fc_forward(params, input_ids, attention_mask,
                                               labels=labels, cfg=cfg)
    # mask = sufficient >= threshold; input_ids*mask + fill*~mask  ==  where(mask, ids, fill)
    keep = sufficient >= threshold
    if complementry == "fixed":
        fill = jnp.full_like(input_ids, 103)
    elif complementry == "noise":
        # TODO(synk): torch.randint noise branch needs an RNG key threaded in; using
        # the deterministic 'fixed' fill (103) instead of random token ids.
        fill = jnp.full_like(input_ids, 103)
    else:
        # Original PyTorch code (complementry=None) would hit NameError on new_x;
        # the runnable path defaults to the 'fixed' behaviour.
        fill = jnp.full_like(input_ids, 103)
    new_x = jnp.where(keep, input_ids, fill)

    labels2 = jnp.argmax(outputs["logits"], axis=1).astype(jnp.int32)
    outputs2, _ = bert_with_fc_forward(params, new_x, attention_mask,
                                       labels=labels2, cfg=cfg)
    return outputs, sufficient, outputs2


# ----------------------------------- main --------------------------------------

if __name__ == "__main__":
    B, S = 2, CFG["max_length"]
    root = jax.random.PRNGKey(0)
    k_params, k_ids = jax.random.split(root)

    params = init_params(k_params, CFG)
    input_ids = jax.random.randint(k_ids, (B, S), 0, CFG["vocab"], dtype=jnp.int32)
    attention_mask = jnp.ones((B, S), dtype=jnp.int32)

    @jax.jit
    def run(params, input_ids, attention_mask):
        return double_bert_forward(params, input_ids, attention_mask,
                                   labels=None, complementry="fixed", threshold=0.0)

    outputs, sufficient, outputs2 = run(params, input_ids, attention_mask)
    jax.block_until_ready((outputs, sufficient, outputs2))

    assert outputs["logits"].shape == (B, CFG["num_labels"])
    assert outputs["last_hidden_state"].shape == (B, S, CFG["hidden"])
    assert sufficient.shape == (B, CFG["max_length"])
    assert outputs2["logits"].shape == (B, CFG["num_labels"])
    assert outputs2["loss"].shape == ()
    print("KERNEL_OK")
</pallas_src>

<mosaic_0001>
module attributes {stable_mosaic.version = 11 : i64} {
  func.func @_bert_pass_kernel(%arg0: i32, %arg1: memref<16x32xf32, #tpu.memory_space<vmem>>, %arg2: memref<2x8xf32, #tpu.memory_space<vmem>>, %arg3: memref<1x32xf32, #tpu.memory_space<vmem>>, %arg4: memref<1x32xf32, #tpu.memory_space<vmem>>, %arg5: memref<2x32x96xf32, #tpu.memory_space<vmem>>, %arg6: memref<2x1x96xf32, #tpu.memory_space<vmem>>, %arg7: memref<2x32x32xf32, #tpu.memory_space<vmem>>, %arg8: memref<2x1x32xf32, #tpu.memory_space<vmem>>, %arg9: memref<2x1x32xf32, #tpu.memory_space<vmem>>, %arg10: memref<2x1x32xf32, #tpu.memory_space<vmem>>, %arg11: memref<2x32x64xf32, #tpu.memory_space<vmem>>, %arg12: memref<2x1x64xf32, #tpu.memory_space<vmem>>, %arg13: memref<2x64x32xf32, #tpu.memory_space<vmem>>, %arg14: memref<2x1x32xf32, #tpu.memory_space<vmem>>, %arg15: memref<2x1x32xf32, #tpu.memory_space<vmem>>, %arg16: memref<2x1x32xf32, #tpu.memory_space<vmem>>, %arg17: memref<32x32xf32, #tpu.memory_space<vmem>>, %arg18: memref<1x32xf32, #tpu.memory_space<vmem>>, %arg19: memref<32x3xf32, #tpu.memory_space<vmem>>, %arg20: memref<1x3xf32, #tpu.memory_space<vmem>>, %arg21: memref<32x8xf32, #tpu.memory_space<vmem>>, %arg22: memref<1x8xf32, #tpu.memory_space<vmem>>, %arg23: memref<16x32xf32, #tpu.memory_space<vmem>>, %arg24: memref<2x3xf32, #tpu.memory_space<vmem>>, %arg25: memref<2x8xf32, #tpu.memory_space<vmem>>) attributes {dimension_semantics = [#tpu.dimension_semantics<arbitrary>], iteration_bounds = array<i64: 1>, scalar_prefetch = 0 : i64, scratch_operands = 0 : i64, tpu.core_type = #tpu.core_type<tc>, window_params = [{pipeline_mode = #tpu.pipeline_mode<synchronous>, transform_indices = @transform_0, window_bounds = array<i64: 16, 32>}, {pipeline_mode = #tpu.pipeline_mode<synchronous>, transform_indices = @transform_1, window_bounds = array<i64: 2, 8>}, {pipeline_mode = #tpu.pipeline_mode<synchronous>, transform_indices = @transform_2, window_bounds = array<i64: 1, 32>}, {pipeline_mode = #tpu.pipeline_mode<synchronous>, transform_indices = @transform_3, window_bounds = array<i64: 1, 32>}, {pipeline_mode = #tpu.pipeline_mode<synchronous>, transform_indices = @transform_4, window_bounds = array<i64: 2, 32, 96>}, {pipeline_mode = #tpu.pipeline_mode<synchronous>, transform_indices = @transform_5, window_bounds = array<i64: 2, 1, 96>}, {pipeline_mode = #tpu.pipeline_mode<synchronous>, transform_indices = @transform_6, window_bounds = array<i64: 2, 32, 32>}, {pipeline_mode = #tpu.pipeline_mode<synchronous>, transform_indices = @transform_7, window_bounds = array<i64: 2, 1, 32>}, {pipeline_mode = #tpu.pipeline_mode<synchronous>, transform_indices = @transform_8, window_bounds = array<i64: 2, 1, 32>}, {pipeline_mode = #tpu.pipeline_mode<synchronous>, transform_indices = @transform_9, window_bounds = array<i64: 2, 1, 32>}, {pipeline_mode = #tpu.pipeline_mode<synchronous>, transform_indices = @transform_10, window_bounds = array<i64: 2, 32, 64>}, {pipeline_mode = #tpu.pipeline_mode<synchronous>, transform_indices = @transform_11, window_bounds = array<i64: 2, 1, 64>}, {pipeline_mode = #tpu.pipeline_mode<synchronous>, transform_indices = @transform_12, window_bounds = array<i64: 2, 64, 32>}, {pipeline_mode = #tpu.pipeline_mode<synchronous>, transform_indices = @transform_13, window_bounds = array<i64: 2, 1, 32>}, {pipeline_mode = #tpu.pipeline_mode<synchronous>, transform_indices = @transform_14, window_bounds = array<i64: 2, 1, 32>}, {pipeline_mode = #tpu.pipeline_mode<synchronous>, transform_indices = @transform_15, window_bounds = array<i64: 2, 1, 32>}, {pipeline_mode = #tpu.pipeline_mode<synchronous>, transform_indices = @transform_16, window_bounds = array<i64: 32, 32>}, {pipeline_mode = #tpu.pipeline_mode<synchronous>, transform_indices = @transform_17, window_bounds = array<i64: 1, 32>}, {pipeline_mode = #tpu.pipeline_mode<synchronous>, transform_indices = @transform_18, window_bounds = array<i64: 32, 3>}, {pipeline_mode = #tpu.pipeline_mode<synchronous>, transform_indices = @transform_19, window_bounds = array<i64: 1, 3>}, {pipeline_mode = #tpu.pipeline_mode<synchronous>, transform_indices = @transform_20, window_bounds = array<i64: 32, 8>}, {pipeline_mode = #tpu.pipeline_mode<synchronous>, transform_indices = @transform_21, window_bounds = array<i64: 1, 8>}, {pipeline_mode = #tpu.pipeline_mode<synchronous>, transform_indices = @transform_22, window_bounds = array<i64: 16, 32>}, {pipeline_mode = #tpu.pipeline_mode<synchronous>, transform_indices = @transform_23, window_bounds = array<i64: 2, 3>}, {pipeline_mode = #tpu.pipeline_mode<synchronous>, transform_indices = @transform_24, window_bounds = array<i64: 2, 8>}]} {
    %c0 = arith.constant 0 : index
    %c0_0 = arith.constant 0 : index
    %0 = vector.load %arg1[%c0, %c0_0] : memref<16x32xf32, #tpu.memory_space<vmem>>, vector<16x32xf32>
    %c0_1 = arith.constant 0 : index
    %c0_2 = arith.constant 0 : index
    %1 = vector.load %arg3[%c0_1, %c0_2] : memref<1x32xf32, #tpu.memory_space<vmem>>, vector<1x32xf32>
    %c0_3 = arith.constant 0 : index
    %c0_4 = arith.constant 0 : index
    %2 = vector.load %arg4[%c0_3, %c0_4] : memref<1x32xf32, #tpu.memory_space<vmem>>, vector<1x32xf32>
    %cst = arith.constant dense<0.000000e+00> : vector<16xf32>
    %3 = vector.multi_reduction <add>, %0, %cst [1] : vector<16x32xf32> to vector<16xf32>
    %4 = vector.shape_cast %3 : vector<16xf32> to vector<16x1xf32>
    %cst_5 = arith.constant 3.200000e+01 : f32
    %5 = vector.broadcast %cst_5 : f32 to vector<16x1xf32>
    %6 = arith.divf %4, %5 : vector<16x1xf32>
    %7 = vector.broadcast %6 : vector<16x1xf32> to vector<16x32xf32>
    %8 = arith.subf %0, %7 : vector<16x32xf32>
    %9 = arith.mulf %8, %8 : vector<16x32xf32>
    %cst_6 = arith.constant dense<0.000000e+00> : vector<16xf32>
    %10 = vector.multi_reduction <add>, %9, %cst_6 [1] : vector<16x32xf32> to vector<16xf32>
    %11 = vector.shape_cast %10 : vector<16xf32> to vector<16x1xf32>
    %cst_7 = arith.constant 3.200000e+01 : f32
    %12 = vector.broadcast %cst_7 : f32 to vector<16x1xf32>
    %13 = arith.divf %11, %12 : vector<16x1xf32>
    %14 = vector.broadcast %6 : vector<16x1xf32> to vector<16x32xf32>
    %15 = arith.subf %0, %14 : vector<16x32xf32>
    %cst_8 = arith.constant 9.99999996E-13 : f32
    %16 = vector.broadcast %cst_8 : f32 to vector<16x1xf32>
    %17 = arith.addf %13, %16 : vector<16x1xf32>
    %18 = math.rsqrt %17 : vector<16x1xf32>
    %19 = vector.broadcast %18 : vector<16x1xf32> to vector<16x32xf32>
    %20 = arith.mulf %15, %19 : vector<16x32xf32>
    %21 = vector.broadcast %1 : vector<1x32xf32> to vector<16x32xf32>
    %22 = arith.mulf %20, %21 : vector<16x32xf32>
    %23 = vector.broadcast %2 : vector<1x32xf32> to vector<16x32xf32>
    %24 = arith.addf %22, %23 : vector<16x32xf32>
    %c0_9 = arith.constant 0 : index
    %c0_10 = arith.constant 0 : index
    %25 = vector.load %arg2[%c0_9, %c0_10] : memref<2x8xf32, #tpu.memory_space<vmem>>, vector<2x8xf32>
    %cst_11 = arith.constant 1.000000e+00 : f32
    %26 = vector.broadcast %cst_11 : f32 to vector<2x8xf32>
    %27 = arith.subf %26, %25 : vector<2x8xf32>
    %cst_12 = arith.constant -1.000000e+04 : f32
    %28 = vector.broadcast %cst_12 : f32 to vector<2x8xf32>
    %29 = arith.mulf %27, %28 : vector<2x8xf32>
    %c0_13 = arith.constant 0 : index
    %c0_14 = arith.constant 0 : index
    %c0_15 = arith.constant 0 : index
    %30 = vector.load %arg5[%c0_13, %c0_14, %c0_15] : memref<2x32x96xf32, #tpu.memory_space<vmem>>, vector<1x32x96xf32>
    %31 = vector.shape_cast %30 : vector<1x32x96xf32> to vector<32x96xf32>
    %32 = arith.truncf %24 : vector<16x32xf32> to vector<16x32xbf16>
    %33 = arith.truncf %31 : vector<32x96xf32> to vector<32x96xbf16>
    %cst_16 = arith.constant dense<0.000000e+00> : vector<16x96xf32>
    %34 = tpu.matmul %32, %33, %cst_16 {dimension_numbers = #tpu.dot_dimension_numbers<[1], [0], [0], [1], [0, 0, 1, 1], [], []>} : vector<16x32xbf16>, vector<32x96xbf16>, vector<16x96xf32> -> vector<16x96xf32>
    %c0_17 = arith.constant 0 : index
    %c0_18 = arith.constant 0 : index
    %c0_19 = arith.constant 0 : index
    %35 = vector.load %arg6[%c0_17, %c0_18, %c0_19] : memref<2x1x96xf32, #tpu.memory_space<vmem>>, vector<1x1x96xf32>
    %36 = vector.shape_cast %35 : vector<1x1x96xf32> to vector<1x96xf32>
    %37 = vector.broadcast %36 : vector<1x96xf32> to vector<16x96xf32>
    %38 = arith.addf %34, %37 : vector<16x96xf32>
    %c0_20 = arith.constant 0 : index
    %c0_21 = arith.constant 0 : index
    %c0_22 = arith.constant 0 : index
    %39 = vector.load %arg7[%c0_20, %c0_21, %c0_22] : memref<2x32x32xf32, #tpu.memory_space<vmem>>, vector<1x32x32xf32>
    %40 = vector.shape_cast %39 : vector<1x32x32xf32> to vector<32x32xf32>
    %41 = vector.extract_strided_slice %29 {offsets = [0, 0], sizes = [1, 8], strides = [1, 1]} : vector<2x8xf32> to vector<1x8xf32>
    %42 = vector.extract_strided_slice %38 {offsets = [0, 0], sizes = [8, 8], strides = [1, 1]} : vector<16x96xf32> to vector<8x8xf32>
    %43 = vector.extract_strided_slice %38 {offsets = [0, 32], sizes = [8, 8], strides = [1, 1]} : vector<16x96xf32> to vector<8x8xf32>
    %44 = vector.extract_strided_slice %38 {offsets = [0, 64], sizes = [8, 8], strides = [1, 1]} : vector<16x96xf32> to vector<8x8xf32>
    %45 = tpu.transpose %43, [1, 0] : vector<8x8xf32> -> vector<8x8xf32>
    %46 = arith.truncf %42 : vector<8x8xf32> to vector<8x8xbf16>
    %47 = arith.truncf %45 : vector<8x8xf32> to vector<8x8xbf16>
    %cst_23 = arith.constant dense<0.000000e+00> : vector<8x8xf32>
    %48 = tpu.matmul %46, %47, %cst_23 {dimension_numbers = #tpu.dot_dimension_numbers<[1], [0], [0], [1], [0, 0, 1, 1], [], []>} : vector<8x8xbf16>, vector<8x8xbf16>, vector<8x8xf32> -> vector<8x8xf32>
    %cst_24 = arith.constant 0.353553385 : f32
    %49 = vector.broadcast %cst_24 : f32 to vector<8x8xf32>
    %50 = arith.mulf %48, %49 : vector<8x8xf32>
    %51 = vector.broadcast %41 : vector<1x8xf32> to vector<8x8xf32>
    %52 = arith.addf %50, %51 : vector<8x8xf32>
    %cst_25 = arith.constant dense<0xFF800000> : vector<8xf32>
    %53 = vector.multi_reduction <maximumf>, %52, %cst_25 [1] : vector<8x8xf32> to vector<8xf32>
    %54 = vector.shape_cast %53 : vector<8xf32> to vector<8x1xf32>
    %55 = vector.broadcast %54 : vector<8x1xf32> to vector<8x8xf32>
    %56 = arith.subf %52, %55 : vector<8x8xf32>
    %57 = math.exp %56 : vector<8x8xf32>
    %cst_26 = arith.constant dense<0.000000e+00> : vector<8xf32>
    %58 = vector.multi_reduction <add>, %57, %cst_26 [1] : vector<8x8xf32> to vector<8xf32>
    %59 = vector.shape_cast %58 : vector<8xf32> to vector<8x1xf32>
    %60 = tpu.reciprocal %59 {approx = true} : vector<8x1xf32> -> vector<8x1xf32>
    %61 = vector.broadcast %60 : vector<8x1xf32> to vector<8x8xf32>
    %62 = arith.mulf %57, %61 : vector<8x8xf32>
    %63 = arith.truncf %62 : vector<8x8xf32> to vector<8x8xbf16>
    %64 = arith.truncf %44 : vector<8x8xf32> to vector<8x8xbf16>
    %cst_27 = arith.constant dense<0.000000e+00> : vector<8x8xf32>
    %65 = tpu.matmul %63, %64, %cst_27 {dimension_numbers = #tpu.dot_dimension_numbers<[1], [0], [0], [1], [0, 0, 1, 1], [], []>} : vector<8x8xbf16>, vector<8x8xbf16>, vector<8x8xf32> -> vector<8x8xf32>
    %66 = vector.extract_strided_slice %40 {offsets = [0, 0], sizes = [8, 32], strides = [1, 1]} : vector<32x32xf32> to vector<8x32xf32>
    %67 = arith.truncf %65 : vector<8x8xf32> to vector<8x8xbf16>
    %68 = arith.truncf %66 : vector<8x32xf32> to vector<8x32xbf16>
    %cst_28 = arith.constant dense<0.000000e+00> : vector<8x32xf32>
    %69 = tpu.matmul %67, %68, %cst_28 {dimension_numbers = #tpu.dot_dimension_numbers<[1], [0], [0], [1], [0, 0, 1, 1], [], []>} : vector<8x8xbf16>, vector<8x32xbf16>, vector<8x32xf32> -> vector<8x32xf32>
    %70 = vector.extract_strided_slice %38 {offsets = [0, 8], sizes = [8, 8], strides = [1, 1]} : vector<16x96xf32> to vector<8x8xf32>
    %71 = vector.extract_strided_slice %38 {offsets = [0, 40], sizes = [8, 8], strides = [1, 1]} : vector<16x96xf32> to vector<8x8xf32>
    %72 = vector.extract_strided_slice %38 {offsets = [0, 72], sizes = [8, 8], strides = [1, 1]} : vector<16x96xf32> to vector<8x8xf32>
    %73 = tpu.transpose %71, [1, 0] : vector<8x8xf32> -> vector<8x8xf32>
    %74 = arith.truncf %70 : vector<8x8xf32> to vector<8x8xbf16>
    %75 = arith.truncf %73 : vector<8x8xf32> to vector<8x8xbf16>
    %cst_29 = arith.constant dense<0.000000e+00> : vector<8x8xf32>
    %76 = tpu.matmul %74, %75, %cst_29 {dimension_numbers = #tpu.dot_dimension_numbers<[1], [0], [0], [1], [0, 0, 1, 1], [], []>} : vector<8x8xbf16>, vector<8x8xbf16>, vector<8x8xf32> -> vector<8x8xf32>
    %cst_30 = arith.constant 0.353553385 : f32
    %77 = vector.broadcast %cst_30 : f32 to vector<8x8xf32>
    %78 = arith.mulf %76, %77 : vector<8x8xf32>
    %79 = vector.broadcast %41 : vector<1x8xf32> to vector<8x8xf32>
    %80 = arith.addf %78, %79 : vector<8x8xf32>
    %cst_31 = arith.constant dense<0xFF800000> : vector<8xf32>
    %81 = vector.multi_reduction <maximumf>, %80, %cst_31 [1] : vector<8x8xf32> to vector<8xf32>
    %82 = vector.shape_cast %81 : vector<8xf32> to vector<8x1xf32>
    %83 = vector.broadcast %82 : vector<8x1xf32> to vector<8x8xf32>
    %84 = arith.subf %80, %83 : vector<8x8xf32>
    %85 = math.exp %84 : vector<8x8xf32>
    %cst_32 = arith.constant dense<0.000000e+00> : vector<8xf32>
    %86 = vector.multi_reduction <add>, %85, %cst_32 [1] : vector<8x8xf32> to vector<8xf32>
    %87 = vector.shape_cast %86 : vector<8xf32> to vector<8x1xf32>
    %88 = tpu.reciprocal %87 {approx = true} : vector<8x1xf32> -> vector<8x1xf32>
    %89 = vector.broadcast %88 : vector<8x1xf32> to vector<8x8xf32>
    %90 = arith.mulf %85, %89 : vector<8x8xf32>
    %91 = arith.truncf %90 : vector<8x8xf32> to vector<8x8xbf16>
    %92 = arith.truncf %72 : vector<8x8xf32> to vector<8x8xbf16>
    %cst_33 = arith.constant dense<0.000000e+00> : vector<8x8xf32>
    %93 = tpu.matmul %91, %92, %cst_33 {dimension_numbers = #tpu.dot_dimension_numbers<[1], [0], [0], [1], [0, 0, 1, 1], [], []>} : vector<8x8xbf16>, vector<8x8xbf16>, vector<8x8xf32> -> vector<8x8xf32>
    %94 = vector.extract_strided_slice %40 {offsets = [8, 0], sizes = [8, 32], strides = [1, 1]} : vector<32x32xf32> to vector<8x32xf32>
    %95 = arith.truncf %93 : vector<8x8xf32> to vector<8x8xbf16>
    %96 = arith.truncf %94 : vector<8x32xf32> to vector<8x32xbf16>
    %cst_34 = arith.constant dense<0.000000e+00> : vector<8x32xf32>
    %97 = tpu.matmul %95, %96, %cst_34 {dimension_numbers = #tpu.dot_dimension_numbers<[1], [0], [0], [1], [0, 0, 1, 1], [], []>} : vector<8x8xbf16>, vector<8x32xbf16>, vector<8x32xf32> -> vector<8x32xf32>
    %98 = arith.addf %69, %97 : vector<8x32xf32>
    %99 = vector.extract_strided_slice %38 {offsets = [0, 16], sizes = [8, 8], strides = [1, 1]} : vector<16x96xf32> to vector<8x8xf32>
    %100 = vector.extract_strided_slice %38 {offsets = [0, 48], sizes = [8, 8], strides = [1, 1]} : vector<16x96xf32> to vector<8x8xf32>
    %101 = vector.extract_strided_slice %38 {offsets = [0, 80], sizes = [8, 8], strides = [1, 1]} : vector<16x96xf32> to vector<8x8xf32>
    %102 = tpu.transpose %100, [1, 0] : vector<8x8xf32> -> vector<8x8xf32>
    %103 = arith.truncf %99 : vector<8x8xf32> to vector<8x8xbf16>
    %104 = arith.truncf %102 : vector<8x8xf32> to vector<8x8xbf16>
    %cst_35 = arith.constant dense<0.000000e+00> : vector<8x8xf32>
    %105 = tpu.matmul %103, %104, %cst_35 {dimension_numbers = #tpu.dot_dimension_numbers<[1], [0], [0], [1], [0, 0, 1, 1], [], []>} : vector<8x8xbf16>, vector<8x8xbf16>, vector<8x8xf32> -> vector<8x8xf32>
    %cst_36 = arith.constant 0.353553385 : f32
    %106 = vector.broadcast %cst_36 : f32 to vector<8x8xf32>
    %107 = arith.mulf %105, %106 : vector<8x8xf32>
    %108 = vector.broadcast %41 : vector<1x8xf32> to vector<8x8xf32>
    %109 = arith.addf %107, %108 : vector<8x8xf32>
    %cst_37 = arith.constant dense<0xFF800000> : vector<8xf32>
    %110 = vector.multi_reduction <maximumf>, %109, %cst_37 [1] : vector<8x8xf32> to vector<8xf32>
    %111 = vector.shape_cast %110 : vector<8xf32> to vector<8x1xf32>
    %112 = vector.broadcast %111 : vector<8x1xf32> to vector<8x8xf32>
    %113 = arith.subf %109, %112 : vector<8x8xf32>
    %114 = math.exp %113 : vector<8x8xf32>
    %cst_38 = arith.constant dense<0.000000e+00> : vector<8xf32>
    %115 = vector.multi_reduction <add>, %114, %cst_38 [1] : vector<8x8xf32> to vector<8xf32>
    %116 = vector.shape_cast %115 : vector<8xf32> to vector<8x1xf32>
    %117 = tpu.reciprocal %116 {approx = true} : vector<8x1xf32> -> vector<8x1xf32>
    %118 = vector.broadcast %117 : vector<8x1xf32> to vector<8x8xf32>
    %119 = arith.mulf %114, %118 : vector<8x8xf32>
    %120 = arith.truncf %119 : vector<8x8xf32> to vector<8x8xbf16>
    %121 = arith.truncf %101 : vector<8x8xf32> to vector<8x8xbf16>
    %cst_39 = arith.constant dense<0.000000e+00> : vector<8x8xf32>
    %122 = tpu.matmul %120, %121, %cst_39 {dimension_numbers = #tpu.dot_dimension_numbers<[1], [0], [0], [1], [0, 0, 1, 1], [], []>} : vector<8x8xbf16>, vector<8x8xbf16>, vector<8x8xf32> -> vector<8x8xf32>
    %123 = vector.extract_strided_slice %40 {offsets = [16, 0], sizes = [8, 32], strides = [1, 1]} : vector<32x32xf32> to vector<8x32xf32>
    %124 = arith.truncf %122 : vector<8x8xf32> to vector<8x8xbf16>
    %125 = arith.truncf %123 : vector<8x32xf32> to vector<8x32xbf16>
    %cst_40 = arith.constant dense<0.000000e+00> : vector<8x32xf32>
    %126 = tpu.matmul %124, %125, %cst_40 {dimension_numbers = #tpu.dot_dimension_numbers<[1], [0], [0], [1], [0, 0, 1, 1], [], []>} : vector<8x8xbf16>, vector<8x32xbf16>, vector<8x32xf32> -> vector<8x32xf32>
    %127 = arith.addf %98, %126 : vector<8x32xf32>
    %128 = vector.extract_strided_slice %38 {offsets = [0, 24], sizes = [8, 8], strides = [1, 1]} : vector<16x96xf32> to vector<8x8xf32>
    %129 = vector.extract_strided_slice %38 {offsets = [0, 56], sizes = [8, 8], strides = [1, 1]} : vector<16x96xf32> to vector<8x8xf32>
    %130 = vector.extract_strided_slice %38 {offsets = [0, 88], sizes = [8, 8], strides = [1, 1]} : vector<16x96xf32> to vector<8x8xf32>
    %131 = tpu.transpose %129, [1, 0] : vector<8x8xf32> -> vector<8x8xf32>
    %132 = arith.truncf %128 : vector<8x8xf32> to vector<8x8xbf16>
    %133 = arith.truncf %131 : vector<8x8xf32> to vector<8x8xbf16>
    %cst_41 = arith.constant dense<0.000000e+00> : vector<8x8xf32>
    %134 = tpu.matmul %132, %133, %cst_41 {dimension_numbers = #tpu.dot_dimension_numbers<[1], [0], [0], [1], [0, 0, 1, 1], [], []>} : vector<8x8xbf16>, vector<8x8xbf16>, vector<8x8xf32> -> vector<8x8xf32>
    %cst_42 = arith.constant 0.353553385 : f32
    %135 = vector.broadcast %cst_42 : f32 to vector<8x8xf32>
    %136 = arith.mulf %134, %135 : vector<8x8xf32>
    %137 = vector.broadcast %41 : vector<1x8xf32> to vector<8x8xf32>
    %138 = arith.addf %136, %137 : vector<8x8xf32>
    %cst_43 = arith.constant dense<0xFF800000> : vector<8xf32>
    %139 = vector.multi_reduction <maximumf>, %138, %cst_43 [1] : vector<8x8xf32> to vector<8xf32>
    %140 = vector.shape_cast %139 : vector<8xf32> to vector<8x1xf32>
    %141 = vector.broadcast %140 : vector<8x1xf32> to vector<8x8xf32>
    %142 = arith.subf %138, %141 : vector<8x8xf32>
    %143 = math.exp %142 : vector<8x8xf32>
    %cst_44 = arith.constant dense<0.000000e+00> : vector<8xf32>
    %144 = vector.multi_reduction <add>, %143, %cst_44 [1] : vector<8x8xf32> to vector<8xf32>
    %145 = vector.shape_cast %144 : vector<8xf32> to vector<8x1xf32>
    %146 = tpu.reciprocal %145 {approx = true} : vector<8x1xf32> -> vector<8x1xf32>
    %147 = vector.broadcast %146 : vector<8x1xf32> to vector<8x8xf32>
    %148 = arith.mulf %143, %147 : vector<8x8xf32>
    %149 = arith.truncf %148 : vector<8x8xf32> to vector<8x8xbf16>
    %150 = arith.truncf %130 : vector<8x8xf32> to vector<8x8xbf16>
    %cst_45 = arith.constant dense<0.000000e+00> : vector<8x8xf32>
    %151 = tpu.matmul %149, %150, %cst_45 {dimension_numbers = #tpu.dot_dimension_numbers<[1], [0], [0], [1], [0, 0, 1, 1], [], []>} : vector<8x8xbf16>, vector<8x8xbf16>, vector<8x8xf32> -> vector<8x8xf32>
    %152 = vector.extract_strided_slice %40 {offsets = [24, 0], sizes = [8, 32], strides = [1, 1]} : vector<32x32xf32> to vector<8x32xf32>
    %153 = arith.truncf %151 : vector<8x8xf32> to vector<8x8xbf16>
    %154 = arith.truncf %152 : vector<8x32xf32> to vector<8x32xbf16>
    %cst_46 = arith.constant dense<0.000000e+00> : vector<8x32xf32>
    %155 = tpu.matmul %153, %154, %cst_46 {dimension_numbers = #tpu.dot_dimension_numbers<[1], [0], [0], [1], [0, 0, 1, 1], [], []>} : vector<8x8xbf16>, vector<8x32xbf16>, vector<8x32xf32> -> vector<8x32xf32>
    %156 = arith.addf %127, %155 : vector<8x32xf32>
    %157 = vector.extract_strided_slice %29 {offsets = [1, 0], sizes = [1, 8], strides = [1, 1]} : vector<2x8xf32> to vector<1x8xf32>
    %158 = vector.extract_strided_slice %38 {offsets = [8, 0], sizes = [8, 8], strides = [1, 1]} : vector<16x96xf32> to vector<8x8xf32>
    %159 = vector.extract_strided_slice %38 {offsets = [8, 32], sizes = [8, 8], strides = [1, 1]} : vector<16x96xf32> to vector<8x8xf32>
    %160 = vector.extract_strided_slice %38 {offsets = [8, 64], sizes = [8, 8], strides = [1, 1]} : vector<16x96xf32> to vector<8x8xf32>
    %161 = tpu.transpose %159, [1, 0] : vector<8x8xf32> -> vector<8x8xf32>
    %162 = arith.truncf %158 : vector<8x8xf32> to vector<8x8xbf16>
    %163 = arith.truncf %161 : vector<8x8xf32> to vector<8x8xbf16>
    %cst_47 = arith.constant dense<0.000000e+00> : vector<8x8xf32>
    %164 = tpu.matmul %162, %163, %cst_47 {dimension_numbers = #tpu.dot_dimension_numbers<[1], [0], [0], [1], [0, 0, 1, 1], [], []>} : vector<8x8xbf16>, vector<8x8xbf16>, vector<8x8xf32> -> vector<8x8xf32>
    %cst_48 = arith.constant 0.353553385 : f32
    %165 = vector.broadcast %cst_48 : f32 to vector<8x8xf32>
    %166 = arith.mulf %164, %165 : vector<8x8xf32>
    %167 = vector.broadcast %157 : vector<1x8xf32> to vector<8x8xf32>
    %168 = arith.addf %166, %167 : vector<8x8xf32>
    %cst_49 = arith.constant dense<0xFF800000> : vector<8xf32>
    %169 = vector.multi_reduction <maximumf>, %168, %cst_49 [1] : vector<8x8xf32> to vector<8xf32>
    %170 = vector.shape_cast %169 : vector<8xf32> to vector<8x1xf32>
    %171 = vector.broadcast %170 : vector<8x1xf32> to vector<8x8xf32>
    %172 = arith.subf %168, %171 : vector<8x8xf32>
    %173 = math.exp %172 : vector<8x8xf32>
    %cst_50 = arith.constant dense<0.000000e+00> : vector<8xf32>
    %174 = vector.multi_reduction <add>, %173, %cst_50 [1] : vector<8x8xf32> to vector<8xf32>
    %175 = vector.shape_cast %174 : vector<8xf32> to vector<8x1xf32>
    %176 = tpu.reciprocal %175 {approx = true} : vector<8x1xf32> -> vector<8x1xf32>
    %177 = vector.broadcast %176 : vector<8x1xf32> to vector<8x8xf32>
    %178 = arith.mulf %173, %177 : vector<8x8xf32>
    %179 = arith.truncf %178 : vector<8x8xf32> to vector<8x8xbf16>
    %180 = arith.truncf %160 : vector<8x8xf32> to vector<8x8xbf16>
    %cst_51 = arith.constant dense<0.000000e+00> : vector<8x8xf32>
    %181 = tpu.matmul %179, %180, %cst_51 {dimension_numbers = #tpu.dot_dimension_numbers<[1], [0], [0], [1], [0, 0, 1, 1], [], []>} : vector<8x8xbf16>, vector<8x8xbf16>, vector<8x8xf32> -> vector<8x8xf32>
    %182 = vector.extract_strided_slice %40 {offsets = [0, 0], sizes = [8, 32], strides = [1, 1]} : vector<32x32xf32> to vector<8x32xf32>
    %183 = arith.truncf %181 : vector<8x8xf32> to vector<8x8xbf16>
    %184 = arith.truncf %182 : vector<8x32xf32> to vector<8x32xbf16>
    %cst_52 = arith.constant dense<0.000000e+00> : vector<8x32xf32>
    %185 = tpu.matmul %183, %184, %cst_52 {dimension_numbers = #tpu.dot_dimension_numbers<[1], [0], [0], [1], [0, 0, 1, 1], [], []>} : vector<8x8xbf16>, vector<8x32xbf16>, vector<8x32xf32> -> vector<8x32xf32>
    %186 = vector.extract_strided_slice %38 {offsets = [8, 8], sizes = [8, 8], strides = [1, 1]} : vector<16x96xf32> to vector<8x8xf32>
    %187 = vector.extract_strided_slice %38 {offsets = [8, 40], sizes = [8, 8], strides = [1, 1]} : vector<16x96xf32> to vector<8x8xf32>
    %188 = vector.extract_strided_slice %38 {offsets = [8, 72], sizes = [8, 8], strides = [1, 1]} : vector<16x96xf32> to vector<8x8xf32>
    %189 = tpu.transpose %187, [1, 0] : vector<8x8xf32> -> vector<8x8xf32>
    %190 = arith.truncf %186 : vector<8x8xf32> to vector<8x8xbf16>
    %191 = arith.truncf %189 : vector<8x8xf32> to vector<8x8xbf16>
    %cst_53 = arith.constant dense<0.000000e+00> : vector<8x8xf32>
    %192 = tpu.matmul %190, %191, %cst_53 {dimension_numbers = #tpu.dot_dimension_numbers<[1], [0], [0], [1], [0, 0, 1, 1], [], []>} : vector<8x8xbf16>, vector<8x8xbf16>, vector<8x8xf32> -> vector<8x8xf32>
    %cst_54 = arith.constant 0.353553385 : f32
    %193 = vector.broadcast %cst_54 : f32 to vector<8x8xf32>
    %194 = arith.mulf %192, %193 : vector<8x8xf32>
    %195 = vector.broadcast %157 : vector<1x8xf32> to vector<8x8xf32>
    %196 = arith.addf %194, %195 : vector<8x8xf32>
    %cst_55 = arith.constant dense<0xFF800000> : vector<8xf32>
    %197 = vector.multi_reduction <maximumf>, %196, %cst_55 [1] : vector<8x8xf32> to vector<8xf32>
    %198 = vector.shape_cast %197 : vector<8xf32> to vector<8x1xf32>
    %199 = vector.broadcast %198 : vector<8x1xf32> to vector<8x8xf32>
    %200 = arith.subf %196, %199 : vector<8x8xf32>
    %201 = math.exp %200 : vector<8x8xf32>
    %cst_56 = arith.constant dense<0.000000e+00> : vector<8xf32>
    %202 = vector.multi_reduction <add>, %201, %cst_56 [1] : vector<8x8xf32> to vector<8xf32>
    %203 = vector.shape_cast %202 : vector<8xf32> to vector<8x1xf32>
    %204 = tpu.reciprocal %203 {approx = true} : vector<8x1xf32> -> vector<8x1xf32>
    %205 = vector.broadcast %204 : vector<8x1xf32> to vector<8x8xf32>
    %206 = arith.mulf %201, %205 : vector<8x8xf32>
    %207 = arith.truncf %206 : vector<8x8xf32> to vector<8x8xbf16>
    %208 = arith.truncf %188 : vector<8x8xf32> to vector<8x8xbf16>
    %cst_57 = arith.constant dense<0.000000e+00> : vector<8x8xf32>
    %209 = tpu.matmul %207, %208, %cst_57 {dimension_numbers = #tpu.dot_dimension_numbers<[1], [0], [0], [1], [0, 0, 1, 1], [], []>} : vector<8x8xbf16>, vector<8x8xbf16>, vector<8x8xf32> -> vector<8x8xf32>
    %210 = vector.extract_strided_slice %40 {offsets = [8, 0], sizes = [8, 32], strides = [1, 1]} : vector<32x32xf32> to vector<8x32xf32>
    %211 = arith.truncf %209 : vector<8x8xf32> to vector<8x8xbf16>
    %212 = arith.truncf %210 : vector<8x32xf32> to vector<8x32xbf16>
    %cst_58 = arith.constant dense<0.000000e+00> : vector<8x32xf32>
    %213 = tpu.matmul %211, %212, %cst_58 {dimension_numbers = #tpu.dot_dimension_numbers<[1], [0], [0], [1], [0, 0, 1, 1], [], []>} : vector<8x8xbf16>, vector<8x32xbf16>, vector<8x32xf32> -> vector<8x32xf32>
    %214 = arith.addf %185, %213 : vector<8x32xf32>
    %215 = vector.extract_strided_slice %38 {offsets = [8, 16], sizes = [8, 8], strides = [1, 1]} : vector<16x96xf32> to vector<8x8xf32>
    %216 = vector.extract_strided_slice %38 {offsets = [8, 48], sizes = [8, 8], strides = [1, 1]} : vector<16x96xf32> to vector<8x8xf32>
    %217 = vector.extract_strided_slice %38 {offsets = [8, 80], sizes = [8, 8], strides = [1, 1]} : vector<16x96xf32> to vector<8x8xf32>
    %218 = tpu.transpose %216, [1, 0] : vector<8x8xf32> -> vector<8x8xf32>
    %219 = arith.truncf %215 : vector<8x8xf32> to vector<8x8xbf16>
    %220 = arith.truncf %218 : vector<8x8xf32> to vector<8x8xbf16>
    %cst_59 = arith.constant dense<0.000000e+00> : vector<8x8xf32>
    %221 = tpu.matmul %219, %220, %cst_59 {dimension_numbers = #tpu.dot_dimension_numbers<[1], [0], [0], [1], [0, 0, 1, 1], [], []>} : vector<8x8xbf16>, vector<8x8xbf16>, vector<8x8xf32> -> vector<8x8xf32>
    %cst_60 = arith.constant 0.353553385 : f32
    %222 = vector.broadcast %cst_60 : f32 to vector<8x8xf32>
    %223 = arith.mulf %221, %222 : vector<8x8xf32>
    %224 = vector.broadcast %157 : vector<1x8xf32> to vector<8x8xf32>
    %225 = arith.addf %223, %224 : vector<8x8xf32>
    %cst_61 = arith.constant dense<0xFF800000> : vector<8xf32>
    %226 = vector.multi_reduction <maximumf>, %225, %cst_61 [1] : vector<8x8xf32> to vector<8xf32>
    %227 = vector.shape_cast %226 : vector<8xf32> to vector<8x1xf32>
    %228 = vector.broadcast %227 : vector<8x1xf32> to vector<8x8xf32>
    %229 = arith.subf %225, %228 : vector<8x8xf32>
    %230 = math.exp %229 : vector<8x8xf32>
    %cst_62 = arith.constant dense<0.000000e+00> : vector<8xf32>
    %231 = vector.multi_reduction <add>, %230, %cst_62 [1] : vector<8x8xf32> to vector<8xf32>
    %232 = vector.shape_cast %231 : vector<8xf32> to vector<8x1xf32>
    %233 = tpu.reciprocal %232 {approx = true} : vector<8x1xf32> -> vector<8x1xf32>
    %234 = vector.broadcast %233 : vector<8x1xf32> to vector<8x8xf32>
    %235 = arith.mulf %230, %234 : vector<8x8xf32>
    %236 = arith.truncf %235 : vector<8x8xf32> to vector<8x8xbf16>
    %237 = arith.truncf %217 : vector<8x8xf32> to vector<8x8xbf16>
    %cst_63 = arith.constant dense<0.000000e+00> : vector<8x8xf32>
    %238 = tpu.matmul %236, %237, %cst_63 {dimension_numbers = #tpu.dot_dimension_numbers<[1], [0], [0], [1], [0, 0, 1, 1], [], []>} : vector<8x8xbf16>, vector<8x8xbf16>, vector<8x8xf32> -> vector<8x8xf32>
    %239 = vector.extract_strided_slice %40 {offsets = [16, 0], sizes = [8, 32], strides = [1, 1]} : vector<32x32xf32> to vector<8x32xf32>
    %240 = arith.truncf %238 : vector<8x8xf32> to vector<8x8xbf16>
    %241 = arith.truncf %239 : vector<8x32xf32> to vector<8x32xbf16>
    %cst_64 = arith.constant dense<0.000000e+00> : vector<8x32xf32>
    %242 = tpu.matmul %240, %241, %cst_64 {dimension_numbers = #tpu.dot_dimension_numbers<[1], [0], [0], [1], [0, 0, 1, 1], [], []>} : vector<8x8xbf16>, vector<8x32xbf16>, vector<8x32xf32> -> vector<8x32xf32>
    %243 = arith.addf %214, %242 : vector<8x32xf32>
    %244 = vector.extract_strided_slice %38 {offsets = [8, 24], sizes = [8, 8], strides = [1, 1]} : vector<16x96xf32> to vector<8x8xf32>
    %245 = vector.extract_strided_slice %38 {offsets = [8, 56], sizes = [8, 8], strides = [1, 1]} : vector<16x96xf32> to vector<8x8xf32>
    %246 = vector.extract_strided_slice %38 {offsets = [8, 88], sizes = [8, 8], strides = [1, 1]} : vector<16x96xf32> to vector<8x8xf32>
    %247 = tpu.transpose %245, [1, 0] : vector<8x8xf32> -> vector<8x8xf32>
    %248 = arith.truncf %244 : vector<8x8xf32> to vector<8x8xbf16>
    %249 = arith.truncf %247 : vector<8x8xf32> to vector<8x8xbf16>
    %cst_65 = arith.constant dense<0.000000e+00> : vector<8x8xf32>
    %250 = tpu.matmul %248, %249, %cst_65 {dimension_numbers = #tpu.dot_dimension_numbers<[1], [0], [0], [1], [0, 0, 1, 1], [], []>} : vector<8x8xbf16>, vector<8x8xbf16>, vector<8x8xf32> -> vector<8x8xf32>
    %cst_66 = arith.constant 0.353553385 : f32
    %251 = vector.broadcast %cst_66 : f32 to vector<8x8xf32>
    %252 = arith.mulf %250, %251 : vector<8x8xf32>
    %253 = vector.broadcast %157 : vector<1x8xf32> to vector<8x8xf32>
    %254 = arith.addf %252, %253 : vector<8x8xf32>
    %cst_67 = arith.constant dense<0xFF800000> : vector<8xf32>
    %255 = vector.multi_reduction <maximumf>, %254, %cst_67 [1] : vector<8x8xf32> to vector<8xf32>
    %256 = vector.shape_cast %255 : vector<8xf32> to vector<8x1xf32>
    %257 = vector.broadcast %256 : vector<8x1xf32> to vector<8x8xf32>
    %258 = arith.subf %254, %257 : vector<8x8xf32>
    %259 = math.exp %258 : vector<8x8xf32>
    %cst_68 = arith.constant dense<0.000000e+00> : vector<8xf32>
    %260 = vector.multi_reduction <add>, %259, %cst_68 [1] : vector<8x8xf32> to vector<8xf32>
    %261 = vector.shape_cast %260 : vector<8xf32> to vector<8x1xf32>
    %262 = tpu.reciprocal %261 {approx = true} : vector<8x1xf32> -> vector<8x1xf32>
    %263 = vector.broadcast %262 : vector<8x1xf32> to vector<8x8xf32>
    %264 = arith.mulf %259, %263 : vector<8x8xf32>
    %265 = arith.truncf %264 : vector<8x8xf32> to vector<8x8xbf16>
    %266 = arith.truncf %246 : vector<8x8xf32> to vector<8x8xbf16>
    %cst_69 = arith.constant dense<0.000000e+00> : vector<8x8xf32>
    %267 = tpu.matmul %265, %266, %cst_69 {dimension_numbers = #tpu.dot_dimension_numbers<[1], [0], [0], [1], [0, 0, 1, 1], [], []>} : vector<8x8xbf16>, vector<8x8xbf16>, vector<8x8xf32> -> vector<8x8xf32>
    %268 = vector.extract_strided_slice %40 {offsets = [24, 0], sizes = [8, 32], strides = [1, 1]} : vector<32x32xf32> to vector<8x32xf32>
    %269 = arith.truncf %267 : vector<8x8xf32> to vector<8x8xbf16>
    %270 = arith.truncf %268 : vector<8x32xf32> to vector<8x32xbf16>
    %cst_70 = arith.constant dense<0.000000e+00> : vector<8x32xf32>
    %271 = tpu.matmul %269, %270, %cst_70 {dimension_numbers = #tpu.dot_dimension_numbers<[1], [0], [0], [1], [0, 0, 1, 1], [], []>} : vector<8x8xbf16>, vector<8x32xbf16>, vector<8x32xf32> -> vector<8x32xf32>
    %272 = arith.addf %243, %271 : vector<8x32xf32>
    %273 = tpu.concatenate %156, %272 in 0 : vector<8x32xf32>, vector<8x32xf32> -> vector<16x32xf32>
    %c0_71 = arith.constant 0 : index
    %c0_72 = arith.constant 0 : index
    %c0_73 = arith.constant 0 : index
    %274 = vector.load %arg8[%c0_71, %c0_72, %c0_73] : memref<2x1x32xf32, #tpu.memory_space<vmem>>, vector<1x1x32xf32>
    %275 = vector.shape_cast %274 : vector<1x1x32xf32> to vector<1x32xf32>
    %276 = vector.broadcast %275 : vector<1x32xf32> to vector<16x32xf32>
    %277 = arith.addf %273, %276 : vector<16x32xf32>
    %278 = arith.addf %24, %277 : vector<16x32xf32>
    %c0_74 = arith.constant 0 : index
    %c0_75 = arith.constant 0 : index
    %c0_76 = arith.constant 0 : index
    %279 = vector.load %arg9[%c0_74, %c0_75, %c0_76] : memref<2x1x32xf32, #tpu.memory_space<vmem>>, vector<1x1x32xf32>
    %280 = vector.shape_cast %279 : vector<1x1x32xf32> to vector<1x32xf32>
    %c0_77 = arith.constant 0 : index
    %c0_78 = arith.constant 0 : index
    %c0_79 = arith.constant 0 : index
    %281 = vector.load %arg10[%c0_77, %c0_78, %c0_79] : memref<2x1x32xf32, #tpu.memory_space<vmem>>, vector<1x1x32xf32>
    %282 = vector.shape_cast %281 : vector<1x1x32xf32> to vector<1x32xf32>
    %cst_80 = arith.constant dense<0.000000e+00> : vector<16xf32>
    %283 = vector.multi_reduction <add>, %278, %cst_80 [1] : vector<16x32xf32> to vector<16xf32>
    %284 = vector.shape_cast %283 : vector<16xf32> to vector<16x1xf32>
    %cst_81 = arith.constant 3.200000e+01 : f32
    %285 = vector.broadcast %cst_81 : f32 to vector<16x1xf32>
    %286 = arith.divf %284, %285 : vector<16x1xf32>
    %287 = vector.broadcast %286 : vector<16x1xf32> to vector<16x32xf32>
    %288 = arith.subf %278, %287 : vector<16x32xf32>
    %289 = arith.mulf %288, %288 : vector<16x32xf32>
    %cst_82 = arith.constant dense<0.000000e+00> : vector<16xf32>
    %290 = vector.multi_reduction <add>, %289, %cst_82 [1] : vector<16x32xf32> to vector<16xf32>
    %291 = vector.shape_cast %290 : vector<16xf32> to vector<16x1xf32>
    %cst_83 = arith.constant 3.200000e+01 : f32
    %292 = vector.broadcast %cst_83 : f32 to vector<16x1xf32>
    %293 = arith.divf %291, %292 : vector<16x1xf32>
    %294 = vector.broadcast %286 : vector<16x1xf32> to vector<16x32xf32>
    %295 = arith.subf %278, %294 : vector<16x32xf32>
    %cst_84 = arith.constant 9.99999996E-13 : f32
    %296 = vector.broadcast %cst_84 : f32 to vector<16x1xf32>
    %297 = arith.addf %293, %296 : vector<16x1xf32>
    %298 = math.rsqrt %297 : vector<16x1xf32>
    %299 = vector.broadcast %298 : vector<16x1xf32> to vector<16x32xf32>
    %300 = arith.mulf %295, %299 : vector<16x32xf32>
    %301 = vector.broadcast %280 : vector<1x32xf32> to vector<16x32xf32>
    %302 = arith.mulf %300, %301 : vector<16x32xf32>
    %303 = vector.broadcast %282 : vector<1x32xf32> to vector<16x32xf32>
    %304 = arith.addf %302, %303 : vector<16x32xf32>
    %c0_85 = arith.constant 0 : index
    %c0_86 = arith.constant 0 : index
    %c0_87 = arith.constant 0 : index
    %305 = vector.load %arg11[%c0_85, %c0_86, %c0_87] : memref<2x32x64xf32, #tpu.memory_space<vmem>>, vector<1x32x64xf32>
    %306 = vector.shape_cast %305 : vector<1x32x64xf32> to vector<32x64xf32>
    %307 = arith.truncf %304 : vector<16x32xf32> to vector<16x32xbf16>
    %308 = arith.truncf %306 : vector<32x64xf32> to vector<32x64xbf16>
    %cst_88 = arith.constant dense<0.000000e+00> : vector<16x64xf32>
    %309 = tpu.matmul %307, %308, %cst_88 {dimension_numbers = #tpu.dot_dimension_numbers<[1], [0], [0], [1], [0, 0, 1, 1], [], []>} : vector<16x32xbf16>, vector<32x64xbf16>, vector<16x64xf32> -> vector<16x64xf32>
    %c0_89 = arith.constant 0 : index
    %c0_90 = arith.constant 0 : index
    %c0_91 = arith.constant 0 : index
    %310 = vector.load %arg12[%c0_89, %c0_90, %c0_91] : memref<2x1x64xf32, #tpu.memory_space<vmem>>, vector<1x1x64xf32>
    %311 = vector.shape_cast %310 : vector<1x1x64xf32> to vector<1x64xf32>
    %312 = vector.broadcast %311 : vector<1x64xf32> to vector<16x64xf32>
    %313 = arith.addf %309, %312 : vector<16x64xf32>
    %cst_92 = arith.constant 5.000000e-01 : f32
    %314 = vector.broadcast %cst_92 : f32 to vector<16x64xf32>
    %315 = arith.mulf %314, %313 : vector<16x64xf32>
    %cst_93 = arith.constant 4.471500e-02 : f32
    %316 = vector.broadcast %cst_93 : f32 to vector<16x64xf32>
    %317 = arith.mulf %316, %313 : vector<16x64xf32>
    %318 = arith.mulf %317, %313 : vector<16x64xf32>
    %319 = arith.mulf %318, %313 : vector<16x64xf32>
    %320 = arith.addf %313, %319 : vector<16x64xf32>
    %cst_94 = arith.constant 0.797884583 : f32
    %321 = vector.broadcast %cst_94 : f32 to vector<16x64xf32>
    %322 = arith.mulf %321, %320 : vector<16x64xf32>
    %323 = math.tanh %322 : vector<16x64xf32>
    %cst_95 = arith.constant 1.000000e+00 : f32
    %324 = vector.broadcast %cst_95 : f32 to vector<16x64xf32>
    %325 = arith.addf %324, %323 : vector<16x64xf32>
    %326 = arith.mulf %315, %325 : vector<16x64xf32>
    %c0_96 = arith.constant 0 : index
    %c0_97 = arith.constant 0 : index
    %c0_98 = arith.constant 0 : index
    %327 = vector.load %arg13[%c0_96, %c0_97, %c0_98] : memref<2x64x32xf32, #tpu.memory_space<vmem>>, vector<1x64x32xf32>
    %328 = vector.shape_cast %327 : vector<1x64x32xf32> to vector<64x32xf32>
    %329 = arith.truncf %326 : vector<16x64xf32> to vector<16x64xbf16>
    %330 = arith.truncf %328 : vector<64x32xf32> to vector<64x32xbf16>
    %cst_99 = arith.constant dense<0.000000e+00> : vector<16x32xf32>
    %331 = tpu.matmul %329, %330, %cst_99 {dimension_numbers = #tpu.dot_dimension_numbers<[1], [0], [0], [1], [0, 0, 1, 1], [], []>} : vector<16x64xbf16>, vector<64x32xbf16>, vector<16x32xf32> -> vector<16x32xf32>
    %c0_100 = arith.constant 0 : index
    %c0_101 = arith.constant 0 : index
    %c0_102 = arith.constant 0 : index
    %332 = vector.load %arg14[%c0_100, %c0_101, %c0_102] : memref<2x1x32xf32, #tpu.memory_space<vmem>>, vector<1x1x32xf32>
    %333 = vector.shape_cast %332 : vector<1x1x32xf32> to vector<1x32xf32>
    %334 = vector.broadcast %333 : vector<1x32xf32> to vector<16x32xf32>
    %335 = arith.addf %331, %334 : vector<16x32xf32>
    %336 = arith.addf %304, %335 : vector<16x32xf32>
    %c0_103 = arith.constant 0 : index
    %c0_104 = arith.constant 0 : index
    %c0_105 = arith.constant 0 : index
    %337 = vector.load %arg15[%c0_103, %c0_104, %c0_105] : memref<2x1x32xf32, #tpu.memory_space<vmem>>, vector<1x1x32xf32>
    %338 = vector.shape_cast %337 : vector<1x1x32xf32> to vector<1x32xf32>
    %c0_106 = arith.constant 0 : index
    %c0_107 = arith.constant 0 : index
    %c0_108 = arith.constant 0 : index
    %339 = vector.load %arg16[%c0_106, %c0_107, %c0_108] : memref<2x1x32xf32, #tpu.memory_space<vmem>>, vector<1x1x32xf32>
    %340 = vector.shape_cast %339 : vector<1x1x32xf32> to vector<1x32xf32>
    %cst_109 = arith.constant dense<0.000000e+00> : vector<16xf32>
    %341 = vector.multi_reduction <add>, %336, %cst_109 [1] : vector<16x32xf32> to vector<16xf32>
    %342 = vector.shape_cast %341 : vector<16xf32> to vector<16x1xf32>
    %cst_110 = arith.constant 3.200000e+01 : f32
    %343 = vector.broadcast %cst_110 : f32 to vector<16x1xf32>
    %344 = arith.divf %342, %343 : vector<16x1xf32>
    %345 = vector.broadcast %344 : vector<16x1xf32> to vector<16x32xf32>
    %346 = arith.subf %336, %345 : vector<16x32xf32>
    %347 = arith.mulf %346, %346 : vector<16x32xf32>
    %cst_111 = arith.constant dense<0.000000e+00> : vector<16xf32>
    %348 = vector.multi_reduction <add>, %347, %cst_111 [1] : vector<16x32xf32> to vector<16xf32>
    %349 = vector.shape_cast %348 : vector<16xf32> to vector<16x1xf32>
    %cst_112 = arith.constant 3.200000e+01 : f32
    %350 = vector.broadcast %cst_112 : f32 to vector<16x1xf32>
    %351 = arith.divf %349, %350 : vector<16x1xf32>
    %352 = vector.broadcast %344 : vector<16x1xf32> to vector<16x32xf32>
    %353 = arith.subf %336, %352 : vector<16x32xf32>
    %cst_113 = arith.constant 9.99999996E-13 : f32
    %354 = vector.broadcast %cst_113 : f32 to vector<16x1xf32>
    %355 = arith.addf %351, %354 : vector<16x1xf32>
    %356 = math.rsqrt %355 : vector<16x1xf32>
    %357 = vector.broadcast %356 : vector<16x1xf32> to vector<16x32xf32>
    %358 = arith.mulf %353, %357 : vector<16x32xf32>
    %359 = vector.broadcast %338 : vector<1x32xf32> to vector<16x32xf32>
    %360 = arith.mulf %358, %359 : vector<16x32xf32>
    %361 = vector.broadcast %340 : vector<1x32xf32> to vector<16x32xf32>
    %362 = arith.addf %360, %361 : vector<16x32xf32>
    %c1 = arith.constant 1 : index
    %c0_114 = arith.constant 0 : index
    %c0_115 = arith.constant 0 : index
    %363 = vector.load %arg5[%c1, %c0_114, %c0_115] : memref<2x32x96xf32, #tpu.memory_space<vmem>>, vector<1x32x96xf32>
    %364 = vector.shape_cast %363 : vector<1x32x96xf32> to vector<32x96xf32>
    %365 = arith.truncf %362 : vector<16x32xf32> to vector<16x32xbf16>
    %366 = arith.truncf %364 : vector<32x96xf32> to vector<32x96xbf16>
    %cst_116 = arith.constant dense<0.000000e+00> : vector<16x96xf32>
    %367 = tpu.matmul %365, %366, %cst_116 {dimension_numbers = #tpu.dot_dimension_numbers<[1], [0], [0], [1], [0, 0, 1, 1], [], []>} : vector<16x32xbf16>, vector<32x96xbf16>, vector<16x96xf32> -> vector<16x96xf32>
    %c1_117 = arith.constant 1 : index
    %c0_118 = arith.constant 0 : index
    %c0_119 = arith.constant 0 : index
    %368 = vector.load %arg6[%c1_117, %c0_118, %c0_119] : memref<2x1x96xf32, #tpu.memory_space<vmem>>, vector<1x1x96xf32>
    %369 = vector.shape_cast %368 : vector<1x1x96xf32> to vector<1x96xf32>
    %370 = vector.broadcast %369 : vector<1x96xf32> to vector<16x96xf32>
    %371 = arith.addf %367, %370 : vector<16x96xf32>
    %c1_120 = arith.constant 1 : index
    %c0_121 = arith.constant 0 : index
    %c0_122 = arith.constant 0 : index
    %372 = vector.load %arg7[%c1_120, %c0_121, %c0_122] : memref<2x32x32xf32, #tpu.memory_space<vmem>>, vector<1x32x32xf32>
    %373 = vector.shape_cast %372 : vector<1x32x32xf32> to vector<32x32xf32>
    %374 = vector.extract_strided_slice %29 {offsets = [0, 0], sizes = [1, 8], strides = [1, 1]} : vector<2x8xf32> to vector<1x8xf32>
    %375 = vector.extract_strided_slice %371 {offsets = [0, 0], sizes = [8, 8], strides = [1, 1]} : vector<16x96xf32> to vector<8x8xf32>
    %376 = vector.extract_strided_slice %371 {offsets = [0, 32], sizes = [8, 8], strides = [1, 1]} : vector<16x96xf32> to vector<8x8xf32>
    %377 = vector.extract_strided_slice %371 {offsets = [0, 64], sizes = [8, 8], strides = [1, 1]} : vector<16x96xf32> to vector<8x8xf32>
    %378 = tpu.transpose %376, [1, 0] : vector<8x8xf32> -> vector<8x8xf32>
    %379 = arith.truncf %375 : vector<8x8xf32> to vector<8x8xbf16>
    %380 = arith.truncf %378 : vector<8x8xf32> to vector<8x8xbf16>
    %cst_123 = arith.constant dense<0.000000e+00> : vector<8x8xf32>
    %381 = tpu.matmul %379, %380, %cst_123 {dimension_numbers = #tpu.dot_dimension_numbers<[1], [0], [0], [1], [0, 0, 1, 1], [], []>} : vector<8x8xbf16>, vector<8x8xbf16>, vector<8x8xf32> -> vector<8x8xf32>
    %cst_124 = arith.constant 0.353553385 : f32
    %382 = vector.broadcast %cst_124 : f32 to vector<8x8xf32>
    %383 = arith.mulf %381, %382 : vector<8x8xf32>
    %384 = vector.broadcast %374 : vector<1x8xf32> to vector<8x8xf32>
    %385 = arith.addf %383, %384 : vector<8x8xf32>
    %cst_125 = arith.constant dense<0xFF800000> : vector<8xf32>
    %386 = vector.multi_reduction <maximumf>, %385, %cst_125 [1] : vector<8x8xf32> to vector<8xf32>
    %387 = vector.shape_cast %386 : vector<8xf32> to vector<8x1xf32>
    %388 = vector.broadcast %387 : vector<8x1xf32> to vector<8x8xf32>
    %389 = arith.subf %385, %388 : vector<8x8xf32>
    %390 = math.exp %389 : vector<8x8xf32>
    %cst_126 = arith.constant dense<0.000000e+00> : vector<8xf32>
    %391 = vector.multi_reduction <add>, %390, %cst_126 [1] : vector<8x8xf32> to vector<8xf32>
    %392 = vector.shape_cast %391 : vector<8xf32> to vector<8x1xf32>
    %393 = tpu.reciprocal %392 {approx = true} : vector<8x1xf32> -> vector<8x1xf32>
    %394 = vector.broadcast %393 : vector<8x1xf32> to vector<8x8xf32>
    %395 = arith.mulf %390, %394 : vector<8x8xf32>
    %396 = arith.truncf %395 : vector<8x8xf32> to vector<8x8xbf16>
    %397 = arith.truncf %377 : vector<8x8xf32> to vector<8x8xbf16>
    %cst_127 = arith.constant dense<0.000000e+00> : vector<8x8xf32>
    %398 = tpu.matmul %396, %397, %cst_127 {dimension_numbers = #tpu.dot_dimension_numbers<[1], [0], [0], [1], [0, 0, 1, 1], [], []>} : vector<8x8xbf16>, vector<8x8xbf16>, vector<8x8xf32> -> vector<8x8xf32>
    %399 = vector.extract_strided_slice %373 {offsets = [0, 0], sizes = [8, 32], strides = [1, 1]} : vector<32x32xf32> to vector<8x32xf32>
    %400 = arith.truncf %398 : vector<8x8xf32> to vector<8x8xbf16>
    %401 = arith.truncf %399 : vector<8x32xf32> to vector<8x32xbf16>
    %cst_128 = arith.constant dense<0.000000e+00> : vector<8x32xf32>
    %402 = tpu.matmul %400, %401, %cst_128 {dimension_numbers = #tpu.dot_dimension_numbers<[1], [0], [0], [1], [0, 0, 1, 1], [], []>} : vector<8x8xbf16>, vector<8x32xbf16>, vector<8x32xf32> -> vector<8x32xf32>
    %403 = vector.extract_strided_slice %371 {offsets = [0, 8], sizes = [8, 8], strides = [1, 1]} : vector<16x96xf32> to vector<8x8xf32>
    %404 = vector.extract_strided_slice %371 {offsets = [0, 40], sizes = [8, 8], strides = [1, 1]} : vector<16x96xf32> to vector<8x8xf32>
    %405 = vector.extract_strided_slice %371 {offsets = [0, 72], sizes = [8, 8], strides = [1, 1]} : vector<16x96xf32> to vector<8x8xf32>
    %406 = tpu.transpose %404, [1, 0] : vector<8x8xf32> -> vector<8x8xf32>
    %407 = arith.truncf %403 : vector<8x8xf32> to vector<8x8xbf16>
    %408 = arith.truncf %406 : vector<8x8xf32> to vector<8x8xbf16>
    %cst_129 = arith.constant dense<0.000000e+00> : vector<8x8xf32>
    %409 = tpu.matmul %407, %408, %cst_129 {dimension_numbers = #tpu.dot_dimension_numbers<[1], [0], [0], [1], [0, 0, 1, 1], [], []>} : vector<8x8xbf16>, vector<8x8xbf16>, vector<8x8xf32> -> vector<8x8xf32>
    %cst_130 = arith.constant 0.353553385 : f32
    %410 = vector.broadcast %cst_130 : f32 to vector<8x8xf32>
    %411 = arith.mulf %409, %410 : vector<8x8xf32>
    %412 = vector.broadcast %374 : vector<1x8xf32> to vector<8x8xf32>
    %413 = arith.addf %411, %412 : vector<8x8xf32>
    %cst_131 = arith.constant dense<0xFF800000> : vector<8xf32>
    %414 = vector.multi_reduction <maximumf>, %413, %cst_131 [1] : vector<8x8xf32> to vector<8xf32>
    %415 = vector.shape_cast %414 : vector<8xf32> to vector<8x1xf32>
    %416 = vector.broadcast %415 : vector<8x1xf32> to vector<8x8xf32>
    %417 = arith.subf %413, %416 : vector<8x8xf32>
    %418 = math.exp %417 : vector<8x8xf32>
    %cst_132 = arith.constant dense<0.000000e+00> : vector<8xf32>
    %419 = vector.multi_reduction <add>, %418, %cst_132 [1] : vector<8x8xf32> to vector<8xf32>
    %420 = vector.shape_cast %419 : vector<8xf32> to vector<8x1xf32>
    %421 = tpu.reciprocal %420 {approx = true} : vector<8x1xf32> -> vector<8x1xf32>
    %422 = vector.broadcast %421 : vector<8x1xf32> to vector<8x8xf32>
    %423 = arith.mulf %418, %422 : vector<8x8xf32>
    %424 = arith.truncf %423 : vector<8x8xf32> to vector<8x8xbf16>
    %425 = arith.truncf %405 : vector<8x8xf32> to vector<8x8xbf16>
    %cst_133 = arith.constant dense<0.000000e+00> : vector<8x8xf32>
    %426 = tpu.matmul %424, %425, %cst_133 {dimension_numbers = #tpu.dot_dimension_numbers<[1], [0], [0], [1], [0, 0, 1, 1], [], []>} : vector<8x8xbf16>, vector<8x8xbf16>, vector<8x8xf32> -> vector<8x8xf32>
    %427 = vector.extract_strided_slice %373 {offsets = [8, 0], sizes = [8, 32], strides = [1, 1]} : vector<32x32xf32> to vector<8x32xf32>
    %428 = arith.truncf %426 : vector<8x8xf32> to vector<8x8xbf16>
    %429 = arith.truncf %427 : vector<8x32xf32> to vector<8x32xbf16>
    %cst_134 = arith.constant dense<0.000000e+00> : vector<8x32xf32>
    %430 = tpu.matmul %428, %429, %cst_134 {dimension_numbers = #tpu.dot_dimension_numbers<[1], [0], [0], [1], [0, 0, 1, 1], [], []>} : vector<8x8xbf16>, vector<8x32xbf16>, vector<8x32xf32> -> vector<8x32xf32>
    %431 = arith.addf %402, %430 : vector<8x32xf32>
    %432 = vector.extract_strided_slice %371 {offsets = [0, 16], sizes = [8, 8], strides = [1, 1]} : vector<16x96xf32> to vector<8x8xf32>
    %433 = vector.extract_strided_slice %371 {offsets = [0, 48], sizes = [8, 8], strides = [1, 1]} : vector<16x96xf32> to vector<8x8xf32>
    %434 = vector.extract_strided_slice %371 {offsets = [0, 80], sizes = [8, 8], strides = [1, 1]} : vector<16x96xf32> to vector<8x8xf32>
    %435 = tpu.transpose %433, [1, 0] : vector<8x8xf32> -> vector<8x8xf32>
    %436 = arith.truncf %432 : vector<8x8xf32> to vector<8x8xbf16>
    %437 = arith.truncf %435 : vector<8x8xf32> to vector<8x8xbf16>
    %cst_135 = arith.constant dense<0.000000e+00> : vector<8x8xf32>
    %438 = tpu.matmul %436, %437, %cst_135 {dimension_numbers = #tpu.dot_dimension_numbers<[1], [0], [0], [1], [0, 0, 1, 1], [], []>} : vector<8x8xbf16>, vector<8x8xbf16>, vector<8x8xf32> -> vector<8x8xf32>
    %cst_136 = arith.constant 0.353553385 : f32
    %439 = vector.broadcast %cst_136 : f32 to vector<8x8xf32>
    %440 = arith.mulf %438, %439 : vector<8x8xf32>
    %441 = vector.broadcast %374 : vector<1x8xf32> to vector<8x8xf32>
    %442 = arith.addf %440, %441 : vector<8x8xf32>
    %cst_137 = arith.constant dense<0xFF800000> : vector<8xf32>
    %443 = vector.multi_reduction <maximumf>, %442, %cst_137 [1] : vector<8x8xf32> to vector<8xf32>
    %444 = vector.shape_cast %443 : vector<8xf32> to vector<8x1xf32>
    %445 = vector.broadcast %444 : vector<8x1xf32> to vector<8x8xf32>
    %446 = arith.subf %442, %445 : vector<8x8xf32>
    %447 = math.exp %446 : vector<8x8xf32>
    %cst_138 = arith.constant dense<0.000000e+00> : vector<8xf32>
    %448 = vector.multi_reduction <add>, %447, %cst_138 [1] : vector<8x8xf32> to vector<8xf32>
    %449 = vector.shape_cast %448 : vector<8xf32> to vector<8x1xf32>
    %450 = tpu.reciprocal %449 {approx = true} : vector<8x1xf32> -> vector<8x1xf32>
    %451 = vector.broadcast %450 : vector<8x1xf32> to vector<8x8xf32>
    %452 = arith.mulf %447, %451 : vector<8x8xf32>
    %453 = arith.truncf %452 : vector<8x8xf32> to vector<8x8xbf16>
    %454 = arith.truncf %434 : vector<8x8xf32> to vector<8x8xbf16>
    %cst_139 = arith.constant dense<0.000000e+00> : vector<8x8xf32>
    %455 = tpu.matmul %453, %454, %cst_139 {dimension_numbers = #tpu.dot_dimension_numbers<[1], [0], [0], [1], [0, 0, 1, 1], [], []>} : vector<8x8xbf16>, vector<8x8xbf16>, vector<8x8xf32> -> vector<8x8xf32>
    %456 = vector.extract_strided_slice %373 {offsets = [16, 0], sizes = [8, 32], strides = [1, 1]} : vector<32x32xf32> to vector<8x32xf32>
    %457 = arith.truncf %455 : vector<8x8xf32> to vector<8x8xbf16>
    %458 = arith.truncf %456 : vector<8x32xf32> to vector<8x32xbf16>
    %cst_140 = arith.constant dense<0.000000e+00> : vector<8x32xf32>
    %459 = tpu.matmul %457, %458, %cst_140 {dimension_numbers = #tpu.dot_dimension_numbers<[1], [0], [0], [1], [0, 0, 1, 1], [], []>} : vector<8x8xbf16>, vector<8x32xbf16>, vector<8x32xf32> -> vector<8x32xf32>
    %460 = arith.addf %431, %459 : vector<8x32xf32>
    %461 = vector.extract_strided_slice %371 {offsets = [0, 24], sizes = [8, 8], strides = [1, 1]} : vector<16x96xf32> to vector<8x8xf32>
    %462 = vector.extract_strided_slice %371 {offsets = [0, 56], sizes = [8, 8], strides = [1, 1]} : vector<16x96xf32> to vector<8x8xf32>
    %463 = vector.extract_strided_slice %371 {offsets = [0, 88], sizes = [8, 8], strides = [1, 1]} : vector<16x96xf32> to vector<8x8xf32>
    %464 = tpu.transpose %462, [1, 0] : vector<8x8xf32> -> vector<8x8xf32>
    %465 = arith.truncf %461 : vector<8x8xf32> to vector<8x8xbf16>
    %466 = arith.truncf %464 : vector<8x8xf32> to vector<8x8xbf16>
    %cst_141 = arith.constant dense<0.000000e+00> : vector<8x8xf32>
    %467 = tpu.matmul %465, %466, %cst_141 {dimension_numbers = #tpu.dot_dimension_numbers<[1], [0], [0], [1], [0, 0, 1, 1], [], []>} : vector<8x8xbf16>, vector<8x8xbf16>, vector<8x8xf32> -> vector<8x8xf32>
    %cst_142 = arith.constant 0.353553385 : f32
    %468 = vector.broadcast %cst_142 : f32 to vector<8x8xf32>
    %469 = arith.mulf %467, %468 : vector<8x8xf32>
    %470 = vector.broadcast %374 : vector<1x8xf32> to vector<8x8xf32>
    %471 = arith.addf %469, %470 : vector<8x8xf32>
    %cst_143 = arith.constant dense<0xFF800000> : vector<8xf32>
    %472 = vector.multi_reduction <maximumf>, %471, %cst_143 [1] : vector<8x8xf32> to vector<8xf32>
    %473 = vector.shape_cast %472 : vector<8xf32> to vector<8x1xf32>
    %474 = vector.broadcast %473 : vector<8x1xf32> to vector<8x8xf32>
    %475 = arith.subf %471, %474 : vector<8x8xf32>
    %476 = math.exp %475 : vector<8x8xf32>
    %cst_144 = arith.constant dense<0.000000e+00> : vector<8xf32>
    %477 = vector.multi_reduction <add>, %476, %cst_144 [1] : vector<8x8xf32> to vector<8xf32>
    %478 = vector.shape_cast %477 : vector<8xf32> to vector<8x1xf32>
    %479 = tpu.reciprocal %478 {approx = true} : vector<8x1xf32> -> vector<8x1xf32>
    %480 = vector.broadcast %479 : vector<8x1xf32> to vector<8x8xf32>
    %481 = arith.mulf %476, %480 : vector<8x8xf32>
    %482 = arith.truncf %481 : vector<8x8xf32> to vector<8x8xbf16>
    %483 = arith.truncf %463 : vector<8x8xf32> to vector<8x8xbf16>
    %cst_145 = arith.constant dense<0.000000e+00> : vector<8x8xf32>
    %484 = tpu.matmul %482, %483, %cst_145 {dimension_numbers = #tpu.dot_dimension_numbers<[1], [0], [0], [1], [0, 0, 1, 1], [], []>} : vector<8x8xbf16>, vector<8x8xbf16>, vector<8x8xf32> -> vector<8x8xf32>
    %485 = vector.extract_strided_slice %373 {offsets = [24, 0], sizes = [8, 32], strides = [1, 1]} : vector<32x32xf32> to vector<8x32xf32>
    %486 = arith.truncf %484 : vector<8x8xf32> to vector<8x8xbf16>
    %487 = arith.truncf %485 : vector<8x32xf32> to vector<8x32xbf16>
    %cst_146 = arith.constant dense<0.000000e+00> : vector<8x32xf32>
    %488 = tpu.matmul %486, %487, %cst_146 {dimension_numbers = #tpu.dot_dimension_numbers<[1], [0], [0], [1], [0, 0, 1, 1], [], []>} : vector<8x8xbf16>, vector<8x32xbf16>, vector<8x32xf32> -> vector<8x32xf32>
    %489 = arith.addf %460, %488 : vector<8x32xf32>
    %490 = vector.extract_strided_slice %29 {offsets = [1, 0], sizes = [1, 8], strides = [1, 1]} : vector<2x8xf32> to vector<1x8xf32>
    %491 = vector.extract_strided_slice %371 {offsets = [8, 0], sizes = [8, 8], strides = [1, 1]} : vector<16x96xf32> to vector<8x8xf32>
    %492 = vector.extract_strided_slice %371 {offsets = [8, 32], sizes = [8, 8], strides = [1, 1]} : vector<16x96xf32> to vector<8x8xf32>
    %493 = vector.extract_strided_slice %371 {offsets = [8, 64], sizes = [8, 8], strides = [1, 1]} : vector<16x96xf32> to vector<8x8xf32>
    %494 = tpu.transpose %492, [1, 0] : vector<8x8xf32> -> vector<8x8xf32>
    %495 = arith.truncf %491 : vector<8x8xf32> to vector<8x8xbf16>
    %496 = arith.truncf %494 : vector<8x8xf32> to vector<8x8xbf16>
    %cst_147 = arith.constant dense<0.000000e+00> : vector<8x8xf32>
    %497 = tpu.matmul %495, %496, %cst_147 {dimension_numbers = #tpu.dot_dimension_numbers<[1], [0], [0], [1], [0, 0, 1, 1], [], []>} : vector<8x8xbf16>, vector<8x8xbf16>, vector<8x8xf32> -> vector<8x8xf32>
    %cst_148 = arith.constant 0.353553385 : f32
    %498 = vector.broadcast %cst_148 : f32 to vector<8x8xf32>
    %499 = arith.mulf %497, %498 : vector<8x8xf32>
    %500 = vector.broadcast %490 : vector<1x8xf32> to vector<8x8xf32>
    %501 = arith.addf %499, %500 : vector<8x8xf32>
    %cst_149 = arith.constant dense<0xFF800000> : vector<8xf32>
    %502 = vector.multi_reduction <maximumf>, %501, %cst_149 [1] : vector<8x8xf32> to vector<8xf32>
    %503 = vector.shape_cast %502 : vector<8xf32> to vector<8x1xf32>
    %504 = vector.broadcast %503 : vector<8x1xf32> to vector<8x8xf32>
    %505 = arith.subf %501, %504 : vector<8x8xf32>
    %506 = math.exp %505 : vector<8x8xf32>
    %cst_150 = arith.constant dense<0.000000e+00> : vector<8xf32>
    %507 = vector.multi_reduction <add>, %506, %cst_150 [1] : vector<8x8xf32> to vector<8xf32>
    %508 = vector.shape_cast %507 : vector<8xf32> to vector<8x1xf32>
    %509 = tpu.reciprocal %508 {approx = true} : vector<8x1xf32> -> vector<8x1xf32>
    %510 = vector.broadcast %509 : vector<8x1xf32> to vector<8x8xf32>
    %511 = arith.mulf %506, %510 : vector<8x8xf32>
    %512 = arith.truncf %511 : vector<8x8xf32> to vector<8x8xbf16>
    %513 = arith.truncf %493 : vector<8x8xf32> to vector<8x8xbf16>
    %cst_151 = arith.constant dense<0.000000e+00> : vector<8x8xf32>
    %514 = tpu.matmul %512, %513, %cst_151 {dimension_numbers = #tpu.dot_dimension_numbers<[1], [0], [0], [1], [0, 0, 1, 1], [], []>} : vector<8x8xbf16>, vector<8x8xbf16>, vector<8x8xf32> -> vector<8x8xf32>
    %515 = vector.extract_strided_slice %373 {offsets = [0, 0], sizes = [8, 32], strides = [1, 1]} : vector<32x32xf32> to vector<8x32xf32>
    %516 = arith.truncf %514 : vector<8x8xf32> to vector<8x8xbf16>
    %517 = arith.truncf %515 : vector<8x32xf32> to vector<8x32xbf16>
    %cst_152 = arith.constant dense<0.000000e+00> : vector<8x32xf32>
    %518 = tpu.matmul %516, %517, %cst_152 {dimension_numbers = #tpu.dot_dimension_numbers<[1], [0], [0], [1], [0, 0, 1, 1], [], []>} : vector<8x8xbf16>, vector<8x32xbf16>, vector<8x32xf32> -> vector<8x32xf32>
    %519 = vector.extract_strided_slice %371 {offsets = [8, 8], sizes = [8, 8], strides = [1, 1]} : vector<16x96xf32> to vector<8x8xf32>
    %520 = vector.extract_strided_slice %371 {offsets = [8, 40], sizes = [8, 8], strides = [1, 1]} : vector<16x96xf32> to vector<8x8xf32>
    %521 = vector.extract_strided_slice %371 {offsets = [8, 72], sizes = [8, 8], strides = [1, 1]} : vector<16x96xf32> to vector<8x8xf32>
    %522 = tpu.transpose %520, [1, 0] : vector<8x8xf32> -> vector<8x8xf32>
    %523 = arith.truncf %519 : vector<8x8xf32> to vector<8x8xbf16>
    %524 = arith.truncf %522 : vector<8x8xf32> to vector<8x8xbf16>
    %cst_153 = arith.constant dense<0.000000e+00> : vector<8x8xf32>
    %525 = tpu.matmul %523, %524, %cst_153 {dimension_numbers = #tpu.dot_dimension_numbers<[1], [0], [0], [1], [0, 0, 1, 1], [], []>} : vector<8x8xbf16>, vector<8x8xbf16>, vector<8x8xf32> -> vector<8x8xf32>
    %cst_154 = arith.constant 0.353553385 : f32
    %526 = vector.broadcast %cst_154 : f32 to vector<8x8xf32>
    %527 = arith.mulf %525, %526 : vector<8x8xf32>
    %528 = vector.broadcast %490 : vector<1x8xf32> to vector<8x8xf32>
    %529 = arith.addf %527, %528 : vector<8x8xf32>
    %cst_155 = arith.constant dense<0xFF800000> : vector<8xf32>
    %530 = vector.multi_reduction <maximumf>, %529, %cst_155 [1] : vector<8x8xf32> to vector<8xf32>
    %531 = vector.shape_cast %530 : vector<8xf32> to vector<8x1xf32>
    %532 = vector.broadcast %531 : vector<8x1xf32> to vector<8x8xf32>
    %533 = arith.subf %529, %532 : vector<8x8xf32>
    %534 = math.exp %533 : vector<8x8xf32>
    %cst_156 = arith.constant dense<0.000000e+00> : vector<8xf32>
    %535 = vector.multi_reduction <add>, %534, %cst_156 [1] : vector<8x8xf32> to vector<8xf32>
    %536 = vector.shape_cast %535 : vector<8xf32> to vector<8x1xf32>
    %537 = tpu.reciprocal %536 {approx = true} : vector<8x1xf32> -> vector<8x1xf32>
    %538 = vector.broadcast %537 : vector<8x1xf32> to vector<8x8xf32>
    %539 = arith.mulf %534, %538 : vector<8x8xf32>
    %540 = arith.truncf %539 : vector<8x8xf32> to vector<8x8xbf16>
    %541 = arith.truncf %521 : vector<8x8xf32> to vector<8x8xbf16>
    %cst_157 = arith.constant dense<0.000000e+00> : vector<8x8xf32>
    %542 = tpu.matmul %540, %541, %cst_157 {dimension_numbers = #tpu.dot_dimension_numbers<[1], [0], [0], [1], [0, 0, 1, 1], [], []>} : vector<8x8xbf16>, vector<8x8xbf16>, vector<8x8xf32> -> vector<8x8xf32>
    %543 = vector.extract_strided_slice %373 {offsets = [8, 0], sizes = [8, 32], strides = [1, 1]} : vector<32x32xf32> to vector<8x32xf32>
    %544 = arith.truncf %542 : vector<8x8xf32> to vector<8x8xbf16>
    %545 = arith.truncf %543 : vector<8x32xf32> to vector<8x32xbf16>
    %cst_158 = arith.constant dense<0.000000e+00> : vector<8x32xf32>
    %546 = tpu.matmul %544, %545, %cst_158 {dimension_numbers = #tpu.dot_dimension_numbers<[1], [0], [0], [1], [0, 0, 1, 1], [], []>} : vector<8x8xbf16>, vector<8x32xbf16>, vector<8x32xf32> -> vector<8x32xf32>
    %547 = arith.addf %518, %546 : vector<8x32xf32>
    %548 = vector.extract_strided_slice %371 {offsets = [8, 16], sizes = [8, 8], strides = [1, 1]} : vector<16x96xf32> to vector<8x8xf32>
    %549 = vector.extract_strided_slice %371 {offsets = [8, 48], sizes = [8, 8], strides = [1, 1]} : vector<16x96xf32> to vector<8x8xf32>
    %550 = vector.extract_strided_slice %371 {offsets = [8, 80], sizes = [8, 8], strides = [1, 1]} : vector<16x96xf32> to vector<8x8xf32>
    %551 = tpu.transpose %549, [1, 0] : vector<8x8xf32> -> vector<8x8xf32>
    %552 = arith.truncf %548 : vector<8x8xf32> to vector<8x8xbf16>
    %553 = arith.truncf %551 : vector<8x8xf32> to vector<8x8xbf16>
    %cst_159 = arith.constant dense<0.000000e+00> : vector<8x8xf32>
    %554 = tpu.matmul %552, %553, %cst_159 {dimension_numbers = #tpu.dot_dimension_numbers<[1], [0], [0], [1], [0, 0, 1, 1], [], []>} : vector<8x8xbf16>, vector<8x8xbf16>, vector<8x8xf32> -> vector<8x8xf32>
    %cst_160 = arith.constant 0.353553385 : f32
    %555 = vector.broadcast %cst_160 : f32 to vector<8x8xf32>
    %556 = arith.mulf %554, %555 : vector<8x8xf32>
    %557 = vector.broadcast %490 : vector<1x8xf32> to vector<8x8xf32>
    %558 = arith.addf %556, %557 : vector<8x8xf32>
    %cst_161 = arith.constant dense<0xFF800000> : vector<8xf32>
    %559 = vector.multi_reduction <maximumf>, %558, %cst_161 [1] : vector<8x8xf32> to vector<8xf32>
    %560 = vector.shape_cast %559 : vector<8xf32> to vector<8x1xf32>
    %561 = vector.broadcast %560 : vector<8x1xf32> to vector<8x8xf32>
    %562 = arith.subf %558, %561 : vector<8x8xf32>
    %563 = math.exp %562 : vector<8x8xf32>
    %cst_162 = arith.constant dense<0.000000e+00> : vector<8xf32>
    %564 = vector.multi_reduction <add>, %563, %cst_162 [1] : vector<8x8xf32> to vector<8xf32>
    %565 = vector.shape_cast %564 : vector<8xf32> to vector<8x1xf32>
    %566 = tpu.reciprocal %565 {approx = true} : vector<8x1xf32> -> vector<8x1xf32>
    %567 = vector.broadcast %566 : vector<8x1xf32> to vector<8x8xf32>
    %568 = arith.mulf %563, %567 : vector<8x8xf32>
    %569 = arith.truncf %568 : vector<8x8xf32> to vector<8x8xbf16>
    %570 = arith.truncf %550 : vector<8x8xf32> to vector<8x8xbf16>
    %cst_163 = arith.constant dense<0.000000e+00> : vector<8x8xf32>
    %571 = tpu.matmul %569, %570, %cst_163 {dimension_numbers = #tpu.dot_dimension_numbers<[1], [0], [0], [1], [0, 0, 1, 1], [], []>} : vector<8x8xbf16>, vector<8x8xbf16>, vector<8x8xf32> -> vector<8x8xf32>
    %572 = vector.extract_strided_slice %373 {offsets = [16, 0], sizes = [8, 32], strides = [1, 1]} : vector<32x32xf32> to vector<8x32xf32>
    %573 = arith.truncf %571 : vector<8x8xf32> to vector<8x8xbf16>
    %574 = arith.truncf %572 : vector<8x32xf32> to vector<8x32xbf16>
    %cst_164 = arith.constant dense<0.000000e+00> : vector<8x32xf32>
    %575 = tpu.matmul %573, %574, %cst_164 {dimension_numbers = #tpu.dot_dimension_numbers<[1], [0], [0], [1], [0, 0, 1, 1], [], []>} : vector<8x8xbf16>, vector<8x32xbf16>, vector<8x32xf32> -> vector<8x32xf32>
    %576 = arith.addf %547, %575 : vector<8x32xf32>
    %577 = vector.extract_strided_slice %371 {offsets = [8, 24], sizes = [8, 8], strides = [1, 1]} : vector<16x96xf32> to vector<8x8xf32>
    %578 = vector.extract_strided_slice %371 {offsets = [8, 56], sizes = [8, 8], strides = [1, 1]} : vector<16x96xf32> to vector<8x8xf32>
    %579 = vector.extract_strided_slice %371 {offsets = [8, 88], sizes = [8, 8], strides = [1, 1]} : vector<16x96xf32> to vector<8x8xf32>
    %580 = tpu.transpose %578, [1, 0] : vector<8x8xf32> -> vector<8x8xf32>
    %581 = arith.truncf %577 : vector<8x8xf32> to vector<8x8xbf16>
    %582 = arith.truncf %580 : vector<8x8xf32> to vector<8x8xbf16>
    %cst_165 = arith.constant dense<0.000000e+00> : vector<8x8xf32>
    %583 = tpu.matmul %581, %582, %cst_165 {dimension_numbers = #tpu.dot_dimension_numbers<[1], [0], [0], [1], [0, 0, 1, 1], [], []>} : vector<8x8xbf16>, vector<8x8xbf16>, vector<8x8xf32> -> vector<8x8xf32>
    %cst_166 = arith.constant 0.353553385 : f32
    %584 = vector.broadcast %cst_166 : f32 to vector<8x8xf32>
    %585 = arith.mulf %583, %584 : vector<8x8xf32>
    %586 = vector.broadcast %490 : vector<1x8xf32> to vector<8x8xf32>
    %587 = arith.addf %585, %586 : vector<8x8xf32>
    %cst_167 = arith.constant dense<0xFF800000> : vector<8xf32>
    %588 = vector.multi_reduction <maximumf>, %587, %cst_167 [1] : vector<8x8xf32> to vector<8xf32>
    %589 = vector.shape_cast %588 : vector<8xf32> to vector<8x1xf32>
    %590 = vector.broadcast %589 : vector<8x1xf32> to vector<8x8xf32>
    %591 = arith.subf %587, %590 : vector<8x8xf32>
    %592 = math.exp %591 : vector<8x8xf32>
    %cst_168 = arith.constant dense<0.000000e+00> : vector<8xf32>
    %593 = vector.multi_reduction <add>, %592, %cst_168 [1] : vector<8x8xf32> to vector<8xf32>
    %594 = vector.shape_cast %593 : vector<8xf32> to vector<8x1xf32>
    %595 = tpu.reciprocal %594 {approx = true} : vector<8x1xf32> -> vector<8x1xf32>
    %596 = vector.broadcast %595 : vector<8x1xf32> to vector<8x8xf32>
    %597 = arith.mulf %592, %596 : vector<8x8xf32>
    %598 = arith.truncf %597 : vector<8x8xf32> to vector<8x8xbf16>
    %599 = arith.truncf %579 : vector<8x8xf32> to vector<8x8xbf16>
    %cst_169 = arith.constant dense<0.000000e+00> : vector<8x8xf32>
    %600 = tpu.matmul %598, %599, %cst_169 {dimension_numbers = #tpu.dot_dimension_numbers<[1], [0], [0], [1], [0, 0, 1, 1], [], []>} : vector<8x8xbf16>, vector<8x8xbf16>, vector<8x8xf32> -> vector<8x8xf32>
    %601 = vector.extract_strided_slice %373 {offsets = [24, 0], sizes = [8, 32], strides = [1, 1]} : vector<32x32xf32> to vector<8x32xf32>
    %602 = arith.truncf %600 : vector<8x8xf32> to vector<8x8xbf16>
    %603 = arith.truncf %601 : vector<8x32xf32> to vector<8x32xbf16>
    %cst_170 = arith.constant dense<0.000000e+00> : vector<8x32xf32>
    %604 = tpu.matmul %602, %603, %cst_170 {dimension_numbers = #tpu.dot_dimension_numbers<[1], [0], [0], [1], [0, 0, 1, 1], [], []>} : vector<8x8xbf16>, vector<8x32xbf16>, vector<8x32xf32> -> vector<8x32xf32>
    %605 = arith.addf %576, %604 : vector<8x32xf32>
    %606 = tpu.concatenate %489, %605 in 0 : vector<8x32xf32>, vector<8x32xf32> -> vector<16x32xf32>
    %c1_171 = arith.constant 1 : index
    %c0_172 = arith.constant 0 : index
    %c0_173 = arith.constant 0 : index
    %607 = vector.load %arg8[%c1_171, %c0_172, %c0_173] : memref<2x1x32xf32, #tpu.memory_space<vmem>>, vector<1x1x32xf32>
    %608 = vector.shape_cast %607 : vector<1x1x32xf32> to vector<1x32xf32>
    %609 = vector.broadcast %608 : vector<1x32xf32> to vector<16x32xf32>
    %610 = arith.addf %606, %609 : vector<16x32xf32>
    %611 = arith.addf %362, %610 : vector<16x32xf32>
    %c1_174 = arith.constant 1 : index
    %c0_175 = arith.constant 0 : index
    %c0_176 = arith.constant 0 : index
    %612 = vector.load %arg9[%c1_174, %c0_175, %c0_176] : memref<2x1x32xf32, #tpu.memory_space<vmem>>, vector<1x1x32xf32>
    %613 = vector.shape_cast %612 : vector<1x1x32xf32> to vector<1x32xf32>
    %c1_177 = arith.constant 1 : index
    %c0_178 = arith.constant 0 : index
    %c0_179 = arith.constant 0 : index
    %614 = vector.load %arg10[%c1_177, %c0_178, %c0_179] : memref<2x1x32xf32, #tpu.memory_space<vmem>>, vector<1x1x32xf32>
    %615 = vector.shape_cast %614 : vector<1x1x32xf32> to vector<1x32xf32>
    %cst_180 = arith.constant dense<0.000000e+00> : vector<16xf32>
    %616 = vector.multi_reduction <add>, %611, %cst_180 [1] : vector<16x32xf32> to vector<16xf32>
    %617 = vector.shape_cast %616 : vector<16xf32> to vector<16x1xf32>
    %cst_181 = arith.constant 3.200000e+01 : f32
    %618 = vector.broadcast %cst_181 : f32 to vector<16x1xf32>
    %619 = arith.divf %617, %618 : vector<16x1xf32>
    %620 = vector.broadcast %619 : vector<16x1xf32> to vector<16x32xf32>
    %621 = arith.subf %611, %620 : vector<16x32xf32>
    %622 = arith.mulf %621, %621 : vector<16x32xf32>
    %cst_182 = arith.constant dense<0.000000e+00> : vector<16xf32>
    %623 = vector.multi_reduction <add>, %622, %cst_182 [1] : vector<16x32xf32> to vector<16xf32>
    %624 = vector.shape_cast %623 : vector<16xf32> to vector<16x1xf32>
    %cst_183 = arith.constant 3.200000e+01 : f32
    %625 = vector.broadcast %cst_183 : f32 to vector<16x1xf32>
    %626 = arith.divf %624, %625 : vector<16x1xf32>
    %627 = vector.broadcast %619 : vector<16x1xf32> to vector<16x32xf32>
    %628 = arith.subf %611, %627 : vector<16x32xf32>
    %cst_184 = arith.constant 9.99999996E-13 : f32
    %629 = vector.broadcast %cst_184 : f32 to vector<16x1xf32>
    %630 = arith.addf %626, %629 : vector<16x1xf32>
    %631 = math.rsqrt %630 : vector<16x1xf32>
    %632 = vector.broadcast %631 : vector<16x1xf32> to vector<16x32xf32>
    %633 = arith.mulf %628, %632 : vector<16x32xf32>
    %634 = vector.broadcast %613 : vector<1x32xf32> to vector<16x32xf32>
    %635 = arith.mulf %633, %634 : vector<16x32xf32>
    %636 = vector.broadcast %615 : vector<1x32xf32> to vector<16x32xf32>
    %637 = arith.addf %635, %636 : vector<16x32xf32>
    %c1_185 = arith.constant 1 : index
    %c0_186 = arith.constant 0 : index
    %c0_187 = arith.constant 0 : index
    %638 = vector.load %arg11[%c1_185, %c0_186, %c0_187] : memref<2x32x64xf32, #tpu.memory_space<vmem>>, vector<1x32x64xf32>
    %639 = vector.shape_cast %638 : vector<1x32x64xf32> to vector<32x64xf32>
    %640 = arith.truncf %637 : vector<16x32xf32> to vector<16x32xbf16>
    %641 = arith.truncf %639 : vector<32x64xf32> to vector<32x64xbf16>
    %cst_188 = arith.constant dense<0.000000e+00> : vector<16x64xf32>
    %642 = tpu.matmul %640, %641, %cst_188 {dimension_numbers = #tpu.dot_dimension_numbers<[1], [0], [0], [1], [0, 0, 1, 1], [], []>} : vector<16x32xbf16>, vector<32x64xbf16>, vector<16x64xf32> -> vector<16x64xf32>
    %c1_189 = arith.constant 1 : index
    %c0_190 = arith.constant 0 : index
    %c0_191 = arith.constant 0 : index
    %643 = vector.load %arg12[%c1_189, %c0_190, %c0_191] : memref<2x1x64xf32, #tpu.memory_space<vmem>>, vector<1x1x64xf32>
    %644 = vector.shape_cast %643 : vector<1x1x64xf32> to vector<1x64xf32>
    %645 = vector.broadcast %644 : vector<1x64xf32> to vector<16x64xf32>
    %646 = arith.addf %642, %645 : vector<16x64xf32>
    %cst_192 = arith.constant 5.000000e-01 : f32
    %647 = vector.broadcast %cst_192 : f32 to vector<16x64xf32>
    %648 = arith.mulf %647, %646 : vector<16x64xf32>
    %cst_193 = arith.constant 4.471500e-02 : f32
    %649 = vector.broadcast %cst_193 : f32 to vector<16x64xf32>
    %650 = arith.mulf %649, %646 : vector<16x64xf32>
    %651 = arith.mulf %650, %646 : vector<16x64xf32>
    %652 = arith.mulf %651, %646 : vector<16x64xf32>
    %653 = arith.addf %646, %652 : vector<16x64xf32>
    %cst_194 = arith.constant 0.797884583 : f32
    %654 = vector.broadcast %cst_194 : f32 to vector<16x64xf32>
    %655 = arith.mulf %654, %653 : vector<16x64xf32>
    %656 = math.tanh %655 : vector<16x64xf32>
    %cst_195 = arith.constant 1.000000e+00 : f32
    %657 = vector.broadcast %cst_195 : f32 to vector<16x64xf32>
    %658 = arith.addf %657, %656 : vector<16x64xf32>
    %659 = arith.mulf %648, %658 : vector<16x64xf32>
    %c1_196 = arith.constant 1 : index
    %c0_197 = arith.constant 0 : index
    %c0_198 = arith.constant 0 : index
    %660 = vector.load %arg13[%c1_196, %c0_197, %c0_198] : memref<2x64x32xf32, #tpu.memory_space<vmem>>, vector<1x64x32xf32>
    %661 = vector.shape_cast %660 : vector<1x64x32xf32> to vector<64x32xf32>
    %662 = arith.truncf %659 : vector<16x64xf32> to vector<16x64xbf16>
    %663 = arith.truncf %661 : vector<64x32xf32> to vector<64x32xbf16>
    %cst_199 = arith.constant dense<0.000000e+00> : vector<16x32xf32>
    %664 = tpu.matmul %662, %663, %cst_199 {dimension_numbers = #tpu.dot_dimension_numbers<[1], [0], [0], [1], [0, 0, 1, 1], [], []>} : vector<16x64xbf16>, vector<64x32xbf16>, vector<16x32xf32> -> vector<16x32xf32>
    %c1_200 = arith.constant 1 : index
    %c0_201 = arith.constant 0 : index
    %c0_202 = arith.constant 0 : index
    %665 = vector.load %arg14[%c1_200, %c0_201, %c0_202] : memref<2x1x32xf32, #tpu.memory_space<vmem>>, vector<1x1x32xf32>
    %666 = vector.shape_cast %665 : vector<1x1x32xf32> to vector<1x32xf32>
    %667 = vector.broadcast %666 : vector<1x32xf32> to vector<16x32xf32>
    %668 = arith.addf %664, %667 : vector<16x32xf32>
    %669 = arith.addf %637, %668 : vector<16x32xf32>
    %c1_203 = arith.constant 1 : index
    %c0_204 = arith.constant 0 : index
    %c0_205 = arith.constant 0 : index
    %670 = vector.load %arg15[%c1_203, %c0_204, %c0_205] : memref<2x1x32xf32, #tpu.memory_space<vmem>>, vector<1x1x32xf32>
    %671 = vector.shape_cast %670 : vector<1x1x32xf32> to vector<1x32xf32>
    %c1_206 = arith.constant 1 : index
    %c0_207 = arith.constant 0 : index
    %c0_208 = arith.constant 0 : index
    %672 = vector.load %arg16[%c1_206, %c0_207, %c0_208] : memref<2x1x32xf32, #tpu.memory_space<vmem>>, vector<1x1x32xf32>
    %673 = vector.shape_cast %672 : vector<1x1x32xf32> to vector<1x32xf32>
    %cst_209 = arith.constant dense<0.000000e+00> : vector<16xf32>
    %674 = vector.multi_reduction <add>, %669, %cst_209 [1] : vector<16x32xf32> to vector<16xf32>
    %675 = vector.shape_cast %674 : vector<16xf32> to vector<16x1xf32>
    %cst_210 = arith.constant 3.200000e+01 : f32
    %676 = vector.broadcast %cst_210 : f32 to vector<16x1xf32>
    %677 = arith.divf %675, %676 : vector<16x1xf32>
    %678 = vector.broadcast %677 : vector<16x1xf32> to vector<16x32xf32>
    %679 = arith.subf %669, %678 : vector<16x32xf32>
    %680 = arith.mulf %679, %679 : vector<16x32xf32>
    %cst_211 = arith.constant dense<0.000000e+00> : vector<16xf32>
    %681 = vector.multi_reduction <add>, %680, %cst_211 [1] : vector<16x32xf32> to vector<16xf32>
    %682 = vector.shape_cast %681 : vector<16xf32> to vector<16x1xf32>
    %cst_212 = arith.constant 3.200000e+01 : f32
    %683 = vector.broadcast %cst_212 : f32 to vector<16x1xf32>
    %684 = arith.divf %682, %683 : vector<16x1xf32>
    %685 = vector.broadcast %677 : vector<16x1xf32> to vector<16x32xf32>
    %686 = arith.subf %669, %685 : vector<16x32xf32>
    %cst_213 = arith.constant 9.99999996E-13 : f32
    %687 = vector.broadcast %cst_213 : f32 to vector<16x1xf32>
    %688 = arith.addf %684, %687 : vector<16x1xf32>
    %689 = math.rsqrt %688 : vector<16x1xf32>
    %690 = vector.broadcast %689 : vector<16x1xf32> to vector<16x32xf32>
    %691 = arith.mulf %686, %690 : vector<16x32xf32>
    %692 = vector.broadcast %671 : vector<1x32xf32> to vector<16x32xf32>
    %693 = arith.mulf %691, %692 : vector<16x32xf32>
    %694 = vector.broadcast %673 : vector<1x32xf32> to vector<16x32xf32>
    %695 = arith.addf %693, %694 : vector<16x32xf32>
    %c0_214 = arith.constant 0 : index
    %c0_215 = arith.constant 0 : index
    %696 = vector.load %arg23[%c0_214, %c0_215] : memref<16x32xf32, #tpu.memory_space<vmem>>, vector<16x32xf32>
    tpu.vector_store %arg23[%c0_214, %c0_215], %695 {strides = array<i32>} : memref<16x32xf32, #tpu.memory_space<vmem>>, vector<16x32xf32>,
    %697 = vector.extract_strided_slice %695 {offsets = [0, 0], sizes = [1, 32], strides = [1, 1]} : vector<16x32xf32> to vector<1x32xf32>
    %698 = vector.extract_strided_slice %695 {offsets = [8, 0], sizes = [1, 32], strides = [1, 1]} : vector<16x32xf32> to vector<1x32xf32>
    %699 = tpu.concatenate %697, %698 in 0 : vector<1x32xf32>, vector<1x32xf32> -> vector<2x32xf32>
    %c0_216 = arith.constant 0 : index
    %c0_217 = arith.constant 0 : index
    %700 = vector.load %arg17[%c0_216, %c0_217] : memref<32x32xf32, #tpu.memory_space<vmem>>, vector<32x32xf32>
    %701 = arith.truncf %699 : vector<2x32xf32> to vector<2x32xbf16>
    %702 = arith.truncf %700 : vector<32x32xf32> to vector<32x32xbf16>
    %cst_218 = arith.constant dense<0.000000e+00> : vector<2x32xf32>
    %703 = tpu.matmul %701, %702, %cst_218 {dimension_numbers = #tpu.dot_dimension_numbers<[1], [0], [0], [1], [0, 0, 1, 1], [], []>} : vector<2x32xbf16>, vector<32x32xbf16>, vector<2x32xf32> -> vector<2x32xf32>
    %c0_219 = arith.constant 0 : index
    %c0_220 = arith.constant 0 : index
    %704 = vector.load %arg18[%c0_219, %c0_220] : memref<1x32xf32, #tpu.memory_space<vmem>>, vector<1x32xf32>
    %705 = vector.broadcast %704 : vector<1x32xf32> to vector<2x32xf32>
    %706 = arith.addf %703, %705 : vector<2x32xf32>
    %707 = math.tanh %706 : vector<2x32xf32>
    %c0_221 = arith.constant 0 : index
    %c0_222 = arith.constant 0 : index
    %708 = vector.load %arg19[%c0_221, %c0_222] : memref<32x3xf32, #tpu.memory_space<vmem>>, vector<32x3xf32>
    %709 = arith.truncf %707 : vector<2x32xf32> to vector<2x32xbf16>
    %710 = arith.truncf %708 : vector<32x3xf32> to vector<32x3xbf16>
    %cst_223 = arith.constant dense<0.000000e+00> : vector<2x3xf32>
    %711 = tpu.matmul %709, %710, %cst_223 {dimension_numbers = #tpu.dot_dimension_numbers<[1], [0], [0], [1], [0, 0, 1, 1], [], []>} : vector<2x32xbf16>, vector<32x3xbf16>, vector<2x3xf32> -> vector<2x3xf32>
    %c0_224 = arith.constant 0 : index
    %c0_225 = arith.constant 0 : index
    %712 = vector.load %arg20[%c0_224, %c0_225] : memref<1x3xf32, #tpu.memory_space<vmem>>, vector<1x3xf32>
    %713 = vector.broadcast %712 : vector<1x3xf32> to vector<2x3xf32>
    %714 = arith.addf %711, %713 : vector<2x3xf32>
    %c0_226 = arith.constant 0 : index
    %c0_227 = arith.constant 0 : index
    %715 = vector.load %arg24[%c0_226, %c0_227] : memref<2x3xf32, #tpu.memory_space<vmem>>, vector<2x3xf32>
    tpu.vector_store %arg24[%c0_226, %c0_227], %714 {strides = array<i32>} : memref<2x3xf32, #tpu.memory_space<vmem>>, vector<2x3xf32>,
    %c0_228 = arith.constant 0 : index
    %c0_229 = arith.constant 0 : index
    %716 = vector.load %arg21[%c0_228, %c0_229] : memref<32x8xf32, #tpu.memory_space<vmem>>, vector<32x8xf32>
    %717 = arith.truncf %699 : vector<2x32xf32> to vector<2x32xbf16>
    %718 = arith.truncf %716 : vector<32x8xf32> to vector<32x8xbf16>
    %cst_230 = arith.constant dense<0.000000e+00> : vector<2x8xf32>
    %719 = tpu.matmul %717, %718, %cst_230 {dimension_numbers = #tpu.dot_dimension_numbers<[1], [0], [0], [1], [0, 0, 1, 1], [], []>} : vector<2x32xbf16>, vector<32x8xbf16>, vector<2x8xf32> -> vector<2x8xf32>
    %c0_231 = arith.constant 0 : index
    %c0_232 = arith.constant 0 : index
    %720 = vector.load %arg22[%c0_231, %c0_232] : memref<1x8xf32, #tpu.memory_space<vmem>>, vector<1x8xf32>
    %721 = vector.broadcast %720 : vector<1x8xf32> to vector<2x8xf32>
    %722 = arith.addf %719, %721 : vector<2x8xf32>
    %723 = arith.negf %722 : vector<2x8xf32>
    %724 = math.exp %723 : vector<2x8xf32>
    %cst_233 = arith.constant 1.000000e+00 : f32
    %725 = vector.broadcast %cst_233 : f32 to vector<2x8xf32>
    %726 = arith.addf %725, %724 : vector<2x8xf32>
    %727 = arith.divf %725, %726 : vector<2x8xf32>
    %c0_234 = arith.constant 0 : index
    %c0_235 = arith.constant 0 : index
    %728 = vector.load %arg25[%c0_234, %c0_235] : memref<2x8xf32, #tpu.memory_space<vmem>>, vector<2x8xf32>
    tpu.vector_store %arg25[%c0_234, %c0_235], %727 {strides = array<i32>} : memref<2x8xf32, #tpu.memory_space<vmem>>, vector<2x8xf32>,
    return
  }
  func.func @transform_0(%arg0: i32) -> (i32, i32) {
    %c0_i32 = arith.constant 0 : i32
    %c0_i32_0 = arith.constant 0 : i32
    %c0_i32_1 = arith.constant 0 : i32
    return %c0_i32, %c0_i32_0 : i32, i32
  }
  func.func @transform_1(%arg0: i32) -> (i32, i32) {
    %c0_i32 = arith.constant 0 : i32
    %c0_i32_0 = arith.constant 0 : i32
    %c0_i32_1 = arith.constant 0 : i32
    return %c0_i32, %c0_i32_0 : i32, i32
  }
  func.func @transform_2(%arg0: i32) -> (i32, i32) {
    %c0_i32 = arith.constant 0 : i32
    %c0_i32_0 = arith.constant 0 : i32
    %c0_i32_1 = arith.constant 0 : i32
    return %c0_i32, %c0_i32_0 : i32, i32
  }
  func.func @transform_3(%arg0: i32) -> (i32, i32) {
    %c0_i32 = arith.constant 0 : i32
    %c0_i32_0 = arith.constant 0 : i32
    %c0_i32_1 = arith.constant 0 : i32
    return %c0_i32, %c0_i32_0 : i32, i32
  }
  func.func @transform_4(%arg0: i32) -> (i32, i32, i32) {
    %c0_i32 = arith.constant 0 : i32
    %c0_i32_0 = arith.constant 0 : i32
    %c0_i32_1 = arith.constant 0 : i32
    %c0_i32_2 = arith.constant 0 : i32
    return %c0_i32, %c0_i32_0, %c0_i32_1 : i32, i32, i32
  }
  func.func @transform_5(%arg0: i32) -> (i32, i32, i32) {
    %c0_i32 = arith.constant 0 : i32
    %c0_i32_0 = arith.constant 0 : i32
    %c0_i32_1 = arith.constant 0 : i32
    %c0_i32_2 = arith.constant 0 : i32
    return %c0_i32, %c0_i32_0, %c0_i32_1 : i32, i32, i32
  }
  func.func @transform_6(%arg0: i32) -> (i32, i32, i32) {
    %c0_i32 = arith.constant 0 : i32
    %c0_i32_0 = arith.constant 0 : i32
    %c0_i32_1 = arith.constant 0 : i32
    %c0_i32_2 = arith.constant 0 : i32
    return %c0_i32, %c0_i32_0, %c0_i32_1 : i32, i32, i32
  }
  func.func @transform_7(%arg0: i32) -> (i32, i32, i32) {
    %c0_i32 = arith.constant 0 : i32
    %c0_i32_0 = arith.constant 0 : i32
    %c0_i32_1 = arith.constant 0 : i32
    %c0_i32_2 = arith.constant 0 : i32
    return %c0_i32, %c0_i32_0, %c0_i32_1 : i32, i32, i32
  }
  func.func @transform_8(%arg0: i32) -> (i32, i32, i32) {
    %c0_i32 = arith.constant 0 : i32
    %c0_i32_0 = arith.constant 0 : i32
    %c0_i32_1 = arith.constant 0 : i32
    %c0_i32_2 = arith.constant 0 : i32
    return %c0_i32, %c0_i32_0, %c0_i32_1 : i32, i32, i32
  }
  func.func @transform_9(%arg0: i32) -> (i32, i32, i32) {
    %c0_i32 = arith.constant 0 : i32
    %c0_i32_0 = arith.constant 0 : i32
    %c0_i32_1 = arith.constant 0 : i32
    %c0_i32_2 = arith.constant 0 : i32
    return %c0_i32, %c0_i32_0, %c0_i32_1 : i32, i32, i32
  }
  func.func @transform_10(%arg0: i32) -> (i32, i32, i32) {
    %c0_i32 = arith.constant 0 : i32
    %c0_i32_0 = arith.constant 0 : i32
    %c0_i32_1 = arith.constant 0 : i32
    %c0_i32_2 = arith.constant 0 : i32
    return %c0_i32, %c0_i32_0, %c0_i32_1 : i32, i32, i32
  }
  func.func @transform_11(%arg0: i32) -> (i32, i32, i32) {
    %c0_i32 = arith.constant 0 : i32
    %c0_i32_0 = arith.constant 0 : i32
    %c0_i32_1 = arith.constant 0 : i32
    %c0_i32_2 = arith.constant 0 : i32
    return %c0_i32, %c0_i32_0, %c0_i32_1 : i32, i32, i32
  }
  func.func @transform_12(%arg0: i32) -> (i32, i32, i32) {
    %c0_i32 = arith.constant 0 : i32
    %c0_i32_0 = arith.constant 0 : i32
    %c0_i32_1 = arith.constant 0 : i32
    %c0_i32_2 = arith.constant 0 : i32
    return %c0_i32, %c0_i32_0, %c0_i32_1 : i32, i32, i32
  }
  func.func @transform_13(%arg0: i32) -> (i32, i32, i32) {
    %c0_i32 = arith.constant 0 : i32
    %c0_i32_0 = arith.constant 0 : i32
    %c0_i32_1 = arith.constant 0 : i32
    %c0_i32_2 = arith.constant 0 : i32
    return %c0_i32, %c0_i32_0, %c0_i32_1 : i32, i32, i32
  }
  func.func @transform_14(%arg0: i32) -> (i32, i32, i32) {
    %c0_i32 = arith.constant 0 : i32
    %c0_i32_0 = arith.constant 0 : i32
    %c0_i32_1 = arith.constant 0 : i32
    %c0_i32_2 = arith.constant 0 : i32
    return %c0_i32, %c0_i32_0, %c0_i32_1 : i32, i32, i32
  }
  func.func @transform_15(%arg0: i32) -> (i32, i32, i32) {
    %c0_i32 = arith.constant 0 : i32
    %c0_i32_0 = arith.constant 0 : i32
    %c0_i32_1 = arith.constant 0 : i32
    %c0_i32_2 = arith.constant 0 : i32
    return %c0_i32, %c0_i32_0, %c0_i32_1 : i32, i32, i32
  }
  func.func @transform_16(%arg0: i32) -> (i32, i32) {
    %c0_i32 = arith.constant 0 : i32
    %c0_i32_0 = arith.constant 0 : i32
    %c0_i32_1 = arith.constant 0 : i32
    return %c0_i32, %c0_i32_0 : i32, i32
  }
  func.func @transform_17(%arg0: i32) -> (i32, i32) {
    %c0_i32 = arith.constant 0 : i32
    %c0_i32_0 = arith.constant 0 : i32
    %c0_i32_1 = arith.constant 0 : i32
    return %c0_i32, %c0_i32_0 : i32, i32
  }
  func.func @transform_18(%arg0: i32) -> (i32, i32) {
    %c0_i32 = arith.constant 0 : i32
    %c0_i32_0 = arith.constant 0 : i32
    %c0_i32_1 = arith.constant 0 : i32
    return %c0_i32, %c0_i32_0 : i32, i32
  }
  func.func @transform_19(%arg0: i32) -> (i32, i32) {
    %c0_i32 = arith.constant 0 : i32
    %c0_i32_0 = arith.constant 0 : i32
    %c0_i32_1 = arith.constant 0 : i32
    return %c0_i32, %c0_i32_0 : i32, i32
  }
  func.func @transform_20(%arg0: i32) -> (i32, i32) {
    %c0_i32 = arith.constant 0 : i32
    %c0_i32_0 = arith.constant 0 : i32
    %c0_i32_1 = arith.constant 0 : i32
    return %c0_i32, %c0_i32_0 : i32, i32
  }
  func.func @transform_21(%arg0: i32) -> (i32, i32) {
    %c0_i32 = arith.constant 0 : i32
    %c0_i32_0 = arith.constant 0 : i32
    %c0_i32_1 = arith.constant 0 : i32
    return %c0_i32, %c0_i32_0 : i32, i32
  }
  func.func @transform_22(%arg0: i32) -> (i32, i32) {
    %c0_i32 = arith.constant 0 : i32
    %c0_i32_0 = arith.constant 0 : i32
    %c0_i32_1 = arith.constant 0 : i32
    return %c0_i32, %c0_i32_0 : i32, i32
  }
  func.func @transform_23(%arg0: i32) -> (i32, i32) {
    %c0_i32 = arith.constant 0 : i32
    %c0_i32_0 = arith.constant 0 : i32
    %c0_i32_1 = arith.constant 0 : i32
    return %c0_i32, %c0_i32_0 : i32, i32
  }
  func.func @transform_24(%arg0: i32) -> (i32, i32) {
    %c0_i32 = arith.constant 0 : i32
    %c0_i32_0 = arith.constant 0 : i32
    %c0_i32_1 = arith.constant 0 : i32
    return %c0_i32, %c0_i32_0 : i32, i32
  }
}

module attributes {stable_mosaic.version = 11 : i64} {
  func.func @_bert_pass_kernel(%arg0: i32, %arg1: memref<16x32xf32, #tpu.memory_space<vmem>>, %arg2: memref<2x8xf32, #tpu.memory_space<vmem>>, %arg3: memref<1x32xf32, #tpu.memory_space<vmem>>, %arg4: memref<1x32xf32, #tpu.memory_space<vmem>>, %arg5: memref<2x32x96xf32, #tpu.memory_space<vmem>>, %arg6: memref<2x1x96xf32, #tpu.memory_space<vmem>>, %arg7: memref<2x32x32xf32, #tpu.memory_space<vmem>>, %arg8: memref<2x1x32xf32, #tpu.memory_space<vmem>>, %arg9: memref<2x1x32xf32, #tpu.memory_space<vmem>>, %arg10: memref<2x1x32xf32, #tpu.memory_space<vmem>>, %arg11: memref<2x32x64xf32, #tpu.memory_space<vmem>>, %arg12: memref<2x1x64xf32, #tpu.memory_space<vmem>>, %arg13: memref<2x64x32xf32, #tpu.memory_space<vmem>>, %arg14: memref<2x1x32xf32, #tpu.memory_space<vmem>>, %arg15: memref<2x1x32xf32, #tpu.memory_space<vmem>>, %arg16: memref<2x1x32xf32, #tpu.memory_space<vmem>>, %arg17: memref<32x32xf32, #tpu.memory_space<vmem>>, %arg18: memref<1x32xf32, #tpu.memory_space<vmem>>, %arg19: memref<32x3xf32, #tpu.memory_space<vmem>>, %arg20: memref<1x3xf32, #tpu.memory_space<vmem>>, %arg21: memref<32x8xf32, #tpu.memory_space<vmem>>, %arg22: memref<1x8xf32, #tpu.memory_space<vmem>>, %arg23: memref<16x32xf32, #tpu.memory_space<vmem>>, %arg24: memref<2x3xf32, #tpu.memory_space<vmem>>, %arg25: memref<2x8xf32, #tpu.memory_space<vmem>>) attributes {dimension_semantics = [#tpu.dimension_semantics<arbitrary>], iteration_bounds = array<i64: 1>, scalar_prefetch = 0 : i64, scratch_operands = 0 : i64, tpu.core_type = #tpu.core_type<tc>, window_params = [{pipeline_mode = #tpu.pipeline_mode<synchronous>, transform_indices = @transform_0, window_bounds = array<i64: 16, 32>}, {pipeline_mode = #tpu.pipeline_mode<synchronous>, transform_indices = @transform_1, window_bounds = array<i64: 2, 8>}, {pipeline_mode = #tpu.pipeline_mode<synchronous>, transform_indices = @transform_2, window_bounds = array<i64: 1, 32>}, {pipeline_mode = #tpu.pipeline_mode<synchronous>, transform_indices = @transform_3, window_bounds = array<i64: 1, 32>}, {pipeline_mode = #tpu.pipeline_mode<synchronous>, transform_indices = @transform_4, window_bounds = array<i64: 2, 32, 96>}, {pipeline_mode = #tpu.pipeline_mode<synchronous>, transform_indices = @transform_5, window_bounds = array<i64: 2, 1, 96>}, {pipeline_mode = #tpu.pipeline_mode<synchronous>, transform_indices = @transform_6, window_bounds = array<i64: 2, 32, 32>}, {pipeline_mode = #tpu.pipeline_mode<synchronous>, transform_indices = @transform_7, window_bounds = array<i64: 2, 1, 32>}, {pipeline_mode = #tpu.pipeline_mode<synchronous>, transform_indices = @transform_8, window_bounds = array<i64: 2, 1, 32>}, {pipeline_mode = #tpu.pipeline_mode<synchronous>, transform_indices = @transform_9, window_bounds = array<i64: 2, 1, 32>}, {pipeline_mode = #tpu.pipeline_mode<synchronous>, transform_indices = @transform_10, window_bounds = array<i64: 2, 32, 64>}, {pipeline_mode = #tpu.pipeline_mode<synchronous>, transform_indices = @transform_11, window_bounds = array<i64: 2, 1, 64>}, {pipeline_mode = #tpu.pipeline_mode<synchronous>, transform_indices = @transform_12, window_bounds = array<i64: 2, 64, 32>}, {pipeline_mode = #tpu.pipeline_mode<synchronous>, transform_indices = @transform_13, window_bounds = array<i64: 2, 1, 32>}, {pipeline_mode = #tpu.pipeline_mode<synchronous>, transform_indices = @transform_14, window_bounds = array<i64: 2, 1, 32>}, {pipeline_mode = #tpu.pipeline_mode<synchronous>, transform_indices = @transform_15, window_bounds = array<i64: 2, 1, 32>}, {pipeline_mode = #tpu.pipeline_mode<synchronous>, transform_indices = @transform_16, window_bounds = array<i64: 32, 32>}, {pipeline_mode = #tpu.pipeline_mode<synchronous>, transform_indices = @transform_17, window_bounds = array<i64: 1, 32>}, {pipeline_mode = #tpu.pipeline_mode<synchronous>, transform_indices = @transform_18, window_bounds = array<i64: 32, 3>}, {pipeline_mode = #tpu.pipeline_mode<synchronous>, transform_indices = @transform_19, window_bounds = array<i64: 1, 3>}, {pipeline_mode = #tpu.pipeline_mode<synchronous>, transform_indices = @transform_20, window_bounds = array<i64: 32, 8>}, {pipeline_mode = #tpu.pipeline_mode<synchronous>, transform_indices = @transform_21, window_bounds = array<i64: 1, 8>}, {pipeline_mode = #tpu.pipeline_mode<synchronous>, transform_indices = @transform_22, window_bounds = array<i64: 16, 32>}, {pipeline_mode = #tpu.pipeline_mode<synchronous>, transform_indices = @transform_23, window_bounds = array<i64: 2, 3>}, {pipeline_mode = #tpu.pipeline_mode<synchronous>, transform_indices = @transform_24, window_bounds = array<i64: 2, 8>}]} {
    %c0 = arith.constant 0 : index
    %c0_0 = arith.constant 0 : index
    %0 = vector.load %arg1[%c0, %c0_0] : memref<16x32xf32, #tpu.memory_space<vmem>>, vector<16x32xf32>
    %c0_1 = arith.constant 0 : index
    %c0_2 = arith.constant 0 : index
    %1 = vector.load %arg3[%c0_1, %c0_2] : memref<1x32xf32, #tpu.memory_space<vmem>>, vector<1x32xf32>
    %c0_3 = arith.constant 0 : index
    %c0_4 = arith.constant 0 : index
    %2 = vector.load %arg4[%c0_3, %c0_4] : memref<1x32xf32, #tpu.memory_space<vmem>>, vector<1x32xf32>
    %cst = arith.constant dense<0.000000e+00> : vector<16xf32>
    %3 = vector.multi_reduction <add>, %0, %cst [1] : vector<16x32xf32> to vector<16xf32>
    %4 = vector.shape_cast %3 : vector<16xf32> to vector<16x1xf32>
    %cst_5 = arith.constant 3.200000e+01 : f32
    %5 = vector.broadcast %cst_5 : f32 to vector<16x1xf32>
    %6 = arith.divf %4, %5 : vector<16x1xf32>
    %7 = vector.broadcast %6 : vector<16x1xf32> to vector<16x32xf32>
    %8 = arith.subf %0, %7 : vector<16x32xf32>
    %9 = arith.mulf %8, %8 : vector<16x32xf32>
    %cst_6 = arith.constant dense<0.000000e+00> : vector<16xf32>
    %10 = vector.multi_reduction <add>, %9, %cst_6 [1] : vector<16x32xf32> to vector<16xf32>
    %11 = vector.shape_cast %10 : vector<16xf32> to vector<16x1xf32>
    %cst_7 = arith.constant 3.200000e+01 : f32
    %12 = vector.broadcast %cst_7 : f32 to vector<16x1xf32>
    %13 = arith.divf %11, %12 : vector<16x1xf32>
    %14 = vector.broadcast %6 : vector<16x1xf32> to vector<16x32xf32>
    %15 = arith.subf %0, %14 : vector<16x32xf32>
    %cst_8 = arith.constant 9.99999996E-13 : f32
    %16 = vector.broadcast %cst_8 : f32 to vector<16x1xf32>
    %17 = arith.addf %13, %16 : vector<16x1xf32>
    %18 = math.rsqrt %17 : vector<16x1xf32>
    %19 = vector.broadcast %18 : vector<16x1xf32> to vector<16x32xf32>
    %20 = arith.mulf %15, %19 : vector<16x32xf32>
    %21 = vector.broadcast %1 : vector<1x32xf32> to vector<16x32xf32>
    %22 = arith.mulf %20, %21 : vector<16x32xf32>
    %23 = vector.broadcast %2 : vector<1x32xf32> to vector<16x32xf32>
    %24 = arith.addf %22, %23 : vector<16x32xf32>
    %c0_9 = arith.constant 0 : index
    %c0_10 = arith.constant 0 : index
    %25 = vector.load %arg2[%c0_9, %c0_10] : memref<2x8xf32, #tpu.memory_space<vmem>>, vector<2x8xf32>
    %cst_11 = arith.constant 1.000000e+00 : f32
    %26 = vector.broadcast %cst_11 : f32 to vector<2x8xf32>
    %27 = arith.subf %26, %25 : vector<2x8xf32>
    %cst_12 = arith.constant -1.000000e+04 : f32
    %28 = vector.broadcast %cst_12 : f32 to vector<2x8xf32>
    %29 = arith.mulf %27, %28 : vector<2x8xf32>
    %c0_13 = arith.constant 0 : index
    %c0_14 = arith.constant 0 : index
    %c0_15 = arith.constant 0 : index
    %30 = vector.load %arg5[%c0_13, %c0_14, %c0_15] : memref<2x32x96xf32, #tpu.memory_space<vmem>>, vector<1x32x96xf32>
    %31 = vector.shape_cast %30 : vector<1x32x96xf32> to vector<32x96xf32>
    %32 = arith.truncf %24 : vector<16x32xf32> to vector<16x32xbf16>
    %33 = arith.truncf %31 : vector<32x96xf32> to vector<32x96xbf16>
    %cst_16 = arith.constant dense<0.000000e+00> : vector<16x96xf32>
    %34 = tpu.matmul %32, %33, %cst_16 {dimension_numbers = #tpu.dot_dimension_numbers<[1], [0], [0], [1], [0, 0, 1, 1], [], []>} : vector<16x32xbf16>, vector<32x96xbf16>, vector<16x96xf32> -> vector<16x96xf32>
    %c0_17 = arith.constant 0 : index
    %c0_18 = arith.constant 0 : index
    %c0_19 = arith.constant 0 : index
    %35 = vector.load %arg6[%c0_17, %c0_18, %c0_19] : memref<2x1x96xf32, #tpu.memory_space<vmem>>, vector<1x1x96xf32>
    %36 = vector.shape_cast %35 : vector<1x1x96xf32> to vector<1x96xf32>
    %37 = vector.broadcast %36 : vector<1x96xf32> to vector<16x96xf32>
    %38 = arith.addf %34, %37 : vector<16x96xf32>
    %c0_20 = arith.constant 0 : index
    %c0_21 = arith.constant 0 : index
    %c0_22 = arith.constant 0 : index
    %39 = vector.load %arg7[%c0_20, %c0_21, %c0_22] : memref<2x32x32xf32, #tpu.memory_space<vmem>>, vector<1x32x32xf32>
    %40 = vector.shape_cast %39 : vector<1x32x32xf32> to vector<32x32xf32>
    %41 = vector.extract_strided_slice %29 {offsets = [0, 0], sizes = [1, 8], strides = [1, 1]} : vector<2x8xf32> to vector<1x8xf32>
    %42 = vector.extract_strided_slice %38 {offsets = [0, 0], sizes = [8, 8], strides = [1, 1]} : vector<16x96xf32> to vector<8x8xf32>
    %43 = vector.extract_strided_slice %38 {offsets = [0, 32], sizes = [8, 8], strides = [1, 1]} : vector<16x96xf32> to vector<8x8xf32>
    %44 = vector.extract_strided_slice %38 {offsets = [0, 64], sizes = [8, 8], strides = [1, 1]} : vector<16x96xf32> to vector<8x8xf32>
    %45 = tpu.transpose %43, [1, 0] : vector<8x8xf32> -> vector<8x8xf32>
    %46 = arith.truncf %42 : vector<8x8xf32> to vector<8x8xbf16>
    %47 = arith.truncf %45 : vector<8x8xf32> to vector<8x8xbf16>
    %cst_23 = arith.constant dense<0.000000e+00> : vector<8x8xf32>
    %48 = tpu.matmul %46, %47, %cst_23 {dimension_numbers = #tpu.dot_dimension_numbers<[1], [0], [0], [1], [0, 0, 1, 1], [], []>} : vector<8x8xbf16>, vector<8x8xbf16>, vector<8x8xf32> -> vector<8x8xf32>
    %cst_24 = arith.constant 0.353553385 : f32
    %49 = vector.broadcast %cst_24 : f32 to vector<8x8xf32>
    %50 = arith.mulf %48, %49 : vector<8x8xf32>
    %51 = vector.broadcast %41 : vector<1x8xf32> to vector<8x8xf32>
    %52 = arith.addf %50, %51 : vector<8x8xf32>
    %cst_25 = arith.constant dense<0xFF800000> : vector<8xf32>
    %53 = vector.multi_reduction <maximumf>, %52, %cst_25 [1] : vector<8x8xf32> to vector<8xf32>
    %54 = vector.shape_cast %53 : vector<8xf32> to vector<8x1xf32>
    %55 = vector.broadcast %54 : vector<8x1xf32> to vector<8x8xf32>
    %56 = arith.subf %52, %55 : vector<8x8xf32>
    %57 = math.exp %56 : vector<8x8xf32>
    %cst_26 = arith.constant dense<0.000000e+00> : vector<8xf32>
    %58 = vector.multi_reduction <add>, %57, %cst_26 [1] : vector<8x8xf32> to vector<8xf32>
    %59 = vector.shape_cast %58 : vector<8xf32> to vector<8x1xf32>
    %60 = tpu.reciprocal %59 {approx = true} : vector<8x1xf32> -> vector<8x1xf32>
    %61 = vector.broadcast %60 : vector<8x1xf32> to vector<8x8xf32>
    %62 = arith.mulf %57, %61 : vector<8x8xf32>
    %63 = arith.truncf %62 : vector<8x8xf32> to vector<8x8xbf16>
    %64 = arith.truncf %44 : vector<8x8xf32> to vector<8x8xbf16>
    %cst_27 = arith.constant dense<0.000000e+00> : vector<8x8xf32>
    %65 = tpu.matmul %63, %64, %cst_27 {dimension_numbers = #tpu.dot_dimension_numbers<[1], [0], [0], [1], [0, 0, 1, 1], [], []>} : vector<8x8xbf16>, vector<8x8xbf16>, vector<8x8xf32> -> vector<8x8xf32>
    %66 = vector.extract_strided_slice %40 {offsets = [0, 0], sizes = [8, 32], strides = [1, 1]} : vector<32x32xf32> to vector<8x32xf32>
    %67 = arith.truncf %65 : vector<8x8xf32> to vector<8x8xbf16>
    %68 = arith.truncf %66 : vector<8x32xf32> to vector<8x32xbf16>
    %cst_28 = arith.constant dense<0.000000e+00> : vector<8x32xf32>
    %69 = tpu.matmul %67, %68, %cst_28 {dimension_numbers = #tpu.dot_dimension_numbers<[1], [0], [0], [1], [0, 0, 1, 1], [], []>} : vector<8x8xbf16>, vector<8x32xbf16>, vector<8x32xf32> -> vector<8x32xf32>
    %70 = vector.extract_strided_slice %38 {offsets = [0, 8], sizes = [8, 8], strides = [1, 1]} : vector<16x96xf32> to vector<8x8xf32>
    %71 = vector.extract_strided_slice %38 {offsets = [0, 40], sizes = [8, 8], strides = [1, 1]} : vector<16x96xf32> to vector<8x8xf32>
    %72 = vector.extract_strided_slice %38 {offsets = [0, 72], sizes = [8, 8], strides = [1, 1]} : vector<16x96xf32> to vector<8x8xf32>
    %73 = tpu.transpose %71, [1, 0] : vector<8x8xf32> -> vector<8x8xf32>
    %74 = arith.truncf %70 : vector<8x8xf32> to vector<8x8xbf16>
    %75 = arith.truncf %73 : vector<8x8xf32> to vector<8x8xbf16>
    %cst_29 = arith.constant dense<0.000000e+00> : vector<8x8xf32>
    %76 = tpu.matmul %74, %75, %cst_29 {dimension_numbers = #tpu.dot_dimension_numbers<[1], [0], [0], [1], [0, 0, 1, 1], [], []>} : vector<8x8xbf16>, vector<8x8xbf16>, vector<8x8xf32> -> vector<8x8xf32>
    %cst_30 = arith.constant 0.353553385 : f32
    %77 = vector.broadcast %cst_30 : f32 to vector<8x8xf32>
    %78 = arith.mulf %76, %77 : vector<8x8xf32>
    %79 = vector.broadcast %41 : vector<1x8xf32> to vector<8x8xf32>
    %80 = arith.addf %78, %79 : vector<8x8xf32>
    %cst_31 = arith.constant dense<0xFF800000> : vector<8xf32>
    %81 = vector.multi_reduction <maximumf>, %80, %cst_31 [1] : vector<8x8xf32> to vector<8xf32>
    %82 = vector.shape_cast %81 : vector<8xf32> to vector<8x1xf32>
    %83 = vector.broadcast %82 : vector<8x1xf32> to vector<8x8xf32>
    %84 = arith.subf %80, %83 : vector<8x8xf32>
    %85 = math.exp %84 : vector<8x8xf32>
    %cst_32 = arith.constant dense<0.000000e+00> : vector<8xf32>
    %86 = vector.multi_reduction <add>, %85, %cst_32 [1] : vector<8x8xf32> to vector<8xf32>
    %87 = vector.shape_cast %86 : vector<8xf32> to vector<8x1xf32>
    %88 = tpu.reciprocal %87 {approx = true} : vector<8x1xf32> -> vector<8x1xf32>
    %89 = vector.broadcast %88 : vector<8x1xf32> to vector<8x8xf32>
    %90 = arith.mulf %85, %89 : vector<8x8xf32>
    %91 = arith.truncf %90 : vector<8x8xf32> to vector<8x8xbf16>
    %92 = arith.truncf %72 : vector<8x8xf32> to vector<8x8xbf16>
    %cst_33 = arith.constant dense<0.000000e+00> : vector<8x8xf32>
    %93 = tpu.matmul %91, %92, %cst_33 {dimension_numbers = #tpu.dot_dimension_numbers<[1], [0], [0], [1], [0, 0, 1, 1], [], []>} : vector<8x8xbf16>, vector<8x8xbf16>, vector<8x8xf32> -> vector<8x8xf32>
    %94 = vector.extract_strided_slice %40 {offsets = [8, 0], sizes = [8, 32], strides = [1, 1]} : vector<32x32xf32> to vector<8x32xf32>
    %95 = arith.truncf %93 : vector<8x8xf32> to vector<8x8xbf16>
    %96 = arith.truncf %94 : vector<8x32xf32> to vector<8x32xbf16>
    %cst_34 = arith.constant dense<0.000000e+00> : vector<8x32xf32>
    %97 = tpu.matmul %95, %96, %cst_34 {dimension_numbers = #tpu.dot_dimension_numbers<[1], [0], [0], [1], [0, 0, 1, 1], [], []>} : vector<8x8xbf16>, vector<8x32xbf16>, vector<8x32xf32> -> vector<8x32xf32>
    %98 = arith.addf %69, %97 : vector<8x32xf32>
    %99 = vector.extract_strided_slice %38 {offsets = [0, 16], sizes = [8, 8], strides = [1, 1]} : vector<16x96xf32> to vector<8x8xf32>
    %100 = vector.extract_strided_slice %38 {offsets = [0, 48], sizes = [8, 8], strides = [1, 1]} : vector<16x96xf32> to vector<8x8xf32>
    %101 = vector.extract_strided_slice %38 {offsets = [0, 80], sizes = [8, 8], strides = [1, 1]} : vector<16x96xf32> to vector<8x8xf32>
    %102 = tpu.transpose %100, [1, 0] : vector<8x8xf32> -> vector<8x8xf32>
    %103 = arith.truncf %99 : vector<8x8xf32> to vector<8x8xbf16>
    %104 = arith.truncf %102 : vector<8x8xf32> to vector<8x8xbf16>
    %cst_35 = arith.constant dense<0.000000e+00> : vector<8x8xf32>
    %105 = tpu.matmul %103, %104, %cst_35 {dimension_numbers = #tpu.dot_dimension_numbers<[1], [0], [0], [1], [0, 0, 1, 1], [], []>} : vector<8x8xbf16>, vector<8x8xbf16>, vector<8x8xf32> -> vector<8x8xf32>
    %cst_36 = arith.constant 0.353553385 : f32
    %106 = vector.broadcast %cst_36 : f32 to vector<8x8xf32>
    %107 = arith.mulf %105, %106 : vector<8x8xf32>
    %108 = vector.broadcast %41 : vector<1x8xf32> to vector<8x8xf32>
    %109 = arith.addf %107, %108 : vector<8x8xf32>
    %cst_37 = arith.constant dense<0xFF800000> : vector<8xf32>
    %110 = vector.multi_reduction <maximumf>, %109, %cst_37 [1] : vector<8x8xf32> to vector<8xf32>
    %111 = vector.shape_cast %110 : vector<8xf32> to vector<8x1xf32>
    %112 = vector.broadcast %111 : vector<8x1xf32> to vector<8x8xf32>
    %113 = arith.subf %109, %112 : vector<8x8xf32>
    %114 = math.exp %113 : vector<8x8xf32>
    %cst_38 = arith.constant dense<0.000000e+00> : vector<8xf32>
    %115 = vector.multi_reduction <add>, %114, %cst_38 [1] : vector<8x8xf32> to vector<8xf32>
    %116 = vector.shape_cast %115 : vector<8xf32> to vector<8x1xf32>
    %117 = tpu.reciprocal %116 {approx = true} : vector<8x1xf32> -> vector<8x1xf32>
    %118 = vector.broadcast %117 : vector<8x1xf32> to vector<8x8xf32>
    %119 = arith.mulf %114, %118 : vector<8x8xf32>
    %120 = arith.truncf %119 : vector<8x8xf32> to vector<8x8xbf16>
    %121 = arith.truncf %101 : vector<8x8xf32> to vector<8x8xbf16>
    %cst_39 = arith.constant dense<0.000000e+00> : vector<8x8xf32>
    %122 = tpu.matmul %120, %121, %cst_39 {dimension_numbers = #tpu.dot_dimension_numbers<[1], [0], [0], [1], [0, 0, 1, 1], [], []>} : vector<8x8xbf16>, vector<8x8xbf16>, vector<8x8xf32> -> vector<8x8xf32>
    %123 = vector.extract_strided_slice %40 {offsets = [16, 0], sizes = [8, 32], strides = [1, 1]} : vector<32x32xf32> to vector<8x32xf32>
    %124 = arith.truncf %122 : vector<8x8xf32> to vector<8x8xbf16>
    %125 = arith.truncf %123 : vector<8x32xf32> to vector<8x32xbf16>
    %cst_40 = arith.constant dense<0.000000e+00> : vector<8x32xf32>
    %126 = tpu.matmul %124, %125, %cst_40 {dimension_numbers = #tpu.dot_dimension_numbers<[1], [0], [0], [1], [0, 0, 1, 1], [], []>} : vector<8x8xbf16>, vector<8x32xbf16>, vector<8x32xf32> -> vector<8x32xf32>
    %127 = arith.addf %98, %126 : vector<8x32xf32>
    %128 = vector.extract_strided_slice %38 {offsets = [0, 24], sizes = [8, 8], strides = [1, 1]} : vector<16x96xf32> to vector<8x8xf32>
    %129 = vector.extract_strided_slice %38 {offsets = [0, 56], sizes = [8, 8], strides = [1, 1]} : vector<16x96xf32> to vector<8x8xf32>
    %130 = vector.extract_strided_slice %38 {offsets = [0, 88], sizes = [8, 8], strides = [1, 1]} : vector<16x96xf32> to vector<8x8xf32>
    %131 = tpu.transpose %129, [1, 0] : vector<8x8xf32> -> vector<8x8xf32>
    %132 = arith.truncf %128 : vector<8x8xf32> to vector<8x8xbf16>
    %133 = arith.truncf %131 : vector<8x8xf32> to vector<8x8xbf16>
    %cst_41 = arith.constant dense<0.000000e+00> : vector<8x8xf32>
    %134 = tpu.matmul %132, %133, %cst_41 {dimension_numbers = #tpu.dot_dimension_numbers<[1], [0], [0], [1], [0, 0, 1, 1], [], []>} : vector<8x8xbf16>, vector<8x8xbf16>, vector<8x8xf32> -> vector<8x8xf32>
    %cst_42 = arith.constant 0.353553385 : f32
    %135 = vector.broadcast %cst_42 : f32 to vector<8x8xf32>
    %136 = arith.mulf %134, %135 : vector<8x8xf32>
    %137 = vector.broadcast %41 : vector<1x8xf32> to vector<8x8xf32>
    %138 = arith.addf %136, %137 : vector<8x8xf32>
    %cst_43 = arith.constant dense<0xFF800000> : vector<8xf32>
    %139 = vector.multi_reduction <maximumf>, %138, %cst_43 [1] : vector<8x8xf32> to vector<8xf32>
    %140 = vector.shape_cast %139 : vector<8xf32> to vector<8x1xf32>
    %141 = vector.broadcast %140 : vector<8x1xf32> to vector<8x8xf32>
    %142 = arith.subf %138, %141 : vector<8x8xf32>
    %143 = math.exp %142 : vector<8x8xf32>
    %cst_44 = arith.constant dense<0.000000e+00> : vector<8xf32>
    %144 = vector.multi_reduction <add>, %143, %cst_44 [1] : vector<8x8xf32> to vector<8xf32>
    %145 = vector.shape_cast %144 : vector<8xf32> to vector<8x1xf32>
    %146 = tpu.reciprocal %145 {approx = true} : vector<8x1xf32> -> vector<8x1xf32>
    %147 = vector.broadcast %146 : vector<8x1xf32> to vector<8x8xf32>
    %148 = arith.mulf %143, %147 : vector<8x8xf32>
    %149 = arith.truncf %148 : vector<8x8xf32> to vector<8x8xbf16>
    %150 = arith.truncf %130 : vector<8x8xf32> to vector<8x8xbf16>
    %cst_45 = arith.constant dense<0.000000e+00> : vector<8x8xf32>
    %151 = tpu.matmul %149, %150, %cst_45 {dimension_numbers = #tpu.dot_dimension_numbers<[1], [0], [0], [1], [0, 0, 1, 1], [], []>} : vector<8x8xbf16>, vector<8x8xbf16>, vector<8x8xf32> -> vector<8x8xf32>
    %152 = vector.extract_strided_slice %40 {offsets = [24, 0], sizes = [8, 32], strides = [1, 1]} : vector<32x32xf32> to vector<8x32xf32>
    %153 = arith.truncf %151 : vector<8x8xf32> to vector<8x8xbf16>
    %154 = arith.truncf %152 : vector<8x32xf32> to vector<8x32xbf16>
    %cst_46 = arith.constant dense<0.000000e+00> : vector<8x32xf32>
    %155 = tpu.matmul %153, %154, %cst_46 {dimension_numbers = #tpu.dot_dimension_numbers<[1], [0], [0], [1], [0, 0, 1, 1], [], []>} : vector<8x8xbf16>, vector<8x32xbf16>, vector<8x32xf32> -> vector<8x32xf32>
    %156 = arith.addf %127, %155 : vector<8x32xf32>
    %157 = vector.extract_strided_slice %29 {offsets = [1, 0], sizes = [1, 8], strides = [1, 1]} : vector<2x8xf32> to vector<1x8xf32>
    %158 = vector.extract_strided_slice %38 {offsets = [8, 0], sizes = [8, 8], strides = [1, 1]} : vector<16x96xf32> to vector<8x8xf32>
    %159 = vector.extract_strided_slice %38 {offsets = [8, 32], sizes = [8, 8], strides = [1, 1]} : vector<16x96xf32> to vector<8x8xf32>
    %160 = vector.extract_strided_slice %38 {offsets = [8, 64], sizes = [8, 8], strides = [1, 1]} : vector<16x96xf32> to vector<8x8xf32>
    %161 = tpu.transpose %159, [1, 0] : vector<8x8xf32> -> vector<8x8xf32>
    %162 = arith.truncf %158 : vector<8x8xf32> to vector<8x8xbf16>
    %163 = arith.truncf %161 : vector<8x8xf32> to vector<8x8xbf16>
    %cst_47 = arith.constant dense<0.000000e+00> : vector<8x8xf32>
    %164 = tpu.matmul %162, %163, %cst_47 {dimension_numbers = #tpu.dot_dimension_numbers<[1], [0], [0], [1], [0, 0, 1, 1], [], []>} : vector<8x8xbf16>, vector<8x8xbf16>, vector<8x8xf32> -> vector<8x8xf32>
    %cst_48 = arith.constant 0.353553385 : f32
    %165 = vector.broadcast %cst_48 : f32 to vector<8x8xf32>
    %166 = arith.mulf %164, %165 : vector<8x8xf32>
    %167 = vector.broadcast %157 : vector<1x8xf32> to vector<8x8xf32>
    %168 = arith.addf %166, %167 : vector<8x8xf32>
    %cst_49 = arith.constant dense<0xFF800000> : vector<8xf32>
    %169 = vector.multi_reduction <maximumf>, %168, %cst_49 [1] : vector<8x8xf32> to vector<8xf32>
    %170 = vector.shape_cast %169 : vector<8xf32> to vector<8x1xf32>
    %171 = vector.broadcast %170 : vector<8x1xf32> to vector<8x8xf32>
    %172 = arith.subf %168, %171 : vector<8x8xf32>
    %173 = math.exp %172 : vector<8x8xf32>
    %cst_50 = arith.constant dense<0.000000e+00> : vector<8xf32>
    %174 = vector.multi_reduction <add>, %173, %cst_50 [1] : vector<8x8xf32> to vector<8xf32>
    %175 = vector.shape_cast %174 : vector<8xf32> to vector<8x1xf32>
    %176 = tpu.reciprocal %175 {approx = true} : vector<8x1xf32> -> vector<8x1xf32>
    %177 = vector.broadcast %176 : vector<8x1xf32> to vector<8x8xf32>
    %178 = arith.mulf %173, %177 : vector<8x8xf32>
    %179 = arith.truncf %178 : vector<8x8xf32> to vector<8x8xbf16>
    %180 = arith.truncf %160 : vector<8x8xf32> to vector<8x8xbf16>
    %cst_51 = arith.constant dense<0.000000e+00> : vector<8x8xf32>
    %181 = tpu.matmul %179, %180, %cst_51 {dimension_numbers = #tpu.dot_dimension_numbers<[1], [0], [0], [1], [0, 0, 1, 1], [], []>} : vector<8x8xbf16>, vector<8x8xbf16>, vector<8x8xf32> -> vector<8x8xf32>
    %182 = vector.extract_strided_slice %40 {offsets = [0, 0], sizes = [8, 32], strides = [1, 1]} : vector<32x32xf32> to vector<8x32xf32>
    %183 = arith.truncf %181 : vector<8x8xf32> to vector<8x8xbf16>
    %184 = arith.truncf %182 : vector<8x32xf32> to vector<8x32xbf16>
    %cst_52 = arith.constant dense<0.000000e+00> : vector<8x32xf32>
    %185 = tpu.matmul %183, %184, %cst_52 {dimension_numbers = #tpu.dot_dimension_numbers<[1], [0], [0], [1], [0, 0, 1, 1], [], []>} : vector<8x8xbf16>, vector<8x32xbf16>, vector<8x32xf32> -> vector<8x32xf32>
    %186 = vector.extract_strided_slice %38 {offsets = [8, 8], sizes = [8, 8], strides = [1, 1]} : vector<16x96xf32> to vector<8x8xf32>
    %187 = vector.extract_strided_slice %38 {offsets = [8, 40], sizes = [8, 8], strides = [1, 1]} : vector<16x96xf32> to vector<8x8xf32>
    %188 = vector.extract_strided_slice %38 {offsets = [8, 72], sizes = [8, 8], strides = [1, 1]} : vector<16x96xf32> to vector<8x8xf32>
    %189 = tpu.transpose %187, [1, 0] : vector<8x8xf32> -> vector<8x8xf32>
    %190 = arith.truncf %186 : vector<8x8xf32> to vector<8x8xbf16>
    %191 = arith.truncf %189 : vector<8x8xf32> to vector<8x8xbf16>
    %cst_53 = arith.constant dense<0.000000e+00> : vector<8x8xf32>
    %192 = tpu.matmul %190, %191, %cst_53 {dimension_numbers = #tpu.dot_dimension_numbers<[1], [0], [0], [1], [0, 0, 1, 1], [], []>} : vector<8x8xbf16>, vector<8x8xbf16>, vector<8x8xf32> -> vector<8x8xf32>
    %cst_54 = arith.constant 0.353553385 : f32
    %193 = vector.broadcast %cst_54 : f32 to vector<8x8xf32>
    %194 = arith.mulf %192, %193 : vector<8x8xf32>
    %195 = vector.broadcast %157 : vector<1x8xf32> to vector<8x8xf32>
    %196 = arith.addf %194, %195 : vector<8x8xf32>
    %cst_55 = arith.constant dense<0xFF800000> : vector<8xf32>
    %197 = vector.multi_reduction <maximumf>, %196, %cst_55 [1] : vector<8x8xf32> to vector<8xf32>
    %198 = vector.shape_cast %197 : vector<8xf32> to vector<8x1xf32>
    %199 = vector.broadcast %198 : vector<8x1xf32> to vector<8x8xf32>
    %200 = arith.subf %196, %199 : vector<8x8xf32>
    %201 = math.exp %200 : vector<8x8xf32>
    %cst_56 = arith.constant dense<0.000000e+00> : vector<8xf32>
    %202 = vector.multi_reduction <add>, %201, %cst_56 [1] : vector<8x8xf32> to vector<8xf32>
    %203 = vector.shape_cast %202 : vector<8xf32> to vector<8x1xf32>
    %204 = tpu.reciprocal %203 {approx = true} : vector<8x1xf32> -> vector<8x1xf32>
    %205 = vector.broadcast %204 : vector<8x1xf32> to vector<8x8xf32>
    %206 = arith.mulf %201, %205 : vector<8x8xf32>
    %207 = arith.truncf %206 : vector<8x8xf32> to vector<8x8xbf16>
    %208 = arith.truncf %188 : vector<8x8xf32> to vector<8x8xbf16>
    %cst_57 = arith.constant dense<0.000000e+00> : vector<8x8xf32>
    %209 = tpu.matmul %207, %208, %cst_57 {dimension_numbers = #tpu.dot_dimension_numbers<[1], [0], [0], [1], [0, 0, 1, 1], [], []>} : vector<8x8xbf16>, vector<8x8xbf16>, vector<8x8xf32> -> vector<8x8xf32>
    %210 = vector.extract_strided_slice %40 {offsets = [8, 0], sizes = [8, 32], strides = [1, 1]} : vector<32x32xf32> to vector<8x32xf32>
    %211 = arith.truncf %209 : vector<8x8xf32> to vector<8x8xbf16>
    %212 = arith.truncf %210 : vector<8x32xf32> to vector<8x32xbf16>
    %cst_58 = arith.constant dense<0.000000e+00> : vector<8x32xf32>
    %213 = tpu.matmul %211, %212, %cst_58 {dimension_numbers = #tpu.dot_dimension_numbers<[1], [0], [0], [1], [0, 0, 1, 1], [], []>} : vector<8x8xbf16>, vector<8x32xbf16>, vector<8x32xf32> -> vector<8x32xf32>
    %214 = arith.addf %185, %213 : vector<8x32xf32>
    %215 = vector.extract_strided_slice %38 {offsets = [8, 16], sizes = [8, 8], strides = [1, 1]} : vector<16x96xf32> to vector<8x8xf32>
    %216 = vector.extract_strided_slice %38 {offsets = [8, 48], sizes = [8, 8], strides = [1, 1]} : vector<16x96xf32> to vector<8x8xf32>
    %217 = vector.extract_strided_slice %38 {offsets = [8, 80], sizes = [8, 8], strides = [1, 1]} : vector<16x96xf32> to vector<8x8xf32>
    %218 = tpu.transpose %216, [1, 0] : vector<8x8xf32> -> vector<8x8xf32>
    %219 = arith.truncf %215 : vector<8x8xf32> to vector<8x8xbf16>
    %220 = arith.truncf %218 : vector<8x8xf32> to vector<8x8xbf16>
    %cst_59 = arith.constant dense<0.000000e+00> : vector<8x8xf32>
    %221 = tpu.matmul %219, %220, %cst_59 {dimension_numbers = #tpu.dot_dimension_numbers<[1], [0], [0], [1], [0, 0, 1, 1], [], []>} : vector<8x8xbf16>, vector<8x8xbf16>, vector<8x8xf32> -> vector<8x8xf32>
    %cst_60 = arith.constant 0.353553385 : f32
    %222 = vector.broadcast %cst_60 : f32 to vector<8x8xf32>
    %223 = arith.mulf %221, %222 : vector<8x8xf32>
    %224 = vector.broadcast %157 : vector<1x8xf32> to vector<8x8xf32>
    %225 = arith.addf %223, %224 : vector<8x8xf32>
    %cst_61 = arith.constant dense<0xFF800000> : vector<8xf32>
    %226 = vector.multi_reduction <maximumf>, %225, %cst_61 [1] : vector<8x8xf32> to vector<8xf32>
    %227 = vector.shape_cast %226 : vector<8xf32> to vector<8x1xf32>
    %228 = vector.broadcast %227 : vector<8x1xf32> to vector<8x8xf32>
    %229 = arith.subf %225, %228 : vector<8x8xf32>
    %230 = math.exp %229 : vector<8x8xf32>
    %cst_62 = arith.constant dense<0.000000e+00> : vector<8xf32>
    %231 = vector.multi_reduction <add>, %230, %cst_62 [1] : vector<8x8xf32> to vector<8xf32>
    %232 = vector.shape_cast %231 : vector<8xf32> to vector<8x1xf32>
    %233 = tpu.reciprocal %232 {approx = true} : vector<8x1xf32> -> vector<8x1xf32>
    %234 = vector.broadcast %233 : vector<8x1xf32> to vector<8x8xf32>
    %235 = arith.mulf %230, %234 : vector<8x8xf32>
    %236 = arith.truncf %235 : vector<8x8xf32> to vector<8x8xbf16>
    %237 = arith.truncf %217 : vector<8x8xf32> to vector<8x8xbf16>
    %cst_63 = arith.constant dense<0.000000e+00> : vector<8x8xf32>
    %238 = tpu.matmul %236, %237, %cst_63 {dimension_numbers = #tpu.dot_dimension_numbers<[1], [0], [0], [1], [0, 0, 1, 1], [], []>} : vector<8x8xbf16>, vector<8x8xbf16>, vector<8x8xf32> -> vector<8x8xf32>
    %239 = vector.extract_strided_slice %40 {offsets = [16, 0], sizes = [8, 32], strides = [1, 1]} : vector<32x32xf32> to vector<8x32xf32>
    %240 = arith.truncf %238 : vector<8x8xf32> to vector<8x8xbf16>
    %241 = arith.truncf %239 : vector<8x32xf32> to vector<8x32xbf16>
    %cst_64 = arith.constant dense<0.000000e+00> : vector<8x32xf32>
    %242 = tpu.matmul %240, %241, %cst_64 {dimension_numbers = #tpu.dot_dimension_numbers<[1], [0], [0], [1], [0, 0, 1, 1], [], []>} : vector<8x8xbf16>, vector<8x32xbf16>, vector<8x32xf32> -> vector<8x32xf32>
    %243 = arith.addf %214, %242 : vector<8x32xf32>
    %244 = vector.extract_strided_slice %38 {offsets = [8, 24], sizes = [8, 8], strides = [1, 1]} : vector<16x96xf32> to vector<8x8xf32>
    %245 = vector.extract_strided_slice %38 {offsets = [8, 56], sizes = [8, 8], strides = [1, 1]} : vector<16x96xf32> to vector<8x8xf32>
    %246 = vector.extract_strided_slice %38 {offsets = [8, 88], sizes = [8, 8], strides = [1, 1]} : vector<16x96xf32> to vector<8x8xf32>
    %247 = tpu.transpose %245, [1, 0] : vector<8x8xf32> -> vector<8x8xf32>
    %248 = arith.truncf %244 : vector<8x8xf32> to vector<8x8xbf16>
    %249 = arith.truncf %247 : vector<8x8xf32> to vector<8x8xbf16>
    %cst_65 = arith.constant dense<0.000000e+00> : vector<8x8xf32>
    %250 = tpu.matmul %248, %249, %cst_65 {dimension_numbers = #tpu.dot_dimension_numbers<[1], [0], [0], [1], [0, 0, 1, 1], [], []>} : vector<8x8xbf16>, vector<8x8xbf16>, vector<8x8xf32> -> vector<8x8xf32>
    %cst_66 = arith.constant 0.353553385 : f32
    %251 = vector.broadcast %cst_66 : f32 to vector<8x8xf32>
    %252 = arith.mulf %250, %251 : vector<8x8xf32>
    %253 = vector.broadcast %157 : vector<1x8xf32> to vector<8x8xf32>
    %254 = arith.addf %252, %253 : vector<8x8xf32>
    %cst_67 = arith.constant dense<0xFF800000> : vector<8xf32>
    %255 = vector.multi_reduction <maximumf>, %254, %cst_67 [1] : vector<8x8xf32> to vector<8xf32>
    %256 = vector.shape_cast %255 : vector<8xf32> to vector<8x1xf32>
    %257 = vector.broadcast %256 : vector<8x1xf32> to vector<8x8xf32>
    %258 = arith.subf %254, %257 : vector<8x8xf32>
    %259 = math.exp %258 : vector<8x8xf32>
    %cst_68 = arith.constant dense<0.000000e+00> : vector<8xf32>
    %260 = vector.multi_reduction <add>, %259, %cst_68 [1] : vector<8x8xf32> to vector<8xf32>
    %261 = vector.shape_cast %260 : vector<8xf32> to vector<8x1xf32>
    %262 = tpu.reciprocal %261 {approx = true} : vector<8x1xf32> -> vector<8x1xf32>
    %263 = vector.broadcast %262 : vector<8x1xf32> to vector<8x8xf32>
    %264 = arith.mulf %259, %263 : vector<8x8xf32>
    %265 = arith.truncf %264 : vector<8x8xf32> to vector<8x8xbf16>
    %266 = arith.truncf %246 : vector<8x8xf32> to vector<8x8xbf16>
    %cst_69 = arith.constant dense<0.000000e+00> : vector<8x8xf32>
    %267 = tpu.matmul %265, %266, %cst_69 {dimension_numbers = #tpu.dot_dimension_numbers<[1], [0], [0], [1], [0, 0, 1, 1], [], []>} : vector<8x8xbf16>, vector<8x8xbf16>, vector<8x8xf32> -> vector<8x8xf32>
    %268 = vector.extract_strided_slice %40 {offsets = [24, 0], sizes = [8, 32], strides = [1, 1]} : vector<32x32xf32> to vector<8x32xf32>
    %269 = arith.truncf %267 : vector<8x8xf32> to vector<8x8xbf16>
    %270 = arith.truncf %268 : vector<8x32xf32> to vector<8x32xbf16>
    %cst_70 = arith.constant dense<0.000000e+00> : vector<8x32xf32>
    %271 = tpu.matmul %269, %270, %cst_70 {dimension_numbers = #tpu.dot_dimension_numbers<[1], [0], [0], [1], [0, 0, 1, 1], [], []>} : vector<8x8xbf16>, vector<8x32xbf16>, vector<8x32xf32> -> vector<8x32xf32>
    %272 = arith.addf %243, %271 : vector<8x32xf32>
    %273 = tpu.concatenate %156, %272 in 0 : vector<8x32xf32>, vector<8x32xf32> -> vector<16x32xf32>
    %c0_71 = arith.constant 0 : index
    %c0_72 = arith.constant 0 : index
    %c0_73 = arith.constant 0 : index
    %274 = vector.load %arg8[%c0_71, %c0_72, %c0_73] : memref<2x1x32xf32, #tpu.memory_space<vmem>>, vector<1x1x32xf32>
    %275 = vector.shape_cast %274 : vector<1x1x32xf32> to vector<1x32xf32>
    %276 = vector.broadcast %275 : vector<1x32xf32> to vector<16x32xf32>
    %277 = arith.addf %273, %276 : vector<16x32xf32>
    %278 = arith.addf %24, %277 : vector<16x32xf32>
    %c0_74 = arith.constant 0 : index
    %c0_75 = arith.constant 0 : index
    %c0_76 = arith.constant 0 : index
    %279 = vector.load %arg9[%c0_74, %c0_75, %c0_76] : memref<2x1x32xf32, #tpu.memory_space<vmem>>, vector<1x1x32xf32>
    %280 = vector.shape_cast %279 : vector<1x1x32xf32> to vector<1x32xf32>
    %c0_77 = arith.constant 0 : index
    %c0_78 = arith.constant 0 : index
    %c0_79 = arith.constant 0 : index
    %281 = vector.load %arg10[%c0_77, %c0_78, %c0_79] : memref<2x1x32xf32, #tpu.memory_space<vmem>>, vector<1x1x32xf32>
    %282 = vector.shape_cast %281 : vector<1x1x32xf32> to vector<1x32xf32>
    %cst_80 = arith.constant dense<0.000000e+00> : vector<16xf32>
    %283 = vector.multi_reduction <add>, %278, %cst_80 [1] : vector<16x32xf32> to vector<16xf32>
    %284 = vector.shape_cast %283 : vector<16xf32> to vector<16x1xf32>
    %cst_81 = arith.constant 3.200000e+01 : f32
    %285 = vector.broadcast %cst_81 : f32 to vector<16x1xf32>
    %286 = arith.divf %284, %285 : vector<16x1xf32>
    %287 = vector.broadcast %286 : vector<16x1xf32> to vector<16x32xf32>
    %288 = arith.subf %278, %287 : vector<16x32xf32>
    %289 = arith.mulf %288, %288 : vector<16x32xf32>
    %cst_82 = arith.constant dense<0.000000e+00> : vector<16xf32>
    %290 = vector.multi_reduction <add>, %289, %cst_82 [1] : vector<16x32xf32> to vector<16xf32>
    %291 = vector.shape_cast %290 : vector<16xf32> to vector<16x1xf32>
    %cst_83 = arith.constant 3.200000e+01 : f32
    %292 = vector.broadcast %cst_83 : f32 to vector<16x1xf32>
    %293 = arith.divf %291, %292 : vector<16x1xf32>
    %294 = vector.broadcast %286 : vector<16x1xf32> to vector<16x32xf32>
    %295 = arith.subf %278, %294 : vector<16x32xf32>
    %cst_84 = arith.constant 9.99999996E-13 : f32
    %296 = vector.broadcast %cst_84 : f32 to vector<16x1xf32>
    %297 = arith.addf %293, %296 : vector<16x1xf32>
    %298 = math.rsqrt %297 : vector<16x1xf32>
    %299 = vector.broadcast %298 : vector<16x1xf32> to vector<16x32xf32>
    %300 = arith.mulf %295, %299 : vector<16x32xf32>
    %301 = vector.broadcast %280 : vector<1x32xf32> to vector<16x32xf32>
    %302 = arith.mulf %300, %301 : vector<16x32xf32>
    %303 = vector.broadcast %282 : vector<1x32xf32> to vector<16x32xf32>
    %304 = arith.addf %302, %303 : vector<16x32xf32>
    %c0_85 = arith.constant 0 : index
    %c0_86 = arith.constant 0 : index
    %c0_87 = arith.constant 0 : index
    %305 = vector.load %arg11[%c0_85, %c0_86, %c0_87] : memref<2x32x64xf32, #tpu.memory_space<vmem>>, vector<1x32x64xf32>
    %306 = vector.shape_cast %305 : vector<1x32x64xf32> to vector<32x64xf32>
    %307 = arith.truncf %304 : vector<16x32xf32> to vector<16x32xbf16>
    %308 = arith.truncf %306 : vector<32x64xf32> to vector<32x64xbf16>
    %cst_88 = arith.constant dense<0.000000e+00> : vector<16x64xf32>
    %309 = tpu.matmul %307, %308, %cst_88 {dimension_numbers = #tpu.dot_dimension_numbers<[1], [0], [0], [1], [0, 0, 1, 1], [], []>} : vector<16x32xbf16>, vector<32x64xbf16>, vector<16x64xf32> -> vector<16x64xf32>
    %c0_89 = arith.constant 0 : index
    %c0_90 = arith.constant 0 : index
    %c0_91 = arith.constant 0 : index
    %310 = vector.load %arg12[%c0_89, %c0_90, %c0_91] : memref<2x1x64xf32, #tpu.memory_space<vmem>>, vector<1x1x64xf32>
    %311 = vector.shape_cast %310 : vector<1x1x64xf32> to vector<1x64xf32>
    %312 = vector.broadcast %311 : vector<1x64xf32> to vector<16x64xf32>
    %313 = arith.addf %309, %312 : vector<16x64xf32>
    %cst_92 = arith.constant 5.000000e-01 : f32
    %314 = vector.broadcast %cst_92 : f32 to vector<16x64xf32>
    %315 = arith.mulf %314, %313 : vector<16x64xf32>
    %cst_93 = arith.constant 4.471500e-02 : f32
    %316 = vector.broadcast %cst_93 : f32 to vector<16x64xf32>
    %317 = arith.mulf %316, %313 : vector<16x64xf32>
    %318 = arith.mulf %317, %313 : vector<16x64xf32>
    %319 = arith.mulf %318, %313 : vector<16x64xf32>
    %320 = arith.addf %313, %319 : vector<16x64xf32>
    %cst_94 = arith.constant 0.797884583 : f32
    %321 = vector.broadcast %cst_94 : f32 to vector<16x64xf32>
    %322 = arith.mulf %321, %320 : vector<16x64xf32>
    %323 = math.tanh %322 : vector<16x64xf32>
    %cst_95 = arith.constant 1.000000e+00 : f32
    %324 = vector.broadcast %cst_95 : f32 to vector<16x64xf32>
    %325 = arith.addf %324, %323 : vector<16x64xf32>
    %326 = arith.mulf %315, %325 : vector<16x64xf32>
    %c0_96 = arith.constant 0 : index
    %c0_97 = arith.constant 0 : index
    %c0_98 = arith.constant 0 : index
    %327 = vector.load %arg13[%c0_96, %c0_97, %c0_98] : memref<2x64x32xf32, #tpu.memory_space<vmem>>, vector<1x64x32xf32>
    %328 = vector.shape_cast %327 : vector<1x64x32xf32> to vector<64x32xf32>
    %329 = arith.truncf %326 : vector<16x64xf32> to vector<16x64xbf16>
    %330 = arith.truncf %328 : vector<64x32xf32> to vector<64x32xbf16>
    %cst_99 = arith.constant dense<0.000000e+00> : vector<16x32xf32>
    %331 = tpu.matmul %329, %330, %cst_99 {dimension_numbers = #tpu.dot_dimension_numbers<[1], [0], [0], [1], [0, 0, 1, 1], [], []>} : vector<16x64xbf16>, vector<64x32xbf16>, vector<16x32xf32> -> vector<16x32xf32>
    %c0_100 = arith.constant 0 : index
    %c0_101 = arith.constant 0 : index
    %c0_102 = arith.constant 0 : index
    %332 = vector.load %arg14[%c0_100, %c0_101, %c0_102] : memref<2x1x32xf32, #tpu.memory_space<vmem>>, vector<1x1x32xf32>
    %333 = vector.shape_cast %332 : vector<1x1x32xf32> to vector<1x32xf32>
    %334 = vector.broadcast %333 : vector<1x32xf32> to vector<16x32xf32>
    %335 = arith.addf %331, %334 : vector<16x32xf32>
    %336 = arith.addf %304, %335 : vector<16x32xf32>
    %c0_103 = arith.constant 0 : index
    %c0_104 = arith.constant 0 : index
    %c0_105 = arith.constant 0 : index
    %337 = vector.load %arg15[%c0_103, %c0_104, %c0_105] : memref<2x1x32xf32, #tpu.memory_space<vmem>>, vector<1x1x32xf32>
    %338 = vector.shape_cast %337 : vector<1x1x32xf32> to vector<1x32xf32>
    %c0_106 = arith.constant 0 : index
    %c0_107 = arith.constant 0 : index
    %c0_108 = arith.constant 0 : index
    %339 = vector.load %arg16[%c0_106, %c0_107, %c0_108] : memref<2x1x32xf32, #tpu.memory_space<vmem>>, vector<1x1x32xf32>
    %340 = vector.shape_cast %339 : vector<1x1x32xf32> to vector<1x32xf32>
    %cst_109 = arith.constant dense<0.000000e+00> : vector<16xf32>
    %341 = vector.multi_reduction <add>, %336, %cst_109 [1] : vector<16x32xf32> to vector<16xf32>
    %342 = vector.shape_cast %341 : vector<16xf32> to vector<16x1xf32>
    %cst_110 = arith.constant 3.200000e+01 : f32
    %343 = vector.broadcast %cst_110 : f32 to vector<16x1xf32>
    %344 = arith.divf %342, %343 : vector<16x1xf32>
    %345 = vector.broadcast %344 : vector<16x1xf32> to vector<16x32xf32>
    %346 = arith.subf %336, %345 : vector<16x32xf32>
    %347 = arith.mulf %346, %346 : vector<16x32xf32>
    %cst_111 = arith.constant dense<0.000000e+00> : vector<16xf32>
    %348 = vector.multi_reduction <add>, %347, %cst_111 [1] : vector<16x32xf32> to vector<16xf32>
    %349 = vector.shape_cast %348 : vector<16xf32> to vector<16x1xf32>
    %cst_112 = arith.constant 3.200000e+01 : f32
    %350 = vector.broadcast %cst_112 : f32 to vector<16x1xf32>
    %351 = arith.divf %349, %350 : vector<16x1xf32>
    %352 = vector.broadcast %344 : vector<16x1xf32> to vector<16x32xf32>
    %353 = arith.subf %336, %352 : vector<16x32xf32>
    %cst_113 = arith.constant 9.99999996E-13 : f32
    %354 = vector.broadcast %cst_113 : f32 to vector<16x1xf32>
    %355 = arith.addf %351, %354 : vector<16x1xf32>
    %356 = math.rsqrt %355 : vector<16x1xf32>
    %357 = vector.broadcast %356 : vector<16x1xf32> to vector<16x32xf32>
    %358 = arith.mulf %353, %357 : vector<16x32xf32>
    %359 = vector.broadcast %338 : vector<1x32xf32> to vector<16x32xf32>
    %360 = arith.mulf %358, %359 : vector<16x32xf32>
    %361 = vector.broadcast %340 : vector<1x32xf32> to vector<16x32xf32>
    %362 = arith.addf %360, %361 : vector<16x32xf32>
    %c1 = arith.constant 1 : index
    %c0_114 = arith.constant 0 : index
    %c0_115 = arith.constant 0 : index
    %363 = vector.load %arg5[%c1, %c0_114, %c0_115] : memref<2x32x96xf32, #tpu.memory_space<vmem>>, vector<1x32x96xf32>
    %364 = vector.shape_cast %363 : vector<1x32x96xf32> to vector<32x96xf32>
    %365 = arith.truncf %362 : vector<16x32xf32> to vector<16x32xbf16>
    %366 = arith.truncf %364 : vector<32x96xf32> to vector<32x96xbf16>
    %cst_116 = arith.constant dense<0.000000e+00> : vector<16x96xf32>
    %367 = tpu.matmul %365, %366, %cst_116 {dimension_numbers = #tpu.dot_dimension_numbers<[1], [0], [0], [1], [0, 0, 1, 1], [], []>} : vector<16x32xbf16>, vector<32x96xbf16>, vector<16x96xf32> -> vector<16x96xf32>
    %c1_117 = arith.constant 1 : index
    %c0_118 = arith.constant 0 : index
    %c0_119 = arith.constant 0 : index
    %368 = vector.load %arg6[%c1_117, %c0_118, %c0_119] : memref<2x1x96xf32, #tpu.memory_space<vmem>>, vector<1x1x96xf32>
    %369 = vector.shape_cast %368 : vector<1x1x96xf32> to vector<1x96xf32>
    %370 = vector.broadcast %369 : vector<1x96xf32> to vector<16x96xf32>
    %371 = arith.addf %367, %370 : vector<16x96xf32>
    %c1_120 = arith.constant 1 : index
    %c0_121 = arith.constant 0 : index
    %c0_122 = arith.constant 0 : index
    %372 = vector.load %arg7[%c1_120, %c0_121, %c0_122] : memref<2x32x32xf32, #tpu.memory_space<vmem>>, vector<1x32x32xf32>
    %373 = vector.shape_cast %372 : vector<1x32x32xf32> to vector<32x32xf32>
    %374 = vector.extract_strided_slice %29 {offsets = [0, 0], sizes = [1, 8], strides = [1, 1]} : vector<2x8xf32> to vector<1x8xf32>
    %375 = vector.extract_strided_slice %371 {offsets = [0, 0], sizes = [8, 8], strides = [1, 1]} : vector<16x96xf32> to vector<8x8xf32>
    %376 = vector.extract_strided_slice %371 {offsets = [0, 32], sizes = [8, 8], strides = [1, 1]} : vector<16x96xf32> to vector<8x8xf32>
    %377 = vector.extract_strided_slice %371 {offsets = [0, 64], sizes = [8, 8], strides = [1, 1]} : vector<16x96xf32> to vector<8x8xf32>
    %378 = tpu.transpose %376, [1, 0] : vector<8x8xf32> -> vector<8x8xf32>
    %379 = arith.truncf %375 : vector<8x8xf32> to vector<8x8xbf16>
    %380 = arith.truncf %378 : vector<8x8xf32> to vector<8x8xbf16>
    %cst_123 = arith.constant dense<0.000000e+00> : vector<8x8xf32>
    %381 = tpu.matmul %379, %380, %cst_123 {dimension_numbers = #tpu.dot_dimension_numbers<[1], [0], [0], [1], [0, 0, 1, 1], [], []>} : vector<8x8xbf16>, vector<8x8xbf16>, vector<8x8xf32> -> vector<8x8xf32>
    %cst_124 = arith.constant 0.353553385 : f32
    %382 = vector.broadcast %cst_124 : f32 to vector<8x8xf32>
    %383 = arith.mulf %381, %382 : vector<8x8xf32>
    %384 = vector.broadcast %374 : vector<1x8xf32> to vector<8x8xf32>
    %385 = arith.addf %383, %384 : vector<8x8xf32>
    %cst_125 = arith.constant dense<0xFF800000> : vector<8xf32>
    %386 = vector.multi_reduction <maximumf>, %385, %cst_125 [1] : vector<8x8xf32> to vector<8xf32>
    %387 = vector.shape_cast %386 : vector<8xf32> to vector<8x1xf32>
    %388 = vector.broadcast %387 : vector<8x1xf32> to vector<8x8xf32>
    %389 = arith.subf %385, %388 : vector<8x8xf32>
    %390 = math.exp %389 : vector<8x8xf32>
    %cst_126 = arith.constant dense<0.000000e+00> : vector<8xf32>
    %391 = vector.multi_reduction <add>, %390, %cst_126 [1] : vector<8x8xf32> to vector<8xf32>
    %392 = vector.shape_cast %391 : vector<8xf32> to vector<8x1xf32>
    %393 = tpu.reciprocal %392 {approx = true} : vector<8x1xf32> -> vector<8x1xf32>
    %394 = vector.broadcast %393 : vector<8x1xf32> to vector<8x8xf32>
    %395 = arith.mulf %390, %394 : vector<8x8xf32>
    %396 = arith.truncf %395 : vector<8x8xf32> to vector<8x8xbf16>
    %397 = arith.truncf %377 : vector<8x8xf32> to vector<8x8xbf16>
    %cst_127 = arith.constant dense<0.000000e+00> : vector<8x8xf32>
    %398 = tpu.matmul %396, %397, %cst_127 {dimension_numbers = #tpu.dot_dimension_numbers<[1], [0], [0], [1], [0, 0, 1, 1], [], []>} : vector<8x8xbf16>, vector<8x8xbf16>, vector<8x8xf32> -> vector<8x8xf32>
    %399 = vector.extract_strided_slice %373 {offsets = [0, 0], sizes = [8, 32], strides = [1, 1]} : vector<32x32xf32> to vector<8x32xf32>
    %400 = arith.truncf %398 : vector<8x8xf32> to vector<8x8xbf16>
    %401 = arith.truncf %399 : vector<8x32xf32> to vector<8x32xbf16>
    %cst_128 = arith.constant dense<0.000000e+00> : vector<8x32xf32>
    %402 = tpu.matmul %400, %401, %cst_128 {dimension_numbers = #tpu.dot_dimension_numbers<[1], [0], [0], [1], [0, 0, 1, 1], [], []>} : vector<8x8xbf16>, vector<8x32xbf16>, vector<8x32xf32> -> vector<8x32xf32>
    %403 = vector.extract_strided_slice %371 {offsets = [0, 8], sizes = [8, 8], strides = [1, 1]} : vector<16x96xf32> to vector<8x8xf32>
    %404 = vector.extract_strided_slice %371 {offsets = [0, 40], sizes = [8, 8], strides = [1, 1]} : vector<16x96xf32> to vector<8x8xf32>
    %405 = vector.extract_strided_slice %371 {offsets = [0, 72], sizes = [8, 8], strides = [1, 1]} : vector<16x96xf32> to vector<8x8xf32>
    %406 = tpu.transpose %404, [1, 0] : vector<8x8xf32> -> vector<8x8xf32>
    %407 = arith.truncf %403 : vector<8x8xf32> to vector<8x8xbf16>
    %408 = arith.truncf %406 : vector<8x8xf32> to vector<8x8xbf16>
    %cst_129 = arith.constant dense<0.000000e+00> : vector<8x8xf32>
    %409 = tpu.matmul %407, %408, %cst_129 {dimension_numbers = #tpu.dot_dimension_numbers<[1], [0], [0], [1], [0, 0, 1, 1], [], []>} : vector<8x8xbf16>, vector<8x8xbf16>, vector<8x8xf32> -> vector<8x8xf32>
    %cst_130 = arith.constant 0.353553385 : f32
    %410 = vector.broadcast %cst_130 : f32 to vector<8x8xf32>
    %411 = arith.mulf %409, %410 : vector<8x8xf32>
    %412 = vector.broadcast %374 : vector<1x8xf32> to vector<8x8xf32>
    %413 = arith.addf %411, %412 : vector<8x8xf32>
    %cst_131 = arith.constant dense<0xFF800000> : vector<8xf32>
    %414 = vector.multi_reduction <maximumf>, %413, %cst_131 [1] : vector<8x8xf32> to vector<8xf32>
    %415 = vector.shape_cast %414 : vector<8xf32> to vector<8x1xf32>
    %416 = vector.broadcast %415 : vector<8x1xf32> to vector<8x8xf32>
    %417 = arith.subf %413, %416 : vector<8x8xf32>
    %418 = math.exp %417 : vector<8x8xf32>
    %cst_132 = arith.constant dense<0.000000e+00> : vector<8xf32>
    %419 = vector.multi_reduction <add>, %418, %cst_132 [1] : vector<8x8xf32> to vector<8xf32>
    %420 = vector.shape_cast %419 : vector<8xf32> to vector<8x1xf32>
    %421 = tpu.reciprocal %420 {approx = true} : vector<8x1xf32> -> vector<8x1xf32>
    %422 = vector.broadcast %421 : vector<8x1xf32> to vector<8x8xf32>
    %423 = arith.mulf %418, %422 : vector<8x8xf32>
    %424 = arith.truncf %423 : vector<8x8xf32> to vector<8x8xbf16>
    %425 = arith.truncf %405 : vector<8x8xf32> to vector<8x8xbf16>
    %cst_133 = arith.constant dense<0.000000e+00> : vector<8x8xf32>
    %426 = tpu.matmul %424, %425, %cst_133 {dimension_numbers = #tpu.dot_dimension_numbers<[1], [0], [0], [1], [0, 0, 1, 1], [], []>} : vector<8x8xbf16>, vector<8x8xbf16>, vector<8x8xf32> -> vector<8x8xf32>
    %427 = vector.extract_strided_slice %373 {offsets = [8, 0], sizes = [8, 32], strides = [1, 1]} : vector<32x32xf32> to vector<8x32xf32>
    %428 = arith.truncf %426 : vector<8x8xf32> to vector<8x8xbf16>
    %429 = arith.truncf %427 : vector<8x32xf32> to vector<8x32xbf16>
    %cst_134 = arith.constant dense<0.000000e+00> : vector<8x32xf32>
    %430 = tpu.matmul %428, %429, %cst_134 {dimension_numbers = #tpu.dot_dimension_numbers<[1], [0], [0], [1], [0, 0, 1, 1], [], []>} : vector<8x8xbf16>, vector<8x32xbf16>, vector<8x32xf32> -> vector<8x32xf32>
    %431 = arith.addf %402, %430 : vector<8x32xf32>
    %432 = vector.extract_strided_slice %371 {offsets = [0, 16], sizes = [8, 8], strides = [1, 1]} : vector<16x96xf32> to vector<8x8xf32>
    %433 = vector.extract_strided_slice %371 {offsets = [0, 48], sizes = [8, 8], strides = [1, 1]} : vector<16x96xf32> to vector<8x8xf32>
    %434 = vector.extract_strided_slice %371 {offsets = [0, 80], sizes = [8, 8], strides = [1, 1]} : vector<16x96xf32> to vector<8x8xf32>
    %435 = tpu.transpose %433, [1, 0] : vector<8x8xf32> -> vector<8x8xf32>
    %436 = arith.truncf %432 : vector<8x8xf32> to vector<8x8xbf16>
    %437 = arith.truncf %435 : vector<8x8xf32> to vector<8x8xbf16>
    %cst_135 = arith.constant dense<0.000000e+00> : vector<8x8xf32>
    %438 = tpu.matmul %436, %437, %cst_135 {dimension_numbers = #tpu.dot_dimension_numbers<[1], [0], [0], [1], [0, 0, 1, 1], [], []>} : vector<8x8xbf16>, vector<8x8xbf16>, vector<8x8xf32> -> vector<8x8xf32>
    %cst_136 = arith.constant 0.353553385 : f32
    %439 = vector.broadcast %cst_136 : f32 to vector<8x8xf32>
    %440 = arith.mulf %438, %439 : vector<8x8xf32>
    %441 = vector.broadcast %374 : vector<1x8xf32> to vector<8x8xf32>
    %442 = arith.addf %440, %441 : vector<8x8xf32>
    %cst_137 = arith.constant dense<0xFF800000> : vector<8xf32>
    %443 = vector.multi_reduction <maximumf>, %442, %cst_137 [1] : vector<8x8xf32> to vector<8xf32>
    %444 = vector.shape_cast %443 : vector<8xf32> to vector<8x1xf32>
    %445 = vector.broadcast %444 : vector<8x1xf32> to vector<8x8xf32>
    %446 = arith.subf %442, %445 : vector<8x8xf32>
    %447 = math.exp %446 : vector<8x8xf32>
    %cst_138 = arith.constant dense<0.000000e+00> : vector<8xf32>
    %448 = vector.multi_reduction <add>, %447, %cst_138 [1] : vector<8x8xf32> to vector<8xf32>
    %449 = vector.shape_cast %448 : vector<8xf32> to vector<8x1xf32>
    %450 = tpu.reciprocal %449 {approx = true} : vector<8x1xf32> -> vector<8x1xf32>
    %451 = vector.broadcast %450 : vector<8x1xf32> to vector<8x8xf32>
    %452 = arith.mulf %447, %451 : vector<8x8xf32>
    %453 = arith.truncf %452 : vector<8x8xf32> to vector<8x8xbf16>
    %454 = arith.truncf %434 : vector<8x8xf32> to vector<8x8xbf16>
    %cst_139 = arith.constant dense<0.000000e+00> : vector<8x8xf32>
    %455 = tpu.matmul %453, %454, %cst_139 {dimension_numbers = #tpu.dot_dimension_numbers<[1], [0], [0], [1], [0, 0, 1, 1], [], []>} : vector<8x8xbf16>, vector<8x8xbf16>, vector<8x8xf32> -> vector<8x8xf32>
    %456 = vector.extract_strided_slice %373 {offsets = [16, 0], sizes = [8, 32], strides = [1, 1]} : vector<32x32xf32> to vector<8x32xf32>
    %457 = arith.truncf %455 : vector<8x8xf32> to vector<8x8xbf16>
    %458 = arith.truncf %456 : vector<8x32xf32> to vector<8x32xbf16>
    %cst_140 = arith.constant dense<0.000000e+00> : vector<8x32xf32>
    %459 = tpu.matmul %457, %458, %cst_140 {dimension_numbers = #tpu.dot_dimension_numbers<[1], [0], [0], [1], [0, 0, 1, 1], [], []>} : vector<8x8xbf16>, vector<8x32xbf16>, vector<8x32xf32> -> vector<8x32xf32>
    %460 = arith.addf %431, %459 : vector<8x32xf32>
    %461 = vector.extract_strided_slice %371 {offsets = [0, 24], sizes = [8, 8], strides = [1, 1]} : vector<16x96xf32> to vector<8x8xf32>
    %462 = vector.extract_strided_slice %371 {offsets = [0, 56], sizes = [8, 8], strides = [1, 1]} : vector<16x96xf32> to vector<8x8xf32>
    %463 = vector.extract_strided_slice %371 {offsets = [0, 88], sizes = [8, 8], strides = [1, 1]} : vector<16x96xf32> to vector<8x8xf32>
    %464 = tpu.transpose %462, [1, 0] : vector<8x8xf32> -> vector<8x8xf32>
    %465 = arith.truncf %461 : vector<8x8xf32> to vector<8x8xbf16>
    %466 = arith.truncf %464 : vector<8x8xf32> to vector<8x8xbf16>
    %cst_141 = arith.constant dense<0.000000e+00> : vector<8x8xf32>
    %467 = tpu.matmul %465, %466, %cst_141 {dimension_numbers = #tpu.dot_dimension_numbers<[1], [0], [0], [1], [0, 0, 1, 1], [], []>} : vector<8x8xbf16>, vector<8x8xbf16>, vector<8x8xf32> -> vector<8x8xf32>
    %cst_142 = arith.constant 0.353553385 : f32
    %468 = vector.broadcast %cst_142 : f32 to vector<8x8xf32>
    %469 = arith.mulf %467, %468 : vector<8x8xf32>
    %470 = vector.broadcast %374 : vector<1x8xf32> to vector<8x8xf32>
    %471 = arith.addf %469, %470 : vector<8x8xf32>
    %cst_143 = arith.constant dense<0xFF800000> : vector<8xf32>
    %472 = vector.multi_reduction <maximumf>, %471, %cst_143 [1] : vector<8x8xf32> to vector<8xf32>
    %473 = vector.shape_cast %472 : vector<8xf32> to vector<8x1xf32>
    %474 = vector.broadcast %473 : vector<8x1xf32> to vector<8x8xf32>
    %475 = arith.subf %471, %474 : vector<8x8xf32>
    %476 = math.exp %475 : vector<8x8xf32>
    %cst_144 = arith.constant dense<0.000000e+00> : vector<8xf32>
    %477 = vector.multi_reduction <add>, %476, %cst_144 [1] : vector<8x8xf32> to vector<8xf32>
    %478 = vector.shape_cast %477 : vector<8xf32> to vector<8x1xf32>
    %479 = tpu.reciprocal %478 {approx = true} : vector<8x1xf32> -> vector<8x1xf32>
    %480 = vector.broadcast %479 : vector<8x1xf32> to vector<8x8xf32>
    %481 = arith.mulf %476, %480 : vector<8x8xf32>
    %482 = arith.truncf %481 : vector<8x8xf32> to vector<8x8xbf16>
    %483 = arith.truncf %463 : vector<8x8xf32> to vector<8x8xbf16>
    %cst_145 = arith.constant dense<0.000000e+00> : vector<8x8xf32>
    %484 = tpu.matmul %482, %483, %cst_145 {dimension_numbers = #tpu.dot_dimension_numbers<[1], [0], [0], [1], [0, 0, 1, 1], [], []>} : vector<8x8xbf16>, vector<8x8xbf16>, vector<8x8xf32> -> vector<8x8xf32>
    %485 = vector.extract_strided_slice %373 {offsets = [24, 0], sizes = [8, 32], strides = [1, 1]} : vector<32x32xf32> to vector<8x32xf32>
    %486 = arith.truncf %484 : vector<8x8xf32> to vector<8x8xbf16>
    %487 = arith.truncf %485 : vector<8x32xf32> to vector<8x32xbf16>
    %cst_146 = arith.constant dense<0.000000e+00> : vector<8x32xf32>
    %488 = tpu.matmul %486, %487, %cst_146 {dimension_numbers = #tpu.dot_dimension_numbers<[1], [0], [0], [1], [0, 0, 1, 1], [], []>} : vector<8x8xbf16>, vector<8x32xbf16>, vector<8x32xf32> -> vector<8x32xf32>
    %489 = arith.addf %460, %488 : vector<8x32xf32>
    %490 = vector.extract_strided_slice %29 {offsets = [1, 0], sizes = [1, 8], strides = [1, 1]} : vector<2x8xf32> to vector<1x8xf32>
    %491 = vector.extract_strided_slice %371 {offsets = [8, 0], sizes = [8, 8], strides = [1, 1]} : vector<16x96xf32> to vector<8x8xf32>
    %492 = vector.extract_strided_slice %371 {offsets = [8, 32], sizes = [8, 8], strides = [1, 1]} : vector<16x96xf32> to vector<8x8xf32>
    %493 = vector.extract_strided_slice %371 {offsets = [8, 64], sizes = [8, 8], strides = [1, 1]} : vector<16x96xf32> to vector<8x8xf32>
    %494 = tpu.transpose %492, [1, 0] : vector<8x8xf32> -> vector<8x8xf32>
    %495 = arith.truncf %491 : vector<8x8xf32> to vector<8x8xbf16>
    %496 = arith.truncf %494 : vector<8x8xf32> to vector<8x8xbf16>
    %cst_147 = arith.constant dense<0.000000e+00> : vector<8x8xf32>
    %497 = tpu.matmul %495, %496, %cst_147 {dimension_numbers = #tpu.dot_dimension_numbers<[1], [0], [0], [1], [0, 0, 1, 1], [], []>} : vector<8x8xbf16>, vector<8x8xbf16>, vector<8x8xf32> -> vector<8x8xf32>
    %cst_148 = arith.constant 0.353553385 : f32
    %498 = vector.broadcast %cst_148 : f32 to vector<8x8xf32>
    %499 = arith.mulf %497, %498 : vector<8x8xf32>
    %500 = vector.broadcast %490 : vector<1x8xf32> to vector<8x8xf32>
    %501 = arith.addf %499, %500 : vector<8x8xf32>
    %cst_149 = arith.constant dense<0xFF800000> : vector<8xf32>
    %502 = vector.multi_reduction <maximumf>, %501, %cst_149 [1] : vector<8x8xf32> to vector<8xf32>
    %503 = vector.shape_cast %502 : vector<8xf32> to vector<8x1xf32>
    %504 = vector.broadcast %503 : vector<8x1xf32> to vector<8x8xf32>
    %505 = arith.subf %501, %504 : vector<8x8xf32>
    %506 = math.exp %505 : vector<8x8xf32>
    %cst_150 = arith.constant dense<0.000000e+00> : vector<8xf32>
    %507 = vector.multi_reduction <add>, %506, %cst_150 [1] : vector<8x8xf32> to vector<8xf32>
    %508 = vector.shape_cast %507 : vector<8xf32> to vector<8x1xf32>
    %509 = tpu.reciprocal %508 {approx = true} : vector<8x1xf32> -> vector<8x1xf32>
    %510 = vector.broadcast %509 : vector<8x1xf32> to vector<8x8xf32>
    %511 = arith.mulf %506, %510 : vector<8x8xf32>
    %512 = arith.truncf %511 : vector<8x8xf32> to vector<8x8xbf16>
    %513 = arith.truncf %493 : vector<8x8xf32> to vector<8x8xbf16>
    %cst_151 = arith.constant dense<0.000000e+00> : vector<8x8xf32>
    %514 = tpu.matmul %512, %513, %cst_151 {dimension_numbers = #tpu.dot_dimension_numbers<[1], [0], [0], [1], [0, 0, 1, 1], [], []>} : vector<8x8xbf16>, vector<8x8xbf16>, vector<8x8xf32> -> vector<8x8xf32>
    %515 = vector.extract_strided_slice %373 {offsets = [0, 0], sizes = [8, 32], strides = [1, 1]} : vector<32x32xf32> to vector<8x32xf32>
    %516 = arith.truncf %514 : vector<8x8xf32> to vector<8x8xbf16>
    %517 = arith.truncf %515 : vector<8x32xf32> to vector<8x32xbf16>
    %cst_152 = arith.constant dense<0.000000e+00> : vector<8x32xf32>
    %518 = tpu.matmul %516, %517, %cst_152 {dimension_numbers = #tpu.dot_dimension_numbers<[1], [0], [0], [1], [0, 0, 1, 1], [], []>} : vector<8x8xbf16>, vector<8x32xbf16>, vector<8x32xf32> -> vector<8x32xf32>
    %519 = vector.extract_strided_slice %371 {offsets = [8, 8], sizes = [8, 8], strides = [1, 1]} : vector<16x96xf32> to vector<8x8xf32>
    %520 = vector.extract_strided_slice %371 {offsets = [8, 40], sizes = [8, 8], strides = [1, 1]} : vector<16x96xf32> to vector<8x8xf32>
    %521 = vector.extract_strided_slice %371 {offsets = [8, 72], sizes = [8, 8], strides = [1, 1]} : vector<16x96xf32> to vector<8x8xf32>
    %522 = tpu.transpose %520, [1, 0] : vector<8x8xf32> -> vector<8x8xf32>
    %523 = arith.truncf %519 : vector<8x8xf32> to vector<8x8xbf16>
    %524 = arith.truncf %522 : vector<8x8xf32> to vector<8x8xbf16>
    %cst_153 = arith.constant dense<0.000000e+00> : vector<8x8xf32>
    %525 = tpu.matmul %523, %524, %cst_153 {dimension_numbers = #tpu.dot_dimension_numbers<[1], [0], [0], [1], [0, 0, 1, 1], [], []>} : vector<8x8xbf16>, vector<8x8xbf16>, vector<8x8xf32> -> vector<8x8xf32>
    %cst_154 = arith.constant 0.353553385 : f32
    %526 = vector.broadcast %cst_154 : f32 to vector<8x8xf32>
    %527 = arith.mulf %525, %526 : vector<8x8xf32>
    %528 = vector.broadcast %490 : vector<1x8xf32> to vector<8x8xf32>
    %529 = arith.addf %527, %528 : vector<8x8xf32>
    %cst_155 = arith.constant dense<0xFF800000> : vector<8xf32>
    %530 = vector.multi_reduction <maximumf>, %529, %cst_155 [1] : vector<8x8xf32> to vector<8xf32>
    %531 = vector.shape_cast %530 : vector<8xf32> to vector<8x1xf32>
    %532 = vector.broadcast %531 : vector<8x1xf32> to vector<8x8xf32>
    %533 = arith.subf %529, %532 : vector<8x8xf32>
    %534 = math.exp %533 : vector<8x8xf32>
    %cst_156 = arith.constant dense<0.000000e+00> : vector<8xf32>
    %535 = vector.multi_reduction <add>, %534, %cst_156 [1] : vector<8x8xf32> to vector<8xf32>
    %536 = vector.shape_cast %535 : vector<8xf32> to vector<8x1xf32>
    %537 = tpu.reciprocal %536 {approx = true} : vector<8x1xf32> -> vector<8x1xf32>
    %538 = vector.broadcast %537 : vector<8x1xf32> to vector<8x8xf32>
    %539 = arith.mulf %534, %538 : vector<8x8xf32>
    %540 = arith.truncf %539 : vector<8x8xf32> to vector<8x8xbf16>
    %541 = arith.truncf %521 : vector<8x8xf32> to vector<8x8xbf16>
    %cst_157 = arith.constant dense<0.000000e+00> : vector<8x8xf32>
    %542 = tpu.matmul %540, %541, %cst_157 {dimension_numbers = #tpu.dot_dimension_numbers<[1], [0], [0], [1], [0, 0, 1, 1], [], []>} : vector<8x8xbf16>, vector<8x8xbf16>, vector<8x8xf32> -> vector<8x8xf32>
    %543 = vector.extract_strided_slice %373 {offsets = [8, 0], sizes = [8, 32], strides = [1, 1]} : vector<32x32xf32> to vector<8x32xf32>
    %544 = arith.truncf %542 : vector<8x8xf32> to vector<8x8xbf16>
    %545 = arith.truncf %543 : vector<8x32xf32> to vector<8x32xbf16>
    %cst_158 = arith.constant dense<0.000000e+00> : vector<8x32xf32>
    %546 = tpu.matmul %544, %545, %cst_158 {dimension_numbers = #tpu.dot_dimension_numbers<[1], [0], [0], [1], [0, 0, 1, 1], [], []>} : vector<8x8xbf16>, vector<8x32xbf16>, vector<8x32xf32> -> vector<8x32xf32>
    %547 = arith.addf %518, %546 : vector<8x32xf32>
    %548 = vector.extract_strided_slice %371 {offsets = [8, 16], sizes = [8, 8], strides = [1, 1]} : vector<16x96xf32> to vector<8x8xf32>
    %549 = vector.extract_strided_slice %371 {offsets = [8, 48], sizes = [8, 8], strides = [1, 1]} : vector<16x96xf32> to vector<8x8xf32>
    %550 = vector.extract_strided_slice %371 {offsets = [8, 80], sizes = [8, 8], strides = [1, 1]} : vector<16x96xf32> to vector<8x8xf32>
    %551 = tpu.transpose %549, [1, 0] : vector<8x8xf32> -> vector<8x8xf32>
    %552 = arith.truncf %548 : vector<8x8xf32> to vector<8x8xbf16>
    %553 = arith.truncf %551 : vector<8x8xf32> to vector<8x8xbf16>
    %cst_159 = arith.constant dense<0.000000e+00> : vector<8x8xf32>
    %554 = tpu.matmul %552, %553, %cst_159 {dimension_numbers = #tpu.dot_dimension_numbers<[1], [0], [0], [1], [0, 0, 1, 1], [], []>} : vector<8x8xbf16>, vector<8x8xbf16>, vector<8x8xf32> -> vector<8x8xf32>
    %cst_160 = arith.constant 0.353553385 : f32
    %555 = vector.broadcast %cst_160 : f32 to vector<8x8xf32>
    %556 = arith.mulf %554, %555 : vector<8x8xf32>
    %557 = vector.broadcast %490 : vector<1x8xf32> to vector<8x8xf32>
    %558 = arith.addf %556, %557 : vector<8x8xf32>
    %cst_161 = arith.constant dense<0xFF800000> : vector<8xf32>
    %559 = vector.multi_reduction <maximumf>, %558, %cst_161 [1] : vector<8x8xf32> to vector<8xf32>
    %560 = vector.shape_cast %559 : vector<8xf32> to vector<8x1xf32>
    %561 = vector.broadcast %560 : vector<8x1xf32> to vector<8x8xf32>
    %562 = arith.subf %558, %561 : vector<8x8xf32>
    %563 = math.exp %562 : vector<8x8xf32>
    %cst_162 = arith.constant dense<0.000000e+00> : vector<8xf32>
    %564 = vector.multi_reduction <add>, %563, %cst_162 [1] : vector<8x8xf32> to vector<8xf32>
    %565 = vector.shape_cast %564 : vector<8xf32> to vector<8x1xf32>
    %566 = tpu.reciprocal %565 {approx = true} : vector<8x1xf32> -> vector<8x1xf32>
    %567 = vector.broadcast %566 : vector<8x1xf32> to vector<8x8xf32>
    %568 = arith.mulf %563, %567 : vector<8x8xf32>
    %569 = arith.truncf %568 : vector<8x8xf32> to vector<8x8xbf16>
    %570 = arith.truncf %550 : vector<8x8xf32> to vector<8x8xbf16>
    %cst_163 = arith.constant dense<0.000000e+00> : vector<8x8xf32>
    %571 = tpu.matmul %569, %570, %cst_163 {dimension_numbers = #tpu.dot_dimension_numbers<[1], [0], [0], [1], [0, 0, 1, 1], [], []>} : vector<8x8xbf16>, vector<8x8xbf16>, vector<8x8xf32> -> vector<8x8xf32>
    %572 = vector.extract_strided_slice %373 {offsets = [16, 0], sizes = [8, 32], strides = [1, 1]} : vector<32x32xf32> to vector<8x32xf32>
    %573 = arith.truncf %571 : vector<8x8xf32> to vector<8x8xbf16>
    %574 = arith.truncf %572 : vector<8x32xf32> to vector<8x32xbf16>
    %cst_164 = arith.constant dense<0.000000e+00> : vector<8x32xf32>
    %575 = tpu.matmul %573, %574, %cst_164 {dimension_numbers = #tpu.dot_dimension_numbers<[1], [0], [0], [1], [0, 0, 1, 1], [], []>} : vector<8x8xbf16>, vector<8x32xbf16>, vector<8x32xf32> -> vector<8x32xf32>
    %576 = arith.addf %547, %575 : vector<8x32xf32>
    %577 = vector.extract_strided_slice %371 {offsets = [8, 24], sizes = [8, 8], strides = [1, 1]} : vector<16x96xf32> to vector<8x8xf32>
    %578 = vector.extract_strided_slice %371 {offsets = [8, 56], sizes = [8, 8], strides = [1, 1]} : vector<16x96xf32> to vector<8x8xf32>
    %579 = vector.extract_strided_slice %371 {offsets = [8, 88], sizes = [8, 8], strides = [1, 1]} : vector<16x96xf32> to vector<8x8xf32>
    %580 = tpu.transpose %578, [1, 0] : vector<8x8xf32> -> vector<8x8xf32>
    %581 = arith.truncf %577 : vector<8x8xf32> to vector<8x8xbf16>
    %582 = arith.truncf %580 : vector<8x8xf32> to vector<8x8xbf16>
    %cst_165 = arith.constant dense<0.000000e+00> : vector<8x8xf32>
    %583 = tpu.matmul %581, %582, %cst_165 {dimension_numbers = #tpu.dot_dimension_numbers<[1], [0], [0], [1], [0, 0, 1, 1], [], []>} : vector<8x8xbf16>, vector<8x8xbf16>, vector<8x8xf32> -> vector<8x8xf32>
    %cst_166 = arith.constant 0.353553385 : f32
    %584 = vector.broadcast %cst_166 : f32 to vector<8x8xf32>
    %585 = arith.mulf %583, %584 : vector<8x8xf32>
    %586 = vector.broadcast %490 : vector<1x8xf32> to vector<8x8xf32>
    %587 = arith.addf %585, %586 : vector<8x8xf32>
    %cst_167 = arith.constant dense<0xFF800000> : vector<8xf32>
    %588 = vector.multi_reduction <maximumf>, %587, %cst_167 [1] : vector<8x8xf32> to vector<8xf32>
    %589 = vector.shape_cast %588 : vector<8xf32> to vector<8x1xf32>
    %590 = vector.broadcast %589 : vector<8x1xf32> to vector<8x8xf32>
    %591 = arith.subf %587, %590 : vector<8x8xf32>
    %592 = math.exp %591 : vector<8x8xf32>
    %cst_168 = arith.constant dense<0.000000e+00> : vector<8xf32>
    %593 = vector.multi_reduction <add>, %592, %cst_168 [1] : vector<8x8xf32> to vector<8xf32>
    %594 = vector.shape_cast %593 : vector<8xf32> to vector<8x1xf32>
    %595 = tpu.reciprocal %594 {approx = true} : vector<8x1xf32> -> vector<8x1xf32>
    %596 = vector.broadcast %595 : vector<8x1xf32> to vector<8x8xf32>
    %597 = arith.mulf %592, %596 : vector<8x8xf32>
    %598 = arith.truncf %597 : vector<8x8xf32> to vector<8x8xbf16>
    %599 = arith.truncf %579 : vector<8x8xf32> to vector<8x8xbf16>
    %cst_169 = arith.constant dense<0.000000e+00> : vector<8x8xf32>
    %600 = tpu.matmul %598, %599, %cst_169 {dimension_numbers = #tpu.dot_dimension_numbers<[1], [0], [0], [1], [0, 0, 1, 1], [], []>} : vector<8x8xbf16>, vector<8x8xbf16>, vector<8x8xf32> -> vector<8x8xf32>
    %601 = vector.extract_strided_slice %373 {offsets = [24, 0], sizes = [8, 32], strides = [1, 1]} : vector<32x32xf32> to vector<8x32xf32>
    %602 = arith.truncf %600 : vector<8x8xf32> to vector<8x8xbf16>
    %603 = arith.truncf %601 : vector<8x32xf32> to vector<8x32xbf16>
    %cst_170 = arith.constant dense<0.000000e+00> : vector<8x32xf32>
    %604 = tpu.matmul %602, %603, %cst_170 {dimension_numbers = #tpu.dot_dimension_numbers<[1], [0], [0], [1], [0, 0, 1, 1], [], []>} : vector<8x8xbf16>, vector<8x32xbf16>, vector<8x32xf32> -> vector<8x32xf32>
    %605 = arith.addf %576, %604 : vector<8x32xf32>
    %606 = tpu.concatenate %489, %605 in 0 : vector<8x32xf32>, vector<8x32xf32> -> vector<16x32xf32>
    %c1_171 = arith.constant 1 : index
    %c0_172 = arith.constant 0 : index
    %c0_173 = arith.constant 0 : index
    %607 = vector.load %arg8[%c1_171, %c0_172, %c0_173] : memref<2x1x32xf32, #tpu.memory_space<vmem>>, vector<1x1x32xf32>
    %608 = vector.shape_cast %607 : vector<1x1x32xf32> to vector<1x32xf32>
    %609 = vector.broadcast %608 : vector<1x32xf32> to vector<16x32xf32>
    %610 = arith.addf %606, %609 : vector<16x32xf32>
    %611 = arith.addf %362, %610 : vector<16x32xf32>
    %c1_174 = arith.constant 1 : index
    %c0_175 = arith.constant 0 : index
    %c0_176 = arith.constant 0 : index
    %612 = vector.load %arg9[%c1_174, %c0_175, %c0_176] : memref<2x1x32xf32, #tpu.memory_space<vmem>>, vector<1x1x32xf32>
    %613 = vector.shape_cast %612 : vector<1x1x32xf32> to vector<1x32xf32>
    %c1_177 = arith.constant 1 : index
    %c0_178 = arith.constant 0 : index
    %c0_179 = arith.constant 0 : index
    %614 = vector.load %arg10[%c1_177, %c0_178, %c0_179] : memref<2x1x32xf32, #tpu.memory_space<vmem>>, vector<1x1x32xf32>
    %615 = vector.shape_cast %614 : vector<1x1x32xf32> to vector<1x32xf32>
    %cst_180 = arith.constant dense<0.000000e+00> : vector<16xf32>
    %616 = vector.multi_reduction <add>, %611, %cst_180 [1] : vector<16x32xf32> to vector<16xf32>
    %617 = vector.shape_cast %616 : vector<16xf32> to vector<16x1xf32>
    %cst_181 = arith.constant 3.200000e+01 : f32
    %618 = vector.broadcast %cst_181 : f32 to vector<16x1xf32>
    %619 = arith.divf %617, %618 : vector<16x1xf32>
    %620 = vector.broadcast %619 : vector<16x1xf32> to vector<16x32xf32>
    %621 = arith.subf %611, %620 : vector<16x32xf32>
    %622 = arith.mulf %621, %621 : vector<16x32xf32>
    %cst_182 = arith.constant dense<0.000000e+00> : vector<16xf32>
    %623 = vector.multi_reduction <add>, %622, %cst_182 [1] : vector<16x32xf32> to vector<16xf32>
    %624 = vector.shape_cast %623 : vector<16xf32> to vector<16x1xf32>
    %cst_183 = arith.constant 3.200000e+01 : f32
    %625 = vector.broadcast %cst_183 : f32 to vector<16x1xf32>
    %626 = arith.divf %624, %625 : vector<16x1xf32>
    %627 = vector.broadcast %619 : vector<16x1xf32> to vector<16x32xf32>
    %628 = arith.subf %611, %627 : vector<16x32xf32>
    %cst_184 = arith.constant 9.99999996E-13 : f32
    %629 = vector.broadcast %cst_184 : f32 to vector<16x1xf32>
    %630 = arith.addf %626, %629 : vector<16x1xf32>
    %631 = math.rsqrt %630 : vector<16x1xf32>
    %632 = vector.broadcast %631 : vector<16x1xf32> to vector<16x32xf32>
    %633 = arith.mulf %628, %632 : vector<16x32xf32>
    %634 = vector.broadcast %613 : vector<1x32xf32> to vector<16x32xf32>
    %635 = arith.mulf %633, %634 : vector<16x32xf32>
    %636 = vector.broadcast %615 : vector<1x32xf32> to vector<16x32xf32>
    %637 = arith.addf %635, %636 : vector<16x32xf32>
    %c1_185 = arith.constant 1 : index
    %c0_186 = arith.constant 0 : index
    %c0_187 = arith.constant 0 : index
    %638 = vector.load %arg11[%c1_185, %c0_186, %c0_187] : memref<2x32x64xf32, #tpu.memory_space<vmem>>, vector<1x32x64xf32>
    %639 = vector.shape_cast %638 : vector<1x32x64xf32> to vector<32x64xf32>
    %640 = arith.truncf %637 : vector<16x32xf32> to vector<16x32xbf16>
    %641 = arith.truncf %639 : vector<32x64xf32> to vector<32x64xbf16>
    %cst_188 = arith.constant dense<0.000000e+00> : vector<16x64xf32>
    %642 = tpu.matmul %640, %641, %cst_188 {dimension_numbers = #tpu.dot_dimension_numbers<[1], [0], [0], [1], [0, 0, 1, 1], [], []>} : vector<16x32xbf16>, vector<32x64xbf16>, vector<16x64xf32> -> vector<16x64xf32>
    %c1_189 = arith.constant 1 : index
    %c0_190 = arith.constant 0 : index
    %c0_191 = arith.constant 0 : index
    %643 = vector.load %arg12[%c1_189, %c0_190, %c0_191] : memref<2x1x64xf32, #tpu.memory_space<vmem>>, vector<1x1x64xf32>
    %644 = vector.shape_cast %643 : vector<1x1x64xf32> to vector<1x64xf32>
    %645 = vector.broadcast %644 : vector<1x64xf32> to vector<16x64xf32>
    %646 = arith.addf %642, %645 : vector<16x64xf32>
    %cst_192 = arith.constant 5.000000e-01 : f32
    %647 = vector.broadcast %cst_192 : f32 to vector<16x64xf32>
    %648 = arith.mulf %647, %646 : vector<16x64xf32>
    %cst_193 = arith.constant 4.471500e-02 : f32
    %649 = vector.broadcast %cst_193 : f32 to vector<16x64xf32>
    %650 = arith.mulf %649, %646 : vector<16x64xf32>
    %651 = arith.mulf %650, %646 : vector<16x64xf32>
    %652 = arith.mulf %651, %646 : vector<16x64xf32>
    %653 = arith.addf %646, %652 : vector<16x64xf32>
    %cst_194 = arith.constant 0.797884583 : f32
    %654 = vector.broadcast %cst_194 : f32 to vector<16x64xf32>
    %655 = arith.mulf %654, %653 : vector<16x64xf32>
    %656 = math.tanh %655 : vector<16x64xf32>
    %cst_195 = arith.constant 1.000000e+00 : f32
    %657 = vector.broadcast %cst_195 : f32 to vector<16x64xf32>
    %658 = arith.addf %657, %656 : vector<16x64xf32>
    %659 = arith.mulf %648, %658 : vector<16x64xf32>
    %c1_196 = arith.constant 1 : index
    %c0_197 = arith.constant 0 : index
    %c0_198 = arith.constant 0 : index
    %660 = vector.load %arg13[%c1_196, %c0_197, %c0_198] : memref<2x64x32xf32, #tpu.memory_space<vmem>>, vector<1x64x32xf32>
    %661 = vector.shape_cast %660 : vector<1x64x32xf32> to vector<64x32xf32>
    %662 = arith.truncf %659 : vector<16x64xf32> to vector<16x64xbf16>
    %663 = arith.truncf %661 : vector<64x32xf32> to vector<64x32xbf16>
    %cst_199 = arith.constant dense<0.000000e+00> : vector<16x32xf32>
    %664 = tpu.matmul %662, %663, %cst_199 {dimension_numbers = #tpu.dot_dimension_numbers<[1], [0], [0], [1], [0, 0, 1, 1], [], []>} : vector<16x64xbf16>, vector<64x32xbf16>, vector<16x32xf32> -> vector<16x32xf32>
    %c1_200 = arith.constant 1 : index
    %c0_201 = arith.constant 0 : index
    %c0_202 = arith.constant 0 : index
    %665 = vector.load %arg14[%c1_200, %c0_201, %c0_202] : memref<2x1x32xf32, #tpu.memory_space<vmem>>, vector<1x1x32xf32>
    %666 = vector.shape_cast %665 : vector<1x1x32xf32> to vector<1x32xf32>
    %667 = vector.broadcast %666 : vector<1x32xf32> to vector<16x32xf32>
    %668 = arith.addf %664, %667 : vector<16x32xf32>
    %669 = arith.addf %637, %668 : vector<16x32xf32>
    %c1_203 = arith.constant 1 : index
    %c0_204 = arith.constant 0 : index
    %c0_205 = arith.constant 0 : index
    %670 = vector.load %arg15[%c1_203, %c0_204, %c0_205] : memref<2x1x32xf32, #tpu.memory_space<vmem>>, vector<1x1x32xf32>
    %671 = vector.shape_cast %670 : vector<1x1x32xf32> to vector<1x32xf32>
    %c1_206 = arith.constant 1 : index
    %c0_207 = arith.constant 0 : index
    %c0_208 = arith.constant 0 : index
    %672 = vector.load %arg16[%c1_206, %c0_207, %c0_208] : memref<2x1x32xf32, #tpu.memory_space<vmem>>, vector<1x1x32xf32>
    %673 = vector.shape_cast %672 : vector<1x1x32xf32> to vector<1x32xf32>
    %cst_209 = arith.constant dense<0.000000e+00> : vector<16xf32>
    %674 = vector.multi_reduction <add>, %669, %cst_209 [1] : vector<16x32xf32> to vector<16xf32>
    %675 = vector.shape_cast %674 : vector<16xf32> to vector<16x1xf32>
    %cst_210 = arith.constant 3.200000e+01 : f32
    %676 = vector.broadcast %cst_210 : f32 to vector<16x1xf32>
    %677 = arith.divf %675, %676 : vector<16x1xf32>
    %678 = vector.broadcast %677 : vector<16x1xf32> to vector<16x32xf32>
    %679 = arith.subf %669, %678 : vector<16x32xf32>
    %680 = arith.mulf %679, %679 : vector<16x32xf32>
    %cst_211 = arith.constant dense<0.000000e+00> : vector<16xf32>
    %681 = vector.multi_reduction <add>, %680, %cst_211 [1] : vector<16x32xf32> to vector<16xf32>
    %682 = vector.shape_cast %681 : vector<16xf32> to vector<16x1xf32>
    %cst_212 = arith.constant 3.200000e+01 : f32
    %683 = vector.broadcast %cst_212 : f32 to vector<16x1xf32>
    %684 = arith.divf %682, %683 : vector<16x1xf32>
    %685 = vector.broadcast %677 : vector<16x1xf32> to vector<16x32xf32>
    %686 = arith.subf %669, %685 : vector<16x32xf32>
    %cst_213 = arith.constant 9.99999996E-13 : f32
    %687 = vector.broadcast %cst_213 : f32 to vector<16x1xf32>
    %688 = arith.addf %684, %687 : vector<16x1xf32>
    %689 = math.rsqrt %688 : vector<16x1xf32>
    %690 = vector.broadcast %689 : vector<16x1xf32> to vector<16x32xf32>
    %691 = arith.mulf %686, %690 : vector<16x32xf32>
    %692 = vector.broadcast %671 : vector<1x32xf32> to vector<16x32xf32>
    %693 = arith.mulf %691, %692 : vector<16x32xf32>
    %694 = vector.broadcast %673 : vector<1x32xf32> to vector<16x32xf32>
    %695 = arith.addf %693, %694 : vector<16x32xf32>
    %c0_214 = arith.constant 0 : index
    %c0_215 = arith.constant 0 : index
    %696 = vector.load %arg23[%c0_214, %c0_215] : memref<16x32xf32, #tpu.memory_space<vmem>>, vector<16x32xf32>
    tpu.vector_store %arg23[%c0_214, %c0_215], %695 {strides = array<i32>} : memref<16x32xf32, #tpu.memory_space<vmem>>, vector<16x32xf32>,
    %697 = vector.extract_strided_slice %695 {offsets = [0, 0], sizes = [1, 32], strides = [1, 1]} : vector<16x32xf32> to vector<1x32xf32>
    %698 = vector.extract_strided_slice %695 {offsets = [8, 0], sizes = [1, 32], strides = [1, 1]} : vector<16x32xf32> to vector<1x32xf32>
    %699 = tpu.concatenate %697, %698 in 0 : vector<1x32xf32>, vector<1x32xf32> -> vector<2x32xf32>
    %c0_216 = arith.constant 0 : index
    %c0_217 = arith.constant 0 : index
    %700 = vector.load %arg17[%c0_216, %c0_217] : memref<32x32xf32, #tpu.memory_space<vmem>>, vector<32x32xf32>
    %701 = arith.truncf %699 : vector<2x32xf32> to vector<2x32xbf16>
    %702 = arith.truncf %700 : vector<32x32xf32> to vector<32x32xbf16>
    %cst_218 = arith.constant dense<0.000000e+00> : vector<2x32xf32>
    %703 = tpu.matmul %701, %702, %cst_218 {dimension_numbers = #tpu.dot_dimension_numbers<[1], [0], [0], [1], [0, 0, 1, 1], [], []>} : vector<2x32xbf16>, vector<32x32xbf16>, vector<2x32xf32> -> vector<2x32xf32>
    %c0_219 = arith.constant 0 : index
    %c0_220 = arith.constant 0 : index
    %704 = vector.load %arg18[%c0_219, %c0_220] : memref<1x32xf32, #tpu.memory_space<vmem>>, vector<1x32xf32>
    %705 = vector.broadcast %704 : vector<1x32xf32> to vector<2x32xf32>
    %706 = arith.addf %703, %705 : vector<2x32xf32>
    %707 = math.tanh %706 : vector<2x32xf32>
    %c0_221 = arith.constant 0 : index
    %c0_222 = arith.constant 0 : index
    %708 = vector.load %arg19[%c0_221, %c0_222] : memref<32x3xf32, #tpu.memory_space<vmem>>, vector<32x3xf32>
    %709 = arith.truncf %707 : vector<2x32xf32> to vector<2x32xbf16>
    %710 = arith.truncf %708 : vector<32x3xf32> to vector<32x3xbf16>
    %cst_223 = arith.constant dense<0.000000e+00> : vector<2x3xf32>
    %711 = tpu.matmul %709, %710, %cst_223 {dimension_numbers = #tpu.dot_dimension_numbers<[1], [0], [0], [1], [0, 0, 1, 1], [], []>} : vector<2x32xbf16>, vector<32x3xbf16>, vector<2x3xf32> -> vector<2x3xf32>
    %c0_224 = arith.constant 0 : index
    %c0_225 = arith.constant 0 : index
    %712 = vector.load %arg20[%c0_224, %c0_225] : memref<1x3xf32, #tpu.memory_space<vmem>>, vector<1x3xf32>
    %713 = vector.broadcast %712 : vector<1x3xf32> to vector<2x3xf32>
    %714 = arith.addf %711, %713 : vector<2x3xf32>
    %c0_226 = arith.constant 0 : index
    %c0_227 = arith.constant 0 : index
    %715 = vector.load %arg24[%c0_226, %c0_227] : memref<2x3xf32, #tpu.memory_space<vmem>>, vector<2x3xf32>
    tpu.vector_store %arg24[%c0_226, %c0_227], %714 {strides = array<i32>} : memref<2x3xf32, #tpu.memory_space<vmem>>, vector<2x3xf32>,
    %c0_228 = arith.constant 0 : index
    %c0_229 = arith.constant 0 : index
    %716 = vector.load %arg21[%c0_228, %c0_229] : memref<32x8xf32, #tpu.memory_space<vmem>>, vector<32x8xf32>
    %717 = arith.truncf %699 : vector<2x32xf32> to vector<2x32xbf16>
    %718 = arith.truncf %716 : vector<32x8xf32> to vector<32x8xbf16>
    %cst_230 = arith.constant dense<0.000000e+00> : vector<2x8xf32>
    %719 = tpu.matmul %717, %718, %cst_230 {dimension_numbers = #tpu.dot_dimension_numbers<[1], [0], [0], [1], [0, 0, 1, 1], [], []>} : vector<2x32xbf16>, vector<32x8xbf16>, vector<2x8xf32> -> vector<2x8xf32>
    %c0_231 = arith.constant 0 : index
    %c0_232 = arith.constant 0 : index
    %720 = vector.load %arg22[%c0_231, %c0_232] : memref<1x8xf32, #tpu.memory_space<vmem>>, vector<1x8xf32>
    %721 = vector.broadcast %720 : vector<1x8xf32> to vector<2x8xf32>
    %722 = arith.addf %719, %721 : vector<2x8xf32>
    %723 = arith.negf %722 : vector<2x8xf32>
    %724 = math.exp %723 : vector<2x8xf32>
    %cst_233 = arith.constant 1.000000e+00 : f32
    %725 = vector.broadcast %cst_233 : f32 to vector<2x8xf32>
    %726 = arith.addf %725, %724 : vector<2x8xf32>
    %727 = arith.divf %725, %726 : vector<2x8xf32>
    %c0_234 = arith.constant 0 : index
    %c0_235 = arith.constant 0 : index
    %728 = vector.load %arg25[%c0_234, %c0_235] : memref<2x8xf32, #tpu.memory_space<vmem>>, vector<2x8xf32>
    tpu.vector_store %arg25[%c0_234, %c0_235], %727 {strides = array<i32>} : memref<2x8xf32, #tpu.memory_space<vmem>>, vector<2x8xf32>,
    return
  }
  func.func @transform_0(%arg0: i32) -> (i32, i32) {
    %c0_i32 = arith.constant 0 : i32
    %c0_i32_0 = arith.constant 0 : i32
    %c0_i32_1 = arith.constant 0 : i32
    return %c0_i32, %c0_i32_0 : i32, i32
  }
  func.func @transform_1(%arg0: i32) -> (i32, i32) {
    %c0_i32 = arith.constant 0 : i32
    %c0_i32_0 = arith.constant 0 : i32
    %c0_i32_1 = arith.constant 0 : i32
    return %c0_i32, %c0_i32_0 : i32, i32
  }
  func.func @transform_2(%arg0: i32) -> (i32, i32) {
    %c0_i32 = arith.constant 0 : i32
    %c0_i32_0 = arith.constant 0 : i32
    %c0_i32_1 = arith.constant 0 : i32
    return %c0_i32, %c0_i32_0 : i32, i32
  }
  func.func @transform_3(%arg0: i32) -> (i32, i32) {
    %c0_i32 = arith.constant 0 : i32
    %c0_i32_0 = arith.constant 0 : i32
    %c0_i32_1 = arith.constant 0 : i32
    return %c0_i32, %c0_i32_0 : i32, i32
  }
  func.func @transform_4(%arg0: i32) -> (i32, i32, i32) {
    %c0_i32 = arith.constant 0 : i32
    %c0_i32_0 = arith.constant 0 : i32
    %c0_i32_1 = arith.constant 0 : i32
    %c0_i32_2 = arith.constant 0 : i32
    return %c0_i32, %c0_i32_0, %c0_i32_1 : i32, i32, i32
  }
  func.func @transform_5(%arg0: i32) -> (i32, i32, i32) {
    %c0_i32 = arith.constant 0 : i32
    %c0_i32_0 = arith.constant 0 : i32
    %c0_i32_1 = arith.constant 0 : i32
    %c0_i32_2 = arith.constant 0 : i32
    return %c0_i32, %c0_i32_0, %c0_i32_1 : i32, i32, i32
  }
  func.func @transform_6(%arg0: i32) -> (i32, i32, i32) {
    %c0_i32 = arith.constant 0 : i32
    %c0_i32_0 = arith.constant 0 : i32
    %c0_i32_1 = arith.constant 0 : i32
    %c0_i32_2 = arith.constant 0 : i32
    return %c0_i32, %c0_i32_0, %c0_i32_1 : i32, i32, i32
  }
  func.func @transform_7(%arg0: i32) -> (i32, i32, i32) {
    %c0_i32 = arith.constant 0 : i32
    %c0_i32_0 = arith.constant 0 : i32
    %c0_i32_1 = arith.constant 0 : i32
    %c0_i32_2 = arith.constant 0 : i32
    return %c0_i32, %c0_i32_0, %c0_i32_1 : i32, i32, i32
  }
  func.func @transform_8(%arg0: i32) -> (i32, i32, i32) {
    %c0_i32 = arith.constant 0 : i32
    %c0_i32_0 = arith.constant 0 : i32
    %c0_i32_1 = arith.constant 0 : i32
    %c0_i32_2 = arith.constant 0 : i32
    return %c0_i32, %c0_i32_0, %c0_i32_1 : i32, i32, i32
  }
  func.func @transform_9(%arg0: i32) -> (i32, i32, i32) {
    %c0_i32 = arith.constant 0 : i32
    %c0_i32_0 = arith.constant 0 : i32
    %c0_i32_1 = arith.constant 0 : i32
    %c0_i32_2 = arith.constant 0 : i32
    return %c0_i32, %c0_i32_0, %c0_i32_1 : i32, i32, i32
  }
  func.func @transform_10(%arg0: i32) -> (i32, i32, i32) {
    %c0_i32 = arith.constant 0 : i32
    %c0_i32_0 = arith.constant 0 : i32
    %c0_i32_1 = arith.constant 0 : i32
    %c0_i32_2 = arith.constant 0 : i32
    return %c0_i32, %c0_i32_0, %c0_i32_1 : i32, i32, i32
  }
  func.func @transform_11(%arg0: i32) -> (i32, i32, i32) {
    %c0_i32 = arith.constant 0 : i32
    %c0_i32_0 = arith.constant 0 : i32
    %c0_i32_1 = arith.constant 0 : i32
    %c0_i32_2 = arith.constant 0 : i32
    return %c0_i32, %c0_i32_0, %c0_i32_1 : i32, i32, i32
  }
  func.func @transform_12(%arg0: i32) -> (i32, i32, i32) {
    %c0_i32 = arith.constant 0 : i32
    %c0_i32_0 = arith.constant 0 : i32
    %c0_i32_1 = arith.constant 0 : i32
    %c0_i32_2 = arith.constant 0 : i32
    return %c0_i32, %c0_i32_0, %c0_i32_1 : i32, i32, i32
  }
  func.func @transform_13(%arg0: i32) -> (i32, i32, i32) {
    %c0_i32 = arith.constant 0 : i32
    %c0_i32_0 = arith.constant 0 : i32
    %c0_i32_1 = arith.constant 0 : i32
    %c0_i32_2 = arith.constant 0 : i32
    return %c0_i32, %c0_i32_0, %c0_i32_1 : i32, i32, i32
  }
  func.func @transform_14(%arg0: i32) -> (i32, i32, i32) {
    %c0_i32 = arith.constant 0 : i32
    %c0_i32_0 = arith.constant 0 : i32
    %c0_i32_1 = arith.constant 0 : i32
    %c0_i32_2 = arith.constant 0 : i32
    return %c0_i32, %c0_i32_0, %c0_i32_1 : i32, i32, i32
  }
  func.func @transform_15(%arg0: i32) -> (i32, i32, i32) {
    %c0_i32 = arith.constant 0 : i32
    %c0_i32_0 = arith.constant 0 : i32
    %c0_i32_1 = arith.constant 0 : i32
    %c0_i32_2 = arith.constant 0 : i32
    return %c0_i32, %c0_i32_0, %c0_i32_1 : i32, i32, i32
  }
  func.func @transform_16(%arg0: i32) -> (i32, i32) {
    %c0_i32 = arith.constant 0 : i32
    %c0_i32_0 = arith.constant 0 : i32
    %c0_i32_1 = arith.constant 0 : i32
    return %c0_i32, %c0_i32_0 : i32, i32
  }
  func.func @transform_17(%arg0: i32) -> (i32, i32) {
    %c0_i32 = arith.constant 0 : i32
    %c0_i32_0 = arith.constant 0 : i32
    %c0_i32_1 = arith.constant 0 : i32
    return %c0_i32, %c0_i32_0 : i32, i32
  }
  func.func @transform_18(%arg0: i32) -> (i32, i32) {
    %c0_i32 = arith.constant 0 : i32
    %c0_i32_0 = arith.constant 0 : i32
    %c0_i32_1 = arith.constant 0 : i32
    return %c0_i32, %c0_i32_0 : i32, i32
  }
  func.func @transform_19(%arg0: i32) -> (i32, i32) {
    %c0_i32 = arith.constant 0 : i32
    %c0_i32_0 = arith.constant 0 : i32
    %c0_i32_1 = arith.constant 0 : i32
    return %c0_i32, %c0_i32_0 : i32, i32
  }
  func.func @transform_20(%arg0: i32) -> (i32, i32) {
    %c0_i32 = arith.constant 0 : i32
    %c0_i32_0 = arith.constant 0 : i32
    %c0_i32_1 = arith.constant 0 : i32
    return %c0_i32, %c0_i32_0 : i32, i32
  }
  func.func @transform_21(%arg0: i32) -> (i32, i32) {
    %c0_i32 = arith.constant 0 : i32
    %c0_i32_0 = arith.constant 0 : i32
    %c0_i32_1 = arith.constant 0 : i32
    return %c0_i32, %c0_i32_0 : i32, i32
  }
  func.func @transform_22(%arg0: i32) -> (i32, i32) {
    %c0_i32 = arith.constant 0 : i32
    %c0_i32_0 = arith.constant 0 : i32
    %c0_i32_1 = arith.constant 0 : i32
    return %c0_i32, %c0_i32_0 : i32, i32
  }
  func.func @transform_23(%arg0: i32) -> (i32, i32) {
    %c0_i32 = arith.constant 0 : i32
    %c0_i32_0 = arith.constant 0 : i32
    %c0_i32_1 = arith.constant 0 : i32
    return %c0_i32, %c0_i32_0 : i32, i32
  }
  func.func @transform_24(%arg0: i32) -> (i32, i32) {
    %c0_i32 = arith.constant 0 : i32
    %c0_i32_0 = arith.constant 0 : i32
    %c0_i32_1 = arith.constant 0 : i32
    return %c0_i32, %c0_i32_0 : i32, i32
  }
}

</mosaic_0001>

<llo_original>
// kernel: run.2
$region0: #{run.2}
  #allocation0 [shape = 'u32[]', space=smem, size = 0x4, offset = 0x4, fixed_abs, tag = 'smem constant byte address 0x4 - core index']
  #allocation1 [shape = 'u32[72,128]{1,0:T(1,128)}', space=vmem, size = 0x9000, scoped, tag = 'internal scratch']
  %s0 = inlined_call_operand.vmem [shape: f32[16,32], index: 0, kind: input, shape index: {}]
  %s1 = inlined_call_operand.vmem [shape: f32[2,8], index: 1, kind: input, shape index: {}]
  %s2 = inlined_call_operand.vmem [shape: f32[1,32], index: 2, kind: input, shape index: {}]
  %s3 = inlined_call_operand.vmem [shape: f32[1,32], index: 3, kind: input, shape index: {}]
  %s4 = inlined_call_operand.vmem [shape: f32[2,32,96], index: 4, kind: input, shape index: {}]
  %s5 = inlined_call_operand.vmem [shape: f32[2,1,96], index: 5, kind: input, shape index: {}]
  %s6 = inlined_call_operand.vmem [shape: f32[2,32,32], index: 6, kind: input, shape index: {}]
  %s7 = inlined_call_operand.vmem [shape: f32[2,1,32], index: 7, kind: input, shape index: {}]
  %s8 = inlined_call_operand.vmem [shape: f32[2,1,32], index: 8, kind: input, shape index: {}]
  %s9 = inlined_call_operand.vmem [shape: f32[2,1,32], index: 9, kind: input, shape index: {}]
  %s10 = inlined_call_operand.vmem [shape: f32[2,32,64], index: 10, kind: input, shape index: {}]
  %s11 = inlined_call_operand.vmem [shape: f32[2,1,64], index: 11, kind: input, shape index: {}]
  %s12 = inlined_call_operand.vmem [shape: f32[2,64,32], index: 12, kind: input, shape index: {}]
  %s13 = inlined_call_operand.vmem [shape: f32[2,1,32], index: 13, kind: input, shape index: {}]
  %s14 = inlined_call_operand.vmem [shape: f32[2,1,32], index: 14, kind: input, shape index: {}]
  %s15 = inlined_call_operand.vmem [shape: f32[2,1,32], index: 15, kind: input, shape index: {}]
  %s16 = inlined_call_operand.vmem [shape: f32[32,32], index: 16, kind: input, shape index: {}]
  %s17 = inlined_call_operand.vmem [shape: f32[1,32], index: 17, kind: input, shape index: {}]
  %s18 = inlined_call_operand.vmem [shape: f32[32,3], index: 18, kind: input, shape index: {}]
  %s19 = inlined_call_operand.vmem [shape: f32[1,3], index: 19, kind: input, shape index: {}]
  %s20 = inlined_call_operand.vmem [shape: f32[32,8], index: 20, kind: input, shape index: {}]
  %s21 = inlined_call_operand.vmem [shape: f32[1,8], index: 21, kind: input, shape index: {}]
  %s22 = inlined_call_operand.hbm [shape: f32[16,32], index: 22, kind: output, shape index: {0}]
  %s23 = inlined_call_operand.vmem [shape: f32[2,3], index: 23, kind: output, shape index: {1}]
  %s24 = inlined_call_operand.vmem [shape: f32[2,8], index: 24, kind: output, shape index: {2}]
  %25 = xla_tuple %s22, %s23, %s24
  %s26 = sld [smem:[#allocation0]]
  $region114: #{run.2} parent=0
    _
  %s28 = ssub.s32 1, %s26
  %s29 = scalar_select 0, %s28, %s26
  $region1: #{run.2} parent=0
    #allocation2 [shape = 'u8[8192]{0}', space=vmem, size = 0x2000, scoped, tag = 'output window, operand 0, single buffered']
    #allocation3 [shape = 's32[1]{0}', space=sflag, size = 0x4, scoped, tag = 'scoped memory for run.2']
    %30 = vsyncpa [#allocation3], 0
    // Predicated region
    $region2: #{run.2} parent=1 // pred_check
      _
    $region3: #{run.2} parent=1 // pred_check_branch
      %32 = sbr.rel (0) target = $region5
    $region4: #{run.2} parent=1 // pred_region
      _
    $region5: #{run.2} parent=1 // pred_fallthru
      _
    // Predicated region
    $region6: #{run.2} parent=1 // pred_check
      _
    $region7: #{run.2} parent=1 // pred_check_branch
      %34 = sbr.rel (0) target = $region9
    $region8: #{run.2} parent=1 // pred_region
      _
    $region9: #{run.2} parent=1 // pred_fallthru
      _
    // Predicated region
    $region10: #{run.2} parent=1 // pred_check
      _
    $region11: #{run.2} parent=1 // pred_check_branch
      %36 = sbr.rel (0) target = $region13
    $region12: #{run.2} parent=1 // pred_region
      _
    $region13: #{run.2} parent=1 // pred_fallthru
      _
    // Predicated region
    $region14: #{run.2} parent=1 // pred_check
      _
    $region15: #{run.2} parent=1 // pred_check_branch
      %38 = sbr.rel (0) target = $region17
    $region16: #{run.2} parent=1 // pred_region
      _
    $region17: #{run.2} parent=1 // pred_fallthru
      _
    // Predicated region
    $region18: #{run.2} parent=1 // pred_check
      _
    $region19: #{run.2} parent=1 // pred_check_branch
      %40 = sbr.rel (0) target = $region21
    $region20: #{run.2} parent=1 // pred_region
      _
    $region21: #{run.2} parent=1 // pred_fallthru
      _
    // Predicated region
    $region22: #{run.2} parent=1 // pred_check
      _
    $region23: #{run.2} parent=1 // pred_check_branch
      %42 = sbr.rel (0) target = $region25
    $region24: #{run.2} parent=1 // pred_region
      _
    $region25: #{run.2} parent=1 // pred_fallthru
      _
    // Predicated region
    $region26: #{run.2} parent=1 // pred_check
      _
    $region27: #{run.2} parent=1 // pred_check_branch
      %44 = sbr.rel (0) target = $region29
    $region28: #{run.2} parent=1 // pred_region
      _
    $region29: #{run.2} parent=1 // pred_fallthru
      _
    // Predicated region
    $region30: #{run.2} parent=1 // pred_check
      _
    $region31: #{run.2} parent=1 // pred_check_branch
      %46 = sbr.rel (0) target = $region33
    $region32: #{run.2} parent=1 // pred_region
      _
    $region33: #{run.2} parent=1 // pred_fallthru
      _
    // Predicated region
    $region34: #{run.2} parent=1 // pred_check
      _
    $region35: #{run.2} parent=1 // pred_check_branch
      %48 = sbr.rel (0) target = $region37
    $region36: #{run.2} parent=1 // pred_region
      _
    $region37: #{run.2} parent=1 // pred_fallthru
      _
    // Predicated region
    $region38: #{run.2} parent=1 // pred_check
      _
    $region39: #{run.2} parent=1 // pred_check_branch
      %50 = sbr.rel (0) target = $region41
    $region40: #{run.2} parent=1 // pred_region
      _
    $region41: #{run.2} parent=1 // pred_fallthru
      _
    // Predicated region
    $region42: #{run.2} parent=1 // pred_check
      _
    $region43: #{run.2} parent=1 // pred_check_branch
      %52 = sbr.rel (0) target = $region45
    $region44: #{run.2} parent=1 // pred_region
      _
    $region45: #{run.2} parent=1 // pred_fallthru
      _
    // Predicated region
    $region46: #{run.2} parent=1 // pred_check
      _
    $region47: #{run.2} parent=1 // pred_check_branch
      %54 = sbr.rel (0) target = $region49
    $region48: #{run.2} parent=1 // pred_region
      _
    $region49: #{run.2} parent=1 // pred_fallthru
      _
    // Predicated region
    $region50: #{run.2} parent=1 // pred_check
      _
    $region51: #{run.2} parent=1 // pred_check_branch
      %56 = sbr.rel (0) target = $region53
    $region52: #{run.2} parent=1 // pred_region
      _
    $region53: #{run.2} parent=1 // pred_fallthru
      _
    // Predicated region
    $region54: #{run.2} parent=1 // pred_check
      _
    $region55: #{run.2} parent=1 // pred_check_branch
      %58 = sbr.rel (0) target = $region57
    $region56: #{run.2} parent=1 // pred_region
      _
    $region57: #{run.2} parent=1 // pred_fallthru
      _
    // Predicated region
    $region58: #{run.2} parent=1 // pred_check
      _
    $region59: #{run.2} parent=1 // pred_check_branch
      %60 = sbr.rel (0) target = $region61
    $region60: #{run.2} parent=1 // pred_region
      _
    $region61: #{run.2} parent=1 // pred_fallthru
      _
    // Predicated region
    $region62: #{run.2} parent=1 // pred_check
      _
    $region63: #{run.2} parent=1 // pred_check_branch
      %62 = sbr.rel (0) target = $region65
    $region64: #{run.2} parent=1 // pred_region
      _
    $region65: #{run.2} parent=1 // pred_fallthru
      _
    // Predicated region
    $region66: #{run.2} parent=1 // pred_check
      _
    $region67: #{run.2} parent=1 // pred_check_branch
      %64 = sbr.rel (0) target = $region69
    $region68: #{run.2} parent=1 // pred_region
      _
    $region69: #{run.2} parent=1 // pred_fallthru
      _
    // Predicated region
    $region70: #{run.2} parent=1 // pred_check
      _
    $region71: #{run.2} parent=1 // pred_check_branch
      %66 = sbr.rel (0) target = $region73
    $region72: #{run.2} parent=1 // pred_region
      _
    $region73: #{run.2} parent=1 // pred_fallthru
      _
    // Predicated region
    $region74: #{run.2} parent=1 // pred_check
      _
    $region75: #{run.2} parent=1 // pred_check_branch
      %68 = sbr.rel (0) target = $region77
    $region76: #{run.2} parent=1 // pred_region
      _
    $region77: #{run.2} parent=1 // pred_fallthru
      _
    // Predicated region
    $region78: #{run.2} parent=1 // pred_check
      _
    $region79: #{run.2} parent=1 // pred_check_branch
      %70 = sbr.rel (0) target = $region81
    $region80: #{run.2} parent=1 // pred_region
      _
    $region81: #{run.2} parent=1 // pred_fallthru
      _
    // Predicated region
    $region82: #{run.2} parent=1 // pred_check
      _
    $region83: #{run.2} parent=1 // pred_check_branch
      %72 = sbr.rel (0) target = $region85
    $region84: #{run.2} parent=1 // pred_region
      _
    $region85: #{run.2} parent=1 // pred_fallthru
      _
    // Predicated region
    $region86: #{run.2} parent=1 // pred_check
      _
    $region87: #{run.2} parent=1 // pred_check_branch
      %74 = sbr.rel (0) target = $region89
    $region88: #{run.2} parent=1 // pred_region
      _
    $region89: #{run.2} parent=1 // pred_fallthru
      _
    %v76 = vld [vmem:[%s0] sm:$0xff]
    %v77 = vld [vmem:[%s0 + $0x8] sm:$0xff]
    %v78 = vld [vmem:[%s2] sm:$0x1]
    %v79 = vld [vmem:[%s3] sm:$0x1]
    %vm80 = vcmask 261120
    %v81 = vsel %vm80, %v76, 0.0
    %82 = vadd.xlane.f32.xlu0 %v81
    %v83 = vpop.xlane.xlu0 %82
    %v84 = vsel %vm80, %v77, 0.0
    %85 = vadd.xlane.f32.xlu0 %v84
    %v86 = vpop.xlane.xlu0 %85
    %v87 = vrcp.pop 32.0
    %v88 = vmul.f32 32.0, %v87
    %v89 = vsub.f32 1.0, %v88
    %v90 = vmul.f32 %v87, %v89
    %v91 = vadd.f32 %v87, %v90
    %vm92 = vweird.f32 %v87
    %v93 = vsel %vm92, %v87, %v91
    %v94 = vmul.f32 %v83, %v93
    %v95 = vmul.f32 %v86, %v93
    %v96 = vsub.f32 %v76, %v94
    %v97 = vsub.f32 %v77, %v95
    %v98 = vmul.f32 %v96, %v96
    %v99 = vmul.f32 %v97, %v97
    %v100 = vsel %vm80, %v98, 0.0
    %101 = vadd.xlane.f32.xlu0 %v100
    %v102 = vpop.xlane.xlu0 %101
    %v103 = vsel %vm80, %v99, 0.0
    %104 = vadd.xlane.f32.xlu0 %v103
    %v105 = vpop.xlane.xlu0 %104
    %v106 = vmul.f32 %v102, %v93
    %v107 = vmul.f32 %v105, %v93
    %v108 = vadd.f32 %v106, 1e-12
    %v109 = vadd.f32 %v107, 1e-12
    %v110 = vrsqrt.pop %v108
    %v111 = vmul.f32 %v110, %v108
    %v112 = vmul.f32 %v111, %v110
    %v113 = vmul.f32 0.5, %v112
    %v114 = vsub.f32 1.5, %v113
    %v115 = vmul.f32 %v110, %v114
    %vm116 = vweird.f32 %v108
    %vm117 = vweird.f32 %v110
    %vm118 = vmor %vm116, %vm117
    %v119 = vsel %vm118, %v110, %v115
    %v120 = vrsqrt.pop %v109
    %v121 = vmul.f32 %v120, %v109
    %v122 = vmul.f32 %v121, %v120
    %v123 = vmul.f32 0.5, %v122
    %v124 = vsub.f32 1.5, %v123
    %v125 = vmul.f32 %v120, %v124
    %vm126 = vweird.f32 %v109
    %vm127 = vweird.f32 %v120
    %vm128 = vmor %vm126, %vm127
    %v129 = vsel %vm128, %v120, %v125
    %v130 = vmul.f32 %v96, %v119
    %v131 = vmul.f32 %v97, %v129
    %v133 = vperm.slane %v78, 0
    %v135 = vmul.f32 %v130, %v133
    %v136 = vmul.f32 %v131, %v133
    %v138 = vperm.slane %v79, 0
    %v140 = vadd.f32 %v135, %v138
    %v141 = vadd.f32 %v136, %v138
    %v142 = vld [vmem:[%s1] sm:$0x3]
    %v143 = vsub.f32 1.0, %v142
    %v144 = vmul.f32 %v143, -10000.0
    %v145 = vld [vmem:[%s4] sm:$0xff]
    %v146 = vld [vmem:[%s4 + $0x8] sm:$0xff]
    %v147 = vld [vmem:[%s4 + $0x10] sm:$0xff]
    %v148 = vld [vmem:[%s4 + $0x18] sm:$0xff]
    %v149 = vpack.c.bf16 %v141, %v140
    %v150 = vpack.c.bf16 %v146, %v145
    %v151 = vpack.c.bf16 %v148, %v147
    %v152 = vld [vmem:[%s5] sm:$0x1]
    %v154 = vperm.slane %v152, 0
    %v157 = vsel %vm80, %v149, 0
    %159 = vmatpush.bf16.msra.mxu0 0
    %160 = vmatpush.bf16.msra.mxu0 0
    %161 = vmatpush.bf16.msra.mxu0 0
    %162 = vmatpush.bf16.msra.mxu0 0
    %163 = vmatpush.bf16.msra.mxu0 0
    %164 = vmatpush.bf16.msra.mxu0 0
    %165 = vmatpush.bf16.msra.mxu0 %v151
    %166 = vmatpush.bf16.msra.mxu0 %v150
    %167 = vmatmul.bf16.gmra.mxu0 %v157
    %v168 = vpop.f32.mrf.mxu0
    %v169 = vadd.f32 %v154, %v168
    %v170 = vpop.f32.mrf.mxu0
    %v171 = vadd.f32 %v154, %v170
    %172 = vdwg.mxu0
    %v173 = vld [vmem:[%s6] sm:$0xff]
    %v174 = vld [vmem:[%s6 + $0x8] sm:$0xff]
    %v175 = vld [vmem:[%s6 + $0x10] sm:$0xff]
    %v176 = vld [vmem:[%s6 + $0x18] sm:$0xff]
    %178 = vrot.lane.b32.xlu0 %v169, 96
    %v179 = vpop.permute.xlu0 %178
    %181 = vxpose.xlu0.b32.start [1/16] %v179, 128
    %182 = vxpose.xlu0.b32.cont [2/16] 0.0, 128
    %183 = vxpose.xlu0.b32.cont [3/16] 0.0, 128
    %184 = vxpose.xlu0.b32.cont [4/16] 0.0, 128
    %185 = vxpose.xlu0.b32.cont [5/16] 0.0, 128
    %186 = vxpose.xlu0.b32.cont [6/16] 0.0, 128
    %187 = vxpose.xlu0.b32.cont [7/16] 0.0, 128
    %188 = vxpose.xlu0.b32.cont [8/16] 0.0, 128
    %189 = vxpose.xlu0.b32.cont [9/16] 0.0, 128
    %190 = vxpose.xlu0.b32.cont [10/16] 0.0, 128
    %191 = vxpose.xlu0.b32.cont [11/16] 0.0, 128
    %192 = vxpose.xlu0.b32.cont [12/16] 0.0, 128
    %193 = vxpose.xlu0.b32.cont [13/16] 0.0, 128
    %194 = vxpose.xlu0.b32.cont [14/16] 0.0, 128
    %195 = vxpose.xlu0.b32.cont [15/16] 0.0, 128
    %196 = vxpose.xlu0.b32.end [16/16] 0.0, 128
    %v197 = vpop.trf.xlu0
    %v198 = vpop.trf.xlu0
    %v199 = vpop.trf.xlu0
    %v200 = vpop.trf.xlu0
    %v201 = vpop.trf.xlu0
    %v202 = vpop.trf.xlu0
    %v203 = vpop.trf.xlu0
    %v204 = vpop.trf.xlu0
    %v205 = vpop.trf.xlu0
    %v206 = vpop.trf.xlu0
    %v207 = vpop.trf.xlu0
    %v208 = vpop.trf.xlu0
    %v209 = vpop.trf.xlu0
    %v210 = vpop.trf.xlu0
    %v211 = vpop.trf.xlu0
    %v212 = vpop.trf.xlu0
    %v213 = vpack.c.bf16 %v169, %v169
    %v214 = vpack.c.bf16 %v197, %v197
    %vm215 = vcmask 64512
    %v217 = vsel %vm215, %v213, 0
    %vm219 = vcmask 1043456
    %v221 = vsel %vm219, %v214, 0
    %223 = vmatpush.bf16.msra.mxu0 0
    %224 = vmatpush.bf16.msra.mxu0 0
    %225 = vmatpush.bf16.msra.mxu0 0
    %226 = vmatpush.bf16.msra.mxu0 0
    %227 = vmatpush.bf16.msra.mxu0 0
    %228 = vmatpush.bf16.msra.mxu0 0
    %229 = vmatpush.bf16.msra.mxu0 0
    %230 = vmatpush.bf16.msra.mxu0 %v221
    %231 = vmatmul.bf16.gmra.mxu0 %v217
    %v232 = vpop.f32.mrf.mxu0
    %v233 = vadd.f32 0.0, %v232
    %v234 = vpop.f32.mrf.mxu0
    %235 = vdwg.mxu0
    %v236 = vmul.f32 %v233, 0.35355338
    %v237 = vperm.slane %v144, 0
    %v238 = vadd.f32 %v236, %v237
    %v239 = vsel %vm215, %v238, -inf
    %240 = vmax.xlane.f32.xlu0 %v239
    %v241 = vpop.xlane.xlu0 %240
    %v242 = vsub.f32 %v238, %v241
    %v243 = vmul.f32 %v242, 1.442695
    %v244 = vpow.pop %v243
    %v245 = vsel %vm215, %v244, 0.0
    %246 = vadd.xlane.f32.xlu0 %v245
    %v247 = vpop.xlane.xlu0 %246
    %v248 = vrcp.pop %v247
    %v249 = vmul.f32 %v244, %v248
    %v250 = vpack.c.bf16 %v249, %v249
    %252 = vrot.lane.b32.xlu0 %v213, 64
    %v253 = vpop.permute.xlu0 %252
    %v255 = vsel %vm215, %v250, 0
    %v258 = vsel %vm219, %v253, 0
    %260 = vmatpush.bf16.msra.mxu0 0
    %261 = vmatpush.bf16.msra.mxu0 0
    %262 = vmatpush.bf16.msra.mxu0 0
    %263 = vmatpush.bf16.msra.mxu0 0
    %264 = vmatpush.bf16.msra.mxu0 0
    %265 = vmatpush.bf16.msra.mxu0 0
    %266 = vmatpush.bf16.msra.mxu0 0
    %267 = vmatpush.bf16.msra.mxu0 %v258
    %268 = vmatmul.bf16.gmra.mxu0 %v255
    %v269 = vpop.f32.mrf.mxu0
    %v270 = vadd.f32 0.0, %v269
    %v271 = vpop.f32.mrf.mxu0
    %272 = vdwg.mxu0
    %v273 = vpack.c.bf16 %v270, %v270
    %v274 = vpack.c.bf16 %v173, %v173
    %275 = vrot.lane.b32.xlu0 %v169, 88
    %v276 = vpop.permute.xlu0 %275
    %278 = vxpose.xlu0.b32.start [1/16] %v276, 128
    %279 = vxpose.xlu0.b32.cont [2/16] 0.0, 128
    %280 = vxpose.xlu0.b32.cont [3/16] 0.0, 128
    %281 = vxpose.xlu0.b32.cont [4/16] 0.0, 128
    %282 = vxpose.xlu0.b32.cont [5/16] 0.0, 128
    %283 = vxpose.xlu0.b32.cont [6/16] 0.0, 128
    %284 = vxpose.xlu0.b32.cont [7/16] 0.0, 128
    %285 = vxpose.xlu0.b32.cont [8/16] 0.0, 128
    %286 = vxpose.xlu0.b32.cont [9/16] 0.0, 128
    %287 = vxpose.xlu0.b32.cont [10/16] 0.0, 128
    %288 = vxpose.xlu0.b32.cont [11/16] 0.0, 128
    %289 = vxpose.xlu0.b32.cont [12/16] 0.0, 128
    %290 = vxpose.xlu0.b32.cont [13/16] 0.0, 128
    %291 = vxpose.xlu0.b32.cont [14/16] 0.0, 128
    %292 = vxpose.xlu0.b32.cont [15/16] 0.0, 128
    %293 = vxpose.xlu0.b32.end [16/16] 0.0, 128
    %v294 = vpop.trf.xlu0
    %v295 = vpop.trf.xlu0
    %v296 = vpop.trf.xlu0
    %v297 = vpop.trf.xlu0
    %v298 = vpop.trf.xlu0
    %v299 = vpop.trf.xlu0
    %v300 = vpop.trf.xlu0
    %v301 = vpop.trf.xlu0
    %v302 = vpop.trf.xlu0
    %v303 = vpop.trf.xlu0
    %v304 = vpop.trf.xlu0
    %v305 = vpop.trf.xlu0
    %v306 = vpop.trf.xlu0
    %v307 = vpop.trf.xlu0
    %v308 = vpop.trf.xlu0
    %v309 = vpop.trf.xlu0
    %v310 = vpack.c.bf16 %v294, %v294
    %311 = vrot.lane.b32.xlu0 %v213, 120
    %v312 = vpop.permute.xlu0 %311
    %v314 = vsel %vm215, %v312, 0
    %v317 = vsel %vm219, %v310, 0
    %319 = vmatpush.bf16.msra.mxu0 0
    %320 = vmatpush.bf16.msra.mxu0 0
    %321 = vmatpush.bf16.msra.mxu0 0
    %322 = vmatpush.bf16.msra.mxu0 0
    %323 = vmatpush.bf16.msra.mxu0 0
    %324 = vmatpush.bf16.msra.mxu0 0
    %325 = vmatpush.bf16.msra.mxu0 0
    %326 = vmatpush.bf16.msra.mxu0 %v317
    %327 = vmatmul.bf16.gmra.mxu0 %v314
    %v328 = vpop.f32.mrf.mxu0
    %v329 = vadd.f32 0.0, %v328
    %v330 = vpop.f32.mrf.mxu0
    %331 = vdwg.mxu0
    %v332 = vmul.f32 %v329, 0.35355338
    %v333 = vadd.f32 %v332, %v237
    %v334 = vsel %vm215, %v333, -inf
    %335 = vmax.xlane.f32.xlu0 %v334
    %v336 = vpop.xlane.xlu0 %335
    %v337 = vsub.f32 %v333, %v336
    %v338 = vmul.f32 %v337, 1.442695
    %v339 = vpow.pop %v338
    %v340 = vsel %vm215, %v339, 0.0
    %341 = vadd.xlane.f32.xlu0 %v340
    %v342 = vpop.xlane.xlu0 %341
    %v343 = vrcp.pop %v342
    %v344 = vmul.f32 %v339, %v343
    %v345 = vpack.c.bf16 %v344, %v344
    %346 = vrot.lane.b32.xlu0 %v213, 56
    %v347 = vpop.permute.xlu0 %346
    %v349 = vsel %vm215, %v345, 0
    %v352 = vsel %vm219, %v347, 0
    %354 = vmatpush.bf16.msra.mxu0 0
    %355 = vmatpush.bf16.msra.mxu0 0
    %356 = vmatpush.bf16.msra.mxu0 0
    %357 = vmatpush.bf16.msra.mxu0 0
    %358 = vmatpush.bf16.msra.mxu0 0
    %359 = vmatpush.bf16.msra.mxu0 0
    %360 = vmatpush.bf16.msra.mxu0 0
    %361 = vmatpush.bf16.msra.mxu0 %v352
    %362 = vmatmul.bf16.gmra.mxu0 %v349
    %v363 = vpop.f32.mrf.mxu0
    %v364 = vadd.f32 0.0, %v363
    %v365 = vpop.f32.mrf.mxu0
    %366 = vdwg.mxu0
    %v367 = vpack.c.bf16 %v364, %v364
    %v368 = vpack.c.bf16 %v174, %v174
    %v370 = vsel %vm215, %v367, 0
    %v373 = vsel %vm219, %v368, 0
    %375 = vmatpush.bf16.msra.mxu0 0
    %376 = vmatpush.bf16.msra.mxu0 0
    %377 = vmatpush.bf16.msra.mxu0 0
    %378 = vmatpush.bf16.msra.mxu0 0
    %379 = vmatpush.bf16.msra.mxu0 0
    %380 = vmatpush.bf16.msra.mxu0 0
    %381 = vmatpush.bf16.msra.mxu0 0
    %382 = vmatpush.bf16.msra.mxu0 %v373
    %383 = vmatmul.bf16.gmra.mxu0 %v370
    %v384 = vpop.f32.mrf.mxu0
    %v385 = vadd.f32 0.0, %v384
    %v386 = vpop.f32.mrf.mxu0
    %387 = vdwg.mxu0
    %v389 = vsel %vm215, %v273, 0
    %v392 = vsel %vm219, %v274, 0
    %394 = vmatpush.bf16.msra.mxu0 0
    %395 = vmatpush.bf16.msra.mxu0 0
    %396 = vmatpush.bf16.msra.mxu0 0
    %397 = vmatpush.bf16.msra.mxu0 0
    %398 = vmatpush.bf16.msra.mxu0 0
    %399 = vmatpush.bf16.msra.mxu0 0
    %400 = vmatpush.bf16.msra.mxu0 0
    %401 = vmatpush.bf16.msra.mxu0 %v392
    %402 = vmatmul.bf16.gmra.mxu0 %v389
    %v403 = vpop.f32.mrf.mxu0
    %v404 = vadd.f32 %v385, %v403
    %v405 = vpop.f32.mrf.mxu0
    %406 = vdwg.mxu0
    %407 = vrot.lane.b32.xlu0 %v169, 80
    %v408 = vpop.permute.xlu0 %407
    %410 = vxpose.xlu0.b32.start [1/16] %v408, 128
    %411 = vxpose.xlu0.b32.cont [2/16] 0.0, 128
    %412 = vxpose.xlu0.b32.cont [3/16] 0.0, 128
    %413 = vxpose.xlu0.b32.cont [4/16] 0.0, 128
    %414 = vxpose.xlu0.b32.cont [5/16] 0.0, 128
    %415 = vxpose.xlu0.b32.cont [6/16] 0.0, 128
    %416 = vxpose.xlu0.b32.cont [7/16] 0.0, 128
    %417 = vxpose.xlu0.b32.cont [8/16] 0.0, 128
    %418 = vxpose.xlu0.b32.cont [9/16] 0.0, 128
    %419 = vxpose.xlu0.b32.cont [10/16] 0.0, 128
    %420 = vxpose.xlu0.b32.cont [11/16] 0.0, 128
    %421 = vxpose.xlu0.b32.cont [12/16] 0.0, 128
    %422 = vxpose.xlu0.b32.cont [13/16] 0.0, 128
    %423 = vxpose.xlu0.b32.cont [14/16] 0.0, 128
    %424 = vxpose.xlu0.b32.cont [15/16] 0.0, 128
    %425 = vxpose.xlu0.b32.end [16/16] 0.0, 128
    %v426 = vpop.trf.xlu0
    %v427 = vpop.trf.xlu0
    %v428 = vpop.trf.xlu0
    %v429 = vpop.trf.xlu0
    %v430 = vpop.trf.xlu0
    %v431 = vpop.trf.xlu0
    %v432 = vpop.trf.xlu0
    %v433 = vpop.trf.xlu0
    %v434 = vpop.trf.xlu0
    %v435 = vpop.trf.xlu0
    %v436 = vpop.trf.xlu0
    %v437 = vpop.trf.xlu0
    %v438 = vpop.trf.xlu0
    %v439 = vpop.trf.xlu0
    %v440 = vpop.trf.xlu0
    %v441 = vpop.trf.xlu0
    %v442 = vpack.c.bf16 %v426, %v426
    %443 = vrot.lane.b32.xlu0 %v213, 112
    %v444 = vpop.permute.xlu0 %443
    %v446 = vsel %vm215, %v444, 0
    %v449 = vsel %vm219, %v442, 0
    %451 = vmatpush.bf16.msra.mxu0 0
    %452 = vmatpush.bf16.msra.mxu0 0
    %453 = vmatpush.bf16.msra.mxu0 0
    %454 = vmatpush.bf16.msra.mxu0 0
    %455 = vmatpush.bf16.msra.mxu0 0
    %456 = vmatpush.bf16.msra.mxu0 0
    %457 = vmatpush.bf16.msra.mxu0 0
    %458 = vmatpush.bf16.msra.mxu0 %v449
    %459 = vmatmul.bf16.gmra.mxu0 %v446
    %v460 = vpop.f32.mrf.mxu0
    %v461 = vadd.f32 0.0, %v460
    %v462 = vpop.f32.mrf.mxu0
    %463 = vdwg.mxu0
    %v464 = vmul.f32 %v461, 0.35355338
    %v465 = vadd.f32 %v464, %v237
    %v466 = vsel %vm215, %v465, -inf
    %467 = vmax.xlane.f32.xlu0 %v466
    %v468 = vpop.xlane.xlu0 %467
    %v469 = vsub.f32 %v465, %v468
    %v470 = vmul.f32 %v469, 1.442695
    %v471 = vpow.pop %v470
    %v472 = vsel %vm215, %v471, 0.0
    %473 = vadd.xlane.f32.xlu0 %v472
    %v474 = vpop.xlane.xlu0 %473
    %v475 = vrcp.pop %v474
    %v476 = vmul.f32 %v471, %v475
    %v477 = vpack.c.bf16 %v476, %v476
    %478 = vrot.lane.b32.xlu0 %v213, 48
    %v479 = vpop.permute.xlu0 %478
    %v481 = vsel %vm215, %v477, 0
    %v484 = vsel %vm219, %v479, 0
    %486 = vmatpush.bf16.msra.mxu0 0
    %487 = vmatpush.bf16.msra.mxu0 0
    %488 = vmatpush.bf16.msra.mxu0 0
    %489 = vmatpush.bf16.msra.mxu0 0
    %490 = vmatpush.bf16.msra.mxu0 0
    %491 = vmatpush.bf16.msra.mxu0 0
    %492 = vmatpush.bf16.msra.mxu0 0
    %493 = vmatpush.bf16.msra.mxu0 %v484
    %494 = vmatmul.bf16.gmra.mxu0 %v481
    %v495 = vpop.f32.mrf.mxu0
    %v496 = vadd.f32 0.0, %v495
    %v497 = vpop.f32.mrf.mxu0
    %498 = vdwg.mxu0
    %v499 = vpack.c.bf16 %v496, %v496
    %v500 = vpack.c.bf16 %v175, %v175
    %v502 = vsel %vm215, %v499, 0
    %v505 = vsel %vm219, %v500, 0
    %507 = vmatpush.bf16.msra.mxu0 0
    %508 = vmatpush.bf16.msra.mxu0 0
    %509 = vmatpush.bf16.msra.mxu0 0
    %510 = vmatpush.bf16.msra.mxu0 0
    %511 = vmatpush.bf16.msra.mxu0 0
    %512 = vmatpush.bf16.msra.mxu0 0
    %513 = vmatpush.bf16.msra.mxu0 0
    %514 = vmatpush.bf16.msra.mxu0 %v505
    %515 = vmatmul.bf16.gmra.mxu0 %v502
    %v516 = vpop.f32.mrf.mxu0
    %v517 = vadd.f32 0.0, %v516
    %v518 = vpop.f32.mrf.mxu0
    %519 = vdwg.mxu0
    %v520 = vadd.f32 %v404, %v517
    %521 = vrot.lane.b32.xlu0 %v169, 72
    %v522 = vpop.permute.xlu0 %521
    %524 = vxpose.xlu0.b32.start [1/16] %v522, 128
    %525 = vxpose.xlu0.b32.cont [2/16] 0.0, 128
    %526 = vxpose.xlu0.b32.cont [3/16] 0.0, 128
    %527 = vxpose.xlu0.b32.cont [4/16] 0.0, 128
    %528 = vxpose.xlu0.b32.cont [5/16] 0.0, 128
    %529 = vxpose.xlu0.b32.cont [6/16] 0.0, 128
    %530 = vxpose.xlu0.b32.cont [7/16] 0.0, 128
    %531 = vxpose.xlu0.b32.cont [8/16] 0.0, 128
    %532 = vxpose.xlu0.b32.cont [9/16] 0.0, 128
    %533 = vxpose.xlu0.b32.cont [10/16] 0.0, 128
    %534 = vxpose.xlu0.b32.cont [11/16] 0.0, 128
    %535 = vxpose.xlu0.b32.cont [12/16] 0.0, 128
    %536 = vxpose.xlu0.b32.cont [13/16] 0.0, 128
    %537 = vxpose.xlu0.b32.cont [14/16] 0.0, 128
    %538 = vxpose.xlu0.b32.cont [15/16] 0.0, 128
    %539 = vxpose.xlu0.b32.end [16/16] 0.0, 128
    %v540 = vpop.trf.xlu0
    %v541 = vpop.trf.xlu0
    %v542 = vpop.trf.xlu0
    %v543 = vpop.trf.xlu0
    %v544 = vpop.trf.xlu0
    %v545 = vpop.trf.xlu0
    %v546 = vpop.trf.xlu0
    %v547 = vpop.trf.xlu0
    %v548 = vpop.trf.xlu0
    %v549 = vpop.trf.xlu0
    %v550 = vpop.trf.xlu0
    %v551 = vpop.trf.xlu0
    %v552 = vpop.trf.xlu0
    %v553 = vpop.trf.xlu0
    %v554 = vpop.trf.xlu0
    %v555 = vpop.trf.xlu0
    %v556 = vpack.c.bf16 %v540, %v540
    %557 = vrot.lane.b32.xlu0 %v213, 104
    %v558 = vpop.permute.xlu0 %557
    %v560 = vsel %vm215, %v558, 0
    %v563 = vsel %vm219, %v556, 0
    %565 = vmatpush.bf16.msra.mxu0 0
    %566 = vmatpush.bf16.msra.mxu0 0
    %567 = vmatpush.bf16.msra.mxu0 0
    %568 = vmatpush.bf16.msra.mxu0 0
    %569 = vmatpush.bf16.msra.mxu0 0
    %570 = vmatpush.bf16.msra.mxu0 0
    %571 = vmatpush.bf16.msra.mxu0 0
    %572 = vmatpush.bf16.msra.mxu0 %v563
    %573 = vmatmul.bf16.gmra.mxu0 %v560
    %v574 = vpop.f32.mrf.mxu0
    %v575 = vadd.f32 0.0, %v574
    %v576 = vpop.f32.mrf.mxu0
    %577 = vdwg.mxu0
    %v578 = vmul.f32 %v575, 0.35355338
    %v579 = vadd.f32 %v578, %v237
    %v580 = vsel %vm215, %v579, -inf
    %581 = vmax.xlane.f32.xlu0 %v580
    %v582 = vpop.xlane.xlu0 %581
    %v583 = vsub.f32 %v579, %v582
    %v584 = vmul.f32 %v583, 1.442695
    %v585 = vpow.pop %v584
    %v586 = vsel %vm215, %v585, 0.0
    %587 = vadd.xlane.f32.xlu0 %v586
    %v588 = vpop.xlane.xlu0 %587
    %v589 = vrcp.pop %v588
    %v590 = vmul.f32 %v585, %v589
    %v591 = vpack.c.bf16 %v590, %v590
    %592 = vrot.lane.b32.xlu0 %v213, 40
    %v593 = vpop.permute.xlu0 %592
    %v595 = vsel %vm215, %v591, 0
    %v598 = vsel %vm219, %v593, 0
    %600 = vmatpush.bf16.msra.mxu0 0
    %601 = vmatpush.bf16.msra.mxu0 0
    %602 = vmatpush.bf16.msra.mxu0 0
    %603 = vmatpush.bf16.msra.mxu0 0
    %604 = vmatpush.bf16.msra.mxu0 0
    %605 = vmatpush.bf16.msra.mxu0 0
    %606 = vmatpush.bf16.msra.mxu0 0
    %607 = vmatpush.bf16.msra.mxu0 %v598
    %608 = vmatmul.bf16.gmra.mxu0 %v595
    %v609 = vpop.f32.mrf.mxu0
    %v610 = vadd.f32 0.0, %v609
    %v611 = vpop.f32.mrf.mxu0
    %612 = vdwg.mxu0
    %v613 = vpack.c.bf16 %v610, %v610
    %v614 = vpack.c.bf16 %v176, %v176
    %v616 = vsel %vm215, %v613, 0
    %v619 = vsel %vm219, %v614, 0
    %621 = vmatpush.bf16.msra.mxu0 0
    %622 = vmatpush.bf16.msra.mxu0 0
    %623 = vmatpush.bf16.msra.mxu0 0
    %624 = vmatpush.bf16.msra.mxu0 0
    %625 = vmatpush.bf16.msra.mxu0 0
    %626 = vmatpush.bf16.msra.mxu0 0
    %627 = vmatpush.bf16.msra.mxu0 0
    %628 = vmatpush.bf16.msra.mxu0 %v619
    %629 = vmatmul.bf16.gmra.mxu0 %v616
    %v630 = vpop.f32.mrf.mxu0
    %v631 = vadd.f32 0.0, %v630
    %v632 = vpop.f32.mrf.mxu0
    %633 = vdwg.mxu0
    %v634 = vadd.f32 %v520, %v631
    %636 = vrot.lane.b32.xlu0 %v171, 96
    %v637 = vpop.permute.xlu0 %636
    %639 = vxpose.xlu0.b32.start [1/16] %v637, 128
    %640 = vxpose.xlu0.b32.cont [2/16] 0.0, 128
    %641 = vxpose.xlu0.b32.cont [3/16] 0.0, 128
    %642 = vxpose.xlu0.b32.cont [4/16] 0.0, 128
    %643 = vxpose.xlu0.b32.cont [5/16] 0.0, 128
    %644 = vxpose.xlu0.b32.cont [6/16] 0.0, 128
    %645 = vxpose.xlu0.b32.cont [7/16] 0.0, 128
    %646 = vxpose.xlu0.b32.cont [8/16] 0.0, 128
    %647 = vxpose.xlu0.b32.cont [9/16] 0.0, 128
    %648 = vxpose.xlu0.b32.cont [10/16] 0.0, 128
    %649 = vxpose.xlu0.b32.cont [11/16] 0.0, 128
    %650 = vxpose.xlu0.b32.cont [12/16] 0.0, 128
    %651 = vxpose.xlu0.b32.cont [13/16] 0.0, 128
    %652 = vxpose.xlu0.b32.cont [14/16] 0.0, 128
    %653 = vxpose.xlu0.b32.cont [15/16] 0.0, 128
    %654 = vxpose.xlu0.b32.end [16/16] 0.0, 128
    %v655 = vpop.trf.xlu0
    %v656 = vpop.trf.xlu0
    %v657 = vpop.trf.xlu0
    %v658 = vpop.trf.xlu0
    %v659 = vpop.trf.xlu0
    %v660 = vpop.trf.xlu0
    %v661 = vpop.trf.xlu0
    %v662 = vpop.trf.xlu0
    %v663 = vpop.trf.xlu0
    %v664 = vpop.trf.xlu0
    %v665 = vpop.trf.xlu0
    %v666 = vpop.trf.xlu0
    %v667 = vpop.trf.xlu0
    %v668 = vpop.trf.xlu0
    %v669 = vpop.trf.xlu0
    %v670 = vpop.trf.xlu0
    %v671 = vpack.c.bf16 %v171, %v171
    %v672 = vpack.c.bf16 %v655, %v655
    %v674 = vsel %vm215, %v671, 0
    %v677 = vsel %vm219, %v672, 0
    %679 = vmatpush.bf16.msra.mxu0 0
    %680 = vmatpush.bf16.msra.mxu0 0
    %681 = vmatpush.bf16.msra.mxu0 0
    %682 = vmatpush.bf16.msra.mxu0 0
    %683 = vmatpush.bf16.msra.mxu0 0
    %684 = vmatpush.bf16.msra.mxu0 0
    %685 = vmatpush.bf16.msra.mxu0 0
    %686 = vmatpush.bf16.msra.mxu0 %v677
    %687 = vmatmul.bf16.gmra.mxu0 %v674
    %v688 = vpop.f32.mrf.mxu0
    %v689 = vadd.f32 0.0, %v688
    %v690 = vpop.f32.mrf.mxu0
    %691 = vdwg.mxu0
    %v692 = vmul.f32 %v689, 0.35355338
    %v693 = vperm.slane %v144, 1
    %v694 = vadd.f32 %v692, %v693
    %v695 = vsel %vm215, %v694, -inf
    %696 = vmax.xlane.f32.xlu0 %v695
    %v697 = vpop.xlane.xlu0 %696
    %v698 = vsub.f32 %v694, %v697
    %v699 = vmul.f32 %v698, 1.442695
    %v700 = vpow.pop %v699
    %v701 = vsel %vm215, %v700, 0.0
    %702 = vadd.xlane.f32.xlu0 %v701
    %v703 = vpop.xlane.xlu0 %702
    %v704 = vrcp.pop %v703
    %v705 = vmul.f32 %v700, %v704
    %v706 = vpack.c.bf16 %v705, %v705
    %708 = vrot.lane.b32.xlu0 %v671, 64
    %v709 = vpop.permute.xlu0 %708
    %v711 = vsel %vm215, %v706, 0
    %v714 = vsel %vm219, %v709, 0
    %716 = vmatpush.bf16.msra.mxu0 0
    %717 = vmatpush.bf16.msra.mxu0 0
    %718 = vmatpush.bf16.msra.mxu0 0
    %719 = vmatpush.bf16.msra.mxu0 0
    %720 = vmatpush.bf16.msra.mxu0 0
    %721 = vmatpush.bf16.msra.mxu0 0
    %722 = vmatpush.bf16.msra.mxu0 0
    %723 = vmatpush.bf16.msra.mxu0 %v714
    %724 = vmatmul.bf16.gmra.mxu0 %v711
    %v725 = vpop.f32.mrf.mxu0
    %v726 = vadd.f32 0.0, %v725
    %v727 = vpop.f32.mrf.mxu0
    %728 = vdwg.mxu0
    %v729 = vpack.c.bf16 %v726, %v726
    %730 = vrot.lane.b32.xlu0 %v171, 88
    %v731 = vpop.permute.xlu0 %730
    %733 = vxpose.xlu0.b32.start [1/16] %v731, 128
    %734 = vxpose.xlu0.b32.cont [2/16] 0.0, 128
    %735 = vxpose.xlu0.b32.cont [3/16] 0.0, 128
    %736 = vxpose.xlu0.b32.cont [4/16] 0.0, 128
    %737 = vxpose.xlu0.b32.cont [5/16] 0.0, 128
    %738 = vxpose.xlu0.b32.cont [6/16] 0.0, 128
    %739 = vxpose.xlu0.b32.cont [7/16] 0.0, 128
    %740 = vxpose.xlu0.b32.cont [8/16] 0.0, 128
    %741 = vxpose.xlu0.b32.cont [9/16] 0.0, 128
    %742 = vxpose.xlu0.b32.cont [10/16] 0.0, 128
    %743 = vxpose.xlu0.b32.cont [11/16] 0.0, 128
    %744 = vxpose.xlu0.b32.cont [12/16] 0.0, 128
    %745 = vxpose.xlu0.b32.cont [13/16] 0.0, 128
    %746 = vxpose.xlu0.b32.cont [14/16] 0.0, 128
    %747 = vxpose.xlu0.b32.cont [15/16] 0.0, 128
    %748 = vxpose.xlu0.b32.end [16/16] 0.0, 128
    %v749 = vpop.trf.xlu0
    %v750 = vpop.trf.xlu0
    %v751 = vpop.trf.xlu0
    %v752 = vpop.trf.xlu0
    %v753 = vpop.trf.xlu0
    %v754 = vpop.trf.xlu0
    %v755 = vpop.trf.xlu0
    %v756 = vpop.trf.xlu0
    %v757 = vpop.trf.xlu0
    %v758 = vpop.trf.xlu0
    %v759 = vpop.trf.xlu0
    %v760 = vpop.trf.xlu0
    %v761 = vpop.trf.xlu0
    %v762 = vpop.trf.xlu0
    %v763 = vpop.trf.xlu0
    %v764 = vpop.trf.xlu0
    %v765 = vpack.c.bf16 %v749, %v749
    %766 = vrot.lane.b32.xlu0 %v671, 120
    %v767 = vpop.permute.xlu0 %766
    %v769 = vsel %vm215, %v767, 0
    %v772 = vsel %vm219, %v765, 0
    %774 = vmatpush.bf16.msra.mxu0 0
    %775 = vmatpush.bf16.msra.mxu0 0
    %776 = vmatpush.bf16.msra.mxu0 0
    %777 = vmatpush.bf16.msra.mxu0 0
    %778 = vmatpush.bf16.msra.mxu0 0
    %779 = vmatpush.bf16.msra.mxu0 0
    %780 = vmatpush.bf16.msra.mxu0 0
    %781 = vmatpush.bf16.msra.mxu0 %v772
    %782 = vmatmul.bf16.gmra.mxu0 %v769
    %v783 = vpop.f32.mrf.mxu0
    %v784 = vadd.f32 0.0, %v783
    %v785 = vpop.f32.mrf.mxu0
    %786 = vdwg.mxu0
    %v787 = vmul.f32 %v784, 0.35355338
    %v788 = vadd.f32 %v787, %v693
    %v789 = vsel %vm215, %v788, -inf
    %790 = vmax.xlane.f32.xlu0 %v789
    %v791 = vpop.xlane.xlu0 %790
    %v792 = vsub.f32 %v788, %v791
    %v793 = vmul.f32 %v792, 1.442695
    %v794 = vpow.pop %v793
    %v795 = vsel %vm215, %v794, 0.0
    %796 = vadd.xlane.f32.xlu0 %v795
    %v797 = vpop.xlane.xlu0 %796
    %v798 = vrcp.pop %v797
    %v799 = vmul.f32 %v794, %v798
    %v800 = vpack.c.bf16 %v799, %v799
    %801 = vrot.lane.b32.xlu0 %v671, 56
    %v802 = vpop.permute.xlu0 %801
    %v804 = vsel %vm215, %v800, 0
    %v807 = vsel %vm219, %v802, 0
    %809 = vmatpush.bf16.msra.mxu0 0
    %810 = vmatpush.bf16.msra.mxu0 0
    %811 = vmatpush.bf16.msra.mxu0 0
    %812 = vmatpush.bf16.msra.mxu0 0
    %813 = vmatpush.bf16.msra.mxu0 0
    %814 = vmatpush.bf16.msra.mxu0 0
    %815 = vmatpush.bf16.msra.mxu0 0
    %816 = vmatpush.bf16.msra.mxu0 %v807
    %817 = vmatmul.bf16.gmra.mxu0 %v804
    %v818 = vpop.f32.mrf.mxu0
    %v819 = vadd.f32 0.0, %v818
    %v820 = vpop.f32.mrf.mxu0
    %821 = vdwg.mxu0
    %v822 = vpack.c.bf16 %v819, %v819
    %v824 = vsel %vm215, %v822, 0
    %826 = vmatpush.bf16.msra.mxu0 0
    %827 = vmatpush.bf16.msra.mxu0 0
    %828 = vmatpush.bf16.msra.mxu0 0
    %829 = vmatpush.bf16.msra.mxu0 0
    %830 = vmatpush.bf16.msra.mxu0 0
    %831 = vmatpush.bf16.msra.mxu0 0
    %832 = vmatpush.bf16.msra.mxu0 0
    %833 = vmatpush.bf16.msra.mxu0 %v373
    %834 = vmatmul.bf16.gmra.mxu0 %v824
    %v835 = vpop.f32.mrf.mxu0
    %v836 = vadd.f32 0.0, %v835
    %v837 = vpop.f32.mrf.mxu0
    %838 = vdwg.mxu0
    %v840 = vsel %vm215, %v729, 0
    %842 = vmatpush.bf16.msra.mxu0 0
    %843 = vmatpush.bf16.msra.mxu0 0
    %844 = vmatpush.bf16.msra.mxu0 0
    %845 = vmatpush.bf16.msra.mxu0 0
    %846 = vmatpush.bf16.msra.mxu0 0
    %847 = vmatpush.bf16.msra.mxu0 0
    %848 = vmatpush.bf16.msra.mxu0 0
    %849 = vmatpush.bf16.msra.mxu0 %v392
    %850 = vmatmul.bf16.gmra.mxu0 %v840
    %v851 = vpop.f32.mrf.mxu0
    %v852 = vadd.f32 %v836, %v851
    %v853 = vpop.f32.mrf.mxu0
    %854 = vdwg.mxu0
    %855 = vrot.lane.b32.xlu0 %v171, 80
    %v856 = vpop.permute.xlu0 %855
    %858 = vxpose.xlu0.b32.start [1/16] %v856, 128
    %859 = vxpose.xlu0.b32.cont [2/16] 0.0, 128
    %860 = vxpose.xlu0.b32.cont [3/16] 0.0, 128
    %861 = vxpose.xlu0.b32.cont [4/16] 0.0, 128
    %862 = vxpose.xlu0.b32.cont [5/16] 0.0, 128
    %863 = vxpose.xlu0.b32.cont [6/16] 0.0, 128
    %864 = vxpose.xlu0.b32.cont [7/16] 0.0, 128
    %865 = vxpose.xlu0.b32.cont [8/16] 0.0, 128
    %866 = vxpose.xlu0.b32.cont [9/16] 0.0, 128
    %867 = vxpose.xlu0.b32.cont [10/16] 0.0, 128
    %868 = vxpose.xlu0.b32.cont [11/16] 0.0, 128
    %869 = vxpose.xlu0.b32.cont [12/16] 0.0, 128
    %870 = vxpose.xlu0.b32.cont [13/16] 0.0, 128
    %871 = vxpose.xlu0.b32.cont [14/16] 0.0, 128
    %872 = vxpose.xlu0.b32.cont [15/16] 0.0, 128
    %873 = vxpose.xlu0.b32.end [16/16] 0.0, 128
    %v874 = vpop.trf.xlu0
    %v875 = vpop.trf.xlu0
    %v876 = vpop.trf.xlu0
    %v877 = vpop.trf.xlu0
    %v878 = vpop.trf.xlu0
    %v879 = vpop.trf.xlu0
    %v880 = vpop.trf.xlu0
    %v881 = vpop.trf.xlu0
    %v882 = vpop.trf.xlu0
    %v883 = vpop.trf.xlu0
    %v884 = vpop.trf.xlu0
    %v885 = vpop.trf.xlu0
    %v886 = vpop.trf.xlu0
    %v887 = vpop.trf.xlu0
    %v888 = vpop.trf.xlu0
    %v889 = vpop.trf.xlu0
    %v890 = vpack.c.bf16 %v874, %v874
    %891 = vrot.lane.b32.xlu0 %v671, 112
    %v892 = vpop.permute.xlu0 %891
    %v894 = vsel %vm215, %v892, 0
    %v897 = vsel %vm219, %v890, 0
    %899 = vmatpush.bf16.msra.mxu0 0
    %900 = vmatpush.bf16.msra.mxu0 0
    %901 = vmatpush.bf16.msra.mxu0 0
    %902 = vmatpush.bf16.msra.mxu0 0
    %903 = vmatpush.bf16.msra.mxu0 0
    %904 = vmatpush.bf16.msra.mxu0 0
    %905 = vmatpush.bf16.msra.mxu0 0
    %906 = vmatpush.bf16.msra.mxu0 %v897
    %907 = vmatmul.bf16.gmra.mxu0 %v894
    %v908 = vpop.f32.mrf.mxu0
    %v909 = vadd.f32 0.0, %v908
    %v910 = vpop.f32.mrf.mxu0
    %911 = vdwg.mxu0
    %v912 = vmul.f32 %v909, 0.35355338
    %v913 = vadd.f32 %v912, %v693
    %v914 = vsel %vm215, %v913, -inf
    %915 = vmax.xlane.f32.xlu0 %v914
    %v916 = vpop.xlane.xlu0 %915
    %v917 = vsub.f32 %v913, %v916
    %v918 = vmul.f32 %v917, 1.442695
    %v919 = vpow.pop %v918
    %v920 = vsel %vm215, %v919, 0.0
    %921 = vadd.xlane.f32.xlu0 %v920
    %v922 = vpop.xlane.xlu0 %921
    %v923 = vrcp.pop %v922
    %v924 = vmul.f32 %v919, %v923
    %v925 = vpack.c.bf16 %v924, %v924
    %926 = vrot.lane.b32.xlu0 %v671, 48
    %v927 = vpop.permute.xlu0 %926
    %v929 = vsel %vm215, %v925, 0
    %v932 = vsel %vm219, %v927, 0
    %934 = vmatpush.bf16.msra.mxu0 0
    %935 = vmatpush.bf16.msra.mxu0 0
    %936 = vmatpush.bf16.msra.mxu0 0
    %937 = vmatpush.bf16.msra.mxu0 0
    %938 = vmatpush.bf16.msra.mxu0 0
    %939 = vmatpush.bf16.msra.mxu0 0
    %940 = vmatpush.bf16.msra.mxu0 0
    %941 = vmatpush.bf16.msra.mxu0 %v932
    %942 = vmatmul.bf16.gmra.mxu0 %v929
    %v943 = vpop.f32.mrf.mxu0
    %v944 = vadd.f32 0.0, %v943
    %v945 = vpop.f32.mrf.mxu0
    %946 = vdwg.mxu0
    %v947 = vpack.c.bf16 %v944, %v944
    %v949 = vsel %vm215, %v947, 0
    %951 = vmatpush.bf16.msra.mxu0 0
    %952 = vmatpush.bf16.msra.mxu0 0
    %953 = vmatpush.bf16.msra.mxu0 0
    %954 = vmatpush.bf16.msra.mxu0 0
    %955 = vmatpush.bf16.msra.mxu0 0
    %956 = vmatpush.bf16.msra.mxu0 0
    %957 = vmatpush.bf16.msra.mxu0 0
    %958 = vmatpush.bf16.msra.mxu0 %v505
    %959 = vmatmul.bf16.gmra.mxu0 %v949
    %v960 = vpop.f32.mrf.mxu0
    %v961 = vadd.f32 0.0, %v960
    %v962 = vpop.f32.mrf.mxu0
    %963 = vdwg.mxu0
    %v964 = vadd.f32 %v852, %v961
    %965 = vrot.lane.b32.xlu0 %v171, 72
    %v966 = vpop.permute.xlu0 %965
    %968 = vxpose.xlu0.b32.start [1/16] %v966, 128
    %969 = vxpose.xlu0.b32.cont [2/16] 0.0, 128
    %970 = vxpose.xlu0.b32.cont [3/16] 0.0, 128
    %971 = vxpose.xlu0.b32.cont [4/16] 0.0, 128
    %972 = vxpose.xlu0.b32.cont [5/16] 0.0, 128
    %973 = vxpose.xlu0.b32.cont [6/16] 0.0, 128
    %974 = vxpose.xlu0.b32.cont [7/16] 0.0, 128
    %975 = vxpose.xlu0.b32.cont [8/16] 0.0, 128
    %976 = vxpose.xlu0.b32.cont [9/16] 0.0, 128
    %977 = vxpose.xlu0.b32.cont [10/16] 0.0, 128
    %978 = vxpose.xlu0.b32.cont [11/16] 0.0, 128
    %979 = vxpose.xlu0.b32.cont [12/16] 0.0, 128
    %980 = vxpose.xlu0.b32.cont [13/16] 0.0, 128
    %981 = vxpose.xlu0.b32.cont [14/16] 0.0, 128
    %982 = vxpose.xlu0.b32.cont [15/16] 0.0, 128
    %983 = vxpose.xlu0.b32.end [16/16] 0.0, 128
    %v984 = vpop.trf.xlu0
    %v985 = vpop.trf.xlu0
    %v986 = vpop.trf.xlu0
    %v987 = vpop.trf.xlu0
    %v988 = vpop.trf.xlu0
    %v989 = vpop.trf.xlu0
    %v990 = vpop.trf.xlu0
    %v991 = vpop.trf.xlu0
    %v992 = vpop.trf.xlu0
    %v993 = vpop.trf.xlu0
    %v994 = vpop.trf.xlu0
    %v995 = vpop.trf.xlu0
    %v996 = vpop.trf.xlu0
    %v997 = vpop.trf.xlu0
    %v998 = vpop.trf.xlu0
    %v999 = vpop.trf.xlu0
    %v1000 = vpack.c.bf16 %v984, %v984
    %1001 = vrot.lane.b32.xlu0 %v671, 104
    %v1002 = vpop.permute.xlu0 %1001
    %v1004 = vsel %vm215, %v1002, 0
    %v1007 = vsel %vm219, %v1000, 0
    %1009 = vmatpush.bf16.msra.mxu0 0
    %1010 = vmatpush.bf16.msra.mxu0 0
    %1011 = vmatpush.bf16.msra.mxu0 0
    %1012 = vmatpush.bf16.msra.mxu0 0
    %1013 = vmatpush.bf16.msra.mxu0 0
    %1014 = vmatpush.bf16.msra.mxu0 0
    %1015 = vmatpush.bf16.msra.mxu0 0
    %1016 = vmatpush.bf16.msra.mxu0 %v1007
    %1017 = vmatmul.bf16.gmra.mxu0 %v1004
    %v1018 = vpop.f32.mrf.mxu0
    %v1019 = vadd.f32 0.0, %v1018
    %v1020 = vpop.f32.mrf.mxu0
    %1021 = vdwg.mxu0
    %v1022 = vmul.f32 %v1019, 0.35355338
    %v1023 = vadd.f32 %v1022, %v693
    %v1024 = vsel %vm215, %v1023, -inf
    %1025 = vmax.xlane.f32.xlu0 %v1024
    %v1026 = vpop.xlane.xlu0 %1025
    %v1027 = vsub.f32 %v1023, %v1026
    %v1028 = vmul.f32 %v1027, 1.442695
    %v1029 = vpow.pop %v1028
    %v1030 = vsel %vm215, %v1029, 0.0
    %1031 = vadd.xlane.f32.xlu0 %v1030
    %v1032 = vpop.xlane.xlu0 %1031
    %v1033 = vrcp.pop %v1032
    %v1034 = vmul.f32 %v1029, %v1033
    %v1035 = vpack.c.bf16 %v1034, %v1034
    %1036 = vrot.lane.b32.xlu0 %v671, 40
    %v1037 = vpop.permute.xlu0 %1036
    %v1039 = vsel %vm215, %v1035, 0
    %v1042 = vsel %vm219, %v1037, 0
    %1044 = vmatpush.bf16.msra.mxu0 0
    %1045 = vmatpush.bf16.msra.mxu0 0
    %1046 = vmatpush.bf16.msra.mxu0 0
    %1047 = vmatpush.bf16.msra.mxu0 0
    %1048 = vmatpush.bf16.msra.mxu0 0
    %1049 = vmatpush.bf16.msra.mxu0 0
    %1050 = vmatpush.bf16.msra.mxu0 0
    %1051 = vmatpush.bf16.msra.mxu0 %v1042
    %1052 = vmatmul.bf16.gmra.mxu0 %v1039
    %v1053 = vpop.f32.mrf.mxu0
    %v1054 = vadd.f32 0.0, %v1053
    %v1055 = vpop.f32.mrf.mxu0
    %1056 = vdwg.mxu0
    %v1057 = vpack.c.bf16 %v1054, %v1054
    %v1059 = vsel %vm215, %v1057, 0
    %1061 = vmatpush.bf16.msra.mxu0 0
    %1062 = vmatpush.bf16.msra.mxu0 0
    %1063 = vmatpush.bf16.msra.mxu0 0
    %1064 = vmatpush.bf16.msra.mxu0 0
    %1065 = vmatpush.bf16.msra.mxu0 0
    %1066 = vmatpush.bf16.msra.mxu0 0
    %1067 = vmatpush.bf16.msra.mxu0 0
    %1068 = vmatpush.bf16.msra.mxu0 %v619
    %1069 = vmatmul.bf16.gmra.mxu0 %v1059
    %v1070 = vpop.f32.mrf.mxu0
    %v1071 = vadd.f32 0.0, %v1070
    %v1072 = vpop.f32.mrf.mxu0
    %1073 = vdwg.mxu0
    %v1074 = vadd.f32 %v964, %v1071
    %v1075 = vld [vmem:[%s7] sm:$0x1]
    %v1077 = vperm.slane %v1075, 0
    %v1079 = vadd.f32 %v634, %v1077
    %v1080 = vadd.f32 %v1074, %v1077
    %v1081 = vadd.f32 %v140, %v1079
    %v1082 = vadd.f32 %v141, %v1080
    %v1083 = vld [vmem:[%s8] sm:$0x1]
    %v1084 = vld [vmem:[%s9] sm:$0x1]
    %v1085 = vsel %vm80, %v1081, 0.0
    %1086 = vadd.xlane.f32.xlu0 %v1085
    %v1087 = vpop.xlane.xlu0 %1086
    %v1088 = vsel %vm80, %v1082, 0.0
    %1089 = vadd.xlane.f32.xlu0 %v1088
    %v1090 = vpop.xlane.xlu0 %1089
    %v1091 = vmul.f32 %v1087, %v93
    %v1092 = vmul.f32 %v1090, %v93
    %v1093 = vsub.f32 %v1081, %v1091
    %v1094 = vsub.f32 %v1082, %v1092
    %v1095 = vmul.f32 %v1093, %v1093
    %v1096 = vmul.f32 %v1094, %v1094
    %v1097 = vsel %vm80, %v1095, 0.0
    %1098 = vadd.xlane.f32.xlu0 %v1097
    %v1099 = vpop.xlane.xlu0 %1098
    %v1100 = vsel %vm80, %v1096, 0.0
    %1101 = vadd.xlane.f32.xlu0 %v1100
    %v1102 = vpop.xlane.xlu0 %1101
    %v1103 = vmul.f32 %v1099, %v93
    %v1104 = vmul.f32 %v1102, %v93
    %v1105 = vadd.f32 %v1103, 1e-12
    %v1106 = vadd.f32 %v1104, 1e-12
    %v1107 = vrsqrt.pop %v1105
    %v1108 = vmul.f32 %v1107, %v1105
    %v1109 = vmul.f32 %v1108, %v1107
    %v1110 = vmul.f32 0.5, %v1109
    %v1111 = vsub.f32 1.5, %v1110
    %v1112 = vmul.f32 %v1107, %v1111
    %vm1113 = vweird.f32 %v1105
    %vm1114 = vweird.f32 %v1107
    %vm1115 = vmor %vm1113, %vm1114
    %v1116 = vsel %vm1115, %v1107, %v1112
    %v1117 = vrsqrt.pop %v1106
    %v1118 = vmul.f32 %v1117, %v1106
    %v1119 = vmul.f32 %v1118, %v1117
    %v1120 = vmul.f32 0.5, %v1119
    %v1121 = vsub.f32 1.5, %v1120
    %v1122 = vmul.f32 %v1117, %v1121
    %vm1123 = vweird.f32 %v1106
    %vm1124 = vweird.f32 %v1117
    %vm1125 = vmor %vm1123, %vm1124
    %v1126 = vsel %vm1125, %v1117, %v1122
    %v1127 = vmul.f32 %v1093, %v1116
    %v1128 = vmul.f32 %v1094, %v1126
    %v1130 = vperm.slane %v1083, 0
    %v1132 = vmul.f32 %v1127, %v1130
    %v1133 = vmul.f32 %v1128, %v1130
    %v1135 = vperm.slane %v1084, 0
    %v1137 = vadd.f32 %v1132, %v1135
    %v1138 = vadd.f32 %v1133, %v1135
    %v1139 = vld [vmem:[%s10] sm:$0xff]
    %v1140 = vld [vmem:[%s10 + $0x8] sm:$0xff]
    %v1141 = vld [vmem:[%s10 + $0x10] sm:$0xff]
    %v1142 = vld [vmem:[%s10 + $0x18] sm:$0xff]
    %v1143 = vpack.c.bf16 %v1138, %v1137
    %v1144 = vpack.c.bf16 %v1140, %v1139
    %v1145 = vpack.c.bf16 %v1142, %v1141
    %v1146 = vld [vmem:[%s11] sm:$0x1]
    %v1148 = vperm.slane %v1146, 0
    %v1151 = vsel %vm80, %v1143, 0
    %1153 = vmatpush.bf16.msra.mxu0 0
    %1154 = vmatpush.bf16.msra.mxu0 0
    %1155 = vmatpush.bf16.msra.mxu0 0
    %1156 = vmatpush.bf16.msra.mxu0 0
    %1157 = vmatpush.bf16.msra.mxu0 0
    %1158 = vmatpush.bf16.msra.mxu0 0
    %1159 = vmatpush.bf16.msra.mxu0 %v1145
    %1160 = vmatpush.bf16.msra.mxu0 %v1144
    %1161 = vmatmul.bf16.gmra.mxu0 %v1151
    %v1162 = vpop.f32.mrf.mxu0
    %v1163 = vadd.f32 %v1148, %v1162
    %v1164 = vpop.f32.mrf.mxu0
    %v1165 = vadd.f32 %v1148, %v1164
    %1166 = vdwg.mxu0
    %v1167 = vmul.f32 %v1163, 0.5
    %v1168 = vmul.f32 %v1165, 0.5
    %v1169 = vmul.f32 %v1163, 0.044715
    %v1170 = vmul.f32 %v1165, 0.044715
    %v1171 = vmul.f32 %v1169, %v1163
    %v1172 = vmul.f32 %v1170, %v1165
    %v1173 = vmul.f32 %v1171, %v1163
    %v1174 = vmul.f32 %v1172, %v1165
    %v1175 = vadd.f32 %v1163, %v1173
    %v1176 = vadd.f32 %v1165, %v1174
    %v1177 = vmul.f32 %v1175, 0.7978846
    %v1178 = vmul.f32 %v1176, 0.7978846
    %v1179 = vtanh.pop %v1177
    %v1180 = vtanh.pop %v1178
    %v1181 = vadd.f32 %v1179, 1.0
    %v1182 = vadd.f32 %v1180, 1.0
    %v1183 = vmul.f32 %v1167, %v1181
    %v1184 = vmul.f32 %v1168, %v1182
    %v1185 = vld [vmem:[%s12] sm:$0xff]
    %v1186 = vld [vmem:[%s12 + $0x8] sm:$0xff]
    %v1187 = vld [vmem:[%s12 + $0x10] sm:$0xff]
    %v1188 = vld [vmem:[%s12 + $0x18] sm:$0xff]
    %v1189 = vld [vmem:[%s12 + $0x20] sm:$0xff]
    %v1190 = vld [vmem:[%s12 + $0x28] sm:$0xff]
    %v1191 = vld [vmem:[%s12 + $0x30] sm:$0xff]
    %v1192 = vld [vmem:[%s12 + $0x38] sm:$0xff]
    %v1193 = vpack.c.bf16 %v1184, %v1183
    %v1194 = vpack.c.bf16 %v1186, %v1185
    %v1195 = vpack.c.bf16 %v1188, %v1187
    %v1196 = vpack.c.bf16 %v1190, %v1189
    %v1197 = vpack.c.bf16 %v1192, %v1191
    %v1198 = vld [vmem:[%s13] sm:$0x1]
    %v1200 = vperm.slane %v1198, 0
    %vm1202 = vcmask 523264
    %v1204 = vsel %vm1202, %v1193, 0
    %1206 = vmatpush.bf16.msra.mxu0 0
    %1207 = vmatpush.bf16.msra.mxu0 0
    %1208 = vmatpush.bf16.msra.mxu0 0
    %1209 = vmatpush.bf16.msra.mxu0 0
    %1210 = vmatpush.bf16.msra.mxu0 %v1197
    %1211 = vmatpush.bf16.msra.mxu0 %v1196
    %1212 = vmatpush.bf16.msra.mxu0 %v1195
    %1213 = vmatpush.bf16.msra.mxu0 %v1194
    %1214 = vmatmul.bf16.gmra.mxu0 %v1204
    %v1215 = vpop.f32.mrf.mxu0
    %v1216 = vadd.f32 %v1200, %v1215
    %v1217 = vpop.f32.mrf.mxu0
    %v1218 = vadd.f32 %v1200, %v1217
    %1219 = vdwg.mxu0
    %v1220 = vadd.f32 %v1137, %v1216
    %v1221 = vadd.f32 %v1138, %v1218
    %v1222 = vld [vmem:[%s14] sm:$0x1]
    %v1223 = vld [vmem:[%s15] sm:$0x1]
    %v1224 = vsel %vm80, %v1220, 0.0
    %1225 = vadd.xlane.f32.xlu0 %v1224
    %v1226 = vpop.xlane.xlu0 %1225
    %v1227 = vsel %vm80, %v1221, 0.0
    %1228 = vadd.xlane.f32.xlu0 %v1227
    %v1229 = vpop.xlane.xlu0 %1228
    %v1230 = vmul.f32 %v1226, %v93
    %v1231 = vmul.f32 %v1229, %v93
    %v1232 = vsub.f32 %v1220, %v1230
    %v1233 = vsub.f32 %v1221, %v1231
    %v1234 = vmul.f32 %v1232, %v1232
    %v1235 = vmul.f32 %v1233, %v1233
    %v1236 = vsel %vm80, %v1234, 0.0
    %1237 = vadd.xlane.f32.xlu0 %v1236
    %v1238 = vpop.xlane.xlu0 %1237
    %v1239 = vsel %vm80, %v1235, 0.0
    %1240 = vadd.xlane.f32.xlu0 %v1239
    %v1241 = vpop.xlane.xlu0 %1240
    %v1242 = vmul.f32 %v1238, %v93
    %v1243 = vmul.f32 %v1241, %v93
    %v1244 = vadd.f32 %v1242, 1e-12
    %v1245 = vadd.f32 %v1243, 1e-12
    %v1246 = vrsqrt.pop %v1244
    %v1247 = vmul.f32 %v1246, %v1244
    %v1248 = vmul.f32 %v1247, %v1246
    %v1249 = vmul.f32 0.5, %v1248
    %v1250 = vsub.f32 1.5, %v1249
    %v1251 = vmul.f32 %v1246, %v1250
    %vm1252 = vweird.f32 %v1244
    %vm1253 = vweird.f32 %v1246
    %vm1254 = vmor %vm1252, %vm1253
    %v1255 = vsel %vm1254, %v1246, %v1251
    %v1256 = vrsqrt.pop %v1245
    %v1257 = vmul.f32 %v1256, %v1245
    %v1258 = vmul.f32 %v1257, %v1256
    %v1259 = vmul.f32 0.5, %v1258
    %v1260 = vsub.f32 1.5, %v1259
    %v1261 = vmul.f32 %v1256, %v1260
    %vm1262 = vweird.f32 %v1245
    %vm1263 = vweird.f32 %v1256
    %vm1264 = vmor %vm1262, %vm1263
    %v1265 = vsel %vm1264, %v1256, %v1261
    %v1266 = vmul.f32 %v1232, %v1255
    %v1267 = vmul.f32 %v1233, %v1265
    %v1269 = vperm.slane %v1222, 0
    %v1271 = vmul.f32 %v1266, %v1269
    %v1272 = vmul.f32 %v1267, %v1269
    %v1274 = vperm.slane %v1223, 0
    %v1276 = vadd.f32 %v1271, %v1274
    %v1277 = vadd.f32 %v1272, %v1274
    %s1278 = scalar_lea.vmem %s4, 32
    %v1279 = vld [vmem:[%s1278] sm:$0xff]
    %v1280 = vld [vmem:[%s1278 + $0x8] sm:$0xff]
    %v1281 = vld [vmem:[%s1278 + $0x10] sm:$0xff]
    %v1282 = vld [vmem:[%s1278 + $0x18] sm:$0xff]
    %v1283 = vpack.c.bf16 %v1277, %v1276
    %v1284 = vpack.c.bf16 %v1280, %v1279
    %v1285 = vpack.c.bf16 %v1282, %v1281
    %s1286 = scalar_lea.vmem %s5, 1
    %v1287 = vld [vmem:[%s1286] sm:$0x1]
    %v1289 = vperm.slane %v1287, 0
    %v1292 = vsel %vm80, %v1283, 0
    %1294 = vmatpush.bf16.msra.mxu0 0
    %1295 = vmatpush.bf16.msra.mxu0 0
    %1296 = vmatpush.bf16.msra.mxu0 0
    %1297 = vmatpush.bf16.msra.mxu0 0
    %1298 = vmatpush.bf16.msra.mxu0 0
    %1299 = vmatpush.bf16.msra.mxu0 0
    %1300 = vmatpush.bf16.msra.mxu0 %v1285
    %1301 = vmatpush.bf16.msra.mxu0 %v1284
    %1302 = vmatmul.bf16.gmra.mxu0 %v1292
    %v1303 = vpop.f32.mrf.mxu0
    %v1304 = vadd.f32 %v1289, %v1303
    %v1305 = vpop.f32.mrf.mxu0
    %v1306 = vadd.f32 %v1289, %v1305
    %1307 = vdwg.mxu0
    %s1308 = scalar_lea.vmem %s6, 32
    %v1309 = vld [vmem:[%s1308] sm:$0xff]
    %v1310 = vld [vmem:[%s1308 + $0x8] sm:$0xff]
    %v1311 = vld [vmem:[%s1308 + $0x10] sm:$0xff]
    %v1312 = vld [vmem:[%s1308 + $0x18] sm:$0xff]
    %1314 = vrot.lane.b32.xlu0 %v1304, 96
    %v1315 = vpop.permute.xlu0 %1314
    %1317 = vxpose.xlu0.b32.start [1/16] %v1315, 128
    %1318 = vxpose.xlu0.b32.cont [2/16] 0.0, 128
    %1319 = vxpose.xlu0.b32.cont [3/16] 0.0, 128
    %1320 = vxpose.xlu0.b32.cont [4/16] 0.0, 128
    %1321 = vxpose.xlu0.b32.cont [5/16] 0.0, 128
    %1322 = vxpose.xlu0.b32.cont [6/16] 0.0, 128
    %1323 = vxpose.xlu0.b32.cont [7/16] 0.0, 128
    %1324 = vxpose.xlu0.b32.cont [8/16] 0.0, 128
    %1325 = vxpose.xlu0.b32.cont [9/16] 0.0, 128
    %1326 = vxpose.xlu0.b32.cont [10/16] 0.0, 128
    %1327 = vxpose.xlu0.b32.cont [11/16] 0.0, 128
    %1328 = vxpose.xlu0.b32.cont [12/16] 0.0, 128
    %1329 = vxpose.xlu0.b32.cont [13/16] 0.0, 128
    %1330 = vxpose.xlu0.b32.cont [14/16] 0.0, 128
    %1331 = vxpose.xlu0.b32.cont [15/16] 0.0, 128
    %1332 = vxpose.xlu0.b32.end [16/16] 0.0, 128
    %v1333 = vpop.trf.xlu0
    %v1334 = vpop.trf.xlu0
    %v1335 = vpop.trf.xlu0
    %v1336 = vpop.trf.xlu0
    %v1337 = vpop.trf.xlu0
    %v1338 = vpop.trf.xlu0
    %v1339 = vpop.trf.xlu0
    %v1340 = vpop.trf.xlu0
    %v1341 = vpop.trf.xlu0
    %v1342 = vpop.trf.xlu0
    %v1343 = vpop.trf.xlu0
    %v1344 = vpop.trf.xlu0
    %v1345 = vpop.trf.xlu0
    %v1346 = vpop.trf.xlu0
    %v1347 = vpop.trf.xlu0
    %v1348 = vpop.trf.xlu0
    %v1349 = vpack.c.bf16 %v1304, %v1304
    %v1350 = vpack.c.bf16 %v1333, %v1333
    %v1352 = vsel %vm215, %v1349, 0
    %v1355 = vsel %vm219, %v1350, 0
    %1357 = vmatpush.bf16.msra.mxu0 0
    %1358 = vmatpush.bf16.msra.mxu0 0
    %1359 = vmatpush.bf16.msra.mxu0 0
    %1360 = vmatpush.bf16.msra.mxu0 0
    %1361 = vmatpush.bf16.msra.mxu0 0
    %1362 = vmatpush.bf16.msra.mxu0 0
    %1363 = vmatpush.bf16.msra.mxu0 0
    %1364 = vmatpush.bf16.msra.mxu0 %v1355
    %1365 = vmatmul.bf16.gmra.mxu0 %v1352
    %v1366 = vpop.f32.mrf.mxu0
    %v1367 = vadd.f32 0.0, %v1366
    %v1368 = vpop.f32.mrf.mxu0
    %1369 = vdwg.mxu0
    %v1370 = vmul.f32 %v1367, 0.35355338
    %v1371 = vadd.f32 %v1370, %v237
    %v1372 = vsel %vm215, %v1371, -inf
    %1373 = vmax.xlane.f32.xlu0 %v1372
    %v1374 = vpop.xlane.xlu0 %1373
    %v1375 = vsub.f32 %v1371, %v1374
    %v1376 = vmul.f32 %v1375, 1.442695
    %v1377 = vpow.pop %v1376
    %v1378 = vsel %vm215, %v1377, 0.0
    %1379 = vadd.xlane.f32.xlu0 %v1378
    %v1380 = vpop.xlane.xlu0 %1379
    %v1381 = vrcp.pop %v1380
    %v1382 = vmul.f32 %v1377, %v1381
    %v1383 = vpack.c.bf16 %v1382, %v1382
    %1385 = vrot.lane.b32.xlu0 %v1349, 64
    %v1386 = vpop.permute.xlu0 %1385
    %v1388 = vsel %vm215, %v1383, 0
    %v1391 = vsel %vm219, %v1386, 0
    %1393 = vmatpush.bf16.msra.mxu0 0
    %1394 = vmatpush.bf16.msra.mxu0 0
    %1395 = vmatpush.bf16.msra.mxu0 0
    %1396 = vmatpush.bf16.msra.mxu0 0
    %1397 = vmatpush.bf16.msra.mxu0 0
    %1398 = vmatpush.bf16.msra.mxu0 0
    %1399 = vmatpush.bf16.msra.mxu0 0
    %1400 = vmatpush.bf16.msra.mxu0 %v1391
    %1401 = vmatmul.bf16.gmra.mxu0 %v1388
    %v1402 = vpop.f32.mrf.mxu0
    %v1403 = vadd.f32 0.0, %v1402
    %v1404 = vpop.f32.mrf.mxu0
    %1405 = vdwg.mxu0
    %v1406 = vpack.c.bf16 %v1403, %v1403
    %v1407 = vpack.c.bf16 %v1309, %v1309
    %1408 = vrot.lane.b32.xlu0 %v1304, 88
    %v1409 = vpop.permute.xlu0 %1408
    %1411 = vxpose.xlu0.b32.start [1/16] %v1409, 128
    %1412 = vxpose.xlu0.b32.cont [2/16] 0.0, 128
    %1413 = vxpose.xlu0.b32.cont [3/16] 0.0, 128
    %1414 = vxpose.xlu0.b32.cont [4/16] 0.0, 128
    %1415 = vxpose.xlu0.b32.cont [5/16] 0.0, 128
    %1416 = vxpose.xlu0.b32.cont [6/16] 0.0, 128
    %1417 = vxpose.xlu0.b32.cont [7/16] 0.0, 128
    %1418 = vxpose.xlu0.b32.cont [8/16] 0.0, 128
    %1419 = vxpose.xlu0.b32.cont [9/16] 0.0, 128
    %1420 = vxpose.xlu0.b32.cont [10/16] 0.0, 128
    %1421 = vxpose.xlu0.b32.cont [11/16] 0.0, 128
    %1422 = vxpose.xlu0.b32.cont [12/16] 0.0, 128
    %1423 = vxpose.xlu0.b32.cont [13/16] 0.0, 128
    %1424 = vxpose.xlu0.b32.cont [14/16] 0.0, 128
    %1425 = vxpose.xlu0.b32.cont [15/16] 0.0, 128
    %1426 = vxpose.xlu0.b32.end [16/16] 0.0, 128
    %v1427 = vpop.trf.xlu0
    %v1428 = vpop.trf.xlu0
    %v1429 = vpop.trf.xlu0
    %v1430 = vpop.trf.xlu0
    %v1431 = vpop.trf.xlu0
    %v1432 = vpop.trf.xlu0
    %v1433 = vpop.trf.xlu0
    %v1434 = vpop.trf.xlu0
    %v1435 = vpop.trf.xlu0
    %v1436 = vpop.trf.xlu0
    %v1437 = vpop.trf.xlu0
    %v1438 = vpop.trf.xlu0
    %v1439 = vpop.trf.xlu0
    %v1440 = vpop.trf.xlu0
    %v1441 = vpop.trf.xlu0
    %v1442 = vpop.trf.xlu0
    %v1443 = vpack.c.bf16 %v1427, %v1427
    %1444 = vrot.lane.b32.xlu0 %v1349, 120
    %v1445 = vpop.permute.xlu0 %1444
    %v1447 = vsel %vm215, %v1445, 0
    %v1450 = vsel %vm219, %v1443, 0
    %1452 = vmatpush.bf16.msra.mxu0 0
    %1453 = vmatpush.bf16.msra.mxu0 0
    %1454 = vmatpush.bf16.msra.mxu0 0
    %1455 = vmatpush.bf16.msra.mxu0 0
    %1456 = vmatpush.bf16.msra.mxu0 0
    %1457 = vmatpush.bf16.msra.mxu0 0
    %1458 = vmatpush.bf16.msra.mxu0 0
    %1459 = vmatpush.bf16.msra.mxu0 %v1450
    %1460 = vmatmul.bf16.gmra.mxu0 %v1447
    %v1461 = vpop.f32.mrf.mxu0
    %v1462 = vadd.f32 0.0, %v1461
    %v1463 = vpop.f32.mrf.mxu0
    %1464 = vdwg.mxu0
    %v1465 = vmul.f32 %v1462, 0.35355338
    %v1466 = vadd.f32 %v1465, %v237
    %v1467 = vsel %vm215, %v1466, -inf
    %1468 = vmax.xlane.f32.xlu0 %v1467
    %v1469 = vpop.xlane.xlu0 %1468
    %v1470 = vsub.f32 %v1466, %v1469
    %v1471 = vmul.f32 %v1470, 1.442695
    %v1472 = vpow.pop %v1471
    %v1473 = vsel %vm215, %v1472, 0.0
    %1474 = vadd.xlane.f32.xlu0 %v1473
    %v1475 = vpop.xlane.xlu0 %1474
    %v1476 = vrcp.pop %v1475
    %v1477 = vmul.f32 %v1472, %v1476
    %v1478 = vpack.c.bf16 %v1477, %v1477
    %1479 = vrot.lane.b32.xlu0 %v1349, 56
    %v1480 = vpop.permute.xlu0 %1479
    %v1482 = vsel %vm215, %v1478, 0
    %v1485 = vsel %vm219, %v1480, 0
    %1487 = vmatpush.bf16.msra.mxu0 0
    %1488 = vmatpush.bf16.msra.mxu0 0
    %1489 = vmatpush.bf16.msra.mxu0 0
    %1490 = vmatpush.bf16.msra.mxu0 0
    %1491 = vmatpush.bf16.msra.mxu0 0
    %1492 = vmatpush.bf16.msra.mxu0 0
    %1493 = vmatpush.bf16.msra.mxu0 0
    %1494 = vmatpush.bf16.msra.mxu0 %v1485
    %1495 = vmatmul.bf16.gmra.mxu0 %v1482
    %v1496 = vpop.f32.mrf.mxu0
    %v1497 = vadd.f32 0.0, %v1496
    %v1498 = vpop.f32.mrf.mxu0
    %1499 = vdwg.mxu0
    %v1500 = vpack.c.bf16 %v1497, %v1497
    %v1501 = vpack.c.bf16 %v1310, %v1310
    %v1503 = vsel %vm215, %v1500, 0
    %v1506 = vsel %vm219, %v1501, 0
    %1508 = vmatpush.bf16.msra.mxu0 0
    %1509 = vmatpush.bf16.msra.mxu0 0
    %1510 = vmatpush.bf16.msra.mxu0 0
    %1511 = vmatpush.bf16.msra.mxu0 0
    %1512 = vmatpush.bf16.msra.mxu0 0
    %1513 = vmatpush.bf16.msra.mxu0 0
    %1514 = vmatpush.bf16.msra.mxu0 0
    %1515 = vmatpush.bf16.msra.mxu0 %v1506
    %1516 = vmatmul.bf16.gmra.mxu0 %v1503
    %v1517 = vpop.f32.mrf.mxu0
    %v1518 = vadd.f32 0.0, %v1517
    %v1519 = vpop.f32.mrf.mxu0
    %1520 = vdwg.mxu0
    %v1522 = vsel %vm215, %v1406, 0
    %v1525 = vsel %vm219, %v1407, 0
    %1527 = vmatpush.bf16.msra.mxu0 0
    %1528 = vmatpush.bf16.msra.mxu0 0
    %1529 = vmatpush.bf16.msra.mxu0 0
    %1530 = vmatpush.bf16.msra.mxu0 0
    %1531 = vmatpush.bf16.msra.mxu0 0
    %1532 = vmatpush.bf16.msra.mxu0 0
    %1533 = vmatpush.bf16.msra.mxu0 0
    %1534 = vmatpush.bf16.msra.mxu0 %v1525
    %1535 = vmatmul.bf16.gmra.mxu0 %v1522
    %v1536 = vpop.f32.mrf.mxu0
    %v1537 = vadd.f32 %v1518, %v1536
    %v1538 = vpop.f32.mrf.mxu0
    %1539 = vdwg.mxu0
    %1540 = vrot.lane.b32.xlu0 %v1304, 80
    %v1541 = vpop.permute.xlu0 %1540
    %1543 = vxpose.xlu0.b32.start [1/16] %v1541, 128
    %1544 = vxpose.xlu0.b32.cont [2/16] 0.0, 128
    %1545 = vxpose.xlu0.b32.cont [3/16] 0.0, 128
    %1546 = vxpose.xlu0.b32.cont [4/16] 0.0, 128
    %1547 = vxpose.xlu0.b32.cont [5/16] 0.0, 128
    %1548 = vxpose.xlu0.b32.cont [6/16] 0.0, 128
    %1549 = vxpose.xlu0.b32.cont [7/16] 0.0, 128
    %1550 = vxpose.xlu0.b32.cont [8/16] 0.0, 128
    %1551 = vxpose.xlu0.b32.cont [9/16] 0.0, 128
    %1552 = vxpose.xlu0.b32.cont [10/16] 0.0, 128
    %1553 = vxpose.xlu0.b32.cont [11/16] 0.0, 128
    %1554 = vxpose.xlu0.b32.cont [12/16] 0.0, 128
    %1555 = vxpose.xlu0.b32.cont [13/16] 0.0, 128
    %1556 = vxpose.xlu0.b32.cont [14/16] 0.0, 128
    %1557 = vxpose.xlu0.b32.cont [15/16] 0.0, 128
    %1558 = vxpose.xlu0.b32.end [16/16] 0.0, 128
    %v1559 = vpop.trf.xlu0
    %v1560 = vpop.trf.xlu0
    %v1561 = vpop.trf.xlu0
    %v1562 = vpop.trf.xlu0
    %v1563 = vpop.trf.xlu0
    %v1564 = vpop.trf.xlu0
    %v1565 = vpop.trf.xlu0
    %v1566 = vpop.trf.xlu0
    %v1567 = vpop.trf.xlu0
    %v1568 = vpop.trf.xlu0
    %v1569 = vpop.trf.xlu0
    %v1570 = vpop.trf.xlu0
    %v1571 = vpop.trf.xlu0
    %v1572 = vpop.trf.xlu0
    %v1573 = vpop.trf.xlu0
    %v1574 = vpop.trf.xlu0
    %v1575 = vpack.c.bf16 %v1559, %v1559
    %1576 = vrot.lane.b32.xlu0 %v1349, 112
    %v1577 = vpop.permute.xlu0 %1576
    %v1579 = vsel %vm215, %v1577, 0
    %v1582 = vsel %vm219, %v1575, 0
    %1584 = vmatpush.bf16.msra.mxu0 0
    %1585 = vmatpush.bf16.msra.mxu0 0
    %1586 = vmatpush.bf16.msra.mxu0 0
    %1587 = vmatpush.bf16.msra.mxu0 0
    %1588 = vmatpush.bf16.msra.mxu0 0
    %1589 = vmatpush.bf16.msra.mxu0 0
    %1590 = vmatpush.bf16.msra.mxu0 0
    %1591 = vmatpush.bf16.msra.mxu0 %v1582
    %1592 = vmatmul.bf16.gmra.mxu0 %v1579
    %v1593 = vpop.f32.mrf.mxu0
    %v1594 = vadd.f32 0.0, %v1593
    %v1595 = vpop.f32.mrf.mxu0
    %1596 = vdwg.mxu0
    %v1597 = vmul.f32 %v1594, 0.35355338
    %v1598 = vadd.f32 %v1597, %v237
    %v1599 = vsel %vm215, %v1598, -inf
    %1600 = vmax.xlane.f32.xlu0 %v1599
    %v1601 = vpop.xlane.xlu0 %1600
    %v1602 = vsub.f32 %v1598, %v1601
    %v1603 = vmul.f32 %v1602, 1.442695
    %v1604 = vpow.pop %v1603
    %v1605 = vsel %vm215, %v1604, 0.0
    %1606 = vadd.xlane.f32.xlu0 %v1605
    %v1607 = vpop.xlane.xlu0 %1606
    %v1608 = vrcp.pop %v1607
    %v1609 = vmul.f32 %v1604, %v1608
    %v1610 = vpack.c.bf16 %v1609, %v1609
    %1611 = vrot.lane.b32.xlu0 %v1349, 48
    %v1612 = vpop.permute.xlu0 %1611
    %v1614 = vsel %vm215, %v1610, 0
    %v1617 = vsel %vm219, %v1612, 0
    %1619 = vmatpush.bf16.msra.mxu0 0
    %1620 = vmatpush.bf16.msra.mxu0 0
    %1621 = vmatpush.bf16.msra.mxu0 0
    %1622 = vmatpush.bf16.msra.mxu0 0
    %1623 = vmatpush.bf16.msra.mxu0 0
    %1624 = vmatpush.bf16.msra.mxu0 0
    %1625 = vmatpush.bf16.msra.mxu0 0
    %1626 = vmatpush.bf16.msra.mxu0 %v1617
    %1627 = vmatmul.bf16.gmra.mxu0 %v1614
    %v1628 = vpop.f32.mrf.mxu0
    %v1629 = vadd.f32 0.0, %v1628
    %v1630 = vpop.f32.mrf.mxu0
    %1631 = vdwg.mxu0
    %v1632 = vpack.c.bf16 %v1629, %v1629
    %v1633 = vpack.c.bf16 %v1311, %v1311
    %v1635 = vsel %vm215, %v1632, 0
    %v1638 = vsel %vm219, %v1633, 0
    %1640 = vmatpush.bf16.msra.mxu0 0
    %1641 = vmatpush.bf16.msra.mxu0 0
    %1642 = vmatpush.bf16.msra.mxu0 0
    %1643 = vmatpush.bf16.msra.mxu0 0
    %1644 = vmatpush.bf16.msra.mxu0 0
    %1645 = vmatpush.bf16.msra.mxu0 0
    %1646 = vmatpush.bf16.msra.mxu0 0
    %1647 = vmatpush.bf16.msra.mxu0 %v1638
    %1648 = vmatmul.bf16.gmra.mxu0 %v1635
    %v1649 = vpop.f32.mrf.mxu0
    %v1650 = vadd.f32 0.0, %v1649
    %v1651 = vpop.f32.mrf.mxu0
    %1652 = vdwg.mxu0
    %v1653 = vadd.f32 %v1537, %v1650
    %1654 = vrot.lane.b32.xlu0 %v1304, 72
    %v1655 = vpop.permute.xlu0 %1654
    %1657 = vxpose.xlu0.b32.start [1/16] %v1655, 128
    %1658 = vxpose.xlu0.b32.cont [2/16] 0.0, 128
    %1659 = vxpose.xlu0.b32.cont [3/16] 0.0, 128
    %1660 = vxpose.xlu0.b32.cont [4/16] 0.0, 128
    %1661 = vxpose.xlu0.b32.cont [5/16] 0.0, 128
    %1662 = vxpose.xlu0.b32.cont [6/16] 0.0, 128
    %1663 = vxpose.xlu0.b32.cont [7/16] 0.0, 128
    %1664 = vxpose.xlu0.b32.cont [8/16] 0.0, 128
    %1665 = vxpose.xlu0.b32.cont [9/16] 0.0, 128
    %1666 = vxpose.xlu0.b32.cont [10/16] 0.0, 128
    %1667 = vxpose.xlu0.b32.cont [11/16] 0.0, 128
    %1668 = vxpose.xlu0.b32.cont [12/16] 0.0, 128
    %1669 = vxpose.xlu0.b32.cont [13/16] 0.0, 128
    %1670 = vxpose.xlu0.b32.cont [14/16] 0.0, 128
    %1671 = vxpose.xlu0.b32.cont [15/16] 0.0, 128
    %1672 = vxpose.xlu0.b32.end [16/16] 0.0, 128
    %v1673 = vpop.trf.xlu0
    %v1674 = vpop.trf.xlu0
    %v1675 = vpop.trf.xlu0
    %v1676 = vpop.trf.xlu0
    %v1677 = vpop.trf.xlu0
    %v1678 = vpop.trf.xlu0
    %v1679 = vpop.trf.xlu0
    %v1680 = vpop.trf.xlu0
    %v1681 = vpop.trf.xlu0
    %v1682 = vpop.trf.xlu0
    %v1683 = vpop.trf.xlu0
    %v1684 = vpop.trf.xlu0
    %v1685 = vpop.trf.xlu0
    %v1686 = vpop.trf.xlu0
    %v1687 = vpop.trf.xlu0
    %v1688 = vpop.trf.xlu0
    %v1689 = vpack.c.bf16 %v1673, %v1673
    %1690 = vrot.lane.b32.xlu0 %v1349, 104
    %v1691 = vpop.permute.xlu0 %1690
    %v1693 = vsel %vm215, %v1691, 0
    %v1696 = vsel %vm219, %v1689, 0
    %1698 = vmatpush.bf16.msra.mxu0 0
    %1699 = vmatpush.bf16.msra.mxu0 0
    %1700 = vmatpush.bf16.msra.mxu0 0
    %1701 = vmatpush.bf16.msra.mxu0 0
    %1702 = vmatpush.bf16.msra.mxu0 0
    %1703 = vmatpush.bf16.msra.mxu0 0
    %1704 = vmatpush.bf16.msra.mxu0 0
    %1705 = vmatpush.bf16.msra.mxu0 %v1696
    %1706 = vmatmul.bf16.gmra.mxu0 %v1693
    %v1707 = vpop.f32.mrf.mxu0
    %v1708 = vadd.f32 0.0, %v1707
    %v1709 = vpop.f32.mrf.mxu0
    %1710 = vdwg.mxu0
    %v1711 = vmul.f32 %v1708, 0.35355338
    %v1712 = vadd.f32 %v1711, %v237
    %v1713 = vsel %vm215, %v1712, -inf
    %1714 = vmax.xlane.f32.xlu0 %v1713
    %v1715 = vpop.xlane.xlu0 %1714
    %v1716 = vsub.f32 %v1712, %v1715
    %v1717 = vmul.f32 %v1716, 1.442695
    %v1718 = vpow.pop %v1717
    %v1719 = vsel %vm215, %v1718, 0.0
    %1720 = vadd.xlane.f32.xlu0 %v1719
    %v1721 = vpop.xlane.xlu0 %1720
    %v1722 = vrcp.pop %v1721
    %v1723 = vmul.f32 %v1718, %v1722
    %v1724 = vpack.c.bf16 %v1723, %v1723
    %1725 = vrot.lane.b32.xlu0 %v1349, 40
    %v1726 = vpop.permute.xlu0 %1725
    %v1728 = vsel %vm215, %v1724, 0
    %v1731 = vsel %vm219, %v1726, 0
    %1733 = vmatpush.bf16.msra.mxu0 0
    %1734 = vmatpush.bf16.msra.mxu0 0
    %1735 = vmatpush.bf16.msra.mxu0 0
    %1736 = vmatpush.bf16.msra.mxu0 0
    %1737 = vmatpush.bf16.msra.mxu0 0
    %1738 = vmatpush.bf16.msra.mxu0 0
    %1739 = vmatpush.bf16.msra.mxu0 0
    %1740 = vmatpush.bf16.msra.mxu0 %v1731
    %1741 = vmatmul.bf16.gmra.mxu0 %v1728
    %v1742 = vpop.f32.mrf.mxu0
    %v1743 = vadd.f32 0.0, %v1742
    %v1744 = vpop.f32.mrf.mxu0
    %1745 = vdwg.mxu0
    %v1746 = vpack.c.bf16 %v1743, %v1743
    %v1747 = vpack.c.bf16 %v1312, %v1312
    %v1749 = vsel %vm215, %v1746, 0
    %v1752 = vsel %vm219, %v1747, 0
    %1754 = vmatpush.bf16.msra.mxu0 0
    %1755 = vmatpush.bf16.msra.mxu0 0
    %1756 = vmatpush.bf16.msra.mxu0 0
    %1757 = vmatpush.bf16.msra.mxu0 0
    %1758 = vmatpush.bf16.msra.mxu0 0
    %1759 = vmatpush.bf16.msra.mxu0 0
    %1760 = vmatpush.bf16.msra.mxu0 0
    %1761 = vmatpush.bf16.msra.mxu0 %v1752
    %1762 = vmatmul.bf16.gmra.mxu0 %v1749
    %v1763 = vpop.f32.mrf.mxu0
    %v1764 = vadd.f32 0.0, %v1763
    %v1765 = vpop.f32.mrf.mxu0
    %1766 = vdwg.mxu0
    %v1767 = vadd.f32 %v1653, %v1764
    %1769 = vrot.lane.b32.xlu0 %v1306, 96
    %v1770 = vpop.permute.xlu0 %1769
    %1772 = vxpose.xlu0.b32.start [1/16] %v1770, 128
    %1773 = vxpose.xlu0.b32.cont [2/16] 0.0, 128
    %1774 = vxpose.xlu0.b32.cont [3/16] 0.0, 128
    %1775 = vxpose.xlu0.b32.cont [4/16] 0.0, 128
    %1776 = vxpose.xlu0.b32.cont [5/16] 0.0, 128
    %1777 = vxpose.xlu0.b32.cont [6/16] 0.0, 128
    %1778 = vxpose.xlu0.b32.cont [7/16] 0.0, 128
    %1779 = vxpose.xlu0.b32.cont [8/16] 0.0, 128
    %1780 = vxpose.xlu0.b32.cont [9/16] 0.0, 128
    %1781 = vxpose.xlu0.b32.cont [10/16] 0.0, 128
    %1782 = vxpose.xlu0.b32.cont [11/16] 0.0, 128
    %1783 = vxpose.xlu0.b32.cont [12/16] 0.0, 128
    %1784 = vxpose.xlu0.b32.cont [13/16] 0.0, 128
    %1785 = vxpose.xlu0.b32.cont [14/16] 0.0, 128
    %1786 = vxpose.xlu0.b32.cont [15/16] 0.0, 128
    %1787 = vxpose.xlu0.b32.end [16/16] 0.0, 128
    %v1788 = vpop.trf.xlu0
    %v1789 = vpop.trf.xlu0
    %v1790 = vpop.trf.xlu0
    %v1791 = vpop.trf.xlu0
    %v1792 = vpop.trf.xlu0
    %v1793 = vpop.trf.xlu0
    %v1794 = vpop.trf.xlu0
    %v1795 = vpop.trf.xlu0
    %v1796 = vpop.trf.xlu0
    %v1797 = vpop.trf.xlu0
    %v1798 = vpop.trf.xlu0
    %v1799 = vpop.trf.xlu0
    %v1800 = vpop.trf.xlu0
    %v1801 = vpop.trf.xlu0
    %v1802 = vpop.trf.xlu0
    %v1803 = vpop.trf.xlu0
    %v1804 = vpack.c.bf16 %v1306, %v1306
    %v1805 = vpack.c.bf16 %v1788, %v1788
    %v1807 = vsel %vm215, %v1804, 0
    %v1810 = vsel %vm219, %v1805, 0
    %1812 = vmatpush.bf16.msra.mxu0 0
    %1813 = vmatpush.bf16.msra.mxu0 0
    %1814 = vmatpush.bf16.msra.mxu0 0
    %1815 = vmatpush.bf16.msra.mxu0 0
    %1816 = vmatpush.bf16.msra.mxu0 0
    %1817 = vmatpush.bf16.msra.mxu0 0
    %1818 = vmatpush.bf16.msra.mxu0 0
    %1819 = vmatpush.bf16.msra.mxu0 %v1810
    %1820 = vmatmul.bf16.gmra.mxu0 %v1807
    %v1821 = vpop.f32.mrf.mxu0
    %v1822 = vadd.f32 0.0, %v1821
    %v1823 = vpop.f32.mrf.mxu0
    %1824 = vdwg.mxu0
    %v1825 = vmul.f32 %v1822, 0.35355338
    %v1826 = vadd.f32 %v1825, %v693
    %v1827 = vsel %vm215, %v1826, -inf
    %1828 = vmax.xlane.f32.xlu0 %v1827
    %v1829 = vpop.xlane.xlu0 %1828
    %v1830 = vsub.f32 %v1826, %v1829
    %v1831 = vmul.f32 %v1830, 1.442695
    %v1832 = vpow.pop %v1831
    %v1833 = vsel %vm215, %v1832, 0.0
    %1834 = vadd.xlane.f32.xlu0 %v1833
    %v1835 = vpop.xlane.xlu0 %1834
    %v1836 = vrcp.pop %v1835
    %v1837 = vmul.f32 %v1832, %v1836
    %v1838 = vpack.c.bf16 %v1837, %v1837
    %1840 = vrot.lane.b32.xlu0 %v1804, 64
    %v1841 = vpop.permute.xlu0 %1840
    %v1843 = vsel %vm215, %v1838, 0
    %v1846 = vsel %vm219, %v1841, 0
    %1848 = vmatpush.bf16.msra.mxu0 0
    %1849 = vmatpush.bf16.msra.mxu0 0
    %1850 = vmatpush.bf16.msra.mxu0 0
    %1851 = vmatpush.bf16.msra.mxu0 0
    %1852 = vmatpush.bf16.msra.mxu0 0
    %1853 = vmatpush.bf16.msra.mxu0 0
    %1854 = vmatpush.bf16.msra.mxu0 0
    %1855 = vmatpush.bf16.msra.mxu0 %v1846
    %1856 = vmatmul.bf16.gmra.mxu0 %v1843
    %v1857 = vpop.f32.mrf.mxu0
    %v1858 = vadd.f32 0.0, %v1857
    %v1859 = vpop.f32.mrf.mxu0
    %1860 = vdwg.mxu0
    %v1861 = vpack.c.bf16 %v1858, %v1858
    %1862 = vrot.lane.b32.xlu0 %v1306, 88
    %v1863 = vpop.permute.xlu0 %1862
    %1865 = vxpose.xlu0.b32.start [1/16] %v1863, 128
    %1866 = vxpose.xlu0.b32.cont [2/16] 0.0, 128
    %1867 = vxpose.xlu0.b32.cont [3/16] 0.0, 128
    %1868 = vxpose.xlu0.b32.cont [4/16] 0.0, 128
    %1869 = vxpose.xlu0.b32.cont [5/16] 0.0, 128
    %1870 = vxpose.xlu0.b32.cont [6/16] 0.0, 128
    %1871 = vxpose.xlu0.b32.cont [7/16] 0.0, 128
    %1872 = vxpose.xlu0.b32.cont [8/16] 0.0, 128
    %1873 = vxpose.xlu0.b32.cont [9/16] 0.0, 128
    %1874 = vxpose.xlu0.b32.cont [10/16] 0.0, 128
    %1875 = vxpose.xlu0.b32.cont [11/16] 0.0, 128
    %1876 = vxpose.xlu0.b32.cont [12/16] 0.0, 128
    %1877 = vxpose.xlu0.b32.cont [13/16] 0.0, 128
    %1878 = vxpose.xlu0.b32.cont [14/16] 0.0, 128
    %1879 = vxpose.xlu0.b32.cont [15/16] 0.0, 128
    %1880 = vxpose.xlu0.b32.end [16/16] 0.0, 128
    %v1881 = vpop.trf.xlu0
    %v1882 = vpop.trf.xlu0
    %v1883 = vpop.trf.xlu0
    %v1884 = vpop.trf.xlu0
    %v1885 = vpop.trf.xlu0
    %v1886 = vpop.trf.xlu0
    %v1887 = vpop.trf.xlu0
    %v1888 = vpop.trf.xlu0
    %v1889 = vpop.trf.xlu0
    %v1890 = vpop.trf.xlu0
    %v1891 = vpop.trf.xlu0
    %v1892 = vpop.trf.xlu0
    %v1893 = vpop.trf.xlu0
    %v1894 = vpop.trf.xlu0
    %v1895 = vpop.trf.xlu0
    %v1896 = vpop.trf.xlu0
    %v1897 = vpack.c.bf16 %v1881, %v1881
    %1898 = vrot.lane.b32.xlu0 %v1804, 120
    %v1899 = vpop.permute.xlu0 %1898
    %v1901 = vsel %vm215, %v1899, 0
    %v1904 = vsel %vm219, %v1897, 0
    %1906 = vmatpush.bf16.msra.mxu0 0
    %1907 = vmatpush.bf16.msra.mxu0 0
    %1908 = vmatpush.bf16.msra.mxu0 0
    %1909 = vmatpush.bf16.msra.mxu0 0
    %1910 = vmatpush.bf16.msra.mxu0 0
    %1911 = vmatpush.bf16.msra.mxu0 0
    %1912 = vmatpush.bf16.msra.mxu0 0
    %1913 = vmatpush.bf16.msra.mxu0 %v1904
    %1914 = vmatmul.bf16.gmra.mxu0 %v1901
    %v1915 = vpop.f32.mrf.mxu0
    %v1916 = vadd.f32 0.0, %v1915
    %v1917 = vpop.f32.mrf.mxu0
    %1918 = vdwg.mxu0
    %v1919 = vmul.f32 %v1916, 0.35355338
    %v1920 = vadd.f32 %v1919, %v693
    %v1921 = vsel %vm215, %v1920, -inf
    %1922 = vmax.xlane.f32.xlu0 %v1921
    %v1923 = vpop.xlane.xlu0 %1922
    %v1924 = vsub.f32 %v1920, %v1923
    %v1925 = vmul.f32 %v1924, 1.442695
    %v1926 = vpow.pop %v1925
    %v1927 = vsel %vm215, %v1926, 0.0
    %1928 = vadd.xlane.f32.xlu0 %v1927
    %v1929 = vpop.xlane.xlu0 %1928
    %v1930 = vrcp.pop %v1929
    %v1931 = vmul.f32 %v1926, %v1930
    %v1932 = vpack.c.bf16 %v1931, %v1931
    %1933 = vrot.lane.b32.xlu0 %v1804, 56
    %v1934 = vpop.permute.xlu0 %1933
    %v1936 = vsel %vm215, %v1932, 0
    %v1939 = vsel %vm219, %v1934, 0
    %1941 = vmatpush.bf16.msra.mxu0 0
    %1942 = vmatpush.bf16.msra.mxu0 0
    %1943 = vmatpush.bf16.msra.mxu0 0
    %1944 = vmatpush.bf16.msra.mxu0 0
    %1945 = vmatpush.bf16.msra.mxu0 0
    %1946 = vmatpush.bf16.msra.mxu0 0
    %1947 = vmatpush.bf16.msra.mxu0 0
    %1948 = vmatpush.bf16.msra.mxu0 %v1939
    %1949 = vmatmul.bf16.gmra.mxu0 %v1936
    %v1950 = vpop.f32.mrf.mxu0
    %v1951 = vadd.f32 0.0, %v1950
    %v1952 = vpop.f32.mrf.mxu0
    %1953 = vdwg.mxu0
    %v1954 = vpack.c.bf16 %v1951, %v1951
    %v1956 = vsel %vm215, %v1954, 0
    %1958 = vmatpush.bf16.msra.mxu0 0
    %1959 = vmatpush.bf16.msra.mxu0 0
    %1960 = vmatpush.bf16.msra.mxu0 0
    %1961 = vmatpush.bf16.msra.mxu0 0
    %1962 = vmatpush.bf16.msra.mxu0 0
    %1963 = vmatpush.bf16.msra.mxu0 0
    %1964 = vmatpush.bf16.msra.mxu0 0
    %1965 = vmatpush.bf16.msra.mxu0 %v1506
    %1966 = vmatmul.bf16.gmra.mxu0 %v1956
    %v1967 = vpop.f32.mrf.mxu0
    %v1968 = vadd.f32 0.0, %v1967
    %v1969 = vpop.f32.mrf.mxu0
    %1970 = vdwg.mxu0
    %v1972 = vsel %vm215, %v1861, 0
    %1974 = vmatpush.bf16.msra.mxu0 0
    %1975 = vmatpush.bf16.msra.mxu0 0
    %1976 = vmatpush.bf16.msra.mxu0 0
    %1977 = vmatpush.bf16.msra.mxu0 0
    %1978 = vmatpush.bf16.msra.mxu0 0
    %1979 = vmatpush.bf16.msra.mxu0 0
    %1980 = vmatpush.bf16.msra.mxu0 0
    %1981 = vmatpush.bf16.msra.mxu0 %v1525
    %1982 = vmatmul.bf16.gmra.mxu0 %v1972
    %v1983 = vpop.f32.mrf.mxu0
    %v1984 = vadd.f32 %v1968, %v1983
    %v1985 = vpop.f32.mrf.mxu0
    %1986 = vdwg.mxu0
    %1987 = vrot.lane.b32.xlu0 %v1306, 80
    %v1988 = vpop.permute.xlu0 %1987
    %1990 = vxpose.xlu0.b32.start [1/16] %v1988, 128
    %1991 = vxpose.xlu0.b32.cont [2/16] 0.0, 128
    %1992 = vxpose.xlu0.b32.cont [3/16] 0.0, 128
    %1993 = vxpose.xlu0.b32.cont [4/16] 0.0, 128
    %1994 = vxpose.xlu0.b32.cont [5/16] 0.0, 128
    %1995 = vxpose.xlu0.b32.cont [6/16] 0.0, 128
    %1996 = vxpose.xlu0.b32.cont [7/16] 0.0, 128
    %1997 = vxpose.xlu0.b32.cont [8/16] 0.0, 128
    %1998 = vxpose.xlu0.b32.cont [9/16] 0.0, 128
    %1999 = vxpose.xlu0.b32.cont [10/16] 0.0, 128
    %2000 = vxpose.xlu0.b32.cont [11/16] 0.0, 128
    %2001 = vxpose.xlu0.b32.cont [12/16] 0.0, 128
    %2002 = vxpose.xlu0.b32.cont [13/16] 0.0, 128
    %2003 = vxpose.xlu0.b32.cont [14/16] 0.0, 128
    %2004 = vxpose.xlu0.b32.cont [15/16] 0.0, 128
    %2005 = vxpose.xlu0.b32.end [16/16] 0.0, 128
    %v2006 = vpop.trf.xlu0
    %v2007 = vpop.trf.xlu0
    %v2008 = vpop.trf.xlu0
    %v2009 = vpop.trf.xlu0
    %v2010 = vpop.trf.xlu0
    %v2011 = vpop.trf.xlu0
    %v2012 = vpop.trf.xlu0
    %v2013 = vpop.trf.xlu0
    %v2014 = vpop.trf.xlu0
    %v2015 = vpop.trf.xlu0
    %v2016 = vpop.trf.xlu0
    %v2017 = vpop.trf.xlu0
    %v2018 = vpop.trf.xlu0
    %v2019 = vpop.trf.xlu0
    %v2020 = vpop.trf.xlu0
    %v2021 = vpop.trf.xlu0
    %v2022 = vpack.c.bf16 %v2006, %v2006
    %2023 = vrot.lane.b32.xlu0 %v1804, 112
    %v2024 = vpop.permute.xlu0 %2023
    %v2026 = vsel %vm215, %v2024, 0
    %v2029 = vsel %vm219, %v2022, 0
    %2031 = vmatpush.bf16.msra.mxu0 0
    %2032 = vmatpush.bf16.msra.mxu0 0
    %2033 = vmatpush.bf16.msra.mxu0 0
    %2034 = vmatpush.bf16.msra.mxu0 0
    %2035 = vmatpush.bf16.msra.mxu0 0
    %2036 = vmatpush.bf16.msra.mxu0 0
    %2037 = vmatpush.bf16.msra.mxu0 0
    %2038 = vmatpush.bf16.msra.mxu0 %v2029
    %2039 = vmatmul.bf16.gmra.mxu0 %v2026
    %v2040 = vpop.f32.mrf.mxu0
    %v2041 = vadd.f32 0.0, %v2040
    %v2042 = vpop.f32.mrf.mxu0
    %2043 = vdwg.mxu0
    %v2044 = vmul.f32 %v2041, 0.35355338
    %v2045 = vadd.f32 %v2044, %v693
    %v2046 = vsel %vm215, %v2045, -inf
    %2047 = vmax.xlane.f32.xlu0 %v2046
    %v2048 = vpop.xlane.xlu0 %2047
    %v2049 = vsub.f32 %v2045, %v2048
    %v2050 = vmul.f32 %v2049, 1.442695
    %v2051 = vpow.pop %v2050
    %v2052 = vsel %vm215, %v2051, 0.0
    %2053 = vadd.xlane.f32.xlu0 %v2052
    %v2054 = vpop.xlane.xlu0 %2053
    %v2055 = vrcp.pop %v2054
    %v2056 = vmul.f32 %v2051, %v2055
    %v2057 = vpack.c.bf16 %v2056, %v2056
    %2058 = vrot.lane.b32.xlu0 %v1804, 48
    %v2059 = vpop.permute.xlu0 %2058
    %v2061 = vsel %vm215, %v2057, 0
    %v2064 = vsel %vm219, %v2059, 0
    %2066 = vmatpush.bf16.msra.mxu0 0
    %2067 = vmatpush.bf16.msra.mxu0 0
    %2068 = vmatpush.bf16.msra.mxu0 0
    %2069 = vmatpush.bf16.msra.mxu0 0
    %2070 = vmatpush.bf16.msra.mxu0 0
    %2071 = vmatpush.bf16.msra.mxu0 0
    %2072 = vmatpush.bf16.msra.mxu0 0
    %2073 = vmatpush.bf16.msra.mxu0 %v2064
    %2074 = vmatmul.bf16.gmra.mxu0 %v2061
    %v2075 = vpop.f32.mrf.mxu0
    %v2076 = vadd.f32 0.0, %v2075
    %v2077 = vpop.f32.mrf.mxu0
    %2078 = vdwg.mxu0
    %v2079 = vpack.c.bf16 %v2076, %v2076
    %v2081 = vsel %vm215, %v2079, 0
    %2083 = vmatpush.bf16.msra.mxu0 0
    %2084 = vmatpush.bf16.msra.mxu0 0
    %2085 = vmatpush.bf16.msra.mxu0 0
    %2086 = vmatpush.bf16.msra.mxu0 0
    %2087 = vmatpush.bf16.msra.mxu0 0
    %2088 = vmatpush.bf16.msra.mxu0 0
    %2089 = vmatpush.bf16.msra.mxu0 0
    %2090 = vmatpush.bf16.msra.mxu0 %v1638
    %2091 = vmatmul.bf16.gmra.mxu0 %v2081
    %v2092 = vpop.f32.mrf.mxu0
    %v2093 = vadd.f32 0.0, %v2092
    %v2094 = vpop.f32.mrf.mxu0
    %2095 = vdwg.mxu0
    %v2096 = vadd.f32 %v1984, %v2093
    %2097 = vrot.lane.b32.xlu0 %v1306, 72
    %v2098 = vpop.permute.xlu0 %2097
    %2100 = vxpose.xlu0.b32.start [1/16] %v2098, 128
    %2101 = vxpose.xlu0.b32.cont [2/16] 0.0, 128
    %2102 = vxpose.xlu0.b32.cont [3/16] 0.0, 128
    %2103 = vxpose.xlu0.b32.cont [4/16] 0.0, 128
    %2104 = vxpose.xlu0.b32.cont [5/16] 0.0, 128
    %2105 = vxpose.xlu0.b32.cont [6/16] 0.0, 128
    %2106 = vxpose.xlu0.b32.cont [7/16] 0.0, 128
    %2107 = vxpose.xlu0.b32.cont [8/16] 0.0, 128
    %2108 = vxpose.xlu0.b32.cont [9/16] 0.0, 128
    %2109 = vxpose.xlu0.b32.cont [10/16] 0.0, 128
    %2110 = vxpose.xlu0.b32.cont [11/16] 0.0, 128
    %2111 = vxpose.xlu0.b32.cont [12/16] 0.0, 128
    %2112 = vxpose.xlu0.b32.cont [13/16] 0.0, 128
    %2113 = vxpose.xlu0.b32.cont [14/16] 0.0, 128
    %2114 = vxpose.xlu0.b32.cont [15/16] 0.0, 128
    %2115 = vxpose.xlu0.b32.end [16/16] 0.0, 128
    %v2116 = vpop.trf.xlu0
    %v2117 = vpop.trf.xlu0
    %v2118 = vpop.trf.xlu0
    %v2119 = vpop.trf.xlu0
    %v2120 = vpop.trf.xlu0
    %v2121 = vpop.trf.xlu0
    %v2122 = vpop.trf.xlu0
    %v2123 = vpop.trf.xlu0
    %v2124 = vpop.trf.xlu0
    %v2125 = vpop.trf.xlu0
    %v2126 = vpop.trf.xlu0
    %v2127 = vpop.trf.xlu0
    %v2128 = vpop.trf.xlu0
    %v2129 = vpop.trf.xlu0
    %v2130 = vpop.trf.xlu0
    %v2131 = vpop.trf.xlu0
    %v2132 = vpack.c.bf16 %v2116, %v2116
    %2133 = vrot.lane.b32.xlu0 %v1804, 104
    %v2134 = vpop.permute.xlu0 %2133
    %v2136 = vsel %vm215, %v2134, 0
    %v2139 = vsel %vm219, %v2132, 0
    %2141 = vmatpush.bf16.msra.mxu0 0
    %2142 = vmatpush.bf16.msra.mxu0 0
    %2143 = vmatpush.bf16.msra.mxu0 0
    %2144 = vmatpush.bf16.msra.mxu0 0
    %2145 = vmatpush.bf16.msra.mxu0 0
    %2146 = vmatpush.bf16.msra.mxu0 0
    %2147 = vmatpush.bf16.msra.mxu0 0
    %2148 = vmatpush.bf16.msra.mxu0 %v2139
    %2149 = vmatmul.bf16.gmra.mxu0 %v2136
    %v2150 = vpop.f32.mrf.mxu0
    %v2151 = vadd.f32 0.0, %v2150
    %v2152 = vpop.f32.mrf.mxu0
    %2153 = vdwg.mxu0
    %v2154 = vmul.f32 %v2151, 0.35355338
    %v2155 = vadd.f32 %v2154, %v693
    %v2156 = vsel %vm215, %v2155, -inf
    %2157 = vmax.xlane.f32.xlu0 %v2156
    %v2158 = vpop.xlane.xlu0 %2157
    %v2159 = vsub.f32 %v2155, %v2158
    %v2160 = vmul.f32 %v2159, 1.442695
    %v2161 = vpow.pop %v2160
    %v2162 = vsel %vm215, %v2161, 0.0
    %2163 = vadd.xlane.f32.xlu0 %v2162
    %v2164 = vpop.xlane.xlu0 %2163
    %v2165 = vrcp.pop %v2164
    %v2166 = vmul.f32 %v2161, %v2165
    %v2167 = vpack.c.bf16 %v2166, %v2166
    %2168 = vrot.lane.b32.xlu0 %v1804, 40
    %v2169 = vpop.permute.xlu0 %2168
    %v2171 = vsel %vm215, %v2167, 0
    %v2174 = vsel %vm219, %v2169, 0
    %2176 = vmatpush.bf16.msra.mxu0 0
    %2177 = vmatpush.bf16.msra.mxu0 0
    %2178 = vmatpush.bf16.msra.mxu0 0
    %2179 = vmatpush.bf16.msra.mxu0 0
    %2180 = vmatpush.bf16.msra.mxu0 0
    %2181 = vmatpush.bf16.msra.mxu0 0
    %2182 = vmatpush.bf16.msra.mxu0 0
    %2183 = vmatpush.bf16.msra.mxu0 %v2174
    %2184 = vmatmul.bf16.gmra.mxu0 %v2171
    %v2185 = vpop.f32.mrf.mxu0
    %v2186 = vadd.f32 0.0, %v2185
    %v2187 = vpop.f32.mrf.mxu0
    %2188 = vdwg.mxu0
    %v2189 = vpack.c.bf16 %v2186, %v2186
    %v2191 = vsel %vm215, %v2189, 0
    %2193 = vmatpush.bf16.msra.mxu0 0
    %2194 = vmatpush.bf16.msra.mxu0 0
    %2195 = vmatpush.bf16.msra.mxu0 0
    %2196 = vmatpush.bf16.msra.mxu0 0
    %2197 = vmatpush.bf16.msra.mxu0 0
    %2198 = vmatpush.bf16.msra.mxu0 0
    %2199 = vmatpush.bf16.msra.mxu0 0
    %2200 = vmatpush.bf16.msra.mxu0 %v1752
    %2201 = vmatmul.bf16.gmra.mxu0 %v2191
    %v2202 = vpop.f32.mrf.mxu0
    %v2203 = vadd.f32 0.0, %v2202
    %v2204 = vpop.f32.mrf.mxu0
    %2205 = vdwg.mxu0
    %v2206 = vadd.f32 %v2096, %v2203
    %s2207 = scalar_lea.vmem %s7, 1
    %v2208 = vld [vmem:[%s2207] sm:$0x1]
    %v2210 = vperm.slane %v2208, 0
    %v2212 = vadd.f32 %v1767, %v2210
    %v2213 = vadd.f32 %v2206, %v2210
    %v2214 = vadd.f32 %v1276, %v2212
    %v2215 = vadd.f32 %v1277, %v2213
    %s2216 = scalar_lea.vmem %s8, 1
    %v2217 = vld [vmem:[%s2216] sm:$0x1]
    %s2218 = scalar_lea.vmem %s9, 1
    %v2219 = vld [vmem:[%s2218] sm:$0x1]
    %v2220 = vsel %vm80, %v2214, 0.0
    %2221 = vadd.xlane.f32.xlu0 %v2220
    %v2222 = vpop.xlane.xlu0 %2221
    %v2223 = vsel %vm80, %v2215, 0.0
    %2224 = vadd.xlane.f32.xlu0 %v2223
    %v2225 = vpop.xlane.xlu0 %2224
    %v2226 = vmul.f32 %v2222, %v93
    %v2227 = vmul.f32 %v2225, %v93
    %v2228 = vsub.f32 %v2214, %v2226
    %v2229 = vsub.f32 %v2215, %v2227
    %v2230 = vmul.f32 %v2228, %v2228
    %v2231 = vmul.f32 %v2229, %v2229
    %v2232 = vsel %vm80, %v2230, 0.0
    %2233 = vadd.xlane.f32.xlu0 %v2232
    %v2234 = vpop.xlane.xlu0 %2233
    %v2235 = vsel %vm80, %v2231, 0.0
    %2236 = vadd.xlane.f32.xlu0 %v2235
    %v2237 = vpop.xlane.xlu0 %2236
    %v2238 = vmul.f32 %v2234, %v93
    %v2239 = vmul.f32 %v2237, %v93
    %v2240 = vadd.f32 %v2238, 1e-12
    %v2241 = vadd.f32 %v2239, 1e-12
    %v2242 = vrsqrt.pop %v2240
    %v2243 = vmul.f32 %v2242, %v2240
    %v2244 = vmul.f32 %v2243, %v2242
    %v2245 = vmul.f32 0.5, %v2244
    %v2246 = vsub.f32 1.5, %v2245
    %v2247 = vmul.f32 %v2242, %v2246
    %vm2248 = vweird.f32 %v2240
    %vm2249 = vweird.f32 %v2242
    %vm2250 = vmor %vm2248, %vm2249
    %v2251 = vsel %vm2250, %v2242, %v2247
    %v2252 = vrsqrt.pop %v2241
    %v2253 = vmul.f32 %v2252, %v2241
    %v2254 = vmul.f32 %v2253, %v2252
    %v2255 = vmul.f32 0.5, %v2254
    %v2256 = vsub.f32 1.5, %v2255
    %v2257 = vmul.f32 %v2252, %v2256
    %vm2258 = vweird.f32 %v2241
    %vm2259 = vweird.f32 %v2252
    %vm2260 = vmor %vm2258, %vm2259
    %v2261 = vsel %vm2260, %v2252, %v2257
    %v2262 = vmul.f32 %v2228, %v2251
    %v2263 = vmul.f32 %v2229, %v2261
    %v2265 = vperm.slane %v2217, 0
    %v2267 = vmul.f32 %v2262, %v2265
    %v2268 = vmul.f32 %v2263, %v2265
    %v2270 = vperm.slane %v2219, 0
    %v2272 = vadd.f32 %v2267, %v2270
    %v2273 = vadd.f32 %v2268, %v2270
    %s2274 = scalar_lea.vmem %s10, 32
    %v2275 = vld [vmem:[%s2274] sm:$0xff]
    %v2276 = vld [vmem:[%s2274 + $0x8] sm:$0xff]
    %v2277 = vld [vmem:[%s2274 + $0x10] sm:$0xff]
    %v2278 = vld [vmem:[%s2274 + $0x18] sm:$0xff]
    %v2279 = vpack.c.bf16 %v2273, %v2272
    %v2280 = vpack.c.bf16 %v2276, %v2275
    %v2281 = vpack.c.bf16 %v2278, %v2277
    %s2282 = scalar_lea.vmem %s11, 1
    %v2283 = vld [vmem:[%s2282] sm:$0x1]
    %v2285 = vperm.slane %v2283, 0
    %v2288 = vsel %vm80, %v2279, 0
    %2290 = vmatpush.bf16.msra.mxu0 0
    %2291 = vmatpush.bf16.msra.mxu0 0
    %2292 = vmatpush.bf16.msra.mxu0 0
    %2293 = vmatpush.bf16.msra.mxu0 0
    %2294 = vmatpush.bf16.msra.mxu0 0
    %2295 = vmatpush.bf16.msra.mxu0 0
    %2296 = vmatpush.bf16.msra.mxu0 %v2281
    %2297 = vmatpush.bf16.msra.mxu0 %v2280
    %2298 = vmatmul.bf16.gmra.mxu0 %v2288
    %v2299 = vpop.f32.mrf.mxu0
    %v2300 = vadd.f32 %v2285, %v2299
    %v2301 = vpop.f32.mrf.mxu0
    %v2302 = vadd.f32 %v2285, %v2301
    %2303 = vdwg.mxu0
    %v2304 = vmul.f32 %v2300, 0.5
    %v2305 = vmul.f32 %v2302, 0.5
    %v2306 = vmul.f32 %v2300, 0.044715
    %v2307 = vmul.f32 %v2302, 0.044715
    %v2308 = vmul.f32 %v2306, %v2300
    %v2309 = vmul.f32 %v2307, %v2302
    %v2310 = vmul.f32 %v2308, %v2300
    %v2311 = vmul.f32 %v2309, %v2302
    %v2312 = vadd.f32 %v2300, %v2310
    %v2313 = vadd.f32 %v2302, %v2311
    %v2314 = vmul.f32 %v2312, 0.7978846
    %v2315 = vmul.f32 %v2313, 0.7978846
    %v2316 = vtanh.pop %v2314
    %v2317 = vtanh.pop %v2315
    %v2318 = vadd.f32 %v2316, 1.0
    %v2319 = vadd.f32 %v2317, 1.0
    %v2320 = vmul.f32 %v2304, %v2318
    %v2321 = vmul.f32 %v2305, %v2319
    %s2322 = scalar_lea.vmem %s12, 64
    %v2323 = vld [vmem:[%s2322] sm:$0xff]
    %v2324 = vld [vmem:[%s2322 + $0x8] sm:$0xff]
    %v2325 = vld [vmem:[%s2322 + $0x10] sm:$0xff]
    %v2326 = vld [vmem:[%s2322 + $0x18] sm:$0xff]
    %v2327 = vld [vmem:[%s2322 + $0x20] sm:$0xff]
    %v2328 = vld [vmem:[%s2322 + $0x28] sm:$0xff]
    %v2329 = vld [vmem:[%s2322 + $0x30] sm:$0xff]
    %v2330 = vld [vmem:[%s2322 + $0x38] sm:$0xff]
    %v2331 = vpack.c.bf16 %v2321, %v2320
    %v2332 = vpack.c.bf16 %v2324, %v2323
    %v2333 = vpack.c.bf16 %v2326, %v2325
    %v2334 = vpack.c.bf16 %v2328, %v2327
    %v2335 = vpack.c.bf16 %v2330, %v2329
    %s2336 = scalar_lea.vmem %s13, 1
    %v2337 = vld [vmem:[%s2336] sm:$0x1]
    %v2339 = vperm.slane %v2337, 0
    %v2342 = vsel %vm1202, %v2331, 0
    %2344 = vmatpush.bf16.msra.mxu0 0
    %2345 = vmatpush.bf16.msra.mxu0 0
    %2346 = vmatpush.bf16.msra.mxu0 0
    %2347 = vmatpush.bf16.msra.mxu0 0
    %2348 = vmatpush.bf16.msra.mxu0 %v2335
    %2349 = vmatpush.bf16.msra.mxu0 %v2334
    %2350 = vmatpush.bf16.msra.mxu0 %v2333
    %2351 = vmatpush.bf16.msra.mxu0 %v2332
    %2352 = vmatmul.bf16.gmra.mxu0 %v2342
    %v2353 = vpop.f32.mrf.mxu0
    %v2354 = vadd.f32 %v2339, %v2353
    %v2355 = vpop.f32.mrf.mxu0
    %v2356 = vadd.f32 %v2339, %v2355
    %2357 = vdwg.mxu0
    %v2358 = vadd.f32 %v2272, %v2354
    %v2359 = vadd.f32 %v2273, %v2356
    %s2360 = scalar_lea.vmem %s14, 1
    %v2361 = vld [vmem:[%s2360] sm:$0x1]
    %s2362 = scalar_lea.vmem %s15, 1
    %v2363 = vld [vmem:[%s2362] sm:$0x1]
    %v2364 = vsel %vm80, %v2358, 0.0
    %2365 = vadd.xlane.f32.xlu0 %v2364
    %v2366 = vpop.xlane.xlu0 %2365
    %v2367 = vsel %vm80, %v2359, 0.0
    %2368 = vadd.xlane.f32.xlu0 %v2367
    %v2369 = vpop.xlane.xlu0 %2368
    %v2370 = vmul.f32 %v2366, %v93
    %v2371 = vmul.f32 %v2369, %v93
    %v2372 = vsub.f32 %v2358, %v2370
    %v2373 = vsub.f32 %v2359, %v2371
    %v2374 = vmul.f32 %v2372, %v2372
    %v2375 = vmul.f32 %v2373, %v2373
    %v2376 = vsel %vm80, %v2374, 0.0
    %2377 = vadd.xlane.f32.xlu0 %v2376
    %v2378 = vpop.xlane.xlu0 %2377
    %v2379 = vsel %vm80, %v2375, 0.0
    %2380 = vadd.xlane.f32.xlu0 %v2379
    %v2381 = vpop.xlane.xlu0 %2380
    %v2382 = vmul.f32 %v2378, %v93
    %v2383 = vmul.f32 %v2381, %v93
    %v2384 = vadd.f32 %v2382, 1e-12
    %v2385 = vadd.f32 %v2383, 1e-12
    %v2386 = vrsqrt.pop %v2384
    %v2387 = vmul.f32 %v2386, %v2384
    %v2388 = vmul.f32 %v2387, %v2386
    %v2389 = vmul.f32 0.5, %v2388
    %v2390 = vsub.f32 1.5, %v2389
    %v2391 = vmul.f32 %v2386, %v2390
    %vm2392 = vweird.f32 %v2384
    %vm2393 = vweird.f32 %v2386
    %vm2394 = vmor %vm2392, %vm2393
    %v2395 = vsel %vm2394, %v2386, %v2391
    %v2396 = vrsqrt.pop %v2385
    %v2397 = vmul.f32 %v2396, %v2385
    %v2398 = vmul.f32 %v2397, %v2396
    %v2399 = vmul.f32 0.5, %v2398
    %v2400 = vsub.f32 1.5, %v2399
    %v2401 = vmul.f32 %v2396, %v2400
    %vm2402 = vweird.f32 %v2385
    %vm2403 = vweird.f32 %v2396
    %vm2404 = vmor %vm2402, %vm2403
    %v2405 = vsel %vm2404, %v2396, %v2401
    %v2406 = vmul.f32 %v2372, %v2395
    %v2407 = vmul.f32 %v2373, %v2405
    %v2409 = vperm.slane %v2361, 0
    %v2411 = vmul.f32 %v2406, %v2409
    %v2412 = vmul.f32 %v2407, %v2409
    %v2414 = vperm.slane %v2363, 0
    %v2416 = vadd.f32 %v2411, %v2414
    %v2417 = vadd.f32 %v2412, %v2414
    %2418 = vst.msk [vmem:[#allocation2] sm:$0xff] %vm80, %v2416
    %2419 = vst.msk [vmem:[#allocation2 + $0x8] sm:$0xff] %vm80, %v2417
    %v2421 = vrot.slane %v2417, 7
    %vm2423 = vcmask 1040384
    %v2424 = vsel %vm2423, %v2416, %v2421
    %v2425 = vld [vmem:[%s16] sm:$0xff]
    %v2426 = vld [vmem:[%s16 + $0x8] sm:$0xff]
    %v2427 = vld [vmem:[%s16 + $0x10] sm:$0xff]
    %v2428 = vld [vmem:[%s16 + $0x18] sm:$0xff]
    %v2429 = vpack.c.bf16 %v2424, %v2424
    %v2430 = vpack.c.bf16 %v2426, %v2425
    %v2431 = vpack.c.bf16 %v2428, %v2427
    %v2432 = vld [vmem:[%s17] sm:$0x1]
    %v2434 = vperm.slane %v2432, 0
    %v2437 = vsel %vm80, %v2429, 0
    %2439 = vmatpush.bf16.msra.mxu0 0
    %2440 = vmatpush.bf16.msra.mxu0 0
    %2441 = vmatpush.bf16.msra.mxu0 0
    %2442 = vmatpush.bf16.msra.mxu0 0
    %2443 = vmatpush.bf16.msra.mxu0 0
    %2444 = vmatpush.bf16.msra.mxu0 0
    %2445 = vmatpush.bf16.msra.mxu0 %v2431
    %2446 = vmatpush.bf16.msra.mxu0 %v2430
    %2447 = vmatmul.bf16.gmra.mxu0 %v2437
    %v2448 = vpop.f32.mrf.mxu0
    %v2449 = vadd.f32 %v2434, %v2448
    %v2450 = vpop.f32.mrf.mxu0
    %2451 = vdwg.mxu0
    %v2452 = vtanh.pop %v2449
    %v2453 = vld [vmem:[%s18] sm:$0xff]
    %v2454 = vld [vmem:[%s18 + $0x8] sm:$0xff]
    %v2455 = vld [vmem:[%s18 + $0x10] sm:$0xff]
    %v2456 = vld [vmem:[%s18 + $0x18] sm:$0xff]
    %v2457 = vpack.c.bf16 %v2452, %v2452
    %v2458 = vpack.c.bf16 %v2454, %v2453
    %v2459 = vpack.c.bf16 %v2456, %v2455
    %v2460 = vld [vmem:[%s19] sm:$0x1]
    %v2462 = vperm.slane %v2460, 0
    %v2465 = vsel %vm80, %v2457, 0
    %2467 = vmatpush.bf16.msra.mxu0 0
    %2468 = vmatpush.bf16.msra.mxu0 0
    %2469 = vmatpush.bf16.msra.mxu0 0
    %2470 = vmatpush.bf16.msra.mxu0 0
    %2471 = vmatpush.bf16.msra.mxu0 0
    %2472 = vmatpush.bf16.msra.mxu0 0
    %2473 = vmatpush.bf16.msra.mxu0 %v2459
    %2474 = vmatpush.bf16.msra.mxu0 %v2458
    %2475 = vmatmul.bf16.gmra.mxu0 %v2465
    %v2476 = vpop.f32.mrf.mxu0
    %v2477 = vadd.f32 %v2462, %v2476
    %v2478 = vpop.f32.mrf.mxu0
    %2479 = vdwg.mxu0
    %vm2480 = vcmask 17408
    %2481 = vst.msk [vmem:[%s23] sm:$0x3] %vm2480, %v2477
    %v2482 = vld [vmem:[%s20] sm:$0xff]
    %v2483 = vld [vmem:[%s20 + $0x8] sm:$0xff]
    %v2484 = vld [vmem:[%s20 + $0x10] sm:$0xff]
    %v2485 = vld [vmem:[%s20 + $0x18] sm:$0xff]
    %v2486 = vpack.c.bf16 %v2483, %v2482
    %v2487 = vpack.c.bf16 %v2485, %v2484
    %v2488 = vld [vmem:[%s21] sm:$0x1]
    %v2490 = vperm.slane %v2488, 0
    %2492 = vmatpush.bf16.msra.mxu0 0
    %2493 = vmatpush.bf16.msra.mxu0 0
    %2494 = vmatpush.bf16.msra.mxu0 0
    %2495 = vmatpush.bf16.msra.mxu0 0
    %2496 = vmatpush.bf16.msra.mxu0 0
    %2497 = vmatpush.bf16.msra.mxu0 0
    %2498 = vmatpush.bf16.msra.mxu0 %v2487
    %2499 = vmatpush.bf16.msra.mxu0 %v2486
    %2500 = vmatmul.bf16.gmra.mxu0 %v2437
    %v2501 = vpop.f32.mrf.mxu0
    %v2502 = vadd.f32 %v2490, %v2501
    %v2503 = vpop.f32.mrf.mxu0
    %2504 = vdwg.mxu0
    %v2505 = vxor.u32 %v2502, 2147483648
    %v2506 = vmul.f32 %v2505, 1.442695
    %v2507 = vpow.pop %v2506
    %v2508 = vadd.f32 %v2507, 1.0
    %v2509 = vrcp.pop %v2508
    %v2510 = vmul.f32 %v2508, %v2509
    %v2511 = vsub.f32 1.0, %v2510
    %v2512 = vmul.f32 %v2509, %v2511
    %v2513 = vadd.f32 %v2509, %v2512
    %vm2514 = vweird.f32 %v2508
    %vm2515 = vweird.f32 %v2509
    %vm2516 = vmor %vm2514, %vm2515
    %v2517 = vsel %vm2516, %v2509, %v2513
    %v2518 = vand.u32 2147483647, %v2508
    %vm2519 = vcmp.eq.f32.partialorder %v2518, 8.507059e+37
    %v2520 = vand.u32 %v2508, 2147483648
    %v2521 = vor.u32 1.1754944e-38, %v2520
    %v2522 = vsel %vm2519, %v2521, %v2517
    %v2523 = vmul.f32 1.0, %v2522
    %vm2524 = vcmask 58368
    %2525 = vst.msk [vmem:[%s24] sm:$0x3] %vm2524, %v2523
    // Predicated region
    $region90: #{run.2} parent=1 // pred_check
      _
    $region91: #{run.2} parent=1 // pred_check_branch
      %2527 = sbr.rel (0) target = $region93
    $region92: #{run.2} parent=1 // pred_region
      %2529 = vsyncadd [#allocation3], 0
      %s2530 = sshll.u32 [#allocation2], 4
      %s2531 = int_to_ptr.vmem [resolvable:$true] %s2530
      %s2532 = sshll.u32 %s22, 4
      %s2533 = int_to_ptr.hbm [resolvable:$true] %s2532
      %2538 = dma.vmem_to_hbm [thread:$0]  %s2531, 256, %s2533, [#allocation3], 128, 128, 8
    $region93: #{run.2} parent=1 // pred_fallthru
      _
    // Predicated region
    $region94: #{run.2} parent=1 // pred_check
      _
    $region95: #{run.2} parent=1 // pred_check_branch
      %2540 = sbr.rel (0) target = $region97
    $region96: #{run.2} parent=1 // pred_region
      _
    $region97: #{run.2} parent=1 // pred_fallthru
      _
    // Predicated region
    $region98: #{run.2} parent=1 // pred_check
      _
    $region99: #{run.2} parent=1 // pred_check_branch
      %2542 = sbr.rel (0) target = $region101
    $region100: #{run.2} parent=1 // pred_region
      _
    $region101: #{run.2} parent=1 // pred_fallthru
      _
    // Predicated region
    $region102: #{run.2} parent=1 // pred_check
      _
    $region103: #{run.2} parent=1 // pred_check_branch
      %2544 = sbr.rel (0) target = $region105
    $region104: #{run.2} parent=1 // pred_region
      %2546 = dma.done [#allocation3], 256
    $region105: #{run.2} parent=1 // pred_fallthru
      _
    // Predicated region
    $region106: #{run.2} parent=1 // pred_check
      _
    $region107: #{run.2} parent=1 // pred_check_branch
      %2548 = sbr.rel (0) target = $region109
    $region108: #{run.2} parent=1 // pred_region
      _
    $region109: #{run.2} parent=1 // pred_fallthru
      _
    // Predicated region
    $region110: #{run.2} parent=1 // pred_check
      _
    $region111: #{run.2} parent=1 // pred_check_branch
      %2550 = sbr.rel (0) target = $region113
    $region112: #{run.2} parent=1 // pred_region
      _
    $region113: #{run.2} parent=1 // pred_fallthru
      _
    %2551 = vsyncpa [#allocation3], 1

// kernel: run.3
$region0: #{run.3}
  #allocation0 [shape = 'u32[]', space=smem, size = 0x4, offset = 0x4, fixed_abs, tag = 'smem constant byte address 0x4 - core index']
  #allocation1 [shape = 'u32[72,128]{1,0:T(1,128)}', space=vmem, size = 0x9000, scoped, tag = 'internal scratch']
  %s0 = inlined_call_operand.vmem [shape: f32[16,32], index: 0, kind: input, shape index: {}]
  %s1 = inlined_call_operand.vmem [shape: f32[2,8], index: 1, kind: input, shape index: {}]
  %s2 = inlined_call_operand.vmem [shape: f32[1,32], index: 2, kind: input, shape index: {}]
  %s3 = inlined_call_operand.vmem [shape: f32[1,32], index: 3, kind: input, shape index: {}]
  %s4 = inlined_call_operand.vmem [shape: f32[2,32,96], index: 4, kind: input, shape index: {}]
  %s5 = inlined_call_operand.vmem [shape: f32[2,1,96], index: 5, kind: input, shape index: {}]
  %s6 = inlined_call_operand.vmem [shape: f32[2,32,32], index: 6, kind: input, shape index: {}]
  %s7 = inlined_call_operand.vmem [shape: f32[2,1,32], index: 7, kind: input, shape index: {}]
  %s8 = inlined_call_operand.vmem [shape: f32[2,1,32], index: 8, kind: input, shape index: {}]
  %s9 = inlined_call_operand.vmem [shape: f32[2,1,32], index: 9, kind: input, shape index: {}]
  %s10 = inlined_call_operand.vmem [shape: f32[2,32,64], index: 10, kind: input, shape index: {}]
  %s11 = inlined_call_operand.vmem [shape: f32[2,1,64], index: 11, kind: input, shape index: {}]
  %s12 = inlined_call_operand.vmem [shape: f32[2,64,32], index: 12, kind: input, shape index: {}]
  %s13 = inlined_call_operand.vmem [shape: f32[2,1,32], index: 13, kind: input, shape index: {}]
  %s14 = inlined_call_operand.vmem [shape: f32[2,1,32], index: 14, kind: input, shape index: {}]
  %s15 = inlined_call_operand.vmem [shape: f32[2,1,32], index: 15, kind: input, shape index: {}]
  %s16 = inlined_call_operand.vmem [shape: f32[32,32], index: 16, kind: input, shape index: {}]
  %s17 = inlined_call_operand.vmem [shape: f32[1,32], index: 17, kind: input, shape index: {}]
  %s18 = inlined_call_operand.vmem [shape: f32[32,3], index: 18, kind: input, shape index: {}]
  %s19 = inlined_call_operand.vmem [shape: f32[1,3], index: 19, kind: input, shape index: {}]
  %s20 = inlined_call_operand.vmem [shape: f32[32,8], index: 20, kind: input, shape index: {}]
  %s21 = inlined_call_operand.vmem [shape: f32[1,8], index: 21, kind: input, shape index: {}]
  %s22 = inlined_call_operand.hbm [shape: f32[16,32], index: 22, kind: output, shape index: {0}]
  %s23 = inlined_call_operand.vmem [shape: f32[2,3], index: 23, kind: output, shape index: {1}]
  %s24 = inlined_call_operand.hbm [shape: f32[2,8], index: 24, kind: output, shape index: {2}]
  %25 = xla_tuple %s22, %s23, %s24
  %s26 = sld [smem:[#allocation0]]
  $region114: #{run.3} parent=0
    _
  %s28 = ssub.s32 1, %s26
  %s29 = scalar_select 0, %s28, %s26
  $region1: #{run.3} parent=0
    #allocation2 [shape = 'u8[8192]{0}', space=vmem, size = 0x2000, scoped, tag = 'output window, operand 0, single buffered']
    #allocation3 [shape = 's32[1]{0}', space=sflag, size = 0x4, scoped, tag = 'scoped memory for run.3']
    #allocation4 [shape = 'u8[1024]{0}', space=vmem, size = 0x400, scoped, tag = 'output window, operand 2, single buffered']
    #allocation5 [shape = 's32[1]{0}', space=sflag, size = 0x4, scoped, tag = 'scoped memory for run.3']
    %30 = vsyncpa [#allocation3], 0
    %31 = vsyncpa [#allocation5], 0
    // Predicated region
    $region2: #{run.3} parent=1 // pred_check
      _
    $region3: #{run.3} parent=1 // pred_check_branch
      %33 = sbr.rel (0) target = $region5
    $region4: #{run.3} parent=1 // pred_region
      _
    $region5: #{run.3} parent=1 // pred_fallthru
      _
    // Predicated region
    $region6: #{run.3} parent=1 // pred_check
      _
    $region7: #{run.3} parent=1 // pred_check_branch
      %35 = sbr.rel (0) target = $region9
    $region8: #{run.3} parent=1 // pred_region
      _
    $region9: #{run.3} parent=1 // pred_fallthru
      _
    // Predicated region
    $region10: #{run.3} parent=1 // pred_check
      _
    $region11: #{run.3} parent=1 // pred_check_branch
      %37 = sbr.rel (0) target = $region13
    $region12: #{run.3} parent=1 // pred_region
      _
    $region13: #{run.3} parent=1 // pred_fallthru
      _
    // Predicated region
    $region14: #{run.3} parent=1 // pred_check
      _
    $region15: #{run.3} parent=1 // pred_check_branch
      %39 = sbr.rel (0) target = $region17
    $region16: #{run.3} parent=1 // pred_region
      _
    $region17: #{run.3} parent=1 // pred_fallthru
      _
    // Predicated region
    $region18: #{run.3} parent=1 // pred_check
      _
    $region19: #{run.3} parent=1 // pred_check_branch
      %41 = sbr.rel (0) target = $region21
    $region20: #{run.3} parent=1 // pred_region
      _
    $region21: #{run.3} parent=1 // pred_fallthru
      _
    // Predicated region
    $region22: #{run.3} parent=1 // pred_check
      _
    $region23: #{run.3} parent=1 // pred_check_branch
      %43 = sbr.rel (0) target = $region25
    $region24: #{run.3} parent=1 // pred_region
      _
    $region25: #{run.3} parent=1 // pred_fallthru
      _
    // Predicated region
    $region26: #{run.3} parent=1 // pred_check
      _
    $region27: #{run.3} parent=1 // pred_check_branch
      %45 = sbr.rel (0) target = $region29
    $region28: #{run.3} parent=1 // pred_region
      _
    $region29: #{run.3} parent=1 // pred_fallthru
      _
    // Predicated region
    $region30: #{run.3} parent=1 // pred_check
      _
    $region31: #{run.3} parent=1 // pred_check_branch
      %47 = sbr.rel (0) target = $region33
    $region32: #{run.3} parent=1 // pred_region
      _
    $region33: #{run.3} parent=1 // pred_fallthru
      _
    // Predicated region
    $region34: #{run.3} parent=1 // pred_check
      _
    $region35: #{run.3} parent=1 // pred_check_branch
      %49 = sbr.rel (0) target = $region37
    $region36: #{run.3} parent=1 // pred_region
      _
    $region37: #{run.3} parent=1 // pred_fallthru
      _
    // Predicated region
    $region38: #{run.3} parent=1 // pred_check
      _
    $region39: #{run.3} parent=1 // pred_check_branch
      %51 = sbr.rel (0) target = $region41
    $region40: #{run.3} parent=1 // pred_region
      _
    $region41: #{run.3} parent=1 // pred_fallthru
      _
    // Predicated region
    $region42: #{run.3} parent=1 // pred_check
      _
    $region43: #{run.3} parent=1 // pred_check_branch
      %53 = sbr.rel (0) target = $region45
    $region44: #{run.3} parent=1 // pred_region
      _
    $region45: #{run.3} parent=1 // pred_fallthru
      _
    // Predicated region
    $region46: #{run.3} parent=1 // pred_check
      _
    $region47: #{run.3} parent=1 // pred_check_branch
      %55 = sbr.rel (0) target = $region49
    $region48: #{run.3} parent=1 // pred_region
      _
    $region49: #{run.3} parent=1 // pred_fallthru
      _
    // Predicated region
    $region50: #{run.3} parent=1 // pred_check
      _
    $region51: #{run.3} parent=1 // pred_check_branch
      %57 = sbr.rel (0) target = $region53
    $region52: #{run.3} parent=1 // pred_region
      _
    $region53: #{run.3} parent=1 // pred_fallthru
      _
    // Predicated region
    $region54: #{run.3} parent=1 // pred_check
      _
    $region55: #{run.3} parent=1 // pred_check_branch
      %59 = sbr.rel (0) target = $region57
    $region56: #{run.3} parent=1 // pred_region
      _
    $region57: #{run.3} parent=1 // pred_fallthru
      _
    // Predicated region
    $region58: #{run.3} parent=1 // pred_check
      _
    $region59: #{run.3} parent=1 // pred_check_branch
      %61 = sbr.rel (0) target = $region61
    $region60: #{run.3} parent=1 // pred_region
      _
    $region61: #{run.3} parent=1 // pred_fallthru
      _
    // Predicated region
    $region62: #{run.3} parent=1 // pred_check
      _
    $region63: #{run.3} parent=1 // pred_check_branch
      %63 = sbr.rel (0) target = $region65
    $region64: #{run.3} parent=1 // pred_region
      _
    $region65: #{run.3} parent=1 // pred_fallthru
      _
    // Predicated region
    $region66: #{run.3} parent=1 // pred_check
      _
    $region67: #{run.3} parent=1 // pred_check_branch
      %65 = sbr.rel (0) target = $region69
    $region68: #{run.3} parent=1 // pred_region
      _
    $region69: #{run.3} parent=1 // pred_fallthru
      _
    // Predicated region
    $region70: #{run.3} parent=1 // pred_check
      _
    $region71: #{run.3} parent=1 // pred_check_branch
      %67 = sbr.rel (0) target = $region73
    $region72: #{run.3} parent=1 // pred_region
      _
    $region73: #{run.3} parent=1 // pred_fallthru
      _
    // Predicated region
    $region74: #{run.3} parent=1 // pred_check
      _
    $region75: #{run.3} parent=1 // pred_check_branch
      %69 = sbr.rel (0) target = $region77
    $region76: #{run.3} parent=1 // pred_region
      _
    $region77: #{run.3} parent=1 // pred_fallthru
      _
    // Predicated region
    $region78: #{run.3} parent=1 // pred_check
      _
    $region79: #{run.3} parent=1 // pred_check_branch
      %71 = sbr.rel (0) target = $region81
    $region80: #{run.3} parent=1 // pred_region
      _
    $region81: #{run.3} parent=1 // pred_fallthru
      _
    // Predicated region
    $region82: #{run.3} parent=1 // pred_check
      _
    $region83: #{run.3} parent=1 // pred_check_branch
      %73 = sbr.rel (0) target = $region85
    $region84: #{run.3} parent=1 // pred_region
      _
    $region85: #{run.3} parent=1 // pred_fallthru
      _
    // Predicated region
    $region86: #{run.3} parent=1 // pred_check
      _
    $region87: #{run.3} parent=1 // pred_check_branch
      %75 = sbr.rel (0) target = $region89
    $region88: #{run.3} parent=1 // pred_region
      _
    $region89: #{run.3} parent=1 // pred_fallthru
      _
    %v77 = vld [vmem:[%s0] sm:$0xff]
    %v78 = vld [vmem:[%s0 + $0x8] sm:$0xff]
    %v79 = vld [vmem:[%s2] sm:$0x1]
    %v80 = vld [vmem:[%s3] sm:$0x1]
    %vm81 = vcmask 261120
    %v82 = vsel %vm81, %v77, 0.0
    %83 = vadd.xlane.f32.xlu0 %v82
    %v84 = vpop.xlane.xlu0 %83
    %v85 = vsel %vm81, %v78, 0.0
    %86 = vadd.xlane.f32.xlu0 %v85
    %v87 = vpop.xlane.xlu0 %86
    %v88 = vrcp.pop 32.0
    %v89 = vmul.f32 32.0, %v88
    %v90 = vsub.f32 1.0, %v89
    %v91 = vmul.f32 %v88, %v90
    %v92 = vadd.f32 %v88, %v91
    %vm93 = vweird.f32 %v88
    %v94 = vsel %vm93, %v88, %v92
    %v95 = vmul.f32 %v84, %v94
    %v96 = vmul.f32 %v87, %v94
    %v97 = vsub.f32 %v77, %v95
    %v98 = vsub.f32 %v78, %v96
    %v99 = vmul.f32 %v97, %v97
    %v100 = vmul.f32 %v98, %v98
    %v101 = vsel %vm81, %v99, 0.0
    %102 = vadd.xlane.f32.xlu0 %v101
    %v103 = vpop.xlane.xlu0 %102
    %v104 = vsel %vm81, %v100, 0.0
    %105 = vadd.xlane.f32.xlu0 %v104
    %v106 = vpop.xlane.xlu0 %105
    %v107 = vmul.f32 %v103, %v94
    %v108 = vmul.f32 %v106, %v94
    %v109 = vadd.f32 %v107, 1e-12
    %v110 = vadd.f32 %v108, 1e-12
    %v111 = vrsqrt.pop %v109
    %v112 = vmul.f32 %v111, %v109
    %v113 = vmul.f32 %v112, %v111
    %v114 = vmul.f32 0.5, %v113
    %v115 = vsub.f32 1.5, %v114
    %v116 = vmul.f32 %v111, %v115
    %vm117 = vweird.f32 %v109
    %vm118 = vweird.f32 %v111
    %vm119 = vmor %vm117, %vm118
    %v120 = vsel %vm119, %v111, %v116
    %v121 = vrsqrt.pop %v110
    %v122 = vmul.f32 %v121, %v110
    %v123 = vmul.f32 %v122, %v121
    %v124 = vmul.f32 0.5, %v123
    %v125 = vsub.f32 1.5, %v124
    %v126 = vmul.f32 %v121, %v125
    %vm127 = vweird.f32 %v110
    %vm128 = vweird.f32 %v121
    %vm129 = vmor %vm127, %vm128
    %v130 = vsel %vm129, %v121, %v126
    %v131 = vmul.f32 %v97, %v120
    %v132 = vmul.f32 %v98, %v130
    %v134 = vperm.slane %v79, 0
    %v136 = vmul.f32 %v131, %v134
    %v137 = vmul.f32 %v132, %v134
    %v139 = vperm.slane %v80, 0
    %v141 = vadd.f32 %v136, %v139
    %v142 = vadd.f32 %v137, %v139
    %v143 = vld [vmem:[%s1] sm:$0x3]
    %v144 = vsub.f32 1.0, %v143
    %v145 = vmul.f32 %v144, -10000.0
    %v146 = vld [vmem:[%s4] sm:$0xff]
    %v147 = vld [vmem:[%s4 + $0x8] sm:$0xff]
    %v148 = vld [vmem:[%s4 + $0x10] sm:$0xff]
    %v149 = vld [vmem:[%s4 + $0x18] sm:$0xff]
    %v150 = vpack.c.bf16 %v142, %v141
    %v151 = vpack.c.bf16 %v147, %v146
    %v152 = vpack.c.bf16 %v149, %v148
    %v153 = vld [vmem:[%s5] sm:$0x1]
    %v155 = vperm.slane %v153, 0
    %v158 = vsel %vm81, %v150, 0
    %160 = vmatpush.bf16.msra.mxu0 0
    %161 = vmatpush.bf16.msra.mxu0 0
    %162 = vmatpush.bf16.msra.mxu0 0
    %163 = vmatpush.bf16.msra.mxu0 0
    %164 = vmatpush.bf16.msra.mxu0 0
    %165 = vmatpush.bf16.msra.mxu0 0
    %166 = vmatpush.bf16.msra.mxu0 %v152
    %167 = vmatpush.bf16.msra.mxu0 %v151
    %168 = vmatmul.bf16.gmra.mxu0 %v158
    %v169 = vpop.f32.mrf.mxu0
    %v170 = vadd.f32 %v155, %v169
    %v171 = vpop.f32.mrf.mxu0
    %v172 = vadd.f32 %v155, %v171
    %173 = vdwg.mxu0
    %v174 = vld [vmem:[%s6] sm:$0xff]
    %v175 = vld [vmem:[%s6 + $0x8] sm:$0xff]
    %v176 = vld [vmem:[%s6 + $0x10] sm:$0xff]
    %v177 = vld [vmem:[%s6 + $0x18] sm:$0xff]
    %179 = vrot.lane.b32.xlu0 %v170, 96
    %v180 = vpop.permute.xlu0 %179
    %182 = vxpose.xlu0.b32.start [1/16] %v180, 128
    %183 = vxpose.xlu0.b32.cont [2/16] 0.0, 128
    %184 = vxpose.xlu0.b32.cont [3/16] 0.0, 128
    %185 = vxpose.xlu0.b32.cont [4/16] 0.0, 128
    %186 = vxpose.xlu0.b32.cont [5/16] 0.0, 128
    %187 = vxpose.xlu0.b32.cont [6/16] 0.0, 128
    %188 = vxpose.xlu0.b32.cont [7/16] 0.0, 128
    %189 = vxpose.xlu0.b32.cont [8/16] 0.0, 128
    %190 = vxpose.xlu0.b32.cont [9/16] 0.0, 128
    %191 = vxpose.xlu0.b32.cont [10/16] 0.0, 128
    %192 = vxpose.xlu0.b32.cont [11/16] 0.0, 128
    %193 = vxpose.xlu0.b32.cont [12/16] 0.0, 128
    %194 = vxpose.xlu0.b32.cont [13/16] 0.0, 128
    %195 = vxpose.xlu0.b32.cont [14/16] 0.0, 128
    %196 = vxpose.xlu0.b32.cont [15/16] 0.0, 128
    %197 = vxpose.xlu0.b32.end [16/16] 0.0, 128
    %v198 = vpop.trf.xlu0
    %v199 = vpop.trf.xlu0
    %v200 = vpop.trf.xlu0
    %v201 = vpop.trf.xlu0
    %v202 = vpop.trf.xlu0
    %v203 = vpop.trf.xlu0
    %v204 = vpop.trf.xlu0
    %v205 = vpop.trf.xlu0
    %v206 = vpop.trf.xlu0
    %v207 = vpop.trf.xlu0
    %v208 = vpop.trf.xlu0
    %v209 = vpop.trf.xlu0
    %v210 = vpop.trf.xlu0
    %v211 = vpop.trf.xlu0
    %v212 = vpop.trf.xlu0
    %v213 = vpop.trf.xlu0
    %v214 = vpack.c.bf16 %v170, %v170
    %v215 = vpack.c.bf16 %v198, %v198
    %vm216 = vcmask 64512
    %v218 = vsel %vm216, %v214, 0
    %vm220 = vcmask 1043456
    %v222 = vsel %vm220, %v215, 0
    %224 = vmatpush.bf16.msra.mxu0 0
    %225 = vmatpush.bf16.msra.mxu0 0
    %226 = vmatpush.bf16.msra.mxu0 0
    %227 = vmatpush.bf16.msra.mxu0 0
    %228 = vmatpush.bf16.msra.mxu0 0
    %229 = vmatpush.bf16.msra.mxu0 0
    %230 = vmatpush.bf16.msra.mxu0 0
    %231 = vmatpush.bf16.msra.mxu0 %v222
    %232 = vmatmul.bf16.gmra.mxu0 %v218
    %v233 = vpop.f32.mrf.mxu0
    %v234 = vadd.f32 0.0, %v233
    %v235 = vpop.f32.mrf.mxu0
    %236 = vdwg.mxu0
    %v237 = vmul.f32 %v234, 0.35355338
    %v238 = vperm.slane %v145, 0
    %v239 = vadd.f32 %v237, %v238
    %v240 = vsel %vm216, %v239, -inf
    %241 = vmax.xlane.f32.xlu0 %v240
    %v242 = vpop.xlane.xlu0 %241
    %v243 = vsub.f32 %v239, %v242
    %v244 = vmul.f32 %v243, 1.442695
    %v245 = vpow.pop %v244
    %v246 = vsel %vm216, %v245, 0.0
    %247 = vadd.xlane.f32.xlu0 %v246
    %v248 = vpop.xlane.xlu0 %247
    %v249 = vrcp.pop %v248
    %v250 = vmul.f32 %v245, %v249
    %v251 = vpack.c.bf16 %v250, %v250
    %253 = vrot.lane.b32.xlu0 %v214, 64
    %v254 = vpop.permute.xlu0 %253
    %v256 = vsel %vm216, %v251, 0
    %v259 = vsel %vm220, %v254, 0
    %261 = vmatpush.bf16.msra.mxu0 0
    %262 = vmatpush.bf16.msra.mxu0 0
    %263 = vmatpush.bf16.msra.mxu0 0
    %264 = vmatpush.bf16.msra.mxu0 0
    %265 = vmatpush.bf16.msra.mxu0 0
    %266 = vmatpush.bf16.msra.mxu0 0
    %267 = vmatpush.bf16.msra.mxu0 0
    %268 = vmatpush.bf16.msra.mxu0 %v259
    %269 = vmatmul.bf16.gmra.mxu0 %v256
    %v270 = vpop.f32.mrf.mxu0
    %v271 = vadd.f32 0.0, %v270
    %v272 = vpop.f32.mrf.mxu0
    %273 = vdwg.mxu0
    %v274 = vpack.c.bf16 %v271, %v271
    %v275 = vpack.c.bf16 %v174, %v174
    %276 = vrot.lane.b32.xlu0 %v170, 88
    %v277 = vpop.permute.xlu0 %276
    %279 = vxpose.xlu0.b32.start [1/16] %v277, 128
    %280 = vxpose.xlu0.b32.cont [2/16] 0.0, 128
    %281 = vxpose.xlu0.b32.cont [3/16] 0.0, 128
    %282 = vxpose.xlu0.b32.cont [4/16] 0.0, 128
    %283 = vxpose.xlu0.b32.cont [5/16] 0.0, 128
    %284 = vxpose.xlu0.b32.cont [6/16] 0.0, 128
    %285 = vxpose.xlu0.b32.cont [7/16] 0.0, 128
    %286 = vxpose.xlu0.b32.cont [8/16] 0.0, 128
    %287 = vxpose.xlu0.b32.cont [9/16] 0.0, 128
    %288 = vxpose.xlu0.b32.cont [10/16] 0.0, 128
    %289 = vxpose.xlu0.b32.cont [11/16] 0.0, 128
    %290 = vxpose.xlu0.b32.cont [12/16] 0.0, 128
    %291 = vxpose.xlu0.b32.cont [13/16] 0.0, 128
    %292 = vxpose.xlu0.b32.cont [14/16] 0.0, 128
    %293 = vxpose.xlu0.b32.cont [15/16] 0.0, 128
    %294 = vxpose.xlu0.b32.end [16/16] 0.0, 128
    %v295 = vpop.trf.xlu0
    %v296 = vpop.trf.xlu0
    %v297 = vpop.trf.xlu0
    %v298 = vpop.trf.xlu0
    %v299 = vpop.trf.xlu0
    %v300 = vpop.trf.xlu0
    %v301 = vpop.trf.xlu0
    %v302 = vpop.trf.xlu0
    %v303 = vpop.trf.xlu0
    %v304 = vpop.trf.xlu0
    %v305 = vpop.trf.xlu0
    %v306 = vpop.trf.xlu0
    %v307 = vpop.trf.xlu0
    %v308 = vpop.trf.xlu0
    %v309 = vpop.trf.xlu0
    %v310 = vpop.trf.xlu0
    %v311 = vpack.c.bf16 %v295, %v295
    %312 = vrot.lane.b32.xlu0 %v214, 120
    %v313 = vpop.permute.xlu0 %312
    %v315 = vsel %vm216, %v313, 0
    %v318 = vsel %vm220, %v311, 0
    %320 = vmatpush.bf16.msra.mxu0 0
    %321 = vmatpush.bf16.msra.mxu0 0
    %322 = vmatpush.bf16.msra.mxu0 0
    %323 = vmatpush.bf16.msra.mxu0 0
    %324 = vmatpush.bf16.msra.mxu0 0
    %325 = vmatpush.bf16.msra.mxu0 0
    %326 = vmatpush.bf16.msra.mxu0 0
    %327 = vmatpush.bf16.msra.mxu0 %v318
    %328 = vmatmul.bf16.gmra.mxu0 %v315
    %v329 = vpop.f32.mrf.mxu0
    %v330 = vadd.f32 0.0, %v329
    %v331 = vpop.f32.mrf.mxu0
    %332 = vdwg.mxu0
    %v333 = vmul.f32 %v330, 0.35355338
    %v334 = vadd.f32 %v333, %v238
    %v335 = vsel %vm216, %v334, -inf
    %336 = vmax.xlane.f32.xlu0 %v335
    %v337 = vpop.xlane.xlu0 %336
    %v338 = vsub.f32 %v334, %v337
    %v339 = vmul.f32 %v338, 1.442695
    %v340 = vpow.pop %v339
    %v341 = vsel %vm216, %v340, 0.0
    %342 = vadd.xlane.f32.xlu0 %v341
    %v343 = vpop.xlane.xlu0 %342
    %v344 = vrcp.pop %v343
    %v345 = vmul.f32 %v340, %v344
    %v346 = vpack.c.bf16 %v345, %v345
    %347 = vrot.lane.b32.xlu0 %v214, 56
    %v348 = vpop.permute.xlu0 %347
    %v350 = vsel %vm216, %v346, 0
    %v353 = vsel %vm220, %v348, 0
    %355 = vmatpush.bf16.msra.mxu0 0
    %356 = vmatpush.bf16.msra.mxu0 0
    %357 = vmatpush.bf16.msra.mxu0 0
    %358 = vmatpush.bf16.msra.mxu0 0
    %359 = vmatpush.bf16.msra.mxu0 0
    %360 = vmatpush.bf16.msra.mxu0 0
    %361 = vmatpush.bf16.msra.mxu0 0
    %362 = vmatpush.bf16.msra.mxu0 %v353
    %363 = vmatmul.bf16.gmra.mxu0 %v350
    %v364 = vpop.f32.mrf.mxu0
    %v365 = vadd.f32 0.0, %v364
    %v366 = vpop.f32.mrf.mxu0
    %367 = vdwg.mxu0
    %v368 = vpack.c.bf16 %v365, %v365
    %v369 = vpack.c.bf16 %v175, %v175
    %v371 = vsel %vm216, %v368, 0
    %v374 = vsel %vm220, %v369, 0
    %376 = vmatpush.bf16.msra.mxu0 0
    %377 = vmatpush.bf16.msra.mxu0 0
    %378 = vmatpush.bf16.msra.mxu0 0
    %379 = vmatpush.bf16.msra.mxu0 0
    %380 = vmatpush.bf16.msra.mxu0 0
    %381 = vmatpush.bf16.msra.mxu0 0
    %382 = vmatpush.bf16.msra.mxu0 0
    %383 = vmatpush.bf16.msra.mxu0 %v374
    %384 = vmatmul.bf16.gmra.mxu0 %v371
    %v385 = vpop.f32.mrf.mxu0
    %v386 = vadd.f32 0.0, %v385
    %v387 = vpop.f32.mrf.mxu0
    %388 = vdwg.mxu0
    %v390 = vsel %vm216, %v274, 0
    %v393 = vsel %vm220, %v275, 0
    %395 = vmatpush.bf16.msra.mxu0 0
    %396 = vmatpush.bf16.msra.mxu0 0
    %397 = vmatpush.bf16.msra.mxu0 0
    %398 = vmatpush.bf16.msra.mxu0 0
    %399 = vmatpush.bf16.msra.mxu0 0
    %400 = vmatpush.bf16.msra.mxu0 0
    %401 = vmatpush.bf16.msra.mxu0 0
    %402 = vmatpush.bf16.msra.mxu0 %v393
    %403 = vmatmul.bf16.gmra.mxu0 %v390
    %v404 = vpop.f32.mrf.mxu0
    %v405 = vadd.f32 %v386, %v404
    %v406 = vpop.f32.mrf.mxu0
    %407 = vdwg.mxu0
    %408 = vrot.lane.b32.xlu0 %v170, 80
    %v409 = vpop.permute.xlu0 %408
    %411 = vxpose.xlu0.b32.start [1/16] %v409, 128
    %412 = vxpose.xlu0.b32.cont [2/16] 0.0, 128
    %413 = vxpose.xlu0.b32.cont [3/16] 0.0, 128
    %414 = vxpose.xlu0.b32.cont [4/16] 0.0, 128
    %415 = vxpose.xlu0.b32.cont [5/16] 0.0, 128
    %416 = vxpose.xlu0.b32.cont [6/16] 0.0, 128
    %417 = vxpose.xlu0.b32.cont [7/16] 0.0, 128
    %418 = vxpose.xlu0.b32.cont [8/16] 0.0, 128
    %419 = vxpose.xlu0.b32.cont [9/16] 0.0, 128
    %420 = vxpose.xlu0.b32.cont [10/16] 0.0, 128
    %421 = vxpose.xlu0.b32.cont [11/16] 0.0, 128
    %422 = vxpose.xlu0.b32.cont [12/16] 0.0, 128
    %423 = vxpose.xlu0.b32.cont [13/16] 0.0, 128
    %424 = vxpose.xlu0.b32.cont [14/16] 0.0, 128
    %425 = vxpose.xlu0.b32.cont [15/16] 0.0, 128
    %426 = vxpose.xlu0.b32.end [16/16] 0.0, 128
    %v427 = vpop.trf.xlu0
    %v428 = vpop.trf.xlu0
    %v429 = vpop.trf.xlu0
    %v430 = vpop.trf.xlu0
    %v431 = vpop.trf.xlu0
    %v432 = vpop.trf.xlu0
    %v433 = vpop.trf.xlu0
    %v434 = vpop.trf.xlu0
    %v435 = vpop.trf.xlu0
    %v436 = vpop.trf.xlu0
    %v437 = vpop.trf.xlu0
    %v438 = vpop.trf.xlu0
    %v439 = vpop.trf.xlu0
    %v440 = vpop.trf.xlu0
    %v441 = vpop.trf.xlu0
    %v442 = vpop.trf.xlu0
    %v443 = vpack.c.bf16 %v427, %v427
    %444 = vrot.lane.b32.xlu0 %v214, 112
    %v445 = vpop.permute.xlu0 %444
    %v447 = vsel %vm216, %v445, 0
    %v450 = vsel %vm220, %v443, 0
    %452 = vmatpush.bf16.msra.mxu0 0
    %453 = vmatpush.bf16.msra.mxu0 0
    %454 = vmatpush.bf16.msra.mxu0 0
    %455 = vmatpush.bf16.msra.mxu0 0
    %456 = vmatpush.bf16.msra.mxu0 0
    %457 = vmatpush.bf16.msra.mxu0 0
    %458 = vmatpush.bf16.msra.mxu0 0
    %459 = vmatpush.bf16.msra.mxu0 %v450
    %460 = vmatmul.bf16.gmra.mxu0 %v447
    %v461 = vpop.f32.mrf.mxu0
    %v462 = vadd.f32 0.0, %v461
    %v463 = vpop.f32.mrf.mxu0
    %464 = vdwg.mxu0
    %v465 = vmul.f32 %v462, 0.35355338
    %v466 = vadd.f32 %v465, %v238
    %v467 = vsel %vm216, %v466, -inf
    %468 = vmax.xlane.f32.xlu0 %v467
    %v469 = vpop.xlane.xlu0 %468
    %v470 = vsub.f32 %v466, %v469
    %v471 = vmul.f32 %v470, 1.442695
    %v472 = vpow.pop %v471
    %v473 = vsel %vm216, %v472, 0.0
    %474 = vadd.xlane.f32.xlu0 %v473
    %v475 = vpop.xlane.xlu0 %474
    %v476 = vrcp.pop %v475
    %v477 = vmul.f32 %v472, %v476
    %v478 = vpack.c.bf16 %v477, %v477
    %479 = vrot.lane.b32.xlu0 %v214, 48
    %v480 = vpop.permute.xlu0 %479
    %v482 = vsel %vm216, %v478, 0
    %v485 = vsel %vm220, %v480, 0
    %487 = vmatpush.bf16.msra.mxu0 0
    %488 = vmatpush.bf16.msra.mxu0 0
    %489 = vmatpush.bf16.msra.mxu0 0
    %490 = vmatpush.bf16.msra.mxu0 0
    %491 = vmatpush.bf16.msra.mxu0 0
    %492 = vmatpush.bf16.msra.mxu0 0
    %493 = vmatpush.bf16.msra.mxu0 0
    %494 = vmatpush.bf16.msra.mxu0 %v485
    %495 = vmatmul.bf16.gmra.mxu0 %v482
    %v496 = vpop.f32.mrf.mxu0
    %v497 = vadd.f32 0.0, %v496
    %v498 = vpop.f32.mrf.mxu0
    %499 = vdwg.mxu0
    %v500 = vpack.c.bf16 %v497, %v497
    %v501 = vpack.c.bf16 %v176, %v176
    %v503 = vsel %vm216, %v500, 0
    %v506 = vsel %vm220, %v501, 0
    %508 = vmatpush.bf16.msra.mxu0 0
    %509 = vmatpush.bf16.msra.mxu0 0
    %510 = vmatpush.bf16.msra.mxu0 0
    %511 = vmatpush.bf16.msra.mxu0 0
    %512 = vmatpush.bf16.msra.mxu0 0
    %513 = vmatpush.bf16.msra.mxu0 0
    %514 = vmatpush.bf16.msra.mxu0 0
    %515 = vmatpush.bf16.msra.mxu0 %v506
    %516 = vmatmul.bf16.gmra.mxu0 %v503
    %v517 = vpop.f32.mrf.mxu0
    %v518 = vadd.f32 0.0, %v517
    %v519 = vpop.f32.mrf.mxu0
    %520 = vdwg.mxu0
    %v521 = vadd.f32 %v405, %v518
    %522 = vrot.lane.b32.xlu0 %v170, 72
    %v523 = vpop.permute.xlu0 %522
    %525 = vxpose.xlu0.b32.start [1/16] %v523, 128
    %526 = vxpose.xlu0.b32.cont [2/16] 0.0, 128
    %527 = vxpose.xlu0.b32.cont [3/16] 0.0, 128
    %528 = vxpose.xlu0.b32.cont [4/16] 0.0, 128
    %529 = vxpose.xlu0.b32.cont [5/16] 0.0, 128
    %530 = vxpose.xlu0.b32.cont [6/16] 0.0, 128
    %531 = vxpose.xlu0.b32.cont [7/16] 0.0, 128
    %532 = vxpose.xlu0.b32.cont [8/16] 0.0, 128
    %533 = vxpose.xlu0.b32.cont [9/16] 0.0, 128
    %534 = vxpose.xlu0.b32.cont [10/16] 0.0, 128
    %535 = vxpose.xlu0.b32.cont [11/16] 0.0, 128
    %536 = vxpose.xlu0.b32.cont [12/16] 0.0, 128
    %537 = vxpose.xlu0.b32.cont [13/16] 0.0, 128
    %538 = vxpose.xlu0.b32.cont [14/16] 0.0, 128
    %539 = vxpose.xlu0.b32.cont [15/16] 0.0, 128
    %540 = vxpose.xlu0.b32.end [16/16] 0.0, 128
    %v541 = vpop.trf.xlu0
    %v542 = vpop.trf.xlu0
    %v543 = vpop.trf.xlu0
    %v544 = vpop.trf.xlu0
    %v545 = vpop.trf.xlu0
    %v546 = vpop.trf.xlu0
    %v547 = vpop.trf.xlu0
    %v548 = vpop.trf.xlu0
    %v549 = vpop.trf.xlu0
    %v550 = vpop.trf.xlu0
    %v551 = vpop.trf.xlu0
    %v552 = vpop.trf.xlu0
    %v553 = vpop.trf.xlu0
    %v554 = vpop.trf.xlu0
    %v555 = vpop.trf.xlu0
    %v556 = vpop.trf.xlu0
    %v557 = vpack.c.bf16 %v541, %v541
    %558 = vrot.lane.b32.xlu0 %v214, 104
    %v559 = vpop.permute.xlu0 %558
    %v561 = vsel %vm216, %v559, 0
    %v564 = vsel %vm220, %v557, 0
    %566 = vmatpush.bf16.msra.mxu0 0
    %567 = vmatpush.bf16.msra.mxu0 0
    %568 = vmatpush.bf16.msra.mxu0 0
    %569 = vmatpush.bf16.msra.mxu0 0
    %570 = vmatpush.bf16.msra.mxu0 0
    %571 = vmatpush.bf16.msra.mxu0 0
    %572 = vmatpush.bf16.msra.mxu0 0
    %573 = vmatpush.bf16.msra.mxu0 %v564
    %574 = vmatmul.bf16.gmra.mxu0 %v561
    %v575 = vpop.f32.mrf.mxu0
    %v576 = vadd.f32 0.0, %v575
    %v577 = vpop.f32.mrf.mxu0
    %578 = vdwg.mxu0
    %v579 = vmul.f32 %v576, 0.35355338
    %v580 = vadd.f32 %v579, %v238
    %v581 = vsel %vm216, %v580, -inf
    %582 = vmax.xlane.f32.xlu0 %v581
    %v583 = vpop.xlane.xlu0 %582
    %v584 = vsub.f32 %v580, %v583
    %v585 = vmul.f32 %v584, 1.442695
    %v586 = vpow.pop %v585
    %v587 = vsel %vm216, %v586, 0.0
    %588 = vadd.xlane.f32.xlu0 %v587
    %v589 = vpop.xlane.xlu0 %588
    %v590 = vrcp.pop %v589
    %v591 = vmul.f32 %v586, %v590
    %v592 = vpack.c.bf16 %v591, %v591
    %593 = vrot.lane.b32.xlu0 %v214, 40
    %v594 = vpop.permute.xlu0 %593
    %v596 = vsel %vm216, %v592, 0
    %v599 = vsel %vm220, %v594, 0
    %601 = vmatpush.bf16.msra.mxu0 0
    %602 = vmatpush.bf16.msra.mxu0 0
    %603 = vmatpush.bf16.msra.mxu0 0
    %604 = vmatpush.bf16.msra.mxu0 0
    %605 = vmatpush.bf16.msra.mxu0 0
    %606 = vmatpush.bf16.msra.mxu0 0
    %607 = vmatpush.bf16.msra.mxu0 0
    %608 = vmatpush.bf16.msra.mxu0 %v599
    %609 = vmatmul.bf16.gmra.mxu0 %v596
    %v610 = vpop.f32.mrf.mxu0
    %v611 = vadd.f32 0.0, %v610
    %v612 = vpop.f32.mrf.mxu0
    %613 = vdwg.mxu0
    %v614 = vpack.c.bf16 %v611, %v611
    %v615 = vpack.c.bf16 %v177, %v177
    %v617 = vsel %vm216, %v614, 0
    %v620 = vsel %vm220, %v615, 0
    %622 = vmatpush.bf16.msra.mxu0 0
    %623 = vmatpush.bf16.msra.mxu0 0
    %624 = vmatpush.bf16.msra.mxu0 0
    %625 = vmatpush.bf16.msra.mxu0 0
    %626 = vmatpush.bf16.msra.mxu0 0
    %627 = vmatpush.bf16.msra.mxu0 0
    %628 = vmatpush.bf16.msra.mxu0 0
    %629 = vmatpush.bf16.msra.mxu0 %v620
    %630 = vmatmul.bf16.gmra.mxu0 %v617
    %v631 = vpop.f32.mrf.mxu0
    %v632 = vadd.f32 0.0, %v631
    %v633 = vpop.f32.mrf.mxu0
    %634 = vdwg.mxu0
    %v635 = vadd.f32 %v521, %v632
    %637 = vrot.lane.b32.xlu0 %v172, 96
    %v638 = vpop.permute.xlu0 %637
    %640 = vxpose.xlu0.b32.start [1/16] %v638, 128
    %641 = vxpose.xlu0.b32.cont [2/16] 0.0, 128
    %642 = vxpose.xlu0.b32.cont [3/16] 0.0, 128
    %643 = vxpose.xlu0.b32.cont [4/16] 0.0, 128
    %644 = vxpose.xlu0.b32.cont [5/16] 0.0, 128
    %645 = vxpose.xlu0.b32.cont [6/16] 0.0, 128
    %646 = vxpose.xlu0.b32.cont [7/16] 0.0, 128
    %647 = vxpose.xlu0.b32.cont [8/16] 0.0, 128
    %648 = vxpose.xlu0.b32.cont [9/16] 0.0, 128
    %649 = vxpose.xlu0.b32.cont [10/16] 0.0, 128
    %650 = vxpose.xlu0.b32.cont [11/16] 0.0, 128
    %651 = vxpose.xlu0.b32.cont [12/16] 0.0, 128
    %652 = vxpose.xlu0.b32.cont [13/16] 0.0, 128
    %653 = vxpose.xlu0.b32.cont [14/16] 0.0, 128
    %654 = vxpose.xlu0.b32.cont [15/16] 0.0, 128
    %655 = vxpose.xlu0.b32.end [16/16] 0.0, 128
    %v656 = vpop.trf.xlu0
    %v657 = vpop.trf.xlu0
    %v658 = vpop.trf.xlu0
    %v659 = vpop.trf.xlu0
    %v660 = vpop.trf.xlu0
    %v661 = vpop.trf.xlu0
    %v662 = vpop.trf.xlu0
    %v663 = vpop.trf.xlu0
    %v664 = vpop.trf.xlu0
    %v665 = vpop.trf.xlu0
    %v666 = vpop.trf.xlu0
    %v667 = vpop.trf.xlu0
    %v668 = vpop.trf.xlu0
    %v669 = vpop.trf.xlu0
    %v670 = vpop.trf.xlu0
    %v671 = vpop.trf.xlu0
    %v672 = vpack.c.bf16 %v172, %v172
    %v673 = vpack.c.bf16 %v656, %v656
    %v675 = vsel %vm216, %v672, 0
    %v678 = vsel %vm220, %v673, 0
    %680 = vmatpush.bf16.msra.mxu0 0
    %681 = vmatpush.bf16.msra.mxu0 0
    %682 = vmatpush.bf16.msra.mxu0 0
    %683 = vmatpush.bf16.msra.mxu0 0
    %684 = vmatpush.bf16.msra.mxu0 0
    %685 = vmatpush.bf16.msra.mxu0 0
    %686 = vmatpush.bf16.msra.mxu0 0
    %687 = vmatpush.bf16.msra.mxu0 %v678
    %688 = vmatmul.bf16.gmra.mxu0 %v675
    %v689 = vpop.f32.mrf.mxu0
    %v690 = vadd.f32 0.0, %v689
    %v691 = vpop.f32.mrf.mxu0
    %692 = vdwg.mxu0
    %v693 = vmul.f32 %v690, 0.35355338
    %v694 = vperm.slane %v145, 1
    %v695 = vadd.f32 %v693, %v694
    %v696 = vsel %vm216, %v695, -inf
    %697 = vmax.xlane.f32.xlu0 %v696
    %v698 = vpop.xlane.xlu0 %697
    %v699 = vsub.f32 %v695, %v698
    %v700 = vmul.f32 %v699, 1.442695
    %v701 = vpow.pop %v700
    %v702 = vsel %vm216, %v701, 0.0
    %703 = vadd.xlane.f32.xlu0 %v702
    %v704 = vpop.xlane.xlu0 %703
    %v705 = vrcp.pop %v704
    %v706 = vmul.f32 %v701, %v705
    %v707 = vpack.c.bf16 %v706, %v706
    %709 = vrot.lane.b32.xlu0 %v672, 64
    %v710 = vpop.permute.xlu0 %709
    %v712 = vsel %vm216, %v707, 0
    %v715 = vsel %vm220, %v710, 0
    %717 = vmatpush.bf16.msra.mxu0 0
    %718 = vmatpush.bf16.msra.mxu0 0
    %719 = vmatpush.bf16.msra.mxu0 0
    %720 = vmatpush.bf16.msra.mxu0 0
    %721 = vmatpush.bf16.msra.mxu0 0
    %722 = vmatpush.bf16.msra.mxu0 0
    %723 = vmatpush.bf16.msra.mxu0 0
    %724 = vmatpush.bf16.msra.mxu0 %v715
    %725 = vmatmul.bf16.gmra.mxu0 %v712
    %v726 = vpop.f32.mrf.mxu0
    %v727 = vadd.f32 0.0, %v726
    %v728 = vpop.f32.mrf.mxu0
    %729 = vdwg.mxu0
    %v730 = vpack.c.bf16 %v727, %v727
    %731 = vrot.lane.b32.xlu0 %v172, 88
    %v732 = vpop.permute.xlu0 %731
    %734 = vxpose.xlu0.b32.start [1/16] %v732, 128
    %735 = vxpose.xlu0.b32.cont [2/16] 0.0, 128
    %736 = vxpose.xlu0.b32.cont [3/16] 0.0, 128
    %737 = vxpose.xlu0.b32.cont [4/16] 0.0, 128
    %738 = vxpose.xlu0.b32.cont [5/16] 0.0, 128
    %739 = vxpose.xlu0.b32.cont [6/16] 0.0, 128
    %740 = vxpose.xlu0.b32.cont [7/16] 0.0, 128
    %741 = vxpose.xlu0.b32.cont [8/16] 0.0, 128
    %742 = vxpose.xlu0.b32.cont [9/16] 0.0, 128
    %743 = vxpose.xlu0.b32.cont [10/16] 0.0, 128
    %744 = vxpose.xlu0.b32.cont [11/16] 0.0, 128
    %745 = vxpose.xlu0.b32.cont [12/16] 0.0, 128
    %746 = vxpose.xlu0.b32.cont [13/16] 0.0, 128
    %747 = vxpose.xlu0.b32.cont [14/16] 0.0, 128
    %748 = vxpose.xlu0.b32.cont [15/16] 0.0, 128
    %749 = vxpose.xlu0.b32.end [16/16] 0.0, 128
    %v750 = vpop.trf.xlu0
    %v751 = vpop.trf.xlu0
    %v752 = vpop.trf.xlu0
    %v753 = vpop.trf.xlu0
    %v754 = vpop.trf.xlu0
    %v755 = vpop.trf.xlu0
    %v756 = vpop.trf.xlu0
    %v757 = vpop.trf.xlu0
    %v758 = vpop.trf.xlu0
    %v759 = vpop.trf.xlu0
    %v760 = vpop.trf.xlu0
    %v761 = vpop.trf.xlu0
    %v762 = vpop.trf.xlu0
    %v763 = vpop.trf.xlu0
    %v764 = vpop.trf.xlu0
    %v765 = vpop.trf.xlu0
    %v766 = vpack.c.bf16 %v750, %v750
    %767 = vrot.lane.b32.xlu0 %v672, 120
    %v768 = vpop.permute.xlu0 %767
    %v770 = vsel %vm216, %v768, 0
    %v773 = vsel %vm220, %v766, 0
    %775 = vmatpush.bf16.msra.mxu0 0
    %776 = vmatpush.bf16.msra.mxu0 0
    %777 = vmatpush.bf16.msra.mxu0 0
    %778 = vmatpush.bf16.msra.mxu0 0
    %779 = vmatpush.bf16.msra.mxu0 0
    %780 = vmatpush.bf16.msra.mxu0 0
    %781 = vmatpush.bf16.msra.mxu0 0
    %782 = vmatpush.bf16.msra.mxu0 %v773
    %783 = vmatmul.bf16.gmra.mxu0 %v770
    %v784 = vpop.f32.mrf.mxu0
    %v785 = vadd.f32 0.0, %v784
    %v786 = vpop.f32.mrf.mxu0
    %787 = vdwg.mxu0
    %v788 = vmul.f32 %v785, 0.35355338
    %v789 = vadd.f32 %v788, %v694
    %v790 = vsel %vm216, %v789, -inf
    %791 = vmax.xlane.f32.xlu0 %v790
    %v792 = vpop.xlane.xlu0 %791
    %v793 = vsub.f32 %v789, %v792
    %v794 = vmul.f32 %v793, 1.442695
    %v795 = vpow.pop %v794
    %v796 = vsel %vm216, %v795, 0.0
    %797 = vadd.xlane.f32.xlu0 %v796
    %v798 = vpop.xlane.xlu0 %797
    %v799 = vrcp.pop %v798
    %v800 = vmul.f32 %v795, %v799
    %v801 = vpack.c.bf16 %v800, %v800
    %802 = vrot.lane.b32.xlu0 %v672, 56
    %v803 = vpop.permute.xlu0 %802
    %v805 = vsel %vm216, %v801, 0
    %v808 = vsel %vm220, %v803, 0
    %810 = vmatpush.bf16.msra.mxu0 0
    %811 = vmatpush.bf16.msra.mxu0 0
    %812 = vmatpush.bf16.msra.mxu0 0
    %813 = vmatpush.bf16.msra.mxu0 0
    %814 = vmatpush.bf16.msra.mxu0 0
    %815 = vmatpush.bf16.msra.mxu0 0
    %816 = vmatpush.bf16.msra.mxu0 0
    %817 = vmatpush.bf16.msra.mxu0 %v808
    %818 = vmatmul.bf16.gmra.mxu0 %v805
    %v819 = vpop.f32.mrf.mxu0
    %v820 = vadd.f32 0.0, %v819
    %v821 = vpop.f32.mrf.mxu0
    %822 = vdwg.mxu0
    %v823 = vpack.c.bf16 %v820, %v820
    %v825 = vsel %vm216, %v823, 0
    %827 = vmatpush.bf16.msra.mxu0 0
    %828 = vmatpush.bf16.msra.mxu0 0
    %829 = vmatpush.bf16.msra.mxu0 0
    %830 = vmatpush.bf16.msra.mxu0 0
    %831 = vmatpush.bf16.msra.mxu0 0
    %832 = vmatpush.bf16.msra.mxu0 0
    %833 = vmatpush.bf16.msra.mxu0 0
    %834 = vmatpush.bf16.msra.mxu0 %v374
    %835 = vmatmul.bf16.gmra.mxu0 %v825
    %v836 = vpop.f32.mrf.mxu0
    %v837 = vadd.f32 0.0, %v836
    %v838 = vpop.f32.mrf.mxu0
    %839 = vdwg.mxu0
    %v841 = vsel %vm216, %v730, 0
    %843 = vmatpush.bf16.msra.mxu0 0
    %844 = vmatpush.bf16.msra.mxu0 0
    %845 = vmatpush.bf16.msra.mxu0 0
    %846 = vmatpush.bf16.msra.mxu0 0
    %847 = vmatpush.bf16.msra.mxu0 0
    %848 = vmatpush.bf16.msra.mxu0 0
    %849 = vmatpush.bf16.msra.mxu0 0
    %850 = vmatpush.bf16.msra.mxu0 %v393
    %851 = vmatmul.bf16.gmra.mxu0 %v841
    %v852 = vpop.f32.mrf.mxu0
    %v853 = vadd.f32 %v837, %v852
    %v854 = vpop.f32.mrf.mxu0
    %855 = vdwg.mxu0
    %856 = vrot.lane.b32.xlu0 %v172, 80
    %v857 = vpop.permute.xlu0 %856
    %859 = vxpose.xlu0.b32.start [1/16] %v857, 128
    %860 = vxpose.xlu0.b32.cont [2/16] 0.0, 128
    %861 = vxpose.xlu0.b32.cont [3/16] 0.0, 128
    %862 = vxpose.xlu0.b32.cont [4/16] 0.0, 128
    %863 = vxpose.xlu0.b32.cont [5/16] 0.0, 128
    %864 = vxpose.xlu0.b32.cont [6/16] 0.0, 128
    %865 = vxpose.xlu0.b32.cont [7/16] 0.0, 128
    %866 = vxpose.xlu0.b32.cont [8/16] 0.0, 128
    %867 = vxpose.xlu0.b32.cont [9/16] 0.0, 128
    %868 = vxpose.xlu0.b32.cont [10/16] 0.0, 128
    %869 = vxpose.xlu0.b32.cont [11/16] 0.0, 128
    %870 = vxpose.xlu0.b32.cont [12/16] 0.0, 128
    %871 = vxpose.xlu0.b32.cont [13/16] 0.0, 128
    %872 = vxpose.xlu0.b32.cont [14/16] 0.0, 128
    %873 = vxpose.xlu0.b32.cont [15/16] 0.0, 128
    %874 = vxpose.xlu0.b32.end [16/16] 0.0, 128
    %v875 = vpop.trf.xlu0
    %v876 = vpop.trf.xlu0
    %v877 = vpop.trf.xlu0
    %v878 = vpop.trf.xlu0
    %v879 = vpop.trf.xlu0
    %v880 = vpop.trf.xlu0
    %v881 = vpop.trf.xlu0
    %v882 = vpop.trf.xlu0
    %v883 = vpop.trf.xlu0
    %v884 = vpop.trf.xlu0
    %v885 = vpop.trf.xlu0
    %v886 = vpop.trf.xlu0
    %v887 = vpop.trf.xlu0
    %v888 = vpop.trf.xlu0
    %v889 = vpop.trf.xlu0
    %v890 = vpop.trf.xlu0
    %v891 = vpack.c.bf16 %v875, %v875
    %892 = vrot.lane.b32.xlu0 %v672, 112
    %v893 = vpop.permute.xlu0 %892
    %v895 = vsel %vm216, %v893, 0
    %v898 = vsel %vm220, %v891, 0
    %900 = vmatpush.bf16.msra.mxu0 0
    %901 = vmatpush.bf16.msra.mxu0 0
    %902 = vmatpush.bf16.msra.mxu0 0
    %903 = vmatpush.bf16.msra.mxu0 0
    %904 = vmatpush.bf16.msra.mxu0 0
    %905 = vmatpush.bf16.msra.mxu0 0
    %906 = vmatpush.bf16.msra.mxu0 0
    %907 = vmatpush.bf16.msra.mxu0 %v898
    %908 = vmatmul.bf16.gmra.mxu0 %v895
    %v909 = vpop.f32.mrf.mxu0
    %v910 = vadd.f32 0.0, %v909
    %v911 = vpop.f32.mrf.mxu0
    %912 = vdwg.mxu0
    %v913 = vmul.f32 %v910, 0.35355338
    %v914 = vadd.f32 %v913, %v694
    %v915 = vsel %vm216, %v914, -inf
    %916 = vmax.xlane.f32.xlu0 %v915
    %v917 = vpop.xlane.xlu0 %916
    %v918 = vsub.f32 %v914, %v917
    %v919 = vmul.f32 %v918, 1.442695
    %v920 = vpow.pop %v919
    %v921 = vsel %vm216, %v920, 0.0
    %922 = vadd.xlane.f32.xlu0 %v921
    %v923 = vpop.xlane.xlu0 %922
    %v924 = vrcp.pop %v923
    %v925 = vmul.f32 %v920, %v924
    %v926 = vpack.c.bf16 %v925, %v925
    %927 = vrot.lane.b32.xlu0 %v672, 48
    %v928 = vpop.permute.xlu0 %927
    %v930 = vsel %vm216, %v926, 0
    %v933 = vsel %vm220, %v928, 0
    %935 = vmatpush.bf16.msra.mxu0 0
    %936 = vmatpush.bf16.msra.mxu0 0
    %937 = vmatpush.bf16.msra.mxu0 0
    %938 = vmatpush.bf16.msra.mxu0 0
    %939 = vmatpush.bf16.msra.mxu0 0
    %940 = vmatpush.bf16.msra.mxu0 0
    %941 = vmatpush.bf16.msra.mxu0 0
    %942 = vmatpush.bf16.msra.mxu0 %v933
    %943 = vmatmul.bf16.gmra.mxu0 %v930
    %v944 = vpop.f32.mrf.mxu0
    %v945 = vadd.f32 0.0, %v944
    %v946 = vpop.f32.mrf.mxu0
    %947 = vdwg.mxu0
    %v948 = vpack.c.bf16 %v945, %v945
    %v950 = vsel %vm216, %v948, 0
    %952 = vmatpush.bf16.msra.mxu0 0
    %953 = vmatpush.bf16.msra.mxu0 0
    %954 = vmatpush.bf16.msra.mxu0 0
    %955 = vmatpush.bf16.msra.mxu0 0
    %956 = vmatpush.bf16.msra.mxu0 0
    %957 = vmatpush.bf16.msra.mxu0 0
    %958 = vmatpush.bf16.msra.mxu0 0
    %959 = vmatpush.bf16.msra.mxu0 %v506
    %960 = vmatmul.bf16.gmra.mxu0 %v950
    %v961 = vpop.f32.mrf.mxu0
    %v962 = vadd.f32 0.0, %v961
    %v963 = vpop.f32.mrf.mxu0
    %964 = vdwg.mxu0
    %v965 = vadd.f32 %v853, %v962
    %966 = vrot.lane.b32.xlu0 %v172, 72
    %v967 = vpop.permute.xlu0 %966
    %969 = vxpose.xlu0.b32.start [1/16] %v967, 128
    %970 = vxpose.xlu0.b32.cont [2/16] 0.0, 128
    %971 = vxpose.xlu0.b32.cont [3/16] 0.0, 128
    %972 = vxpose.xlu0.b32.cont [4/16] 0.0, 128
    %973 = vxpose.xlu0.b32.cont [5/16] 0.0, 128
    %974 = vxpose.xlu0.b32.cont [6/16] 0.0, 128
    %975 = vxpose.xlu0.b32.cont [7/16] 0.0, 128
    %976 = vxpose.xlu0.b32.cont [8/16] 0.0, 128
    %977 = vxpose.xlu0.b32.cont [9/16] 0.0, 128
    %978 = vxpose.xlu0.b32.cont [10/16] 0.0, 128
    %979 = vxpose.xlu0.b32.cont [11/16] 0.0, 128
    %980 = vxpose.xlu0.b32.cont [12/16] 0.0, 128
    %981 = vxpose.xlu0.b32.cont [13/16] 0.0, 128
    %982 = vxpose.xlu0.b32.cont [14/16] 0.0, 128
    %983 = vxpose.xlu0.b32.cont [15/16] 0.0, 128
    %984 = vxpose.xlu0.b32.end [16/16] 0.0, 128
    %v985 = vpop.trf.xlu0
    %v986 = vpop.trf.xlu0
    %v987 = vpop.trf.xlu0
    %v988 = vpop.trf.xlu0
    %v989 = vpop.trf.xlu0
    %v990 = vpop.trf.xlu0
    %v991 = vpop.trf.xlu0
    %v992 = vpop.trf.xlu0
    %v993 = vpop.trf.xlu0
    %v994 = vpop.trf.xlu0
    %v995 = vpop.trf.xlu0
    %v996 = vpop.trf.xlu0
    %v997 = vpop.trf.xlu0
    %v998 = vpop.trf.xlu0
    %v999 = vpop.trf.xlu0
    %v1000 = vpop.trf.xlu0
    %v1001 = vpack.c.bf16 %v985, %v985
    %1002 = vrot.lane.b32.xlu0 %v672, 104
    %v1003 = vpop.permute.xlu0 %1002
    %v1005 = vsel %vm216, %v1003, 0
    %v1008 = vsel %vm220, %v1001, 0
    %1010 = vmatpush.bf16.msra.mxu0 0
    %1011 = vmatpush.bf16.msra.mxu0 0
    %1012 = vmatpush.bf16.msra.mxu0 0
    %1013 = vmatpush.bf16.msra.mxu0 0
    %1014 = vmatpush.bf16.msra.mxu0 0
    %1015 = vmatpush.bf16.msra.mxu0 0
    %1016 = vmatpush.bf16.msra.mxu0 0
    %1017 = vmatpush.bf16.msra.mxu0 %v1008
    %1018 = vmatmul.bf16.gmra.mxu0 %v1005
    %v1019 = vpop.f32.mrf.mxu0
    %v1020 = vadd.f32 0.0, %v1019
    %v1021 = vpop.f32.mrf.mxu0
    %1022 = vdwg.mxu0
    %v1023 = vmul.f32 %v1020, 0.35355338
    %v1024 = vadd.f32 %v1023, %v694
    %v1025 = vsel %vm216, %v1024, -inf
    %1026 = vmax.xlane.f32.xlu0 %v1025
    %v1027 = vpop.xlane.xlu0 %1026
    %v1028 = vsub.f32 %v1024, %v1027
    %v1029 = vmul.f32 %v1028, 1.442695
    %v1030 = vpow.pop %v1029
    %v1031 = vsel %vm216, %v1030, 0.0
    %1032 = vadd.xlane.f32.xlu0 %v1031
    %v1033 = vpop.xlane.xlu0 %1032
    %v1034 = vrcp.pop %v1033
    %v1035 = vmul.f32 %v1030, %v1034
    %v1036 = vpack.c.bf16 %v1035, %v1035
    %1037 = vrot.lane.b32.xlu0 %v672, 40
    %v1038 = vpop.permute.xlu0 %1037
    %v1040 = vsel %vm216, %v1036, 0
    %v1043 = vsel %vm220, %v1038, 0
    %1045 = vmatpush.bf16.msra.mxu0 0
    %1046 = vmatpush.bf16.msra.mxu0 0
    %1047 = vmatpush.bf16.msra.mxu0 0
    %1048 = vmatpush.bf16.msra.mxu0 0
    %1049 = vmatpush.bf16.msra.mxu0 0
    %1050 = vmatpush.bf16.msra.mxu0 0
    %1051 = vmatpush.bf16.msra.mxu0 0
    %1052 = vmatpush.bf16.msra.mxu0 %v1043
    %1053 = vmatmul.bf16.gmra.mxu0 %v1040
    %v1054 = vpop.f32.mrf.mxu0
    %v1055 = vadd.f32 0.0, %v1054
    %v1056 = vpop.f32.mrf.mxu0
    %1057 = vdwg.mxu0
    %v1058 = vpack.c.bf16 %v1055, %v1055
    %v1060 = vsel %vm216, %v1058, 0
    %1062 = vmatpush.bf16.msra.mxu0 0
    %1063 = vmatpush.bf16.msra.mxu0 0
    %1064 = vmatpush.bf16.msra.mxu0 0
    %1065 = vmatpush.bf16.msra.mxu0 0
    %1066 = vmatpush.bf16.msra.mxu0 0
    %1067 = vmatpush.bf16.msra.mxu0 0
    %1068 = vmatpush.bf16.msra.mxu0 0
    %1069 = vmatpush.bf16.msra.mxu0 %v620
    %1070 = vmatmul.bf16.gmra.mxu0 %v1060
    %v1071 = vpop.f32.mrf.mxu0
    %v1072 = vadd.f32 0.0, %v1071
    %v1073 = vpop.f32.mrf.mxu0
    %1074 = vdwg.mxu0
    %v1075 = vadd.f32 %v965, %v1072
    %v1076 = vld [vmem:[%s7] sm:$0x1]
    %v1078 = vperm.slane %v1076, 0
    %v1080 = vadd.f32 %v635, %v1078
    %v1081 = vadd.f32 %v1075, %v1078
    %v1082 = vadd.f32 %v141, %v1080
    %v1083 = vadd.f32 %v142, %v1081
    %v1084 = vld [vmem:[%s8] sm:$0x1]
    %v1085 = vld [vmem:[%s9] sm:$0x1]
    %v1086 = vsel %vm81, %v1082, 0.0
    %1087 = vadd.xlane.f32.xlu0 %v1086
    %v1088 = vpop.xlane.xlu0 %1087
    %v1089 = vsel %vm81, %v1083, 0.0
    %1090 = vadd.xlane.f32.xlu0 %v1089
    %v1091 = vpop.xlane.xlu0 %1090
    %v1092 = vmul.f32 %v1088, %v94
    %v1093 = vmul.f32 %v1091, %v94
    %v1094 = vsub.f32 %v1082, %v1092
    %v1095 = vsub.f32 %v1083, %v1093
    %v1096 = vmul.f32 %v1094, %v1094
    %v1097 = vmul.f32 %v1095, %v1095
    %v1098 = vsel %vm81, %v1096, 0.0
    %1099 = vadd.xlane.f32.xlu0 %v1098
    %v1100 = vpop.xlane.xlu0 %1099
    %v1101 = vsel %vm81, %v1097, 0.0
    %1102 = vadd.xlane.f32.xlu0 %v1101
    %v1103 = vpop.xlane.xlu0 %1102
    %v1104 = vmul.f32 %v1100, %v94
    %v1105 = vmul.f32 %v1103, %v94
    %v1106 = vadd.f32 %v1104, 1e-12
    %v1107 = vadd.f32 %v1105, 1e-12
    %v1108 = vrsqrt.pop %v1106
    %v1109 = vmul.f32 %v1108, %v1106
    %v1110 = vmul.f32 %v1109, %v1108
    %v1111 = vmul.f32 0.5, %v1110
    %v1112 = vsub.f32 1.5, %v1111
    %v1113 = vmul.f32 %v1108, %v1112
    %vm1114 = vweird.f32 %v1106
    %vm1115 = vweird.f32 %v1108
    %vm1116 = vmor %vm1114, %vm1115
    %v1117 = vsel %vm1116, %v1108, %v1113
    %v1118 = vrsqrt.pop %v1107
    %v1119 = vmul.f32 %v1118, %v1107
    %v1120 = vmul.f32 %v1119, %v1118
    %v1121 = vmul.f32 0.5, %v1120
    %v1122 = vsub.f32 1.5, %v1121
    %v1123 = vmul.f32 %v1118, %v1122
    %vm1124 = vweird.f32 %v1107
    %vm1125 = vweird.f32 %v1118
    %vm1126 = vmor %vm1124, %vm1125
    %v1127 = vsel %vm1126, %v1118, %v1123
    %v1128 = vmul.f32 %v1094, %v1117
    %v1129 = vmul.f32 %v1095, %v1127
    %v1131 = vperm.slane %v1084, 0
    %v1133 = vmul.f32 %v1128, %v1131
    %v1134 = vmul.f32 %v1129, %v1131
    %v1136 = vperm.slane %v1085, 0
    %v1138 = vadd.f32 %v1133, %v1136
    %v1139 = vadd.f32 %v1134, %v1136
    %v1140 = vld [vmem:[%s10] sm:$0xff]
    %v1141 = vld [vmem:[%s10 + $0x8] sm:$0xff]
    %v1142 = vld [vmem:[%s10 + $0x10] sm:$0xff]
    %v1143 = vld [vmem:[%s10 + $0x18] sm:$0xff]
    %v1144 = vpack.c.bf16 %v1139, %v1138
    %v1145 = vpack.c.bf16 %v1141, %v1140
    %v1146 = vpack.c.bf16 %v1143, %v1142
    %v1147 = vld [vmem:[%s11] sm:$0x1]
    %v1149 = vperm.slane %v1147, 0
    %v1152 = vsel %vm81, %v1144, 0
    %1154 = vmatpush.bf16.msra.mxu0 0
    %1155 = vmatpush.bf16.msra.mxu0 0
    %1156 = vmatpush.bf16.msra.mxu0 0
    %1157 = vmatpush.bf16.msra.mxu0 0
    %1158 = vmatpush.bf16.msra.mxu0 0
    %1159 = vmatpush.bf16.msra.mxu0 0
    %1160 = vmatpush.bf16.msra.mxu0 %v1146
    %1161 = vmatpush.bf16.msra.mxu0 %v1145
    %1162 = vmatmul.bf16.gmra.mxu0 %v1152
    %v1163 = vpop.f32.mrf.mxu0
    %v1164 = vadd.f32 %v1149, %v1163
    %v1165 = vpop.f32.mrf.mxu0
    %v1166 = vadd.f32 %v1149, %v1165
    %1167 = vdwg.mxu0
    %v1168 = vmul.f32 %v1164, 0.5
    %v1169 = vmul.f32 %v1166, 0.5
    %v1170 = vmul.f32 %v1164, 0.044715
    %v1171 = vmul.f32 %v1166, 0.044715
    %v1172 = vmul.f32 %v1170, %v1164
    %v1173 = vmul.f32 %v1171, %v1166
    %v1174 = vmul.f32 %v1172, %v1164
    %v1175 = vmul.f32 %v1173, %v1166
    %v1176 = vadd.f32 %v1164, %v1174
    %v1177 = vadd.f32 %v1166, %v1175
    %v1178 = vmul.f32 %v1176, 0.7978846
    %v1179 = vmul.f32 %v1177, 0.7978846
    %v1180 = vtanh.pop %v1178
    %v1181 = vtanh.pop %v1179
    %v1182 = vadd.f32 %v1180, 1.0
    %v1183 = vadd.f32 %v1181, 1.0
    %v1184 = vmul.f32 %v1168, %v1182
    %v1185 = vmul.f32 %v1169, %v1183
    %v1186 = vld [vmem:[%s12] sm:$0xff]
    %v1187 = vld [vmem:[%s12 + $0x8] sm:$0xff]
    %v1188 = vld [vmem:[%s12 + $0x10] sm:$0xff]
    %v1189 = vld [vmem:[%s12 + $0x18] sm:$0xff]
    %v1190 = vld [vmem:[%s12 + $0x20] sm:$0xff]
    %v1191 = vld [vmem:[%s12 + $0x28] sm:$0xff]
    %v1192 = vld [vmem:[%s12 + $0x30] sm:$0xff]
    %v1193 = vld [vmem:[%s12 + $0x38] sm:$0xff]
    %v1194 = vpack.c.bf16 %v1185, %v1184
    %v1195 = vpack.c.bf16 %v1187, %v1186
    %v1196 = vpack.c.bf16 %v1189, %v1188
    %v1197 = vpack.c.bf16 %v1191, %v1190
    %v1198 = vpack.c.bf16 %v1193, %v1192
    %v1199 = vld [vmem:[%s13] sm:$0x1]
    %v1201 = vperm.slane %v1199, 0
    %vm1203 = vcmask 523264
    %v1205 = vsel %vm1203, %v1194, 0
    %1207 = vmatpush.bf16.msra.mxu0 0
    %1208 = vmatpush.bf16.msra.mxu0 0
    %1209 = vmatpush.bf16.msra.mxu0 0
    %1210 = vmatpush.bf16.msra.mxu0 0
    %1211 = vmatpush.bf16.msra.mxu0 %v1198
    %1212 = vmatpush.bf16.msra.mxu0 %v1197
    %1213 = vmatpush.bf16.msra.mxu0 %v1196
    %1214 = vmatpush.bf16.msra.mxu0 %v1195
    %1215 = vmatmul.bf16.gmra.mxu0 %v1205
    %v1216 = vpop.f32.mrf.mxu0
    %v1217 = vadd.f32 %v1201, %v1216
    %v1218 = vpop.f32.mrf.mxu0
    %v1219 = vadd.f32 %v1201, %v1218
    %1220 = vdwg.mxu0
    %v1221 = vadd.f32 %v1138, %v1217
    %v1222 = vadd.f32 %v1139, %v1219
    %v1223 = vld [vmem:[%s14] sm:$0x1]
    %v1224 = vld [vmem:[%s15] sm:$0x1]
    %v1225 = vsel %vm81, %v1221, 0.0
    %1226 = vadd.xlane.f32.xlu0 %v1225
    %v1227 = vpop.xlane.xlu0 %1226
    %v1228 = vsel %vm81, %v1222, 0.0
    %1229 = vadd.xlane.f32.xlu0 %v1228
    %v1230 = vpop.xlane.xlu0 %1229
    %v1231 = vmul.f32 %v1227, %v94
    %v1232 = vmul.f32 %v1230, %v94
    %v1233 = vsub.f32 %v1221, %v1231
    %v1234 = vsub.f32 %v1222, %v1232
    %v1235 = vmul.f32 %v1233, %v1233
    %v1236 = vmul.f32 %v1234, %v1234
    %v1237 = vsel %vm81, %v1235, 0.0
    %1238 = vadd.xlane.f32.xlu0 %v1237
    %v1239 = vpop.xlane.xlu0 %1238
    %v1240 = vsel %vm81, %v1236, 0.0
    %1241 = vadd.xlane.f32.xlu0 %v1240
    %v1242 = vpop.xlane.xlu0 %1241
    %v1243 = vmul.f32 %v1239, %v94
    %v1244 = vmul.f32 %v1242, %v94
    %v1245 = vadd.f32 %v1243, 1e-12
    %v1246 = vadd.f32 %v1244, 1e-12
    %v1247 = vrsqrt.pop %v1245
    %v1248 = vmul.f32 %v1247, %v1245
    %v1249 = vmul.f32 %v1248, %v1247
    %v1250 = vmul.f32 0.5, %v1249
    %v1251 = vsub.f32 1.5, %v1250
    %v1252 = vmul.f32 %v1247, %v1251
    %vm1253 = vweird.f32 %v1245
    %vm1254 = vweird.f32 %v1247
    %vm1255 = vmor %vm1253, %vm1254
    %v1256 = vsel %vm1255, %v1247, %v1252
    %v1257 = vrsqrt.pop %v1246
    %v1258 = vmul.f32 %v1257, %v1246
    %v1259 = vmul.f32 %v1258, %v1257
    %v1260 = vmul.f32 0.5, %v1259
    %v1261 = vsub.f32 1.5, %v1260
    %v1262 = vmul.f32 %v1257, %v1261
    %vm1263 = vweird.f32 %v1246
    %vm1264 = vweird.f32 %v1257
    %vm1265 = vmor %vm1263, %vm1264
    %v1266 = vsel %vm1265, %v1257, %v1262
    %v1267 = vmul.f32 %v1233, %v1256
    %v1268 = vmul.f32 %v1234, %v1266
    %v1270 = vperm.slane %v1223, 0
    %v1272 = vmul.f32 %v1267, %v1270
    %v1273 = vmul.f32 %v1268, %v1270
    %v1275 = vperm.slane %v1224, 0
    %v1277 = vadd.f32 %v1272, %v1275
    %v1278 = vadd.f32 %v1273, %v1275
    %s1279 = scalar_lea.vmem %s4, 32
    %v1280 = vld [vmem:[%s1279] sm:$0xff]
    %v1281 = vld [vmem:[%s1279 + $0x8] sm:$0xff]
    %v1282 = vld [vmem:[%s1279 + $0x10] sm:$0xff]
    %v1283 = vld [vmem:[%s1279 + $0x18] sm:$0xff]
    %v1284 = vpack.c.bf16 %v1278, %v1277
    %v1285 = vpack.c.bf16 %v1281, %v1280
    %v1286 = vpack.c.bf16 %v1283, %v1282
    %s1287 = scalar_lea.vmem %s5, 1
    %v1288 = vld [vmem:[%s1287] sm:$0x1]
    %v1290 = vperm.slane %v1288, 0
    %v1293 = vsel %vm81, %v1284, 0
    %1295 = vmatpush.bf16.msra.mxu0 0
    %1296 = vmatpush.bf16.msra.mxu0 0
    %1297 = vmatpush.bf16.msra.mxu0 0
    %1298 = vmatpush.bf16.msra.mxu0 0
    %1299 = vmatpush.bf16.msra.mxu0 0
    %1300 = vmatpush.bf16.msra.mxu0 0
    %1301 = vmatpush.bf16.msra.mxu0 %v1286
    %1302 = vmatpush.bf16.msra.mxu0 %v1285
    %1303 = vmatmul.bf16.gmra.mxu0 %v1293
    %v1304 = vpop.f32.mrf.mxu0
    %v1305 = vadd.f32 %v1290, %v1304
    %v1306 = vpop.f32.mrf.mxu0
    %v1307 = vadd.f32 %v1290, %v1306
    %1308 = vdwg.mxu0
    %s1309 = scalar_lea.vmem %s6, 32
    %v1310 = vld [vmem:[%s1309] sm:$0xff]
    %v1311 = vld [vmem:[%s1309 + $0x8] sm:$0xff]
    %v1312 = vld [vmem:[%s1309 + $0x10] sm:$0xff]
    %v1313 = vld [vmem:[%s1309 + $0x18] sm:$0xff]
    %1315 = vrot.lane.b32.xlu0 %v1305, 96
    %v1316 = vpop.permute.xlu0 %1315
    %1318 = vxpose.xlu0.b32.start [1/16] %v1316, 128
    %1319 = vxpose.xlu0.b32.cont [2/16] 0.0, 128
    %1320 = vxpose.xlu0.b32.cont [3/16] 0.0, 128
    %1321 = vxpose.xlu0.b32.cont [4/16] 0.0, 128
    %1322 = vxpose.xlu0.b32.cont [5/16] 0.0, 128
    %1323 = vxpose.xlu0.b32.cont [6/16] 0.0, 128
    %1324 = vxpose.xlu0.b32.cont [7/16] 0.0, 128
    %1325 = vxpose.xlu0.b32.cont [8/16] 0.0, 128
    %1326 = vxpose.xlu0.b32.cont [9/16] 0.0, 128
    %1327 = vxpose.xlu0.b32.cont [10/16] 0.0, 128
    %1328 = vxpose.xlu0.b32.cont [11/16] 0.0, 128
    %1329 = vxpose.xlu0.b32.cont [12/16] 0.0, 128
    %1330 = vxpose.xlu0.b32.cont [13/16] 0.0, 128
    %1331 = vxpose.xlu0.b32.cont [14/16] 0.0, 128
    %1332 = vxpose.xlu0.b32.cont [15/16] 0.0, 128
    %1333 = vxpose.xlu0.b32.end [16/16] 0.0, 128
    %v1334 = vpop.trf.xlu0
    %v1335 = vpop.trf.xlu0
    %v1336 = vpop.trf.xlu0
    %v1337 = vpop.trf.xlu0
    %v1338 = vpop.trf.xlu0
    %v1339 = vpop.trf.xlu0
    %v1340 = vpop.trf.xlu0
    %v1341 = vpop.trf.xlu0
    %v1342 = vpop.trf.xlu0
    %v1343 = vpop.trf.xlu0
    %v1344 = vpop.trf.xlu0
    %v1345 = vpop.trf.xlu0
    %v1346 = vpop.trf.xlu0
    %v1347 = vpop.trf.xlu0
    %v1348 = vpop.trf.xlu0
    %v1349 = vpop.trf.xlu0
    %v1350 = vpack.c.bf16 %v1305, %v1305
    %v1351 = vpack.c.bf16 %v1334, %v1334
    %v1353 = vsel %vm216, %v1350, 0
    %v1356 = vsel %vm220, %v1351, 0
    %1358 = vmatpush.bf16.msra.mxu0 0
    %1359 = vmatpush.bf16.msra.mxu0 0
    %1360 = vmatpush.bf16.msra.mxu0 0
    %1361 = vmatpush.bf16.msra.mxu0 0
    %1362 = vmatpush.bf16.msra.mxu0 0
    %1363 = vmatpush.bf16.msra.mxu0 0
    %1364 = vmatpush.bf16.msra.mxu0 0
    %1365 = vmatpush.bf16.msra.mxu0 %v1356
    %1366 = vmatmul.bf16.gmra.mxu0 %v1353
    %v1367 = vpop.f32.mrf.mxu0
    %v1368 = vadd.f32 0.0, %v1367
    %v1369 = vpop.f32.mrf.mxu0
    %1370 = vdwg.mxu0
    %v1371 = vmul.f32 %v1368, 0.35355338
    %v1372 = vadd.f32 %v1371, %v238
    %v1373 = vsel %vm216, %v1372, -inf
    %1374 = vmax.xlane.f32.xlu0 %v1373
    %v1375 = vpop.xlane.xlu0 %1374
    %v1376 = vsub.f32 %v1372, %v1375
    %v1377 = vmul.f32 %v1376, 1.442695
    %v1378 = vpow.pop %v1377
    %v1379 = vsel %vm216, %v1378, 0.0
    %1380 = vadd.xlane.f32.xlu0 %v1379
    %v1381 = vpop.xlane.xlu0 %1380
    %v1382 = vrcp.pop %v1381
    %v1383 = vmul.f32 %v1378, %v1382
    %v1384 = vpack.c.bf16 %v1383, %v1383
    %1386 = vrot.lane.b32.xlu0 %v1350, 64
    %v1387 = vpop.permute.xlu0 %1386
    %v1389 = vsel %vm216, %v1384, 0
    %v1392 = vsel %vm220, %v1387, 0
    %1394 = vmatpush.bf16.msra.mxu0 0
    %1395 = vmatpush.bf16.msra.mxu0 0
    %1396 = vmatpush.bf16.msra.mxu0 0
    %1397 = vmatpush.bf16.msra.mxu0 0
    %1398 = vmatpush.bf16.msra.mxu0 0
    %1399 = vmatpush.bf16.msra.mxu0 0
    %1400 = vmatpush.bf16.msra.mxu0 0
    %1401 = vmatpush.bf16.msra.mxu0 %v1392
    %1402 = vmatmul.bf16.gmra.mxu0 %v1389
    %v1403 = vpop.f32.mrf.mxu0
    %v1404 = vadd.f32 0.0, %v1403
    %v1405 = vpop.f32.mrf.mxu0
    %1406 = vdwg.mxu0
    %v1407 = vpack.c.bf16 %v1404, %v1404
    %v1408 = vpack.c.bf16 %v1310, %v1310
    %1409 = vrot.lane.b32.xlu0 %v1305, 88
    %v1410 = vpop.permute.xlu0 %1409
    %1412 = vxpose.xlu0.b32.start [1/16] %v1410, 128
    %1413 = vxpose.xlu0.b32.cont [2/16] 0.0, 128
    %1414 = vxpose.xlu0.b32.cont [3/16] 0.0, 128
    %1415 = vxpose.xlu0.b32.cont [4/16] 0.0, 128
    %1416 = vxpose.xlu0.b32.cont [5/16] 0.0, 128
    %1417 = vxpose.xlu0.b32.cont [6/16] 0.0, 128
    %1418 = vxpose.xlu0.b32.cont [7/16] 0.0, 128
    %1419 = vxpose.xlu0.b32.cont [8/16] 0.0, 128
    %1420 = vxpose.xlu0.b32.cont [9/16] 0.0, 128
    %1421 = vxpose.xlu0.b32.cont [10/16] 0.0, 128
    %1422 = vxpose.xlu0.b32.cont [11/16] 0.0, 128
    %1423 = vxpose.xlu0.b32.cont [12/16] 0.0, 128
    %1424 = vxpose.xlu0.b32.cont [13/16] 0.0, 128
    %1425 = vxpose.xlu0.b32.cont [14/16] 0.0, 128
    %1426 = vxpose.xlu0.b32.cont [15/16] 0.0, 128
    %1427 = vxpose.xlu0.b32.end [16/16] 0.0, 128
    %v1428 = vpop.trf.xlu0
    %v1429 = vpop.trf.xlu0
    %v1430 = vpop.trf.xlu0
    %v1431 = vpop.trf.xlu0
    %v1432 = vpop.trf.xlu0
    %v1433 = vpop.trf.xlu0
    %v1434 = vpop.trf.xlu0
    %v1435 = vpop.trf.xlu0
    %v1436 = vpop.trf.xlu0
    %v1437 = vpop.trf.xlu0
    %v1438 = vpop.trf.xlu0
    %v1439 = vpop.trf.xlu0
    %v1440 = vpop.trf.xlu0
    %v1441 = vpop.trf.xlu0
    %v1442 = vpop.trf.xlu0
    %v1443 = vpop.trf.xlu0
    %v1444 = vpack.c.bf16 %v1428, %v1428
    %1445 = vrot.lane.b32.xlu0 %v1350, 120
    %v1446 = vpop.permute.xlu0 %1445
    %v1448 = vsel %vm216, %v1446, 0
    %v1451 = vsel %vm220, %v1444, 0
    %1453 = vmatpush.bf16.msra.mxu0 0
    %1454 = vmatpush.bf16.msra.mxu0 0
    %1455 = vmatpush.bf16.msra.mxu0 0
    %1456 = vmatpush.bf16.msra.mxu0 0
    %1457 = vmatpush.bf16.msra.mxu0 0
    %1458 = vmatpush.bf16.msra.mxu0 0
    %1459 = vmatpush.bf16.msra.mxu0 0
    %1460 = vmatpush.bf16.msra.mxu0 %v1451
    %1461 = vmatmul.bf16.gmra.mxu0 %v1448
    %v1462 = vpop.f32.mrf.mxu0
    %v1463 = vadd.f32 0.0, %v1462
    %v1464 = vpop.f32.mrf.mxu0
    %1465 = vdwg.mxu0
    %v1466 = vmul.f32 %v1463, 0.35355338
    %v1467 = vadd.f32 %v1466, %v238
    %v1468 = vsel %vm216, %v1467, -inf
    %1469 = vmax.xlane.f32.xlu0 %v1468
    %v1470 = vpop.xlane.xlu0 %1469
    %v1471 = vsub.f32 %v1467, %v1470
    %v1472 = vmul.f32 %v1471, 1.442695
    %v1473 = vpow.pop %v1472
    %v1474 = vsel %vm216, %v1473, 0.0
    %1475 = vadd.xlane.f32.xlu0 %v1474
    %v1476 = vpop.xlane.xlu0 %1475
    %v1477 = vrcp.pop %v1476
    %v1478 = vmul.f32 %v1473, %v1477
    %v1479 = vpack.c.bf16 %v1478, %v1478
    %1480 = vrot.lane.b32.xlu0 %v1350, 56
    %v1481 = vpop.permute.xlu0 %1480
    %v1483 = vsel %vm216, %v1479, 0
    %v1486 = vsel %vm220, %v1481, 0
    %1488 = vmatpush.bf16.msra.mxu0 0
    %1489 = vmatpush.bf16.msra.mxu0 0
    %1490 = vmatpush.bf16.msra.mxu0 0
    %1491 = vmatpush.bf16.msra.mxu0 0
    %1492 = vmatpush.bf16.msra.mxu0 0
    %1493 = vmatpush.bf16.msra.mxu0 0
    %1494 = vmatpush.bf16.msra.mxu0 0
    %1495 = vmatpush.bf16.msra.mxu0 %v1486
    %1496 = vmatmul.bf16.gmra.mxu0 %v1483
    %v1497 = vpop.f32.mrf.mxu0
    %v1498 = vadd.f32 0.0, %v1497
    %v1499 = vpop.f32.mrf.mxu0
    %1500 = vdwg.mxu0
    %v1501 = vpack.c.bf16 %v1498, %v1498
    %v1502 = vpack.c.bf16 %v1311, %v1311
    %v1504 = vsel %vm216, %v1501, 0
    %v1507 = vsel %vm220, %v1502, 0
    %1509 = vmatpush.bf16.msra.mxu0 0
    %1510 = vmatpush.bf16.msra.mxu0 0
    %1511 = vmatpush.bf16.msra.mxu0 0
    %1512 = vmatpush.bf16.msra.mxu0 0
    %1513 = vmatpush.bf16.msra.mxu0 0
    %1514 = vmatpush.bf16.msra.mxu0 0
    %1515 = vmatpush.bf16.msra.mxu0 0
    %1516 = vmatpush.bf16.msra.mxu0 %v1507
    %1517 = vmatmul.bf16.gmra.mxu0 %v1504
    %v1518 = vpop.f32.mrf.mxu0
    %v1519 = vadd.f32 0.0, %v1518
    %v1520 = vpop.f32.mrf.mxu0
    %1521 = vdwg.mxu0
    %v1523 = vsel %vm216, %v1407, 0
    %v1526 = vsel %vm220, %v1408, 0
    %1528 = vmatpush.bf16.msra.mxu0 0
    %1529 = vmatpush.bf16.msra.mxu0 0
    %1530 = vmatpush.bf16.msra.mxu0 0
    %1531 = vmatpush.bf16.msra.mxu0 0
    %1532 = vmatpush.bf16.msra.mxu0 0
    %1533 = vmatpush.bf16.msra.mxu0 0
    %1534 = vmatpush.bf16.msra.mxu0 0
    %1535 = vmatpush.bf16.msra.mxu0 %v1526
    %1536 = vmatmul.bf16.gmra.mxu0 %v1523
    %v1537 = vpop.f32.mrf.mxu0
    %v1538 = vadd.f32 %v1519, %v1537
    %v1539 = vpop.f32.mrf.mxu0
    %1540 = vdwg.mxu0
    %1541 = vrot.lane.b32.xlu0 %v1305, 80
    %v1542 = vpop.permute.xlu0 %1541
    %1544 = vxpose.xlu0.b32.start [1/16] %v1542, 128
    %1545 = vxpose.xlu0.b32.cont [2/16] 0.0, 128
    %1546 = vxpose.xlu0.b32.cont [3/16] 0.0, 128
    %1547 = vxpose.xlu0.b32.cont [4/16] 0.0, 128
    %1548 = vxpose.xlu0.b32.cont [5/16] 0.0, 128
    %1549 = vxpose.xlu0.b32.cont [6/16] 0.0, 128
    %1550 = vxpose.xlu0.b32.cont [7/16] 0.0, 128
    %1551 = vxpose.xlu0.b32.cont [8/16] 0.0, 128
    %1552 = vxpose.xlu0.b32.cont [9/16] 0.0, 128
    %1553 = vxpose.xlu0.b32.cont [10/16] 0.0, 128
    %1554 = vxpose.xlu0.b32.cont [11/16] 0.0, 128
    %1555 = vxpose.xlu0.b32.cont [12/16] 0.0, 128
    %1556 = vxpose.xlu0.b32.cont [13/16] 0.0, 128
    %1557 = vxpose.xlu0.b32.cont [14/16] 0.0, 128
    %1558 = vxpose.xlu0.b32.cont [15/16] 0.0, 128
    %1559 = vxpose.xlu0.b32.end [16/16] 0.0, 128
    %v1560 = vpop.trf.xlu0
    %v1561 = vpop.trf.xlu0
    %v1562 = vpop.trf.xlu0
    %v1563 = vpop.trf.xlu0
    %v1564 = vpop.trf.xlu0
    %v1565 = vpop.trf.xlu0
    %v1566 = vpop.trf.xlu0
    %v1567 = vpop.trf.xlu0
    %v1568 = vpop.trf.xlu0
    %v1569 = vpop.trf.xlu0
    %v1570 = vpop.trf.xlu0
    %v1571 = vpop.trf.xlu0
    %v1572 = vpop.trf.xlu0
    %v1573 = vpop.trf.xlu0
    %v1574 = vpop.trf.xlu0
    %v1575 = vpop.trf.xlu0
    %v1576 = vpack.c.bf16 %v1560, %v1560
    %1577 = vrot.lane.b32.xlu0 %v1350, 112
    %v1578 = vpop.permute.xlu0 %1577
    %v1580 = vsel %vm216, %v1578, 0
    %v1583 = vsel %vm220, %v1576, 0
    %1585 = vmatpush.bf16.msra.mxu0 0
    %1586 = vmatpush.bf16.msra.mxu0 0
    %1587 = vmatpush.bf16.msra.mxu0 0
    %1588 = vmatpush.bf16.msra.mxu0 0
    %1589 = vmatpush.bf16.msra.mxu0 0
    %1590 = vmatpush.bf16.msra.mxu0 0
    %1591 = vmatpush.bf16.msra.mxu0 0
    %1592 = vmatpush.bf16.msra.mxu0 %v1583
    %1593 = vmatmul.bf16.gmra.mxu0 %v1580
    %v1594 = vpop.f32.mrf.mxu0
    %v1595 = vadd.f32 0.0, %v1594
    %v1596 = vpop.f32.mrf.mxu0
    %1597 = vdwg.mxu0
    %v1598 = vmul.f32 %v1595, 0.35355338
    %v1599 = vadd.f32 %v1598, %v238
    %v1600 = vsel %vm216, %v1599, -inf
    %1601 = vmax.xlane.f32.xlu0 %v1600
    %v1602 = vpop.xlane.xlu0 %1601
    %v1603 = vsub.f32 %v1599, %v1602
    %v1604 = vmul.f32 %v1603, 1.442695
    %v1605 = vpow.pop %v1604
    %v1606 = vsel %vm216, %v1605, 0.0
    %1607 = vadd.xlane.f32.xlu0 %v1606
    %v1608 = vpop.xlane.xlu0 %1607
    %v1609 = vrcp.pop %v1608
    %v1610 = vmul.f32 %v1605, %v1609
    %v1611 = vpack.c.bf16 %v1610, %v1610
    %1612 = vrot.lane.b32.xlu0 %v1350, 48
    %v1613 = vpop.permute.xlu0 %1612
    %v1615 = vsel %vm216, %v1611, 0
    %v1618 = vsel %vm220, %v1613, 0
    %1620 = vmatpush.bf16.msra.mxu0 0
    %1621 = vmatpush.bf16.msra.mxu0 0
    %1622 = vmatpush.bf16.msra.mxu0 0
    %1623 = vmatpush.bf16.msra.mxu0 0
    %1624 = vmatpush.bf16.msra.mxu0 0
    %1625 = vmatpush.bf16.msra.mxu0 0
    %1626 = vmatpush.bf16.msra.mxu0 0
    %1627 = vmatpush.bf16.msra.mxu0 %v1618
    %1628 = vmatmul.bf16.gmra.mxu0 %v1615
    %v1629 = vpop.f32.mrf.mxu0
    %v1630 = vadd.f32 0.0, %v1629
    %v1631 = vpop.f32.mrf.mxu0
    %1632 = vdwg.mxu0
    %v1633 = vpack.c.bf16 %v1630, %v1630
    %v1634 = vpack.c.bf16 %v1312, %v1312
    %v1636 = vsel %vm216, %v1633, 0
    %v1639 = vsel %vm220, %v1634, 0
    %1641 = vmatpush.bf16.msra.mxu0 0
    %1642 = vmatpush.bf16.msra.mxu0 0
    %1643 = vmatpush.bf16.msra.mxu0 0
    %1644 = vmatpush.bf16.msra.mxu0 0
    %1645 = vmatpush.bf16.msra.mxu0 0
    %1646 = vmatpush.bf16.msra.mxu0 0
    %1647 = vmatpush.bf16.msra.mxu0 0
    %1648 = vmatpush.bf16.msra.mxu0 %v1639
    %1649 = vmatmul.bf16.gmra.mxu0 %v1636
    %v1650 = vpop.f32.mrf.mxu0
    %v1651 = vadd.f32 0.0, %v1650
    %v1652 = vpop.f32.mrf.mxu0
    %1653 = vdwg.mxu0
    %v1654 = vadd.f32 %v1538, %v1651
    %1655 = vrot.lane.b32.xlu0 %v1305, 72
    %v1656 = vpop.permute.xlu0 %1655
    %1658 = vxpose.xlu0.b32.start [1/16] %v1656, 128
    %1659 = vxpose.xlu0.b32.cont [2/16] 0.0, 128
    %1660 = vxpose.xlu0.b32.cont [3/16] 0.0, 128
    %1661 = vxpose.xlu0.b32.cont [4/16] 0.0, 128
    %1662 = vxpose.xlu0.b32.cont [5/16] 0.0, 128
    %1663 = vxpose.xlu0.b32.cont [6/16] 0.0, 128
    %1664 = vxpose.xlu0.b32.cont [7/16] 0.0, 128
    %1665 = vxpose.xlu0.b32.cont [8/16] 0.0, 128
    %1666 = vxpose.xlu0.b32.cont [9/16] 0.0, 128
    %1667 = vxpose.xlu0.b32.cont [10/16] 0.0, 128
    %1668 = vxpose.xlu0.b32.cont [11/16] 0.0, 128
    %1669 = vxpose.xlu0.b32.cont [12/16] 0.0, 128
    %1670 = vxpose.xlu0.b32.cont [13/16] 0.0, 128
    %1671 = vxpose.xlu0.b32.cont [14/16] 0.0, 128
    %1672 = vxpose.xlu0.b32.cont [15/16] 0.0, 128
    %1673 = vxpose.xlu0.b32.end [16/16] 0.0, 128
    %v1674 = vpop.trf.xlu0
    %v1675 = vpop.trf.xlu0
    %v1676 = vpop.trf.xlu0
    %v1677 = vpop.trf.xlu0
    %v1678 = vpop.trf.xlu0
    %v1679 = vpop.trf.xlu0
    %v1680 = vpop.trf.xlu0
    %v1681 = vpop.trf.xlu0
    %v1682 = vpop.trf.xlu0
    %v1683 = vpop.trf.xlu0
    %v1684 = vpop.trf.xlu0
    %v1685 = vpop.trf.xlu0
    %v1686 = vpop.trf.xlu0
    %v1687 = vpop.trf.xlu0
    %v1688 = vpop.trf.xlu0
    %v1689 = vpop.trf.xlu0
    %v1690 = vpack.c.bf16 %v1674, %v1674
    %1691 = vrot.lane.b32.xlu0 %v1350, 104
    %v1692 = vpop.permute.xlu0 %1691
    %v1694 = vsel %vm216, %v1692, 0
    %v1697 = vsel %vm220, %v1690, 0
    %1699 = vmatpush.bf16.msra.mxu0 0
    %1700 = vmatpush.bf16.msra.mxu0 0
    %1701 = vmatpush.bf16.msra.mxu0 0
    %1702 = vmatpush.bf16.msra.mxu0 0
    %1703 = vmatpush.bf16.msra.mxu0 0
    %1704 = vmatpush.bf16.msra.mxu0 0
    %1705 = vmatpush.bf16.msra.mxu0 0
    %1706 = vmatpush.bf16.msra.mxu0 %v1697
    %1707 = vmatmul.bf16.gmra.mxu0 %v1694
    %v1708 = vpop.f32.mrf.mxu0
    %v1709 = vadd.f32 0.0, %v1708
    %v1710 = vpop.f32.mrf.mxu0
    %1711 = vdwg.mxu0
    %v1712 = vmul.f32 %v1709, 0.35355338
    %v1713 = vadd.f32 %v1712, %v238
    %v1714 = vsel %vm216, %v1713, -inf
    %1715 = vmax.xlane.f32.xlu0 %v1714
    %v1716 = vpop.xlane.xlu0 %1715
    %v1717 = vsub.f32 %v1713, %v1716
    %v1718 = vmul.f32 %v1717, 1.442695
    %v1719 = vpow.pop %v1718
    %v1720 = vsel %vm216, %v1719, 0.0
    %1721 = vadd.xlane.f32.xlu0 %v1720
    %v1722 = vpop.xlane.xlu0 %1721
    %v1723 = vrcp.pop %v1722
    %v1724 = vmul.f32 %v1719, %v1723
    %v1725 = vpack.c.bf16 %v1724, %v1724
    %1726 = vrot.lane.b32.xlu0 %v1350, 40
    %v1727 = vpop.permute.xlu0 %1726
    %v1729 = vsel %vm216, %v1725, 0
    %v1732 = vsel %vm220, %v1727, 0
    %1734 = vmatpush.bf16.msra.mxu0 0
    %1735 = vmatpush.bf16.msra.mxu0 0
    %1736 = vmatpush.bf16.msra.mxu0 0
    %1737 = vmatpush.bf16.msra.mxu0 0
    %1738 = vmatpush.bf16.msra.mxu0 0
    %1739 = vmatpush.bf16.msra.mxu0 0
    %1740 = vmatpush.bf16.msra.mxu0 0
    %1741 = vmatpush.bf16.msra.mxu0 %v1732
    %1742 = vmatmul.bf16.gmra.mxu0 %v1729
    %v1743 = vpop.f32.mrf.mxu0
    %v1744 = vadd.f32 0.0, %v1743
    %v1745 = vpop.f32.mrf.mxu0
    %1746 = vdwg.mxu0
    %v1747 = vpack.c.bf16 %v1744, %v1744
    %v1748 = vpack.c.bf16 %v1313, %v1313
    %v1750 = vsel %vm216, %v1747, 0
    %v1753 = vsel %vm220, %v1748, 0
    %1755 = vmatpush.bf16.msra.mxu0 0
    %1756 = vmatpush.bf16.msra.mxu0 0
    %1757 = vmatpush.bf16.msra.mxu0 0
    %1758 = vmatpush.bf16.msra.mxu0 0
    %1759 = vmatpush.bf16.msra.mxu0 0
    %1760 = vmatpush.bf16.msra.mxu0 0
    %1761 = vmatpush.bf16.msra.mxu0 0
    %1762 = vmatpush.bf16.msra.mxu0 %v1753
    %1763 = vmatmul.bf16.gmra.mxu0 %v1750
    %v1764 = vpop.f32.mrf.mxu0
    %v1765 = vadd.f32 0.0, %v1764
    %v1766 = vpop.f32.mrf.mxu0
    %1767 = vdwg.mxu0
    %v1768 = vadd.f32 %v1654, %v1765
    %1770 = vrot.lane.b32.xlu0 %v1307, 96
    %v1771 = vpop.permute.xlu0 %1770
    %1773 = vxpose.xlu0.b32.start [1/16] %v1771, 128
    %1774 = vxpose.xlu0.b32.cont [2/16] 0.0, 128
    %1775 = vxpose.xlu0.b32.cont [3/16] 0.0, 128
    %1776 = vxpose.xlu0.b32.cont [4/16] 0.0, 128
    %1777 = vxpose.xlu0.b32.cont [5/16] 0.0, 128
    %1778 = vxpose.xlu0.b32.cont [6/16] 0.0, 128
    %1779 = vxpose.xlu0.b32.cont [7/16] 0.0, 128
    %1780 = vxpose.xlu0.b32.cont [8/16] 0.0, 128
    %1781 = vxpose.xlu0.b32.cont [9/16] 0.0, 128
    %1782 = vxpose.xlu0.b32.cont [10/16] 0.0, 128
    %1783 = vxpose.xlu0.b32.cont [11/16] 0.0, 128
    %1784 = vxpose.xlu0.b32.cont [12/16] 0.0, 128
    %1785 = vxpose.xlu0.b32.cont [13/16] 0.0, 128
    %1786 = vxpose.xlu0.b32.cont [14/16] 0.0, 128
    %1787 = vxpose.xlu0.b32.cont [15/16] 0.0, 128
    %1788 = vxpose.xlu0.b32.end [16/16] 0.0, 128
    %v1789 = vpop.trf.xlu0
    %v1790 = vpop.trf.xlu0
    %v1791 = vpop.trf.xlu0
    %v1792 = vpop.trf.xlu0
    %v1793 = vpop.trf.xlu0
    %v1794 = vpop.trf.xlu0
    %v1795 = vpop.trf.xlu0
    %v1796 = vpop.trf.xlu0
    %v1797 = vpop.trf.xlu0
    %v1798 = vpop.trf.xlu0
    %v1799 = vpop.trf.xlu0
    %v1800 = vpop.trf.xlu0
    %v1801 = vpop.trf.xlu0
    %v1802 = vpop.trf.xlu0
    %v1803 = vpop.trf.xlu0
    %v1804 = vpop.trf.xlu0
    %v1805 = vpack.c.bf16 %v1307, %v1307
    %v1806 = vpack.c.bf16 %v1789, %v1789
    %v1808 = vsel %vm216, %v1805, 0
    %v1811 = vsel %vm220, %v1806, 0
    %1813 = vmatpush.bf16.msra.mxu0 0
    %1814 = vmatpush.bf16.msra.mxu0 0
    %1815 = vmatpush.bf16.msra.mxu0 0
    %1816 = vmatpush.bf16.msra.mxu0 0
    %1817 = vmatpush.bf16.msra.mxu0 0
    %1818 = vmatpush.bf16.msra.mxu0 0
    %1819 = vmatpush.bf16.msra.mxu0 0
    %1820 = vmatpush.bf16.msra.mxu0 %v1811
    %1821 = vmatmul.bf16.gmra.mxu0 %v1808
    %v1822 = vpop.f32.mrf.mxu0
    %v1823 = vadd.f32 0.0, %v1822
    %v1824 = vpop.f32.mrf.mxu0
    %1825 = vdwg.mxu0
    %v1826 = vmul.f32 %v1823, 0.35355338
    %v1827 = vadd.f32 %v1826, %v694
    %v1828 = vsel %vm216, %v1827, -inf
    %1829 = vmax.xlane.f32.xlu0 %v1828
    %v1830 = vpop.xlane.xlu0 %1829
    %v1831 = vsub.f32 %v1827, %v1830
    %v1832 = vmul.f32 %v1831, 1.442695
    %v1833 = vpow.pop %v1832
    %v1834 = vsel %vm216, %v1833, 0.0
    %1835 = vadd.xlane.f32.xlu0 %v1834
    %v1836 = vpop.xlane.xlu0 %1835
    %v1837 = vrcp.pop %v1836
    %v1838 = vmul.f32 %v1833, %v1837
    %v1839 = vpack.c.bf16 %v1838, %v1838
    %1841 = vrot.lane.b32.xlu0 %v1805, 64
    %v1842 = vpop.permute.xlu0 %1841
    %v1844 = vsel %vm216, %v1839, 0
    %v1847 = vsel %vm220, %v1842, 0
    %1849 = vmatpush.bf16.msra.mxu0 0
    %1850 = vmatpush.bf16.msra.mxu0 0
    %1851 = vmatpush.bf16.msra.mxu0 0
    %1852 = vmatpush.bf16.msra.mxu0 0
    %1853 = vmatpush.bf16.msra.mxu0 0
    %1854 = vmatpush.bf16.msra.mxu0 0
    %1855 = vmatpush.bf16.msra.mxu0 0
    %1856 = vmatpush.bf16.msra.mxu0 %v1847
    %1857 = vmatmul.bf16.gmra.mxu0 %v1844
    %v1858 = vpop.f32.mrf.mxu0
    %v1859 = vadd.f32 0.0, %v1858
    %v1860 = vpop.f32.mrf.mxu0
    %1861 = vdwg.mxu0
    %v1862 = vpack.c.bf16 %v1859, %v1859
    %1863 = vrot.lane.b32.xlu0 %v1307, 88
    %v1864 = vpop.permute.xlu0 %1863
    %1866 = vxpose.xlu0.b32.start [1/16] %v1864, 128
    %1867 = vxpose.xlu0.b32.cont [2/16] 0.0, 128
    %1868 = vxpose.xlu0.b32.cont [3/16] 0.0, 128
    %1869 = vxpose.xlu0.b32.cont [4/16] 0.0, 128
    %1870 = vxpose.xlu0.b32.cont [5/16] 0.0, 128
    %1871 = vxpose.xlu0.b32.cont [6/16] 0.0, 128
    %1872 = vxpose.xlu0.b32.cont [7/16] 0.0, 128
    %1873 = vxpose.xlu0.b32.cont [8/16] 0.0, 128
    %1874 = vxpose.xlu0.b32.cont [9/16] 0.0, 128
    %1875 = vxpose.xlu0.b32.cont [10/16] 0.0, 128
    %1876 = vxpose.xlu0.b32.cont [11/16] 0.0, 128
    %1877 = vxpose.xlu0.b32.cont [12/16] 0.0, 128
    %1878 = vxpose.xlu0.b32.cont [13/16] 0.0, 128
    %1879 = vxpose.xlu0.b32.cont [14/16] 0.0, 128
    %1880 = vxpose.xlu0.b32.cont [15/16] 0.0, 128
    %1881 = vxpose.xlu0.b32.end [16/16] 0.0, 128
    %v1882 = vpop.trf.xlu0
    %v1883 = vpop.trf.xlu0
    %v1884 = vpop.trf.xlu0
    %v1885 = vpop.trf.xlu0
    %v1886 = vpop.trf.xlu0
    %v1887 = vpop.trf.xlu0
    %v1888 = vpop.trf.xlu0
    %v1889 = vpop.trf.xlu0
    %v1890 = vpop.trf.xlu0
    %v1891 = vpop.trf.xlu0
    %v1892 = vpop.trf.xlu0
    %v1893 = vpop.trf.xlu0
    %v1894 = vpop.trf.xlu0
    %v1895 = vpop.trf.xlu0
    %v1896 = vpop.trf.xlu0
    %v1897 = vpop.trf.xlu0
    %v1898 = vpack.c.bf16 %v1882, %v1882
    %1899 = vrot.lane.b32.xlu0 %v1805, 120
    %v1900 = vpop.permute.xlu0 %1899
    %v1902 = vsel %vm216, %v1900, 0
    %v1905 = vsel %vm220, %v1898, 0
    %1907 = vmatpush.bf16.msra.mxu0 0
    %1908 = vmatpush.bf16.msra.mxu0 0
    %1909 = vmatpush.bf16.msra.mxu0 0
    %1910 = vmatpush.bf16.msra.mxu0 0
    %1911 = vmatpush.bf16.msra.mxu0 0
    %1912 = vmatpush.bf16.msra.mxu0 0
    %1913 = vmatpush.bf16.msra.mxu0 0
    %1914 = vmatpush.bf16.msra.mxu0 %v1905
    %1915 = vmatmul.bf16.gmra.mxu0 %v1902
    %v1916 = vpop.f32.mrf.mxu0
    %v1917 = vadd.f32 0.0, %v1916
    %v1918 = vpop.f32.mrf.mxu0
    %1919 = vdwg.mxu0
    %v1920 = vmul.f32 %v1917, 0.35355338
    %v1921 = vadd.f32 %v1920, %v694
    %v1922 = vsel %vm216, %v1921, -inf
    %1923 = vmax.xlane.f32.xlu0 %v1922
    %v1924 = vpop.xlane.xlu0 %1923
    %v1925 = vsub.f32 %v1921, %v1924
    %v1926 = vmul.f32 %v1925, 1.442695
    %v1927 = vpow.pop %v1926
    %v1928 = vsel %vm216, %v1927, 0.0
    %1929 = vadd.xlane.f32.xlu0 %v1928
    %v1930 = vpop.xlane.xlu0 %1929
    %v1931 = vrcp.pop %v1930
    %v1932 = vmul.f32 %v1927, %v1931
    %v1933 = vpack.c.bf16 %v1932, %v1932
    %1934 = vrot.lane.b32.xlu0 %v1805, 56
    %v1935 = vpop.permute.xlu0 %1934
    %v1937 = vsel %vm216, %v1933, 0
    %v1940 = vsel %vm220, %v1935, 0
    %1942 = vmatpush.bf16.msra.mxu0 0
    %1943 = vmatpush.bf16.msra.mxu0 0
    %1944 = vmatpush.bf16.msra.mxu0 0
    %1945 = vmatpush.bf16.msra.mxu0 0
    %1946 = vmatpush.bf16.msra.mxu0 0
    %1947 = vmatpush.bf16.msra.mxu0 0
    %1948 = vmatpush.bf16.msra.mxu0 0
    %1949 = vmatpush.bf16.msra.mxu0 %v1940
    %1950 = vmatmul.bf16.gmra.mxu0 %v1937
    %v1951 = vpop.f32.mrf.mxu0
    %v1952 = vadd.f32 0.0, %v1951
    %v1953 = vpop.f32.mrf.mxu0
    %1954 = vdwg.mxu0
    %v1955 = vpack.c.bf16 %v1952, %v1952
    %v1957 = vsel %vm216, %v1955, 0
    %1959 = vmatpush.bf16.msra.mxu0 0
    %1960 = vmatpush.bf16.msra.mxu0 0
    %1961 = vmatpush.bf16.msra.mxu0 0
    %1962 = vmatpush.bf16.msra.mxu0 0
    %1963 = vmatpush.bf16.msra.mxu0 0
    %1964 = vmatpush.bf16.msra.mxu0 0
    %1965 = vmatpush.bf16.msra.mxu0 0
    %1966 = vmatpush.bf16.msra.mxu0 %v1507
    %1967 = vmatmul.bf16.gmra.mxu0 %v1957
    %v1968 = vpop.f32.mrf.mxu0
    %v1969 = vadd.f32 0.0, %v1968
    %v1970 = vpop.f32.mrf.mxu0
    %1971 = vdwg.mxu0
    %v1973 = vsel %vm216, %v1862, 0
    %1975 = vmatpush.bf16.msra.mxu0 0
    %1976 = vmatpush.bf16.msra.mxu0 0
    %1977 = vmatpush.bf16.msra.mxu0 0
    %1978 = vmatpush.bf16.msra.mxu0 0
    %1979 = vmatpush.bf16.msra.mxu0 0
    %1980 = vmatpush.bf16.msra.mxu0 0
    %1981 = vmatpush.bf16.msra.mxu0 0
    %1982 = vmatpush.bf16.msra.mxu0 %v1526
    %1983 = vmatmul.bf16.gmra.mxu0 %v1973
    %v1984 = vpop.f32.mrf.mxu0
    %v1985 = vadd.f32 %v1969, %v1984
    %v1986 = vpop.f32.mrf.mxu0
    %1987 = vdwg.mxu0
    %1988 = vrot.lane.b32.xlu0 %v1307, 80
    %v1989 = vpop.permute.xlu0 %1988
    %1991 = vxpose.xlu0.b32.start [1/16] %v1989, 128
    %1992 = vxpose.xlu0.b32.cont [2/16] 0.0, 128
    %1993 = vxpose.xlu0.b32.cont [3/16] 0.0, 128
    %1994 = vxpose.xlu0.b32.cont [4/16] 0.0, 128
    %1995 = vxpose.xlu0.b32.cont [5/16] 0.0, 128
    %1996 = vxpose.xlu0.b32.cont [6/16] 0.0, 128
    %1997 = vxpose.xlu0.b32.cont [7/16] 0.0, 128
    %1998 = vxpose.xlu0.b32.cont [8/16] 0.0, 128
    %1999 = vxpose.xlu0.b32.cont [9/16] 0.0, 128
    %2000 = vxpose.xlu0.b32.cont [10/16] 0.0, 128
    %2001 = vxpose.xlu0.b32.cont [11/16] 0.0, 128
    %2002 = vxpose.xlu0.b32.cont [12/16] 0.0, 128
    %2003 = vxpose.xlu0.b32.cont [13/16] 0.0, 128
    %2004 = vxpose.xlu0.b32.cont [14/16] 0.0, 128
    %2005 = vxpose.xlu0.b32.cont [15/16] 0.0, 128
    %2006 = vxpose.xlu0.b32.end [16/16] 0.0, 128
    %v2007 = vpop.trf.xlu0
    %v2008 = vpop.trf.xlu0
    %v2009 = vpop.trf.xlu0
    %v2010 = vpop.trf.xlu0
    %v2011 = vpop.trf.xlu0
    %v2012 = vpop.trf.xlu0
    %v2013 = vpop.trf.xlu0
    %v2014 = vpop.trf.xlu0
    %v2015 = vpop.trf.xlu0
    %v2016 = vpop.trf.xlu0
    %v2017 = vpop.trf.xlu0
    %v2018 = vpop.trf.xlu0
    %v2019 = vpop.trf.xlu0
    %v2020 = vpop.trf.xlu0
    %v2021 = vpop.trf.xlu0
    %v2022 = vpop.trf.xlu0
    %v2023 = vpack.c.bf16 %v2007, %v2007
    %2024 = vrot.lane.b32.xlu0 %v1805, 112
    %v2025 = vpop.permute.xlu0 %2024
    %v2027 = vsel %vm216, %v2025, 0
    %v2030 = vsel %vm220, %v2023, 0
    %2032 = vmatpush.bf16.msra.mxu0 0
    %2033 = vmatpush.bf16.msra.mxu0 0
    %2034 = vmatpush.bf16.msra.mxu0 0
    %2035 = vmatpush.bf16.msra.mxu0 0
    %2036 = vmatpush.bf16.msra.mxu0 0
    %2037 = vmatpush.bf16.msra.mxu0 0
    %2038 = vmatpush.bf16.msra.mxu0 0
    %2039 = vmatpush.bf16.msra.mxu0 %v2030
    %2040 = vmatmul.bf16.gmra.mxu0 %v2027
    %v2041 = vpop.f32.mrf.mxu0
    %v2042 = vadd.f32 0.0, %v2041
    %v2043 = vpop.f32.mrf.mxu0
    %2044 = vdwg.mxu0
    %v2045 = vmul.f32 %v2042, 0.35355338
    %v2046 = vadd.f32 %v2045, %v694
    %v2047 = vsel %vm216, %v2046, -inf
    %2048 = vmax.xlane.f32.xlu0 %v2047
    %v2049 = vpop.xlane.xlu0 %2048
    %v2050 = vsub.f32 %v2046, %v2049
    %v2051 = vmul.f32 %v2050, 1.442695
    %v2052 = vpow.pop %v2051
    %v2053 = vsel %vm216, %v2052, 0.0
    %2054 = vadd.xlane.f32.xlu0 %v2053
    %v2055 = vpop.xlane.xlu0 %2054
    %v2056 = vrcp.pop %v2055
    %v2057 = vmul.f32 %v2052, %v2056
    %v2058 = vpack.c.bf16 %v2057, %v2057
    %2059 = vrot.lane.b32.xlu0 %v1805, 48
    %v2060 = vpop.permute.xlu0 %2059
    %v2062 = vsel %vm216, %v2058, 0
    %v2065 = vsel %vm220, %v2060, 0
    %2067 = vmatpush.bf16.msra.mxu0 0
    %2068 = vmatpush.bf16.msra.mxu0 0
    %2069 = vmatpush.bf16.msra.mxu0 0
    %2070 = vmatpush.bf16.msra.mxu0 0
    %2071 = vmatpush.bf16.msra.mxu0 0
    %2072 = vmatpush.bf16.msra.mxu0 0
    %2073 = vmatpush.bf16.msra.mxu0 0
    %2074 = vmatpush.bf16.msra.mxu0 %v2065
    %2075 = vmatmul.bf16.gmra.mxu0 %v2062
    %v2076 = vpop.f32.mrf.mxu0
    %v2077 = vadd.f32 0.0, %v2076
    %v2078 = vpop.f32.mrf.mxu0
    %2079 = vdwg.mxu0
    %v2080 = vpack.c.bf16 %v2077, %v2077
    %v2082 = vsel %vm216, %v2080, 0
    %2084 = vmatpush.bf16.msra.mxu0 0
    %2085 = vmatpush.bf16.msra.mxu0 0
    %2086 = vmatpush.bf16.msra.mxu0 0
    %2087 = vmatpush.bf16.msra.mxu0 0
    %2088 = vmatpush.bf16.msra.mxu0 0
    %2089 = vmatpush.bf16.msra.mxu0 0
    %2090 = vmatpush.bf16.msra.mxu0 0
    %2091 = vmatpush.bf16.msra.mxu0 %v1639
    %2092 = vmatmul.bf16.gmra.mxu0 %v2082
    %v2093 = vpop.f32.mrf.mxu0
    %v2094 = vadd.f32 0.0, %v2093
    %v2095 = vpop.f32.mrf.mxu0
    %2096 = vdwg.mxu0
    %v2097 = vadd.f32 %v1985, %v2094
    %2098 = vrot.lane.b32.xlu0 %v1307, 72
    %v2099 = vpop.permute.xlu0 %2098
    %2101 = vxpose.xlu0.b32.start [1/16] %v2099, 128
    %2102 = vxpose.xlu0.b32.cont [2/16] 0.0, 128
    %2103 = vxpose.xlu0.b32.cont [3/16] 0.0, 128
    %2104 = vxpose.xlu0.b32.cont [4/16] 0.0, 128
    %2105 = vxpose.xlu0.b32.cont [5/16] 0.0, 128
    %2106 = vxpose.xlu0.b32.cont [6/16] 0.0, 128
    %2107 = vxpose.xlu0.b32.cont [7/16] 0.0, 128
    %2108 = vxpose.xlu0.b32.cont [8/16] 0.0, 128
    %2109 = vxpose.xlu0.b32.cont [9/16] 0.0, 128
    %2110 = vxpose.xlu0.b32.cont [10/16] 0.0, 128
    %2111 = vxpose.xlu0.b32.cont [11/16] 0.0, 128
    %2112 = vxpose.xlu0.b32.cont [12/16] 0.0, 128
    %2113 = vxpose.xlu0.b32.cont [13/16] 0.0, 128
    %2114 = vxpose.xlu0.b32.cont [14/16] 0.0, 128
    %2115 = vxpose.xlu0.b32.cont [15/16] 0.0, 128
    %2116 = vxpose.xlu0.b32.end [16/16] 0.0, 128
    %v2117 = vpop.trf.xlu0
    %v2118 = vpop.trf.xlu0
    %v2119 = vpop.trf.xlu0
    %v2120 = vpop.trf.xlu0
    %v2121 = vpop.trf.xlu0
    %v2122 = vpop.trf.xlu0
    %v2123 = vpop.trf.xlu0
    %v2124 = vpop.trf.xlu0
    %v2125 = vpop.trf.xlu0
    %v2126 = vpop.trf.xlu0
    %v2127 = vpop.trf.xlu0
    %v2128 = vpop.trf.xlu0
    %v2129 = vpop.trf.xlu0
    %v2130 = vpop.trf.xlu0
    %v2131 = vpop.trf.xlu0
    %v2132 = vpop.trf.xlu0
    %v2133 = vpack.c.bf16 %v2117, %v2117
    %2134 = vrot.lane.b32.xlu0 %v1805, 104
    %v2135 = vpop.permute.xlu0 %2134
    %v2137 = vsel %vm216, %v2135, 0
    %v2140 = vsel %vm220, %v2133, 0
    %2142 = vmatpush.bf16.msra.mxu0 0
    %2143 = vmatpush.bf16.msra.mxu0 0
    %2144 = vmatpush.bf16.msra.mxu0 0
    %2145 = vmatpush.bf16.msra.mxu0 0
    %2146 = vmatpush.bf16.msra.mxu0 0
    %2147 = vmatpush.bf16.msra.mxu0 0
    %2148 = vmatpush.bf16.msra.mxu0 0
    %2149 = vmatpush.bf16.msra.mxu0 %v2140
    %2150 = vmatmul.bf16.gmra.mxu0 %v2137
    %v2151 = vpop.f32.mrf.mxu0
    %v2152 = vadd.f32 0.0, %v2151
    %v2153 = vpop.f32.mrf.mxu0
    %2154 = vdwg.mxu0
    %v2155 = vmul.f32 %v2152, 0.35355338
    %v2156 = vadd.f32 %v2155, %v694
    %v2157 = vsel %vm216, %v2156, -inf
    %2158 = vmax.xlane.f32.xlu0 %v2157
    %v2159 = vpop.xlane.xlu0 %2158
    %v2160 = vsub.f32 %v2156, %v2159
    %v2161 = vmul.f32 %v2160, 1.442695
    %v2162 = vpow.pop %v2161
    %v2163 = vsel %vm216, %v2162, 0.0
    %2164 = vadd.xlane.f32.xlu0 %v2163
    %v2165 = vpop.xlane.xlu0 %2164
    %v2166 = vrcp.pop %v2165
    %v2167 = vmul.f32 %v2162, %v2166
    %v2168 = vpack.c.bf16 %v2167, %v2167
    %2169 = vrot.lane.b32.xlu0 %v1805, 40
    %v2170 = vpop.permute.xlu0 %2169
    %v2172 = vsel %vm216, %v2168, 0
    %v2175 = vsel %vm220, %v2170, 0
    %2177 = vmatpush.bf16.msra.mxu0 0
    %2178 = vmatpush.bf16.msra.mxu0 0
    %2179 = vmatpush.bf16.msra.mxu0 0
    %2180 = vmatpush.bf16.msra.mxu0 0
    %2181 = vmatpush.bf16.msra.mxu0 0
    %2182 = vmatpush.bf16.msra.mxu0 0
    %2183 = vmatpush.bf16.msra.mxu0 0
    %2184 = vmatpush.bf16.msra.mxu0 %v2175
    %2185 = vmatmul.bf16.gmra.mxu0 %v2172
    %v2186 = vpop.f32.mrf.mxu0
    %v2187 = vadd.f32 0.0, %v2186
    %v2188 = vpop.f32.mrf.mxu0
    %2189 = vdwg.mxu0
    %v2190 = vpack.c.bf16 %v2187, %v2187
    %v2192 = vsel %vm216, %v2190, 0
    %2194 = vmatpush.bf16.msra.mxu0 0
    %2195 = vmatpush.bf16.msra.mxu0 0
    %2196 = vmatpush.bf16.msra.mxu0 0
    %2197 = vmatpush.bf16.msra.mxu0 0
    %2198 = vmatpush.bf16.msra.mxu0 0
    %2199 = vmatpush.bf16.msra.mxu0 0
    %2200 = vmatpush.bf16.msra.mxu0 0
    %2201 = vmatpush.bf16.msra.mxu0 %v1753
    %2202 = vmatmul.bf16.gmra.mxu0 %v2192
    %v2203 = vpop.f32.mrf.mxu0
    %v2204 = vadd.f32 0.0, %v2203
    %v2205 = vpop.f32.mrf.mxu0
    %2206 = vdwg.mxu0
    %v2207 = vadd.f32 %v2097, %v2204
    %s2208 = scalar_lea.vmem %s7, 1
    %v2209 = vld [vmem:[%s2208] sm:$0x1]
    %v2211 = vperm.slane %v2209, 0
    %v2213 = vadd.f32 %v1768, %v2211
    %v2214 = vadd.f32 %v2207, %v2211
    %v2215 = vadd.f32 %v1277, %v2213
    %v2216 = vadd.f32 %v1278, %v2214
    %s2217 = scalar_lea.vmem %s8, 1
    %v2218 = vld [vmem:[%s2217] sm:$0x1]
    %s2219 = scalar_lea.vmem %s9, 1
    %v2220 = vld [vmem:[%s2219] sm:$0x1]
    %v2221 = vsel %vm81, %v2215, 0.0
    %2222 = vadd.xlane.f32.xlu0 %v2221
    %v2223 = vpop.xlane.xlu0 %2222
    %v2224 = vsel %vm81, %v2216, 0.0
    %2225 = vadd.xlane.f32.xlu0 %v2224
    %v2226 = vpop.xlane.xlu0 %2225
    %v2227 = vmul.f32 %v2223, %v94
    %v2228 = vmul.f32 %v2226, %v94
    %v2229 = vsub.f32 %v2215, %v2227
    %v2230 = vsub.f32 %v2216, %v2228
    %v2231 = vmul.f32 %v2229, %v2229
    %v2232 = vmul.f32 %v2230, %v2230
    %v2233 = vsel %vm81, %v2231, 0.0
    %2234 = vadd.xlane.f32.xlu0 %v2233
    %v2235 = vpop.xlane.xlu0 %2234
    %v2236 = vsel %vm81, %v2232, 0.0
    %2237 = vadd.xlane.f32.xlu0 %v2236
    %v2238 = vpop.xlane.xlu0 %2237
    %v2239 = vmul.f32 %v2235, %v94
    %v2240 = vmul.f32 %v2238, %v94
    %v2241 = vadd.f32 %v2239, 1e-12
    %v2242 = vadd.f32 %v2240, 1e-12
    %v2243 = vrsqrt.pop %v2241
    %v2244 = vmul.f32 %v2243, %v2241
    %v2245 = vmul.f32 %v2244, %v2243
    %v2246 = vmul.f32 0.5, %v2245
    %v2247 = vsub.f32 1.5, %v2246
    %v2248 = vmul.f32 %v2243, %v2247
    %vm2249 = vweird.f32 %v2241
    %vm2250 = vweird.f32 %v2243
    %vm2251 = vmor %vm2249, %vm2250
    %v2252 = vsel %vm2251, %v2243, %v2248
    %v2253 = vrsqrt.pop %v2242
    %v2254 = vmul.f32 %v2253, %v2242
    %v2255 = vmul.f32 %v2254, %v2253
    %v2256 = vmul.f32 0.5, %v2255
    %v2257 = vsub.f32 1.5, %v2256
    %v2258 = vmul.f32 %v2253, %v2257
    %vm2259 = vweird.f32 %v2242
    %vm2260 = vweird.f32 %v2253
    %vm2261 = vmor %vm2259, %vm2260
    %v2262 = vsel %vm2261, %v2253, %v2258
    %v2263 = vmul.f32 %v2229, %v2252
    %v2264 = vmul.f32 %v2230, %v2262
    %v2266 = vperm.slane %v2218, 0
    %v2268 = vmul.f32 %v2263, %v2266
    %v2269 = vmul.f32 %v2264, %v2266
    %v2271 = vperm.slane %v2220, 0
    %v2273 = vadd.f32 %v2268, %v2271
    %v2274 = vadd.f32 %v2269, %v2271
    %s2275 = scalar_lea.vmem %s10, 32
    %v2276 = vld [vmem:[%s2275] sm:$0xff]
    %v2277 = vld [vmem:[%s2275 + $0x8] sm:$0xff]
    %v2278 = vld [vmem:[%s2275 + $0x10] sm:$0xff]
    %v2279 = vld [vmem:[%s2275 + $0x18] sm:$0xff]
    %v2280 = vpack.c.bf16 %v2274, %v2273
    %v2281 = vpack.c.bf16 %v2277, %v2276
    %v2282 = vpack.c.bf16 %v2279, %v2278
    %s2283 = scalar_lea.vmem %s11, 1
    %v2284 = vld [vmem:[%s2283] sm:$0x1]
    %v2286 = vperm.slane %v2284, 0
    %v2289 = vsel %vm81, %v2280, 0
    %2291 = vmatpush.bf16.msra.mxu0 0
    %2292 = vmatpush.bf16.msra.mxu0 0
    %2293 = vmatpush.bf16.msra.mxu0 0
    %2294 = vmatpush.bf16.msra.mxu0 0
    %2295 = vmatpush.bf16.msra.mxu0 0
    %2296 = vmatpush.bf16.msra.mxu0 0
    %2297 = vmatpush.bf16.msra.mxu0 %v2282
    %2298 = vmatpush.bf16.msra.mxu0 %v2281
    %2299 = vmatmul.bf16.gmra.mxu0 %v2289
    %v2300 = vpop.f32.mrf.mxu0
    %v2301 = vadd.f32 %v2286, %v2300
    %v2302 = vpop.f32.mrf.mxu0
    %v2303 = vadd.f32 %v2286, %v2302
    %2304 = vdwg.mxu0
    %v2305 = vmul.f32 %v2301, 0.5
    %v2306 = vmul.f32 %v2303, 0.5
    %v2307 = vmul.f32 %v2301, 0.044715
    %v2308 = vmul.f32 %v2303, 0.044715
    %v2309 = vmul.f32 %v2307, %v2301
    %v2310 = vmul.f32 %v2308, %v2303
    %v2311 = vmul.f32 %v2309, %v2301
    %v2312 = vmul.f32 %v2310, %v2303
    %v2313 = vadd.f32 %v2301, %v2311
    %v2314 = vadd.f32 %v2303, %v2312
    %v2315 = vmul.f32 %v2313, 0.7978846
    %v2316 = vmul.f32 %v2314, 0.7978846
    %v2317 = vtanh.pop %v2315
    %v2318 = vtanh.pop %v2316
    %v2319 = vadd.f32 %v2317, 1.0
    %v2320 = vadd.f32 %v2318, 1.0
    %v2321 = vmul.f32 %v2305, %v2319
    %v2322 = vmul.f32 %v2306, %v2320
    %s2323 = scalar_lea.vmem %s12, 64
    %v2324 = vld [vmem:[%s2323] sm:$0xff]
    %v2325 = vld [vmem:[%s2323 + $0x8] sm:$0xff]
    %v2326 = vld [vmem:[%s2323 + $0x10] sm:$0xff]
    %v2327 = vld [vmem:[%s2323 + $0x18] sm:$0xff]
    %v2328 = vld [vmem:[%s2323 + $0x20] sm:$0xff]
    %v2329 = vld [vmem:[%s2323 + $0x28] sm:$0xff]
    %v2330 = vld [vmem:[%s2323 + $0x30] sm:$0xff]
    %v2331 = vld [vmem:[%s2323 + $0x38] sm:$0xff]
    %v2332 = vpack.c.bf16 %v2322, %v2321
    %v2333 = vpack.c.bf16 %v2325, %v2324
    %v2334 = vpack.c.bf16 %v2327, %v2326
    %v2335 = vpack.c.bf16 %v2329, %v2328
    %v2336 = vpack.c.bf16 %v2331, %v2330
    %s2337 = scalar_lea.vmem %s13, 1
    %v2338 = vld [vmem:[%s2337] sm:$0x1]
    %v2340 = vperm.slane %v2338, 0
    %v2343 = vsel %vm1203, %v2332, 0
    %2345 = vmatpush.bf16.msra.mxu0 0
    %2346 = vmatpush.bf16.msra.mxu0 0
    %2347 = vmatpush.bf16.msra.mxu0 0
    %2348 = vmatpush.bf16.msra.mxu0 0
    %2349 = vmatpush.bf16.msra.mxu0 %v2336
    %2350 = vmatpush.bf16.msra.mxu0 %v2335
    %2351 = vmatpush.bf16.msra.mxu0 %v2334
    %2352 = vmatpush.bf16.msra.mxu0 %v2333
    %2353 = vmatmul.bf16.gmra.mxu0 %v2343
    %v2354 = vpop.f32.mrf.mxu0
    %v2355 = vadd.f32 %v2340, %v2354
    %v2356 = vpop.f32.mrf.mxu0
    %v2357 = vadd.f32 %v2340, %v2356
    %2358 = vdwg.mxu0
    %v2359 = vadd.f32 %v2273, %v2355
    %v2360 = vadd.f32 %v2274, %v2357
    %s2361 = scalar_lea.vmem %s14, 1
    %v2362 = vld [vmem:[%s2361] sm:$0x1]
    %s2363 = scalar_lea.vmem %s15, 1
    %v2364 = vld [vmem:[%s2363] sm:$0x1]
    %v2365 = vsel %vm81, %v2359, 0.0
    %2366 = vadd.xlane.f32.xlu0 %v2365
    %v2367 = vpop.xlane.xlu0 %2366
    %v2368 = vsel %vm81, %v2360, 0.0
    %2369 = vadd.xlane.f32.xlu0 %v2368
    %v2370 = vpop.xlane.xlu0 %2369
    %v2371 = vmul.f32 %v2367, %v94
    %v2372 = vmul.f32 %v2370, %v94
    %v2373 = vsub.f32 %v2359, %v2371
    %v2374 = vsub.f32 %v2360, %v2372
    %v2375 = vmul.f32 %v2373, %v2373
    %v2376 = vmul.f32 %v2374, %v2374
    %v2377 = vsel %vm81, %v2375, 0.0
    %2378 = vadd.xlane.f32.xlu0 %v2377
    %v2379 = vpop.xlane.xlu0 %2378
    %v2380 = vsel %vm81, %v2376, 0.0
    %2381 = vadd.xlane.f32.xlu0 %v2380
    %v2382 = vpop.xlane.xlu0 %2381
    %v2383 = vmul.f32 %v2379, %v94
    %v2384 = vmul.f32 %v2382, %v94
    %v2385 = vadd.f32 %v2383, 1e-12
    %v2386 = vadd.f32 %v2384, 1e-12
    %v2387 = vrsqrt.pop %v2385
    %v2388 = vmul.f32 %v2387, %v2385
    %v2389 = vmul.f32 %v2388, %v2387
    %v2390 = vmul.f32 0.5, %v2389
    %v2391 = vsub.f32 1.5, %v2390
    %v2392 = vmul.f32 %v2387, %v2391
    %vm2393 = vweird.f32 %v2385
    %vm2394 = vweird.f32 %v2387
    %vm2395 = vmor %vm2393, %vm2394
    %v2396 = vsel %vm2395, %v2387, %v2392
    %v2397 = vrsqrt.pop %v2386
    %v2398 = vmul.f32 %v2397, %v2386
    %v2399 = vmul.f32 %v2398, %v2397
    %v2400 = vmul.f32 0.5, %v2399
    %v2401 = vsub.f32 1.5, %v2400
    %v2402 = vmul.f32 %v2397, %v2401
    %vm2403 = vweird.f32 %v2386
    %vm2404 = vweird.f32 %v2397
    %vm2405 = vmor %vm2403, %vm2404
    %v2406 = vsel %vm2405, %v2397, %v2402
    %v2407 = vmul.f32 %v2373, %v2396
    %v2408 = vmul.f32 %v2374, %v2406
    %v2410 = vperm.slane %v2362, 0
    %v2412 = vmul.f32 %v2407, %v2410
    %v2413 = vmul.f32 %v2408, %v2410
    %v2415 = vperm.slane %v2364, 0
    %v2417 = vadd.f32 %v2412, %v2415
    %v2418 = vadd.f32 %v2413, %v2415
    %2419 = vst.msk [vmem:[#allocation2] sm:$0xff] %vm81, %v2417
    %2420 = vst.msk [vmem:[#allocation2 + $0x8] sm:$0xff] %vm81, %v2418
    %v2422 = vrot.slane %v2418, 7
    %vm2424 = vcmask 1040384
    %v2425 = vsel %vm2424, %v2417, %v2422
    %v2426 = vld [vmem:[%s16] sm:$0xff]
    %v2427 = vld [vmem:[%s16 + $0x8] sm:$0xff]
    %v2428 = vld [vmem:[%s16 + $0x10] sm:$0xff]
    %v2429 = vld [vmem:[%s16 + $0x18] sm:$0xff]
    %v2430 = vpack.c.bf16 %v2425, %v2425
    %v2431 = vpack.c.bf16 %v2427, %v2426
    %v2432 = vpack.c.bf16 %v2429, %v2428
    %v2433 = vld [vmem:[%s17] sm:$0x1]
    %v2435 = vperm.slane %v2433, 0
    %v2438 = vsel %vm81, %v2430, 0
    %2440 = vmatpush.bf16.msra.mxu0 0
    %2441 = vmatpush.bf16.msra.mxu0 0
    %2442 = vmatpush.bf16.msra.mxu0 0
    %2443 = vmatpush.bf16.msra.mxu0 0
    %2444 = vmatpush.bf16.msra.mxu0 0
    %2445 = vmatpush.bf16.msra.mxu0 0
    %2446 = vmatpush.bf16.msra.mxu0 %v2432
    %2447 = vmatpush.bf16.msra.mxu0 %v2431
    %2448 = vmatmul.bf16.gmra.mxu0 %v2438
    %v2449 = vpop.f32.mrf.mxu0
    %v2450 = vadd.f32 %v2435, %v2449
    %v2451 = vpop.f32.mrf.mxu0
    %2452 = vdwg.mxu0
    %v2453 = vtanh.pop %v2450
    %v2454 = vld [vmem:[%s18] sm:$0xff]
    %v2455 = vld [vmem:[%s18 + $0x8] sm:$0xff]
    %v2456 = vld [vmem:[%s18 + $0x10] sm:$0xff]
    %v2457 = vld [vmem:[%s18 + $0x18] sm:$0xff]
    %v2458 = vpack.c.bf16 %v2453, %v2453
    %v2459 = vpack.c.bf16 %v2455, %v2454
    %v2460 = vpack.c.bf16 %v2457, %v2456
    %v2461 = vld [vmem:[%s19] sm:$0x1]
    %v2463 = vperm.slane %v2461, 0
    %v2466 = vsel %vm81, %v2458, 0
    %2468 = vmatpush.bf16.msra.mxu0 0
    %2469 = vmatpush.bf16.msra.mxu0 0
    %2470 = vmatpush.bf16.msra.mxu0 0
    %2471 = vmatpush.bf16.msra.mxu0 0
    %2472 = vmatpush.bf16.msra.mxu0 0
    %2473 = vmatpush.bf16.msra.mxu0 0
    %2474 = vmatpush.bf16.msra.mxu0 %v2460
    %2475 = vmatpush.bf16.msra.mxu0 %v2459
    %2476 = vmatmul.bf16.gmra.mxu0 %v2466
    %v2477 = vpop.f32.mrf.mxu0
    %v2478 = vadd.f32 %v2463, %v2477
    %v2479 = vpop.f32.mrf.mxu0
    %2480 = vdwg.mxu0
    %vm2481 = vcmask 17408
    %2482 = vst.msk [vmem:[%s23] sm:$0x3] %vm2481, %v2478
    %v2483 = vld [vmem:[%s20] sm:$0xff]
    %v2484 = vld [vmem:[%s20 + $0x8] sm:$0xff]
    %v2485 = vld [vmem:[%s20 + $0x10] sm:$0xff]
    %v2486 = vld [vmem:[%s20 + $0x18] sm:$0xff]
    %v2487 = vpack.c.bf16 %v2484, %v2483
    %v2488 = vpack.c.bf16 %v2486, %v2485
    %v2489 = vld [vmem:[%s21] sm:$0x1]
    %v2491 = vperm.slane %v2489, 0
    %2493 = vmatpush.bf16.msra.mxu0 0
    %2494 = vmatpush.bf16.msra.mxu0 0
    %2495 = vmatpush.bf16.msra.mxu0 0
    %2496 = vmatpush.bf16.msra.mxu0 0
    %2497 = vmatpush.bf16.msra.mxu0 0
    %2498 = vmatpush.bf16.msra.mxu0 0
    %2499 = vmatpush.bf16.msra.mxu0 %v2488
    %2500 = vmatpush.bf16.msra.mxu0 %v2487
    %2501 = vmatmul.bf16.gmra.mxu0 %v2438
    %v2502 = vpop.f32.mrf.mxu0
    %v2503 = vadd.f32 %v2491, %v2502
    %v2504 = vpop.f32.mrf.mxu0
    %2505 = vdwg.mxu0
    %v2506 = vxor.u32 %v2503, 2147483648
    %v2507 = vmul.f32 %v2506, 1.442695
    %v2508 = vpow.pop %v2507
    %v2509 = vadd.f32 %v2508, 1.0
    %v2510 = vrcp.pop %v2509
    %v2511 = vmul.f32 %v2509, %v2510
    %v2512 = vsub.f32 1.0, %v2511
    %v2513 = vmul.f32 %v2510, %v2512
    %v2514 = vadd.f32 %v2510, %v2513
    %vm2515 = vweird.f32 %v2509
    %vm2516 = vweird.f32 %v2510
    %vm2517 = vmor %vm2515, %vm2516
    %v2518 = vsel %vm2517, %v2510, %v2514
    %v2519 = vand.u32 2147483647, %v2509
    %vm2520 = vcmp.eq.f32.partialorder %v2519, 8.507059e+37
    %v2521 = vand.u32 %v2509, 2147483648
    %v2522 = vor.u32 1.1754944e-38, %v2521
    %v2523 = vsel %vm2520, %v2522, %v2518
    %v2524 = vmul.f32 1.0, %v2523
    %vm2525 = vcmask 58368
    %2526 = vst.msk [vmem:[#allocation4] sm:$0x3] %vm2525, %v2524
    // Predicated region
    $region90: #{run.3} parent=1 // pred_check
      _
    $region91: #{run.3} parent=1 // pred_check_branch
      %2528 = sbr.rel (0) target = $region93
    $region92: #{run.3} parent=1 // pred_region
      %2530 = vsyncadd [#allocation3], 0
      %s2531 = sshll.u32 [#allocation2], 4
      %s2532 = int_to_ptr.vmem [resolvable:$true] %s2531
      %s2533 = sshll.u32 %s22, 4
      %s2534 = int_to_ptr.hbm [resolvable:$true] %s2533
      %2539 = dma.vmem_to_hbm [thread:$0]  %s2532, 256, %s2534, [#allocation3], 128, 128, 8
    $region93: #{run.3} parent=1 // pred_fallthru
      _
    // Predicated region
    $region94: #{run.3} parent=1 // pred_check
      _
    $region95: #{run.3} parent=1 // pred_check_branch
      %2541 = sbr.rel (0) target = $region97
    $region96: #{run.3} parent=1 // pred_region
      _
    $region97: #{run.3} parent=1 // pred_fallthru
      _
    // Predicated region
    $region98: #{run.3} parent=1 // pred_check
      _
    $region99: #{run.3} parent=1 // pred_check_branch
      %2543 = sbr.rel (0) target = $region101
    $region100: #{run.3} parent=1 // pred_region
      %2545 = vsyncadd [#allocation5], 0
      %s2547 = sshll.u32 [#allocation4], 4
      %s2548 = int_to_ptr.vmem [resolvable:$true] %s2547
      %s2549 = sshll.u32 %s24, 4
      %s2550 = int_to_ptr.hbm [resolvable:$true] %s2549
      %2552 = dma.vmem_to_hbm [thread:$0]  %s2548, 32, %s2550, [#allocation5]
    $region101: #{run.3} parent=1 // pred_fallthru
      _
    // Predicated region
    $region102: #{run.3} parent=1 // pred_check
      _
    $region103: #{run.3} parent=1 // pred_check_branch
      %2554 = sbr.rel (0) target = $region105
    $region104: #{run.3} parent=1 // pred_region
      %2556 = dma.done [#allocation3], 256
    $region105: #{run.3} parent=1 // pred_fallthru
      _
    // Predicated region
    $region106: #{run.3} parent=1 // pred_check
      _
    $region107: #{run.3} parent=1 // pred_check_branch
      %2558 = sbr.rel (0) target = $region109
    $region108: #{run.3} parent=1 // pred_region
      _
    $region109: #{run.3} parent=1 // pred_fallthru
      _
    // Predicated region
    $region110: #{run.3} parent=1 // pred_check
      _
    $region111: #{run.3} parent=1 // pred_check_branch
      %2560 = sbr.rel (0) target = $region113
    $region112: #{run.3} parent=1 // pred_region
      %2562 = dma.done [#allocation5], 32
    $region113: #{run.3} parent=1 // pred_fallthru
      _
    %2563 = vsyncpa [#allocation3], 1
    %2564 = vsyncpa [#allocation5], 1

</llo_original>
